<compile_context>
chip_gen: v7x
topology: tpu7x:2x2x1
jax: 0.10.0
libtpu: 0.0.40
codegen_flags: <defaults>
</compile_context>

<pallas_src>
import jax
import jax.numpy as jnp
from jax.experimental import pallas as pl
from jax.experimental.pallas import tpu as pltpu

NUM_HEADS = 2      # head_dim = HIDDEN // NUM_HEADS; chosen so head_dim == 128
LN_EPS = 1e-5


# ---------------------------------------------------------------------------
# Pallas kernel: grid step l applies transformer block l to the resident
# hidden state (kept in the output VMEM block across the whole grid).
# ---------------------------------------------------------------------------
def stacked_blocks_kernel(x_ref,
                          ln1_g_ref, ln1_b_ref,
                          wqkv_ref, wo_ref,
                          ln2_g_ref, ln2_b_ref,
                          w1_ref, b1_ref, w2_ref, b2_ref,
                          o_ref):
    layer = pl.program_id(0)

    # Load the initial hidden state into the resident output block once.
    @pl.when(layer == 0)
    def _():
        o_ref[...] = x_ref[...]

    x = o_ref[...].astype(jnp.float32)               # [B, S, H]
    B, S, H = x.shape
    hd = H // NUM_HEADS
    x2 = x.reshape(B * S, H)                         # leading-dim merge: free

    def layernorm(v, g_ref, b_ref):                  # f32 statistics
        mu = jnp.mean(v, axis=-1, keepdims=True)
        var = jnp.mean(jnp.square(v - mu), axis=-1, keepdims=True)
        return (v - mu) * jax.lax.rsqrt(var + LN_EPS) * g_ref[...] + b_ref[...]

    # ---- attention sub-block (pre-LN) --------------------------------------
    xn = layernorm(x2, ln1_g_ref, ln1_b_ref)         # [B*S, H]

    # Fused QKV projection: [B*S,H] @ [H,3H]; bf16 operands, f32 accumulate,
    # then a single rounding back to bf16 for the score/context matmuls.
    qkv = jnp.dot(xn.astype(jnp.bfloat16), wqkv_ref[...],
                  preferred_element_type=jnp.float32).astype(jnp.bfloat16)
    qkv = qkv.reshape(B, S, 3 * H)                   # [B, S, 3H]

    wo = wo_ref[...]                                 # [H, H] bf16
    attn = jnp.zeros((B * S, H), jnp.float32)
    for h in range(NUM_HEADS):                       # static loop; 128-aligned slices
        lo = h * hd
        q_h = qkv[:, :, lo:lo + hd]                          # [B, S, hd] bf16
        k_h = qkv[:, :, H + lo:H + lo + hd]                  # [B, S, hd]
        v_h = qkv[:, :, 2 * H + lo:2 * H + lo + hd]          # [B, S, hd]

        # Scores; the 1/sqrt(hd) scale was folded into the Q weights at init.
        s = jnp.einsum('bqd,bkd->bqk', q_h, k_h,
                       preferred_element_type=jnp.float32)   # [B, S, S]
        s = s - jnp.max(s, axis=-1, keepdims=True)
        p = jnp.exp(s)
        p = p * pl.reciprocal(jnp.sum(p, axis=-1, keepdims=True), approx=True)

        ctx = jnp.einsum('bqk,bkd->bqd', p.astype(jnp.bfloat16), v_h,
                         preferred_element_type=jnp.float32)  # [B, S, hd]
        # Per-head slice of the output projection -> no lane-axis concat.
        attn = attn + jnp.dot(ctx.reshape(B * S, hd).astype(jnp.bfloat16),
                              wo[lo:lo + hd, :],
                              preferred_element_type=jnp.float32)

    h1 = x2 + attn                                   # [B*S, H] f32

    # ---- MLP sub-block (pre-LN) --------------------------------------------
    h1n = layernorm(h1, ln2_g_ref, ln2_b_ref)
    ff = jnp.dot(h1n.astype(jnp.bfloat16), w1_ref[...],
                 preferred_element_type=jnp.float32) + b1_ref[...]
    ff = jax.nn.gelu(ff)                             # f32 (tanh approx, HF gelu_new)
    ff = jnp.dot(ff.astype(jnp.bfloat16), w2_ref[...],
                 preferred_element_type=jnp.float32) + b2_ref[...]

    # Carry the hidden state (bf16, like the reference module outputs) to the
    # next layer via the resident output block; HBM writeback happens once,
    # after the last grid step.
    o_ref[...] = (h1 + ff).reshape(B, S, H).astype(o_ref.dtype)


# ---------------------------------------------------------------------------
# Wrapper: one fused pallas_call over all layers.
# ---------------------------------------------------------------------------
def hf_model_list_forward(hidden, stacked_params):
    # mirrors:  for module in self.module_list: hidden = module(hidden)[0]
    B, S, H = hidden.shape
    L = stacked_params["wqkv"].shape[0]
    F = stacked_params["w1"].shape[2]

    # Hidden: full-array block, constant index -> DMA'd in once / out once.
    hid_spec = pl.BlockSpec((B, S, H), lambda l: (0, 0, 0))

    def wspec(shape):
        # Per-layer weight slab, squeezed layer dim, indexed by the grid step
        # -> double-buffered prefetch of layer l+1 while layer l computes.
        return pl.BlockSpec((pl.Squeezed(),) + shape,
                            lambda l, _n=len(shape): (l,) + (0,) * _n)

    in_specs = [
        hid_spec,                                    # hidden   [B, S, H]
        wspec((1, H)), wspec((1, H)),                # ln1 gamma / beta (f32)
        wspec((H, 3 * H)), wspec((H, H)),            # wqkv, wo (bf16)
        wspec((1, H)), wspec((1, H)),                # ln2 gamma / beta (f32)
        wspec((H, F)), wspec((1, F)),                # w1, b1
        wspec((F, H)), wspec((1, H)),                # w2, b2
    ]

    return pl.pallas_call(
        stacked_blocks_kernel,
        out_shape=jax.ShapeDtypeStruct((B, S, H), hidden.dtype),
        grid=(L,),
        in_specs=in_specs,
        out_specs=hid_spec,
        input_output_aliases={0: 0},                 # hidden updated in place
        compiler_params=pltpu.CompilerParams(
            dimension_semantics=("arbitrary",),      # serial layer dependence
            vmem_limit_bytes=32 * 1024 * 1024),
    )(hidden,
      stacked_params["ln1_g"], stacked_params["ln1_b"],
      stacked_params["wqkv"], stacked_params["wo"],
      stacked_params["ln2_g"], stacked_params["ln2_b"],
      stacked_params["w1"], stacked_params["b1"],
      stacked_params["w2"], stacked_params["b2"])


# ---------------------------------------------------------------------------
# Deterministic parameter construction (synthetic "module_list").
# ---------------------------------------------------------------------------
def init_block_params(key, hidden_dim, ffn_dim, num_heads, dtype=jnp.bfloat16):
    ks = jax.random.split(key, 6)
    std = 0.02
    hd = hidden_dim // num_heads
    scale = 1.0 / (hd ** 0.5)
    wq = jax.random.normal(ks[0], (hidden_dim, hidden_dim), jnp.float32) * std
    wk = jax.random.normal(ks[1], (hidden_dim, hidden_dim), jnp.float32) * std
    wv = jax.random.normal(ks[2], (hidden_dim, hidden_dim), jnp.float32) * std
    return {
        "ln1_g": jnp.ones((1, hidden_dim), jnp.float32),
        "ln1_b": jnp.zeros((1, hidden_dim), jnp.float32),
        # Fused QKV with the attention scale folded into the Q columns at init.
        "wqkv": jnp.concatenate([wq * scale, wk, wv], axis=1).astype(dtype),
        "wo": (jax.random.normal(ks[3], (hidden_dim, hidden_dim), jnp.float32)
               * std).astype(dtype),
        "ln2_g": jnp.ones((1, hidden_dim), jnp.float32),
        "ln2_b": jnp.zeros((1, hidden_dim), jnp.float32),
        "w1": (jax.random.normal(ks[4], (hidden_dim, ffn_dim), jnp.float32)
               * std).astype(dtype),
        "b1": jnp.zeros((1, ffn_dim), jnp.float32),
        "w2": (jax.random.normal(ks[5], (ffn_dim, hidden_dim), jnp.float32)
               * std).astype(dtype),
        "b2": jnp.zeros((1, hidden_dim), jnp.float32),
    }


def stack_layer_params(params_list):
    # [per-layer dict, ...] -> dict of arrays with a leading layer axis.
    return jax.tree_util.tree_map(lambda *xs: jnp.stack(xs, axis=0),
                                  *params_list)


if __name__ == "__main__":
    B, S, H = 2, 128, 256        # MXU/lane-aligned demo sizes (head_dim = 128)
    FFN = 4 * H
    NUM_LAYERS = 2

    key = jax.random.PRNGKey(0)
    k_hidden, *k_layers = jax.random.split(key, NUM_LAYERS + 1)

    hidden = jax.random.normal(k_hidden, (B, S, H), jnp.bfloat16)
    params_list = [init_block_params(k, H, FFN, NUM_HEADS) for k in k_layers]
    stacked_params = stack_layer_params(params_list)

    fwd = jax.jit(hf_model_list_forward)
    out = jax.block_until_ready(fwd(hidden, stacked_params))

    assert out.shape == (B, S, H) and out.dtype == jnp.bfloat16
    assert bool(jnp.all(jnp.isfinite(out.astype(jnp.float32))))
    print("KERNEL_OK")
</pallas_src>

<mosaic_0001>
module attributes {stable_mosaic.version = 11 : i64} {
  func.func @stacked_blocks_kernel(%arg0: i32, %arg1: memref<2x128x256xbf16, #tpu.memory_space<vmem>>, %arg2: memref<1x1x256xf32, #tpu.memory_space<vmem>>, %arg3: memref<1x1x256xf32, #tpu.memory_space<vmem>>, %arg4: memref<1x256x768xbf16, #tpu.memory_space<vmem>>, %arg5: memref<1x256x256xbf16, #tpu.memory_space<vmem>>, %arg6: memref<1x1x256xf32, #tpu.memory_space<vmem>>, %arg7: memref<1x1x256xf32, #tpu.memory_space<vmem>>, %arg8: memref<1x256x1024xbf16, #tpu.memory_space<vmem>>, %arg9: memref<1x1x1024xf32, #tpu.memory_space<vmem>>, %arg10: memref<1x1024x256xbf16, #tpu.memory_space<vmem>>, %arg11: memref<1x1x256xf32, #tpu.memory_space<vmem>>, %arg12: memref<2x128x256xbf16, #tpu.memory_space<vmem>>) attributes {dimension_semantics = [#tpu.dimension_semantics<arbitrary>], iteration_bounds = array<i64: 2>, scalar_prefetch = 0 : i64, scratch_operands = 0 : i64, tpu.core_type = #tpu.core_type<tc>, window_params = [{pipeline_mode = #tpu.pipeline_mode<synchronous>, transform_indices = @transform_0, window_bounds = array<i64: 2, 128, 256>}, {transform_indices = @transform_1, window_bounds = array<i64: 1, 1, 256>}, {transform_indices = @transform_2, window_bounds = array<i64: 1, 1, 256>}, {transform_indices = @transform_3, window_bounds = array<i64: 1, 256, 768>}, {transform_indices = @transform_4, window_bounds = array<i64: 1, 256, 256>}, {transform_indices = @transform_5, window_bounds = array<i64: 1, 1, 256>}, {transform_indices = @transform_6, window_bounds = array<i64: 1, 1, 256>}, {transform_indices = @transform_7, window_bounds = array<i64: 1, 256, 1024>}, {transform_indices = @transform_8, window_bounds = array<i64: 1, 1, 1024>}, {transform_indices = @transform_9, window_bounds = array<i64: 1, 1024, 256>}, {transform_indices = @transform_10, window_bounds = array<i64: 1, 1, 256>}, {pipeline_mode = #tpu.pipeline_mode<synchronous>, transform_indices = @transform_11, window_bounds = array<i64: 2, 128, 256>}]} {
    %c0_i32 = arith.constant 0 : i32
    %0 = arith.cmpi eq, %arg0, %c0_i32 : i32
    %1 = arith.extui %0 : i1 to i32
    %c0_i32_0 = arith.constant 0 : i32
    %2 = arith.cmpi ne, %1, %c0_i32_0 : i32
    scf.if %2 {
      %c0_63 = arith.constant 0 : index
      %c0_64 = arith.constant 0 : index
      %c0_65 = arith.constant 0 : index
      %143 = vector.load %arg1[%c0_63, %c0_64, %c0_65] : memref<2x128x256xbf16, #tpu.memory_space<vmem>>, vector<2x128x256xbf16>
      %c0_66 = arith.constant 0 : index
      %c0_67 = arith.constant 0 : index
      %c0_68 = arith.constant 0 : index
      %144 = vector.load %arg12[%c0_66, %c0_67, %c0_68] : memref<2x128x256xbf16, #tpu.memory_space<vmem>>, vector<2x128x256xbf16>
      tpu.vector_store %arg12[%c0_66, %c0_67, %c0_68], %143 {strides = array<i32>} : memref<2x128x256xbf16, #tpu.memory_space<vmem>>, vector<2x128x256xbf16>,
    } else {
    }
    %c0 = arith.constant 0 : index
    %c0_1 = arith.constant 0 : index
    %c0_2 = arith.constant 0 : index
    %3 = vector.load %arg12[%c0, %c0_1, %c0_2] : memref<2x128x256xbf16, #tpu.memory_space<vmem>>, vector<2x128x256xbf16>
    %4 = arith.extf %3 : vector<2x128x256xbf16> to vector<2x128x256xf32>
    %5 = vector.shape_cast %4 : vector<2x128x256xf32> to vector<256x256xf32>
    %cst = arith.constant dense<0.000000e+00> : vector<256xf32>
    %6 = vector.multi_reduction <add>, %5, %cst [1] : vector<256x256xf32> to vector<256xf32>
    %7 = vector.shape_cast %6 : vector<256xf32> to vector<256x1xf32>
    %cst_3 = arith.constant 2.560000e+02 : f32
    %8 = vector.broadcast %cst_3 : f32 to vector<256x1xf32>
    %9 = arith.divf %7, %8 : vector<256x1xf32>
    %10 = vector.broadcast %9 : vector<256x1xf32> to vector<256x256xf32>
    %11 = arith.subf %5, %10 : vector<256x256xf32>
    %12 = arith.mulf %11, %11 : vector<256x256xf32>
    %cst_4 = arith.constant dense<0.000000e+00> : vector<256xf32>
    %13 = vector.multi_reduction <add>, %12, %cst_4 [1] : vector<256x256xf32> to vector<256xf32>
    %14 = vector.shape_cast %13 : vector<256xf32> to vector<256x1xf32>
    %cst_5 = arith.constant 2.560000e+02 : f32
    %15 = vector.broadcast %cst_5 : f32 to vector<256x1xf32>
    %16 = arith.divf %14, %15 : vector<256x1xf32>
    %17 = vector.broadcast %9 : vector<256x1xf32> to vector<256x256xf32>
    %18 = arith.subf %5, %17 : vector<256x256xf32>
    %cst_6 = arith.constant 9.99999974E-6 : f32
    %19 = vector.broadcast %cst_6 : f32 to vector<256x1xf32>
    %20 = arith.addf %16, %19 : vector<256x1xf32>
    %21 = math.rsqrt %20 : vector<256x1xf32>
    %22 = vector.broadcast %21 : vector<256x1xf32> to vector<256x256xf32>
    %23 = arith.mulf %18, %22 : vector<256x256xf32>
    %c0_7 = arith.constant 0 : index
    %c0_8 = arith.constant 0 : index
    %c0_9 = arith.constant 0 : index
    %24 = vector.load %arg2[%c0_7, %c0_8, %c0_9] : memref<1x1x256xf32, #tpu.memory_space<vmem>>, vector<1x1x256xf32>
    %25 = vector.shape_cast %24 : vector<1x1x256xf32> to vector<1x256xf32>
    %26 = vector.broadcast %25 : vector<1x256xf32> to vector<256x256xf32>
    %27 = arith.mulf %23, %26 : vector<256x256xf32>
    %c0_10 = arith.constant 0 : index
    %c0_11 = arith.constant 0 : index
    %c0_12 = arith.constant 0 : index
    %28 = vector.load %arg3[%c0_10, %c0_11, %c0_12] : memref<1x1x256xf32, #tpu.memory_space<vmem>>, vector<1x1x256xf32>
    %29 = vector.shape_cast %28 : vector<1x1x256xf32> to vector<1x256xf32>
    %30 = vector.broadcast %29 : vector<1x256xf32> to vector<256x256xf32>
    %31 = arith.addf %27, %30 : vector<256x256xf32>
    %32 = arith.truncf %31 : vector<256x256xf32> to vector<256x256xbf16>
    %c0_13 = arith.constant 0 : index
    %c0_14 = arith.constant 0 : index
    %c0_15 = arith.constant 0 : index
    %33 = vector.load %arg4[%c0_13, %c0_14, %c0_15] : memref<1x256x768xbf16, #tpu.memory_space<vmem>>, vector<1x256x768xbf16>
    %34 = vector.shape_cast %33 : vector<1x256x768xbf16> to vector<256x768xbf16>
    %cst_16 = arith.constant dense<0.000000e+00> : vector<256x768xf32>
    %35 = tpu.matmul %32, %34, %cst_16 {dimension_numbers = #tpu.dot_dimension_numbers<[1], [0], [0], [1], [0, 0, 1, 1], [], []>} : vector<256x256xbf16>, vector<256x768xbf16>, vector<256x768xf32> -> vector<256x768xf32>
    %36 = arith.truncf %35 : vector<256x768xf32> to vector<256x768xbf16>
    %37 = vector.shape_cast %36 : vector<256x768xbf16> to vector<2x128x768xbf16>
    %c0_17 = arith.constant 0 : index
    %c0_18 = arith.constant 0 : index
    %c0_19 = arith.constant 0 : index
    %38 = vector.load %arg5[%c0_17, %c0_18, %c0_19] : memref<1x256x256xbf16, #tpu.memory_space<vmem>>, vector<1x256x256xbf16>
    %39 = vector.shape_cast %38 : vector<1x256x256xbf16> to vector<256x256xbf16>
    %cst_20 = arith.constant 0.000000e+00 : f32
    %40 = vector.broadcast %cst_20 : f32 to vector<256x256xf32>
    %41 = vector.extract_strided_slice %37 {offsets = [0, 0, 0], sizes = [2, 128, 128], strides = [1, 1, 1]} : vector<2x128x768xbf16> to vector<2x128x128xbf16>
    %42 = vector.extract_strided_slice %37 {offsets = [0, 0, 256], sizes = [2, 128, 128], strides = [1, 1, 1]} : vector<2x128x768xbf16> to vector<2x128x128xbf16>
    %43 = vector.extract_strided_slice %37 {offsets = [0, 0, 512], sizes = [2, 128, 128], strides = [1, 1, 1]} : vector<2x128x768xbf16> to vector<2x128x128xbf16>
    "tpu.trace_start"() <{level = 10 : i32, message = "bqd,bkd->bqk"}> : () -> ()
    %cst_21 = arith.constant dense<0.000000e+00> : vector<2x128x128xf32>
    %44 = tpu.matmul %41, %42, %cst_21 {dimension_numbers = #tpu.dot_dimension_numbers<[2], [2], [1], [1], [0, 0, 0, 1, 1, 1], [0], [0]>} : vector<2x128x128xbf16>, vector<2x128x128xbf16>, vector<2x128x128xf32> -> vector<2x128x128xf32>
    "tpu.trace_stop"() : () -> ()
    %cst_22 = arith.constant dense<0xFF800000> : vector<2x128xf32>
    %45 = vector.multi_reduction <maximumf>, %44, %cst_22 [2] : vector<2x128x128xf32> to vector<2x128xf32>
    %46 = vector.shape_cast %45 : vector<2x128xf32> to vector<2x128x1xf32>
    %47 = vector.broadcast %46 : vector<2x128x1xf32> to vector<2x128x128xf32>
    %48 = arith.subf %44, %47 : vector<2x128x128xf32>
    %49 = math.exp %48 : vector<2x128x128xf32>
    %cst_23 = arith.constant dense<0.000000e+00> : vector<2x128xf32>
    %50 = vector.multi_reduction <add>, %49, %cst_23 [2] : vector<2x128x128xf32> to vector<2x128xf32>
    %51 = vector.shape_cast %50 : vector<2x128xf32> to vector<2x128x1xf32>
    %52 = tpu.reciprocal %51 {approx = true} : vector<2x128x1xf32> -> vector<2x128x1xf32>
    %53 = vector.broadcast %52 : vector<2x128x1xf32> to vector<2x128x128xf32>
    %54 = arith.mulf %49, %53 : vector<2x128x128xf32>
    %55 = arith.truncf %54 : vector<2x128x128xf32> to vector<2x128x128xbf16>
    "tpu.trace_start"() <{level = 10 : i32, message = "bqk,bkd->bqd"}> : () -> ()
    %cst_24 = arith.constant dense<0.000000e+00> : vector<2x128x128xf32>
    %56 = tpu.matmul %55, %43, %cst_24 {dimension_numbers = #tpu.dot_dimension_numbers<[2], [1], [1], [2], [0, 0, 0, 1, 1, 2], [0], [0]>} : vector<2x128x128xbf16>, vector<2x128x128xbf16>, vector<2x128x128xf32> -> vector<2x128x128xf32>
    "tpu.trace_stop"() : () -> ()
    %57 = vector.shape_cast %56 : vector<2x128x128xf32> to vector<256x128xf32>
    %58 = arith.truncf %57 : vector<256x128xf32> to vector<256x128xbf16>
    %59 = vector.extract_strided_slice %39 {offsets = [0, 0], sizes = [128, 256], strides = [1, 1]} : vector<256x256xbf16> to vector<128x256xbf16>
    %cst_25 = arith.constant dense<0.000000e+00> : vector<256x256xf32>
    %60 = tpu.matmul %58, %59, %cst_25 {dimension_numbers = #tpu.dot_dimension_numbers<[1], [0], [0], [1], [0, 0, 1, 1], [], []>} : vector<256x128xbf16>, vector<128x256xbf16>, vector<256x256xf32> -> vector<256x256xf32>
    %61 = arith.addf %40, %60 : vector<256x256xf32>
    %62 = vector.extract_strided_slice %37 {offsets = [0, 0, 128], sizes = [2, 128, 128], strides = [1, 1, 1]} : vector<2x128x768xbf16> to vector<2x128x128xbf16>
    %63 = vector.extract_strided_slice %37 {offsets = [0, 0, 384], sizes = [2, 128, 128], strides = [1, 1, 1]} : vector<2x128x768xbf16> to vector<2x128x128xbf16>
    %64 = vector.extract_strided_slice %37 {offsets = [0, 0, 640], sizes = [2, 128, 128], strides = [1, 1, 1]} : vector<2x128x768xbf16> to vector<2x128x128xbf16>
    "tpu.trace_start"() <{level = 10 : i32, message = "bqd,bkd->bqk"}> : () -> ()
    %cst_26 = arith.constant dense<0.000000e+00> : vector<2x128x128xf32>
    %65 = tpu.matmul %62, %63, %cst_26 {dimension_numbers = #tpu.dot_dimension_numbers<[2], [2], [1], [1], [0, 0, 0, 1, 1, 1], [0], [0]>} : vector<2x128x128xbf16>, vector<2x128x128xbf16>, vector<2x128x128xf32> -> vector<2x128x128xf32>
    "tpu.trace_stop"() : () -> ()
    %cst_27 = arith.constant dense<0xFF800000> : vector<2x128xf32>
    %66 = vector.multi_reduction <maximumf>, %65, %cst_27 [2] : vector<2x128x128xf32> to vector<2x128xf32>
    %67 = vector.shape_cast %66 : vector<2x128xf32> to vector<2x128x1xf32>
    %68 = vector.broadcast %67 : vector<2x128x1xf32> to vector<2x128x128xf32>
    %69 = arith.subf %65, %68 : vector<2x128x128xf32>
    %70 = math.exp %69 : vector<2x128x128xf32>
    %cst_28 = arith.constant dense<0.000000e+00> : vector<2x128xf32>
    %71 = vector.multi_reduction <add>, %70, %cst_28 [2] : vector<2x128x128xf32> to vector<2x128xf32>
    %72 = vector.shape_cast %71 : vector<2x128xf32> to vector<2x128x1xf32>
    %73 = tpu.reciprocal %72 {approx = true} : vector<2x128x1xf32> -> vector<2x128x1xf32>
    %74 = vector.broadcast %73 : vector<2x128x1xf32> to vector<2x128x128xf32>
    %75 = arith.mulf %70, %74 : vector<2x128x128xf32>
    %76 = arith.truncf %75 : vector<2x128x128xf32> to vector<2x128x128xbf16>
    "tpu.trace_start"() <{level = 10 : i32, message = "bqk,bkd->bqd"}> : () -> ()
    %cst_29 = arith.constant dense<0.000000e+00> : vector<2x128x128xf32>
    %77 = tpu.matmul %76, %64, %cst_29 {dimension_numbers = #tpu.dot_dimension_numbers<[2], [1], [1], [2], [0, 0, 0, 1, 1, 2], [0], [0]>} : vector<2x128x128xbf16>, vector<2x128x128xbf16>, vector<2x128x128xf32> -> vector<2x128x128xf32>
    "tpu.trace_stop"() : () -> ()
    %78 = vector.shape_cast %77 : vector<2x128x128xf32> to vector<256x128xf32>
    %79 = arith.truncf %78 : vector<256x128xf32> to vector<256x128xbf16>
    %80 = vector.extract_strided_slice %39 {offsets = [128, 0], sizes = [128, 256], strides = [1, 1]} : vector<256x256xbf16> to vector<128x256xbf16>
    %cst_30 = arith.constant dense<0.000000e+00> : vector<256x256xf32>
    %81 = tpu.matmul %79, %80, %cst_30 {dimension_numbers = #tpu.dot_dimension_numbers<[1], [0], [0], [1], [0, 0, 1, 1], [], []>} : vector<256x128xbf16>, vector<128x256xbf16>, vector<256x256xf32> -> vector<256x256xf32>
    %82 = arith.addf %61, %81 : vector<256x256xf32>
    %83 = arith.addf %5, %82 : vector<256x256xf32>
    %cst_31 = arith.constant dense<0.000000e+00> : vector<256xf32>
    %84 = vector.multi_reduction <add>, %83, %cst_31 [1] : vector<256x256xf32> to vector<256xf32>
    %85 = vector.shape_cast %84 : vector<256xf32> to vector<256x1xf32>
    %cst_32 = arith.constant 2.560000e+02 : f32
    %86 = vector.broadcast %cst_32 : f32 to vector<256x1xf32>
    %87 = arith.divf %85, %86 : vector<256x1xf32>
    %88 = vector.broadcast %87 : vector<256x1xf32> to vector<256x256xf32>
    %89 = arith.subf %83, %88 : vector<256x256xf32>
    %90 = arith.mulf %89, %89 : vector<256x256xf32>
    %cst_33 = arith.constant dense<0.000000e+00> : vector<256xf32>
    %91 = vector.multi_reduction <add>, %90, %cst_33 [1] : vector<256x256xf32> to vector<256xf32>
    %92 = vector.shape_cast %91 : vector<256xf32> to vector<256x1xf32>
    %cst_34 = arith.constant 2.560000e+02 : f32
    %93 = vector.broadcast %cst_34 : f32 to vector<256x1xf32>
    %94 = arith.divf %92, %93 : vector<256x1xf32>
    %95 = vector.broadcast %87 : vector<256x1xf32> to vector<256x256xf32>
    %96 = arith.subf %83, %95 : vector<256x256xf32>
    %cst_35 = arith.constant 9.99999974E-6 : f32
    %97 = vector.broadcast %cst_35 : f32 to vector<256x1xf32>
    %98 = arith.addf %94, %97 : vector<256x1xf32>
    %99 = math.rsqrt %98 : vector<256x1xf32>
    %100 = vector.broadcast %99 : vector<256x1xf32> to vector<256x256xf32>
    %101 = arith.mulf %96, %100 : vector<256x256xf32>
    %c0_36 = arith.constant 0 : index
    %c0_37 = arith.constant 0 : index
    %c0_38 = arith.constant 0 : index
    %102 = vector.load %arg6[%c0_36, %c0_37, %c0_38] : memref<1x1x256xf32, #tpu.memory_space<vmem>>, vector<1x1x256xf32>
    %103 = vector.shape_cast %102 : vector<1x1x256xf32> to vector<1x256xf32>
    %104 = vector.broadcast %103 : vector<1x256xf32> to vector<256x256xf32>
    %105 = arith.mulf %101, %104 : vector<256x256xf32>
    %c0_39 = arith.constant 0 : index
    %c0_40 = arith.constant 0 : index
    %c0_41 = arith.constant 0 : index
    %106 = vector.load %arg7[%c0_39, %c0_40, %c0_41] : memref<1x1x256xf32, #tpu.memory_space<vmem>>, vector<1x1x256xf32>
    %107 = vector.shape_cast %106 : vector<1x1x256xf32> to vector<1x256xf32>
    %108 = vector.broadcast %107 : vector<1x256xf32> to vector<256x256xf32>
    %109 = arith.addf %105, %108 : vector<256x256xf32>
    %110 = arith.truncf %109 : vector<256x256xf32> to vector<256x256xbf16>
    %c0_42 = arith.constant 0 : index
    %c0_43 = arith.constant 0 : index
    %c0_44 = arith.constant 0 : index
    %111 = vector.load %arg8[%c0_42, %c0_43, %c0_44] : memref<1x256x1024xbf16, #tpu.memory_space<vmem>>, vector<1x256x1024xbf16>
    %112 = vector.shape_cast %111 : vector<1x256x1024xbf16> to vector<256x1024xbf16>
    %cst_45 = arith.constant dense<0.000000e+00> : vector<256x1024xf32>
    %113 = tpu.matmul %110, %112, %cst_45 {dimension_numbers = #tpu.dot_dimension_numbers<[1], [0], [0], [1], [0, 0, 1, 1], [], []>} : vector<256x256xbf16>, vector<256x1024xbf16>, vector<256x1024xf32> -> vector<256x1024xf32>
    %c0_46 = arith.constant 0 : index
    %c0_47 = arith.constant 0 : index
    %c0_48 = arith.constant 0 : index
    %114 = vector.load %arg9[%c0_46, %c0_47, %c0_48] : memref<1x1x1024xf32, #tpu.memory_space<vmem>>, vector<1x1x1024xf32>
    %115 = vector.shape_cast %114 : vector<1x1x1024xf32> to vector<1x1024xf32>
    %116 = vector.broadcast %115 : vector<1x1024xf32> to vector<256x1024xf32>
    %117 = arith.addf %113, %116 : vector<256x1024xf32>
    %118 = arith.mulf %117, %117 : vector<256x1024xf32>
    %119 = arith.mulf %117, %118 : vector<256x1024xf32>
    %cst_49 = arith.constant 4.471500e-02 : f32
    %120 = vector.broadcast %cst_49 : f32 to vector<256x1024xf32>
    %121 = arith.mulf %120, %119 : vector<256x1024xf32>
    %122 = arith.addf %117, %121 : vector<256x1024xf32>
    %cst_50 = arith.constant 0.797884583 : f32
    %123 = vector.broadcast %cst_50 : f32 to vector<256x1024xf32>
    %124 = arith.mulf %123, %122 : vector<256x1024xf32>
    %125 = math.tanh %124 : vector<256x1024xf32>
    %cst_51 = arith.constant 1.000000e+00 : f32
    %126 = vector.broadcast %cst_51 : f32 to vector<256x1024xf32>
    %127 = arith.addf %126, %125 : vector<256x1024xf32>
    %cst_52 = arith.constant 5.000000e-01 : f32
    %128 = vector.broadcast %cst_52 : f32 to vector<256x1024xf32>
    %129 = arith.mulf %128, %127 : vector<256x1024xf32>
    %130 = arith.mulf %117, %129 : vector<256x1024xf32>
    %131 = arith.truncf %130 : vector<256x1024xf32> to vector<256x1024xbf16>
    %c0_53 = arith.constant 0 : index
    %c0_54 = arith.constant 0 : index
    %c0_55 = arith.constant 0 : index
    %132 = vector.load %arg10[%c0_53, %c0_54, %c0_55] : memref<1x1024x256xbf16, #tpu.memory_space<vmem>>, vector<1x1024x256xbf16>
    %133 = vector.shape_cast %132 : vector<1x1024x256xbf16> to vector<1024x256xbf16>
    %cst_56 = arith.constant dense<0.000000e+00> : vector<256x256xf32>
    %134 = tpu.matmul %131, %133, %cst_56 {dimension_numbers = #tpu.dot_dimension_numbers<[1], [0], [0], [1], [0, 0, 1, 1], [], []>} : vector<256x1024xbf16>, vector<1024x256xbf16>, vector<256x256xf32> -> vector<256x256xf32>
    %c0_57 = arith.constant 0 : index
    %c0_58 = arith.constant 0 : index
    %c0_59 = arith.constant 0 : index
    %135 = vector.load %arg11[%c0_57, %c0_58, %c0_59] : memref<1x1x256xf32, #tpu.memory_space<vmem>>, vector<1x1x256xf32>
    %136 = vector.shape_cast %135 : vector<1x1x256xf32> to vector<1x256xf32>
    %137 = vector.broadcast %136 : vector<1x256xf32> to vector<256x256xf32>
    %138 = arith.addf %134, %137 : vector<256x256xf32>
    %139 = arith.addf %83, %138 : vector<256x256xf32>
    %140 = vector.shape_cast %139 : vector<256x256xf32> to vector<2x128x256xf32>
    %141 = arith.truncf %140 : vector<2x128x256xf32> to vector<2x128x256xbf16>
    %c0_60 = arith.constant 0 : index
    %c0_61 = arith.constant 0 : index
    %c0_62 = arith.constant 0 : index
    %142 = vector.load %arg12[%c0_60, %c0_61, %c0_62] : memref<2x128x256xbf16, #tpu.memory_space<vmem>>, vector<2x128x256xbf16>
    tpu.vector_store %arg12[%c0_60, %c0_61, %c0_62], %141 {strides = array<i32>} : memref<2x128x256xbf16, #tpu.memory_space<vmem>>, vector<2x128x256xbf16>,
    return
  }
  func.func @transform_0(%arg0: i32) -> (i32, i32, i32) {
    %c0_i32 = arith.constant 0 : i32
    %c0_i32_0 = arith.constant 0 : i32
    %c0_i32_1 = arith.constant 0 : i32
    %c0_i32_2 = arith.constant 0 : i32
    return %c0_i32, %c0_i32_0, %c0_i32_1 : i32, i32, i32
  }
  func.func @transform_1(%arg0: i32) -> (i32, i32, i32) {
    %c0_i32 = arith.constant 0 : i32
    %c0_i32_0 = arith.constant 0 : i32
    %c0_i32_1 = arith.constant 0 : i32
    return %arg0, %c0_i32, %c0_i32_0 : i32, i32, i32
  }
  func.func @transform_2(%arg0: i32) -> (i32, i32, i32) {
    %c0_i32 = arith.constant 0 : i32
    %c0_i32_0 = arith.constant 0 : i32
    %c0_i32_1 = arith.constant 0 : i32
    return %arg0, %c0_i32, %c0_i32_0 : i32, i32, i32
  }
  func.func @transform_3(%arg0: i32) -> (i32, i32, i32) {
    %c0_i32 = arith.constant 0 : i32
    %c0_i32_0 = arith.constant 0 : i32
    %c0_i32_1 = arith.constant 0 : i32
    return %arg0, %c0_i32, %c0_i32_0 : i32, i32, i32
  }
  func.func @transform_4(%arg0: i32) -> (i32, i32, i32) {
    %c0_i32 = arith.constant 0 : i32
    %c0_i32_0 = arith.constant 0 : i32
    %c0_i32_1 = arith.constant 0 : i32
    return %arg0, %c0_i32, %c0_i32_0 : i32, i32, i32
  }
  func.func @transform_5(%arg0: i32) -> (i32, i32, i32) {
    %c0_i32 = arith.constant 0 : i32
    %c0_i32_0 = arith.constant 0 : i32
    %c0_i32_1 = arith.constant 0 : i32
    return %arg0, %c0_i32, %c0_i32_0 : i32, i32, i32
  }
  func.func @transform_6(%arg0: i32) -> (i32, i32, i32) {
    %c0_i32 = arith.constant 0 : i32
    %c0_i32_0 = arith.constant 0 : i32
    %c0_i32_1 = arith.constant 0 : i32
    return %arg0, %c0_i32, %c0_i32_0 : i32, i32, i32
  }
  func.func @transform_7(%arg0: i32) -> (i32, i32, i32) {
    %c0_i32 = arith.constant 0 : i32
    %c0_i32_0 = arith.constant 0 : i32
    %c0_i32_1 = arith.constant 0 : i32
    return %arg0, %c0_i32, %c0_i32_0 : i32, i32, i32
  }
  func.func @transform_8(%arg0: i32) -> (i32, i32, i32) {
    %c0_i32 = arith.constant 0 : i32
    %c0_i32_0 = arith.constant 0 : i32
    %c0_i32_1 = arith.constant 0 : i32
    return %arg0, %c0_i32, %c0_i32_0 : i32, i32, i32
  }
  func.func @transform_9(%arg0: i32) -> (i32, i32, i32) {
    %c0_i32 = arith.constant 0 : i32
    %c0_i32_0 = arith.constant 0 : i32
    %c0_i32_1 = arith.constant 0 : i32
    return %arg0, %c0_i32, %c0_i32_0 : i32, i32, i32
  }
  func.func @transform_10(%arg0: i32) -> (i32, i32, i32) {
    %c0_i32 = arith.constant 0 : i32
    %c0_i32_0 = arith.constant 0 : i32
    %c0_i32_1 = arith.constant 0 : i32
    return %arg0, %c0_i32, %c0_i32_0 : i32, i32, i32
  }
  func.func @transform_11(%arg0: i32) -> (i32, i32, i32) {
    %c0_i32 = arith.constant 0 : i32
    %c0_i32_0 = arith.constant 0 : i32
    %c0_i32_1 = arith.constant 0 : i32
    %c0_i32_2 = arith.constant 0 : i32
    return %c0_i32, %c0_i32_0, %c0_i32_1 : i32, i32, i32
  }
}

</mosaic_0001>

<llo_original>
// kernel: hf_model_list_forward.1
$region0: #{hf_model_list_forward.1}
  #allocation0 [shape = 'u32[]', space=smem, size = 0x4, offset = 0x4, fixed_abs, tag = 'smem constant byte address 0x4 - core index']
  #allocation1 [shape = 'u32[144,128]{1,0:T(1,128)}', space=vmem, size = 0x12000, scoped, tag = 'internal scratch']
  %s0 = inlined_call_operand.hbm [shape: bf16[2,128,256], index: 0, kind: input, shape index: {}, may-alias: {0,11}]
  %s1 = inlined_call_operand.vmem [shape: f32[2,1,256], index: 1, kind: input, shape index: {}]
  %s2 = inlined_call_operand.vmem [shape: f32[2,1,256], index: 2, kind: input, shape index: {}]
  %s3 = inlined_call_operand.hbm [shape: bf16[2,256,768], index: 3, kind: input, shape index: {}]
  %s4 = inlined_call_operand.vmem [shape: bf16[2,256,256], index: 4, kind: input, shape index: {}]
  %s5 = inlined_call_operand.vmem [shape: f32[2,1,256], index: 5, kind: input, shape index: {}]
  %s6 = inlined_call_operand.vmem [shape: f32[2,1,256], index: 6, kind: input, shape index: {}]
  %s7 = inlined_call_operand.hbm [shape: bf16[2,256,1024], index: 7, kind: input, shape index: {}]
  %s8 = inlined_call_operand.vmem [shape: f32[2,1,1024], index: 8, kind: input, shape index: {}]
  %s9 = inlined_call_operand.hbm [shape: bf16[2,1024,256], index: 9, kind: input, shape index: {}]
  %s10 = inlined_call_operand.hbm [shape: f32[2,1,256], index: 10, kind: input, shape index: {}]
  %s11 = inlined_call_operand.hbm [shape: bf16[2,128,256], index: 11, kind: output, shape index: {}, may-alias: {0,11}]
  %s12 = sld [smem:[#allocation0]]
  $region101: #{hf_model_list_forward.1} parent=0
    _
  %s14 = ssub.s32 1, %s12
  %s15 = scalar_select 0, %s14, %s12
  $region1: #{hf_model_list_forward.1} parent=0
    #allocation2 [shape = 'u8[131072]{0}', space=vmem, size = 0x20000, scoped, tag = 'input window, operand 0, single buffered']
    #allocation3 [shape = 's32[2]{0}', space=sflag, size = 0x8, scoped, tag = 'scoped memory for hf_model_list_forward.1']
    #allocation4 [shape = 's32[2]{0}', space=sflag, size = 0x8, scoped, tag = 'scoped memory for hf_model_list_forward.1']
    #allocation5 [shape = 'u8[786432]{0}', space=vmem, size = 0xc0000, scoped, tag = 'input window, operand 3']
    #allocation6 [shape = 's32[2]{0}', space=sflag, size = 0x8, scoped, tag = 'scoped memory for hf_model_list_forward.1']
    #allocation7 [shape = 'u8[1048576]{0}', space=vmem, size = 0x100000, scoped, tag = 'input window, operand 7']
    #allocation8 [shape = 'u8[1048576]{0}', space=vmem, size = 0x100000, scoped, tag = 'input window, operand 9']
    #allocation9 [shape = 's32[2]{0}', space=sflag, size = 0x8, scoped, tag = 'scoped memory for hf_model_list_forward.1']
    #allocation10 [shape = 'u8[2048]{0}', space=vmem, size = 0x800, scoped, tag = 'input window, operand 10']
    #allocation11 [shape = 'u8[131072]{0}', space=vmem, size = 0x20000, scoped, tag = 'output window, operand 0, single buffered']
    %16 = vsyncpa [#allocation3], 0
    %17 = vsyncpa [#allocation6], 0
    %s18 = scalar_lea.sflag [#allocation6], 1
    %19 = vsyncpa %s18, 0
    %20 = vsyncpa [#allocation9], 0
    %s21 = scalar_lea.sflag [#allocation9], 1
    %22 = vsyncpa %s21, 0
    %23 = vsyncpa [#allocation4], 0
    loop: start=0, step=1, limit=4
    $region2: #{hf_model_list_forward.1} parent=1 // loop_pre_header
      _
    $region3: #{hf_model_list_forward.1} parent=1 // loop_header
      %s25 = sphi 0, %s29
      %p26 = scmp.ge.s32.totalorder %s25, 4
      %s33 = sphi 0, %s33
      %s35 = sphi 0, %s33
      %s36 = sphi 0, %s35
      %s50 = sphi 0, %s36
      %s56 = sphi 0, %s58
      %s59 = sphi 0, %s56
      %s60 = sphi 0, %s59
      %s76 = sphi 0, %s60
      %s82 = sphi 0, %s84
      %s85 = sphi 0, %s82
      %s86 = sphi 0, %s85
      %s102 = sphi 0, %s86
      %s108 = sphi 0, %s110
      %s111 = sphi 0, %s108
      %s112 = sphi 0, %s111
      %s128 = sphi 0, %s112
      %s134 = sphi 0, %s136
      %s137 = sphi 0, %s134
      %s138 = sphi 0, %s137
      %s154 = sphi 0, %s138
      %s160 = sphi 0, %s162
      %s163 = sphi 0, %s160
      %s164 = sphi 0, %s163
      %s180 = sphi 0, %s164
      %s186 = sphi 0, %s188
      %s189 = sphi 0, %s186
      %s190 = sphi 0, %s189
      %s206 = sphi 0, %s190
      %s212 = sphi 0, %s214
      %s215 = sphi 0, %s212
      %s216 = sphi 0, %s215
      %s232 = sphi 0, %s216
      %s238 = sphi 0, %s240
      %s241 = sphi 0, %s238
      %s242 = sphi 0, %s241
      %s258 = sphi 0, %s242
      %s264 = sphi 0, %s266
      %s267 = sphi 0, %s264
      %s268 = sphi 0, %s267
      %s284 = sphi 0, %s268
      %s290 = sphi 0, %s292
      %s293 = sphi 0, %s290
      %s294 = sphi 0, %s293
      %s310 = sphi 0, %s294
      %s314 = sphi 0, %s314
      %s316 = sphi 0, %s314
      %s317 = sphi 0, %s316
      %s331 = sphi 0, %s317
    $region4: #{hf_model_list_forward.1} parent=1 // loop_header_branch
      %28 = sbr.rel (%p26) target = $region8
    $region5: #{hf_model_list_forward.1} parent=1 // loop_body
      %s30 = ssub.s32 %s25, 1
      %s31 = ssub.s32 %s25, 2
      %s32 = sadd.s32 %s25, 1
      %s34 = sadd.s32 %s33, 1
      %p37 = scmp.eq.s32.totalorder %s25, 1
      %p38 = scmp.ne.s32.totalorder %s33, %s35
      %p39 = scmp.eq.s32.totalorder %s25, 0
      %p40 = por %p38, %p39
      %p41 = scmp.ne.s32.totalorder %s33, %s35
      %p42 = scmp.eq.s32.totalorder %s30, 1
      %p43 = por %p41, %p42
      %p44 = scmp.ne.s32.totalorder %s35, %s36
      %p45 = scmp.eq.s32.totalorder %s30, 0
      %p46 = por %p44, %p45
      %p47 = scmp.ne.s32.totalorder %s35, %s36
      %p48 = scmp.eq.s32.totalorder %s31, 1
      %p49 = por %p47, %p48
      %p51 = scmp.ne.s32.totalorder %s36, %s50
      %p52 = scmp.eq.s32.totalorder %s31, 0
      %p53 = por %p51, %p52
      %s54 = ssub.s32 %s25, %s32
      %p55 = scmp.eq.s32.totalorder %s54, 0
      %s57 = sadd.s32 %s56, 1
      %s58 = scalar_select %p55, %s56, %s57
      %p61 = pneg %p55
      %p62 = scmp.eq.s32.totalorder %s25, 1
      %p63 = por %p61, %p62
      %p64 = scmp.ne.s32.totalorder %s56, %s59
      %p65 = scmp.eq.s32.totalorder %s25, 0
      %p66 = por %p64, %p65
      %p67 = scmp.ne.s32.totalorder %s56, %s59
      %p68 = scmp.eq.s32.totalorder %s30, 1
      %p69 = por %p67, %p68
      %p70 = scmp.ne.s32.totalorder %s59, %s60
      %p71 = scmp.eq.s32.totalorder %s30, 0
      %p72 = por %p70, %p71
      %p73 = scmp.ne.s32.totalorder %s59, %s60
      %p74 = scmp.eq.s32.totalorder %s31, 1
      %p75 = por %p73, %p74
      %p77 = scmp.ne.s32.totalorder %s60, %s76
      %p78 = scmp.eq.s32.totalorder %s31, 0
      %p79 = por %p77, %p78
      %s80 = ssub.s32 %s25, %s32
      %p81 = scmp.eq.s32.totalorder %s80, 0
      %s83 = sadd.s32 %s82, 1
      %s84 = scalar_select %p81, %s82, %s83
      %p87 = pneg %p81
      %p88 = scmp.eq.s32.totalorder %s25, 1
      %p89 = por %p87, %p88
      %p90 = scmp.ne.s32.totalorder %s82, %s85
      %p91 = scmp.eq.s32.totalorder %s25, 0
      %p92 = por %p90, %p91
      %p93 = scmp.ne.s32.totalorder %s82, %s85
      %p94 = scmp.eq.s32.totalorder %s30, 1
      %p95 = por %p93, %p94
      %p96 = scmp.ne.s32.totalorder %s85, %s86
      %p97 = scmp.eq.s32.totalorder %s30, 0
      %p98 = por %p96, %p97
      %p99 = scmp.ne.s32.totalorder %s85, %s86
      %p100 = scmp.eq.s32.totalorder %s31, 1
      %p101 = por %p99, %p100
      %p103 = scmp.ne.s32.totalorder %s86, %s102
      %p104 = scmp.eq.s32.totalorder %s31, 0
      %p105 = por %p103, %p104
      %s106 = ssub.s32 %s25, %s32
      %p107 = scmp.eq.s32.totalorder %s106, 0
      %s109 = sadd.s32 %s108, 1
      %s110 = scalar_select %p107, %s108, %s109
      %p113 = pneg %p107
      %p114 = scmp.eq.s32.totalorder %s25, 1
      %p115 = por %p113, %p114
      %p116 = scmp.ne.s32.totalorder %s108, %s111
      %p117 = scmp.eq.s32.totalorder %s25, 0
      %p118 = por %p116, %p117
      %p119 = scmp.ne.s32.totalorder %s108, %s111
      %p120 = scmp.eq.s32.totalorder %s30, 1
      %p121 = por %p119, %p120
      %p122 = scmp.ne.s32.totalorder %s111, %s112
      %p123 = scmp.eq.s32.totalorder %s30, 0
      %p124 = por %p122, %p123
      %p125 = scmp.ne.s32.totalorder %s111, %s112
      %p126 = scmp.eq.s32.totalorder %s31, 1
      %p127 = por %p125, %p126
      %p129 = scmp.ne.s32.totalorder %s112, %s128
      %p130 = scmp.eq.s32.totalorder %s31, 0
      %p131 = por %p129, %p130
      %s132 = ssub.s32 %s25, %s32
      %p133 = scmp.eq.s32.totalorder %s132, 0
      %s135 = sadd.s32 %s134, 1
      %s136 = scalar_select %p133, %s134, %s135
      %p139 = pneg %p133
      %p140 = scmp.eq.s32.totalorder %s25, 1
      %p141 = por %p139, %p140
      %p142 = scmp.ne.s32.totalorder %s134, %s137
      %p143 = scmp.eq.s32.totalorder %s25, 0
      %p144 = por %p142, %p143
      %p145 = scmp.ne.s32.totalorder %s134, %s137
      %p146 = scmp.eq.s32.totalorder %s30, 1
      %p147 = por %p145, %p146
      %p148 = scmp.ne.s32.totalorder %s137, %s138
      %p149 = scmp.eq.s32.totalorder %s30, 0
      %p150 = por %p148, %p149
      %p151 = scmp.ne.s32.totalorder %s137, %s138
      %p152 = scmp.eq.s32.totalorder %s31, 1
      %p153 = por %p151, %p152
      %p155 = scmp.ne.s32.totalorder %s138, %s154
      %p156 = scmp.eq.s32.totalorder %s31, 0
      %p157 = por %p155, %p156
      %s158 = ssub.s32 %s25, %s32
      %p159 = scmp.eq.s32.totalorder %s158, 0
      %s161 = sadd.s32 %s160, 1
      %s162 = scalar_select %p159, %s160, %s161
      %p165 = pneg %p159
      %p166 = scmp.eq.s32.totalorder %s25, 1
      %p167 = por %p165, %p166
      %p168 = scmp.ne.s32.totalorder %s160, %s163
      %p169 = scmp.eq.s32.totalorder %s25, 0
      %p170 = por %p168, %p169
      %p171 = scmp.ne.s32.totalorder %s160, %s163
      %p172 = scmp.eq.s32.totalorder %s30, 1
      %p173 = por %p171, %p172
      %p174 = scmp.ne.s32.totalorder %s163, %s164
      %p175 = scmp.eq.s32.totalorder %s30, 0
      %p176 = por %p174, %p175
      %p177 = scmp.ne.s32.totalorder %s163, %s164
      %p178 = scmp.eq.s32.totalorder %s31, 1
      %p179 = por %p177, %p178
      %p181 = scmp.ne.s32.totalorder %s164, %s180
      %p182 = scmp.eq.s32.totalorder %s31, 0
      %p183 = por %p181, %p182
      %s184 = ssub.s32 %s25, %s32
      %p185 = scmp.eq.s32.totalorder %s184, 0
      %s187 = sadd.s32 %s186, 1
      %s188 = scalar_select %p185, %s186, %s187
      %p191 = pneg %p185
      %p192 = scmp.eq.s32.totalorder %s25, 1
      %p193 = por %p191, %p192
      %p194 = scmp.ne.s32.totalorder %s186, %s189
      %p195 = scmp.eq.s32.totalorder %s25, 0
      %p196 = por %p194, %p195
      %p197 = scmp.ne.s32.totalorder %s186, %s189
      %p198 = scmp.eq.s32.totalorder %s30, 1
      %p199 = por %p197, %p198
      %p200 = scmp.ne.s32.totalorder %s189, %s190
      %p201 = scmp.eq.s32.totalorder %s30, 0
      %p202 = por %p200, %p201
      %p203 = scmp.ne.s32.totalorder %s189, %s190
      %p204 = scmp.eq.s32.totalorder %s31, 1
      %p205 = por %p203, %p204
      %p207 = scmp.ne.s32.totalorder %s190, %s206
      %p208 = scmp.eq.s32.totalorder %s31, 0
      %p209 = por %p207, %p208
      %s210 = ssub.s32 %s25, %s32
      %p211 = scmp.eq.s32.totalorder %s210, 0
      %s213 = sadd.s32 %s212, 1
      %s214 = scalar_select %p211, %s212, %s213
      %p217 = pneg %p211
      %p218 = scmp.eq.s32.totalorder %s25, 1
      %p219 = por %p217, %p218
      %p220 = scmp.ne.s32.totalorder %s212, %s215
      %p221 = scmp.eq.s32.totalorder %s25, 0
      %p222 = por %p220, %p221
      %p223 = scmp.ne.s32.totalorder %s212, %s215
      %p224 = scmp.eq.s32.totalorder %s30, 1
      %p225 = por %p223, %p224
      %p226 = scmp.ne.s32.totalorder %s215, %s216
      %p227 = scmp.eq.s32.totalorder %s30, 0
      %p228 = por %p226, %p227
      %p229 = scmp.ne.s32.totalorder %s215, %s216
      %p230 = scmp.eq.s32.totalorder %s31, 1
      %p231 = por %p229, %p230
      %p233 = scmp.ne.s32.totalorder %s216, %s232
      %p234 = scmp.eq.s32.totalorder %s31, 0
      %p235 = por %p233, %p234
      %s236 = ssub.s32 %s25, %s32
      %p237 = scmp.eq.s32.totalorder %s236, 0
      %s239 = sadd.s32 %s238, 1
      %s240 = scalar_select %p237, %s238, %s239
      %p243 = pneg %p237
      %p244 = scmp.eq.s32.totalorder %s25, 1
      %p245 = por %p243, %p244
      %p246 = scmp.ne.s32.totalorder %s238, %s241
      %p247 = scmp.eq.s32.totalorder %s25, 0
      %p248 = por %p246, %p247
      %p249 = scmp.ne.s32.totalorder %s238, %s241
      %p250 = scmp.eq.s32.totalorder %s30, 1
      %p251 = por %p249, %p250
      %p252 = scmp.ne.s32.totalorder %s241, %s242
      %p253 = scmp.eq.s32.totalorder %s30, 0
      %p254 = por %p252, %p253
      %p255 = scmp.ne.s32.totalorder %s241, %s242
      %p256 = scmp.eq.s32.totalorder %s31, 1
      %p257 = por %p255, %p256
      %p259 = scmp.ne.s32.totalorder %s242, %s258
      %p260 = scmp.eq.s32.totalorder %s31, 0
      %p261 = por %p259, %p260
      %s262 = ssub.s32 %s25, %s32
      %p263 = scmp.eq.s32.totalorder %s262, 0
      %s265 = sadd.s32 %s264, 1
      %s266 = scalar_select %p263, %s264, %s265
      %p269 = pneg %p263
      %p270 = scmp.eq.s32.totalorder %s25, 1
      %p271 = por %p269, %p270
      %p272 = scmp.ne.s32.totalorder %s264, %s267
      %p273 = scmp.eq.s32.totalorder %s25, 0
      %p274 = por %p272, %p273
      %p275 = scmp.ne.s32.totalorder %s264, %s267
      %p276 = scmp.eq.s32.totalorder %s30, 1
      %p277 = por %p275, %p276
      %p278 = scmp.ne.s32.totalorder %s267, %s268
      %p279 = scmp.eq.s32.totalorder %s30, 0
      %p280 = por %p278, %p279
      %p281 = scmp.ne.s32.totalorder %s267, %s268
      %p282 = scmp.eq.s32.totalorder %s31, 1
      %p283 = por %p281, %p282
      %p285 = scmp.ne.s32.totalorder %s268, %s284
      %p286 = scmp.eq.s32.totalorder %s31, 0
      %p287 = por %p285, %p286
      %s288 = ssub.s32 %s25, %s32
      %p289 = scmp.eq.s32.totalorder %s288, 0
      %s291 = sadd.s32 %s290, 1
      %s292 = scalar_select %p289, %s290, %s291
      %p295 = pneg %p289
      %p296 = scmp.eq.s32.totalorder %s25, 1
      %p297 = por %p295, %p296
      %p298 = scmp.ne.s32.totalorder %s290, %s293
      %p299 = scmp.eq.s32.totalorder %s25, 0
      %p300 = por %p298, %p299
      %p301 = scmp.ne.s32.totalorder %s290, %s293
      %p302 = scmp.eq.s32.totalorder %s30, 1
      %p303 = por %p301, %p302
      %p304 = scmp.ne.s32.totalorder %s293, %s294
      %p305 = scmp.eq.s32.totalorder %s30, 0
      %p306 = por %p304, %p305
      %p307 = scmp.ne.s32.totalorder %s293, %s294
      %p308 = scmp.eq.s32.totalorder %s31, 1
      %p309 = por %p307, %p308
      %p311 = scmp.ne.s32.totalorder %s294, %s310
      %p312 = scmp.eq.s32.totalorder %s31, 0
      %p313 = por %p311, %p312
      %s315 = sadd.s32 %s314, 1
      %p318 = scmp.eq.s32.totalorder %s25, 1
      %p319 = scmp.ne.s32.totalorder %s314, %s316
      %p320 = scmp.eq.s32.totalorder %s25, 0
      %p321 = por %p319, %p320
      %p322 = scmp.ne.s32.totalorder %s314, %s316
      %p323 = scmp.eq.s32.totalorder %s30, 1
      %p324 = por %p322, %p323
      %p325 = scmp.ne.s32.totalorder %s316, %s317
      %p326 = scmp.eq.s32.totalorder %s30, 0
      %p327 = por %p325, %p326
      %p328 = scmp.ne.s32.totalorder %s316, %s317
      %p329 = scmp.eq.s32.totalorder %s31, 1
      %p330 = por %p328, %p329
      %p332 = scmp.ne.s32.totalorder %s317, %s331
      %p333 = scmp.eq.s32.totalorder %s31, 0
      %p334 = por %p332, %p333
      %p335 = scmp.le.s32.totalorder 1, %s25
      %p336 = scmp.lt.s32.totalorder %s25, 3
      %p337 = pnand %p335, %p336
      %p338 = pneg %p337
      // Predicated region
      $region9: #{hf_model_list_forward.1} parent=5 // pred_check
        _
      $region10: #{hf_model_list_forward.1} parent=5 // pred_check_branch
        %340 = sbr.rel (%p337) target = $region12
      $region11: #{hf_model_list_forward.1} parent=5 // pred_region
        %s341 = ssub.s32 %s25, 1
        // Predicated region
        $region13: #{hf_model_list_forward.1} parent=11 // pred_check
          %p342 = pneg %p46
        $region14: #{hf_model_list_forward.1} parent=11 // pred_check_branch
          %344 = sbr.rel (%p342) target = $region16
        $region15: #{hf_model_list_forward.1} parent=11 // pred_region
          %s346 = ssub.s32 4096, 4096
          %347 = vsyncadd [#allocation3], %s346
          %s348 = sshll.u32 [#allocation2], 4
          %s349 = int_to_ptr.vmem [resolvable:$true] %s348
          %354 = dma.hbm_to_vmem [thread:$0]  %s0, 4096, %s349, [#allocation3], 128, 128, 8
        $region16: #{hf_model_list_forward.1} parent=11 // pred_fallthru
          _
      $region12: #{hf_model_list_forward.1} parent=5 // pred_fallthru
        _
      %p355 = scmp.lt.s32.totalorder %s25, 2
      // Predicated region
      $region17: #{hf_model_list_forward.1} parent=5 // pred_check
        %p356 = pneg %p355
      $region18: #{hf_model_list_forward.1} parent=5 // pred_check_branch
        %358 = sbr.rel (%p356) target = $region20
      $region19: #{hf_model_list_forward.1} parent=5 // pred_region
        // Predicated region
        $region21: #{hf_model_list_forward.1} parent=19 // pred_check
          %p359 = pneg %p66
        $region22: #{hf_model_list_forward.1} parent=19 // pred_check_branch
          %361 = sbr.rel (%p359) target = $region24
        $region23: #{hf_model_list_forward.1} parent=19 // pred_region
          %p362 = scmp.lt.s32.totalorder %s25, 1
          %s363 = scalar_select %p362, %s25, 1
          %s364 = smul.addr %s363, 2
          %s365 = scalar_lea.vmem %s1, %s364
        $region24: #{hf_model_list_forward.1} parent=19 // pred_fallthru
          _
        // Predicated region
        $region25: #{hf_model_list_forward.1} parent=19 // pred_check
          %p366 = pneg %p92
        $region26: #{hf_model_list_forward.1} parent=19 // pred_check_branch
          %368 = sbr.rel (%p366) target = $region28
        $region27: #{hf_model_list_forward.1} parent=19 // pred_region
          %p369 = scmp.lt.s32.totalorder %s25, 1
          %s370 = scalar_select %p369, %s25, 1
          %s371 = smul.addr %s370, 2
          %s372 = scalar_lea.vmem %s2, %s371
        $region28: #{hf_model_list_forward.1} parent=19 // pred_fallthru
          _
        // Predicated region
        $region29: #{hf_model_list_forward.1} parent=19 // pred_check
          %p373 = pneg %p118
        $region30: #{hf_model_list_forward.1} parent=19 // pred_check_branch
          %375 = sbr.rel (%p373) target = $region32
        $region31: #{hf_model_list_forward.1} parent=19 // pred_region
          %s376 = sand.u32 %s25, 1
          %s377 = scalar_lea.sflag [#allocation6], %s376
          %s378 = sand.u32 %s108, 1
          %s379 = smul.addr %s378, 768
          %s380 = scalar_lea.vmem [#allocation5], %s379
          %s382 = ssub.s32 12288, 12288
          %383 = vsyncadd %s377, %s382
          %s384 = smul.addr %s25, 192
          %s385 = smul.addr %s384, 64
          %s386 = scalar_lea.hbm %s3, %s385
          %s387 = sshll.u32 %s380, 4
          %s388 = int_to_ptr.vmem [resolvable:$true] %s387
          %393 = dma.hbm_to_vmem [thread:$0]  %s386, 12288, %s388, %s377, 384, 384, 24
        $region32: #{hf_model_list_forward.1} parent=19 // pred_fallthru
          _
        // Predicated region
        $region33: #{hf_model_list_forward.1} parent=19 // pred_check
          %p394 = pneg %p144
        $region34: #{hf_model_list_forward.1} parent=19 // pred_check_branch
          %396 = sbr.rel (%p394) target = $region36
        $region35: #{hf_model_list_forward.1} parent=19 // pred_region
          %p397 = scmp.lt.s32.totalorder %s25, 1
          %s398 = scalar_select %p397, %s25, 1
          %s399 = smul.addr %s398, 64
          %s400 = smul.addr %s399, 4
          %s401 = scalar_lea.vmem %s4, %s400
        $region36: #{hf_model_list_forward.1} parent=19 // pred_fallthru
          _
        // Predicated region
        $region37: #{hf_model_list_forward.1} parent=19 // pred_check
          %p402 = pneg %p170
        $region38: #{hf_model_list_forward.1} parent=19 // pred_check_branch
          %404 = sbr.rel (%p402) target = $region40
        $region39: #{hf_model_list_forward.1} parent=19 // pred_region
          %p405 = scmp.lt.s32.totalorder %s25, 1
          %s406 = scalar_select %p405, %s25, 1
          %s407 = smul.addr %s406, 2
          %s408 = scalar_lea.vmem %s5, %s407
        $region40: #{hf_model_list_forward.1} parent=19 // pred_fallthru
          _
        // Predicated region
        $region41: #{hf_model_list_forward.1} parent=19 // pred_check
          %p409 = pneg %p196
        $region42: #{hf_model_list_forward.1} parent=19 // pred_check_branch
          %411 = sbr.rel (%p409) target = $region44
        $region43: #{hf_model_list_forward.1} parent=19 // pred_region
          %p412 = scmp.lt.s32.totalorder %s25, 1
          %s413 = scalar_select %p412, %s25, 1
          %s414 = smul.addr %s413, 2
          %s415 = scalar_lea.vmem %s6, %s414
        $region44: #{hf_model_list_forward.1} parent=19 // pred_fallthru
          _
        // Predicated region
        $region45: #{hf_model_list_forward.1} parent=19 // pred_check
          %p416 = pneg %p222
        $region46: #{hf_model_list_forward.1} parent=19 // pred_check_branch
          %418 = sbr.rel (%p416) target = $region48
        $region47: #{hf_model_list_forward.1} parent=19 // pred_region
          %s419 = sand.u32 %s25, 1
          %s420 = scalar_lea.sflag [#allocation6], %s419
          %s421 = sand.u32 %s212, 1
          %s422 = smul.addr %s421, 1024
          %s423 = scalar_lea.vmem [#allocation7], %s422
          %s425 = ssub.s32 16384, 16384
          %426 = vsyncadd %s420, %s425
          %s427 = smul.addr %s25, 256
          %s428 = smul.addr %s427, 64
          %s429 = scalar_lea.hbm %s7, %s428
          %s430 = sshll.u32 %s423, 4
          %s431 = int_to_ptr.vmem [resolvable:$true] %s430
          %436 = dma.hbm_to_vmem [thread:$0]  %s429, 16384, %s431, %s420, 512, 512, 32
        $region48: #{hf_model_list_forward.1} parent=19 // pred_fallthru
          _
        // Predicated region
        $region49: #{hf_model_list_forward.1} parent=19 // pred_check
          %p437 = pneg %p248
        $region50: #{hf_model_list_forward.1} parent=19 // pred_check_branch
          %439 = sbr.rel (%p437) target = $region52
        $region51: #{hf_model_list_forward.1} parent=19 // pred_region
          %p440 = scmp.lt.s32.totalorder %s25, 1
          %s441 = scalar_select %p440, %s25, 1
          %s442 = smul.addr %s441, 8
          %s443 = scalar_lea.vmem %s8, %s442
        $region52: #{hf_model_list_forward.1} parent=19 // pred_fallthru
          _
        // Predicated region
        $region53: #{hf_model_list_forward.1} parent=19 // pred_check
          %p444 = pneg %p274
        $region54: #{hf_model_list_forward.1} parent=19 // pred_check_branch
          %446 = sbr.rel (%p444) target = $region56
        $region55: #{hf_model_list_forward.1} parent=19 // pred_region
          %s447 = sand.u32 %s25, 1
          %s448 = scalar_lea.sflag [#allocation9], %s447
          %s449 = sand.u32 %s264, 1
          %s450 = smul.addr %s449, 1024
          %s451 = scalar_lea.vmem [#allocation8], %s450
          %s453 = ssub.s32 16384, 16384
          %454 = vsyncadd %s448, %s453
          %s455 = smul.addr %s25, 256
          %s456 = smul.addr %s455, 64
          %s457 = scalar_lea.hbm %s9, %s456
          %s458 = sshll.u32 %s451, 4
          %s459 = int_to_ptr.vmem [resolvable:$true] %s458
          %464 = dma.hbm_to_vmem [thread:$0]  %s457, 16384, %s459, %s448, 128, 128, 8
        $region56: #{hf_model_list_forward.1} parent=19 // pred_fallthru
          _
        // Predicated region
        $region57: #{hf_model_list_forward.1} parent=19 // pred_check
          %p465 = pneg %p300
        $region58: #{hf_model_list_forward.1} parent=19 // pred_check_branch
          %467 = sbr.rel (%p465) target = $region60
        $region59: #{hf_model_list_forward.1} parent=19 // pred_region
          %s468 = sand.u32 %s25, 1
          %s469 = scalar_lea.sflag [#allocation9], %s468
          %s470 = sand.u32 %s290, 1
          %s471 = smul.addr %s470, 2
          %s472 = scalar_lea.vmem [#allocation10], %s471
          %s474 = ssub.s32 32, 32
          %475 = vsyncadd %s469, %s474
          %s476 = smul.addr %s25, 2
          %s477 = smul.addr %s476, 16
          %s478 = scalar_lea.hbm %s10, %s477
          %s480 = sshll.u32 %s472, 4
          %s481 = int_to_ptr.vmem [resolvable:$true] %s480
          %483 = dma.hbm_to_vmem [thread:$0]  %s478, 32, %s481, %s469
        $region60: #{hf_model_list_forward.1} parent=19 // pred_fallthru
          _
      $region20: #{hf_model_list_forward.1} parent=5 // pred_fallthru
        _
      %p484 = scmp.le.s32.totalorder 1, %s25
      %p485 = scmp.lt.s32.totalorder %s25, 3
      %p486 = pnand %p484, %p485
      %p487 = pneg %p486
      // Predicated region
      $region61: #{hf_model_list_forward.1} parent=5 // pred_check
        _
      $region62: #{hf_model_list_forward.1} parent=5 // pred_check_branch
        %489 = sbr.rel (%p486) target = $region64
      $region63: #{hf_model_list_forward.1} parent=5 // pred_region
        %s490 = ssub.s32 %s25, 1
        // Predicated region
        $region65: #{hf_model_list_forward.1} parent=63 // pred_check
          %p491 = pneg %p46
        $region66: #{hf_model_list_forward.1} parent=63 // pred_check_branch
          %493 = sbr.rel (%p491) target = $region68
        $region67: #{hf_model_list_forward.1} parent=63 // pred_region
          %494 = dma.done [#allocation3], 4096
        $region68: #{hf_model_list_forward.1} parent=63 // pred_fallthru
          _
        %s495 = sand.u32 %s30, 1
        %s496 = scalar_lea.sflag [#allocation6], %s495
        %s497 = sand.u32 %s111, 1
        %s498 = smul.addr %s497, 768
        %s499 = scalar_lea.vmem [#allocation5], %s498
        // Predicated region
        $region69: #{hf_model_list_forward.1} parent=63 // pred_check
          %p500 = pneg %p124
        $region70: #{hf_model_list_forward.1} parent=63 // pred_check_branch
          %502 = sbr.rel (%p500) target = $region72
        $region71: #{hf_model_list_forward.1} parent=63 // pred_region
          %503 = dma.done %s496, 12288
        $region72: #{hf_model_list_forward.1} parent=63 // pred_fallthru
          _
        %s504 = sand.u32 %s30, 1
        %s505 = scalar_lea.sflag [#allocation6], %s504
        %s506 = sand.u32 %s215, 1
        %s507 = smul.addr %s506, 1024
        %s508 = scalar_lea.vmem [#allocation7], %s507
        // Predicated region
        $region73: #{hf_model_list_forward.1} parent=63 // pred_check
          %p509 = pneg %p228
        $region74: #{hf_model_list_forward.1} parent=63 // pred_check_branch
          %511 = sbr.rel (%p509) target = $region76
        $region75: #{hf_model_list_forward.1} parent=63 // pred_region
          %512 = dma.done %s505, 16384
        $region76: #{hf_model_list_forward.1} parent=63 // pred_fallthru
          _
        %s513 = sand.u32 %s30, 1
        %s514 = scalar_lea.sflag [#allocation9], %s513
        %s515 = sand.u32 %s267, 1
        %s516 = smul.addr %s515, 1024
        %s517 = scalar_lea.vmem [#allocation8], %s516
        // Predicated region
        $region77: #{hf_model_list_forward.1} parent=63 // pred_check
          %p518 = pneg %p280
        $region78: #{hf_model_list_forward.1} parent=63 // pred_check_branch
          %520 = sbr.rel (%p518) target = $region80
        $region79: #{hf_model_list_forward.1} parent=63 // pred_region
          %521 = dma.done %s514, 16384
        $region80: #{hf_model_list_forward.1} parent=63 // pred_fallthru
          _
        %s522 = sand.u32 %s30, 1
        %s523 = scalar_lea.sflag [#allocation9], %s522
        %s524 = sand.u32 %s293, 1
        %s525 = smul.addr %s524, 2
        %s526 = scalar_lea.vmem [#allocation10], %s525
        // Predicated region
        $region81: #{hf_model_list_forward.1} parent=63 // pred_check
          %p527 = pneg %p306
        $region82: #{hf_model_list_forward.1} parent=63 // pred_check_branch
          %529 = sbr.rel (%p527) target = $region84
        $region83: #{hf_model_list_forward.1} parent=63 // pred_region
          %530 = dma.done %s523, 32
        $region84: #{hf_model_list_forward.1} parent=63 // pred_fallthru
          _
        %p531 = pneg %p46
        %p532 = pneg %p43
        %p533 = scmp.lt.s32.totalorder %s30, 1
        %s534 = scalar_select %p533, %s30, 1
        %s535 = smul.addr %s534, 2
        %s536 = scalar_lea.vmem %s1, %s535
        %p537 = pneg %p72
        %p538 = pneg %p69
        %p539 = scmp.lt.s32.totalorder %s30, 1
        %s540 = scalar_select %p539, %s30, 1
        %s541 = smul.addr %s540, 2
        %s542 = scalar_lea.vmem %s2, %s541
        %p543 = pneg %p98
        %p544 = pneg %p95
        %s545 = sand.u32 %s30, 1
        %s546 = scalar_lea.sflag [#allocation6], %s545
        %s547 = sand.u32 %s111, 1
        %s548 = smul.addr %s547, 768
        %s549 = scalar_lea.vmem [#allocation5], %s548
        %p550 = pneg %p124
        %p551 = pneg %p121
        %p552 = scmp.lt.s32.totalorder %s30, 1
        %s553 = scalar_select %p552, %s30, 1
        %s554 = smul.addr %s553, 64
        %s555 = smul.addr %s554, 4
        %s556 = scalar_lea.vmem %s4, %s555
        %p557 = pneg %p150
        %p558 = pneg %p147
        %p559 = scmp.lt.s32.totalorder %s30, 1
        %s560 = scalar_select %p559, %s30, 1
        %s561 = smul.addr %s560, 2
        %s562 = scalar_lea.vmem %s5, %s561
        %p563 = pneg %p176
        %p564 = pneg %p173
        %p565 = scmp.lt.s32.totalorder %s30, 1
        %s566 = scalar_select %p565, %s30, 1
        %s567 = smul.addr %s566, 2
        %s568 = scalar_lea.vmem %s6, %s567
        %p569 = pneg %p202
        %p570 = pneg %p199
        %s571 = sand.u32 %s30, 1
        %s572 = scalar_lea.sflag [#allocation6], %s571
        %s573 = sand.u32 %s215, 1
        %s574 = smul.addr %s573, 1024
        %s575 = scalar_lea.vmem [#allocation7], %s574
        %p576 = pneg %p228
        %p577 = pneg %p225
        %p578 = scmp.lt.s32.totalorder %s30, 1
        %s579 = scalar_select %p578, %s30, 1
        %s580 = smul.addr %s579, 8
        %s581 = scalar_lea.vmem %s8, %s580
        %p582 = pneg %p254
        %p583 = pneg %p251
        %s584 = sand.u32 %s30, 1
        %s585 = scalar_lea.sflag [#allocation9], %s584
        %s586 = sand.u32 %s267, 1
        %s587 = smul.addr %s586, 1024
        %s588 = scalar_lea.vmem [#allocation8], %s587
        %p589 = pneg %p280
        %p590 = pneg %p277
        %s591 = sand.u32 %s30, 1
        %s592 = scalar_lea.sflag [#allocation9], %s591
        %s593 = sand.u32 %s293, 1
        %s594 = smul.addr %s593, 2
        %s595 = scalar_lea.vmem [#allocation10], %s594
        %p596 = pneg %p306
        %p597 = pneg %p303
        %p598 = pneg %p327
        %p599 = pneg %p324
        %p600 = scmp.lt.s32.totalorder %s30, 1
        %s601 = scalar_select %p600, %s30, 1
        %s602 = smul.addr %s601, 2
        %s603 = scalar_lea.vmem %s1, %s602
        %p604 = scmp.lt.s32.totalorder %s30, 1
        %s605 = scalar_select %p604, %s30, 1
        %s606 = smul.addr %s605, 2
        %s607 = scalar_lea.vmem %s2, %s606
        %p608 = scmp.lt.s32.totalorder %s30, 1
        %s609 = scalar_select %p608, %s30, 1
        %s610 = smul.addr %s609, 64
        %s611 = smul.addr %s610, 4
        %s612 = scalar_lea.vmem %s4, %s611
        %p613 = scmp.lt.s32.totalorder %s30, 1
        %s614 = scalar_select %p613, %s30, 1
        %s615 = smul.addr %s614, 2
        %s616 = scalar_lea.vmem %s5, %s615
        %p617 = scmp.lt.s32.totalorder %s30, 1
        %s618 = scalar_select %p617, %s30, 1
        %s619 = smul.addr %s618, 2
        %s620 = scalar_lea.vmem %s6, %s619
        %p621 = scmp.lt.s32.totalorder %s30, 1
        %s622 = scalar_select %p621, %s30, 1
        %s623 = smul.addr %s622, 8
        %s624 = scalar_lea.vmem %s8, %s623
        %p626 = scmp.eq.s32.totalorder %s30, 0
        // Predicated region
        $region85: #{hf_model_list_forward.1} parent=63 // pred_check
          %p627 = pneg %p626
        $region86: #{hf_model_list_forward.1} parent=63 // pred_check_branch
          %629 = sbr.rel (%p627) target = $region88
        $region87: #{hf_model_list_forward.1} parent=63 // pred_region
          %v630 = vld [vmem:[#allocation2] sm:$0xff]
          %v631 = vld [vmem:[#allocation2 + $0x8] sm:$0xff]
          %v632 = vld [vmem:[#allocation2 + $0x10] sm:$0xff]
          %v633 = vld [vmem:[#allocation2 + $0x18] sm:$0xff]
          %v634 = vld [vmem:[#allocation2 + $0x20] sm:$0xff]
          %v635 = vld [vmem:[#allocation2 + $0x28] sm:$0xff]
          %v636 = vld [vmem:[#allocation2 + $0x30] sm:$0xff]
          %v637 = vld [vmem:[#allocation2 + $0x38] sm:$0xff]
          %v638 = vld [vmem:[#allocation2 + $0x40] sm:$0xff]
          %v639 = vld [vmem:[#allocation2 + $0x48] sm:$0xff]
          %v640 = vld [vmem:[#allocation2 + $0x50] sm:$0xff]
          %v641 = vld [vmem:[#allocation2 + $0x58] sm:$0xff]
          %v642 = vld [vmem:[#allocation2 + $0x60] sm:$0xff]
          %v643 = vld [vmem:[#allocation2 + $0x68] sm:$0xff]
          %v644 = vld [vmem:[#allocation2 + $0x70] sm:$0xff]
          %v645 = vld [vmem:[#allocation2 + $0x78] sm:$0xff]
          %v646 = vld [vmem:[#allocation2 + $0x80] sm:$0xff]
          %v647 = vld [vmem:[#allocation2 + $0x88] sm:$0xff]
          %v648 = vld [vmem:[#allocation2 + $0x90] sm:$0xff]
          %v649 = vld [vmem:[#allocation2 + $0x98] sm:$0xff]
          %v650 = vld [vmem:[#allocation2 + $0xa0] sm:$0xff]
          %v651 = vld [vmem:[#allocation2 + $0xa8] sm:$0xff]
          %v652 = vld [vmem:[#allocation2 + $0xb0] sm:$0xff]
          %v653 = vld [vmem:[#allocation2 + $0xb8] sm:$0xff]
          %v654 = vld [vmem:[#allocation2 + $0xc0] sm:$0xff]
          %v655 = vld [vmem:[#allocation2 + $0xc8] sm:$0xff]
          %v656 = vld [vmem:[#allocation2 + $0xd0] sm:$0xff]
          %v657 = vld [vmem:[#allocation2 + $0xd8] sm:$0xff]
          %v658 = vld [vmem:[#allocation2 + $0xe0] sm:$0xff]
          %v659 = vld [vmem:[#allocation2 + $0xe8] sm:$0xff]
          %v660 = vld [vmem:[#allocation2 + $0xf0] sm:$0xff]
          %v661 = vld [vmem:[#allocation2 + $0xf8] sm:$0xff]
          %662 = vst [vmem:[#allocation11] sm:$0xff] %v630
          %663 = vst [vmem:[#allocation11 + $0x8] sm:$0xff] %v631
          %664 = vst [vmem:[#allocation11 + $0x10] sm:$0xff] %v632
          %665 = vst [vmem:[#allocation11 + $0x18] sm:$0xff] %v633
          %666 = vst [vmem:[#allocation11 + $0x20] sm:$0xff] %v634
          %667 = vst [vmem:[#allocation11 + $0x28] sm:$0xff] %v635
          %668 = vst [vmem:[#allocation11 + $0x30] sm:$0xff] %v636
          %669 = vst [vmem:[#allocation11 + $0x38] sm:$0xff] %v637
          %670 = vst [vmem:[#allocation11 + $0x40] sm:$0xff] %v638
          %671 = vst [vmem:[#allocation11 + $0x48] sm:$0xff] %v639
          %672 = vst [vmem:[#allocation11 + $0x50] sm:$0xff] %v640
          %673 = vst [vmem:[#allocation11 + $0x58] sm:$0xff] %v641
          %674 = vst [vmem:[#allocation11 + $0x60] sm:$0xff] %v642
          %675 = vst [vmem:[#allocation11 + $0x68] sm:$0xff] %v643
          %676 = vst [vmem:[#allocation11 + $0x70] sm:$0xff] %v644
          %677 = vst [vmem:[#allocation11 + $0x78] sm:$0xff] %v645
          %678 = vst [vmem:[#allocation11 + $0x80] sm:$0xff] %v646
          %679 = vst [vmem:[#allocation11 + $0x88] sm:$0xff] %v647
          %680 = vst [vmem:[#allocation11 + $0x90] sm:$0xff] %v648
          %681 = vst [vmem:[#allocation11 + $0x98] sm:$0xff] %v649
          %682 = vst [vmem:[#allocation11 + $0xa0] sm:$0xff] %v650
          %683 = vst [vmem:[#allocation11 + $0xa8] sm:$0xff] %v651
          %684 = vst [vmem:[#allocation11 + $0xb0] sm:$0xff] %v652
          %685 = vst [vmem:[#allocation11 + $0xb8] sm:$0xff] %v653
          %686 = vst [vmem:[#allocation11 + $0xc0] sm:$0xff] %v654
          %687 = vst [vmem:[#allocation11 + $0xc8] sm:$0xff] %v655
          %688 = vst [vmem:[#allocation11 + $0xd0] sm:$0xff] %v656
          %689 = vst [vmem:[#allocation11 + $0xd8] sm:$0xff] %v657
          %690 = vst [vmem:[#allocation11 + $0xe0] sm:$0xff] %v658
          %691 = vst [vmem:[#allocation11 + $0xe8] sm:$0xff] %v659
          %692 = vst [vmem:[#allocation11 + $0xf0] sm:$0xff] %v660
          %693 = vst [vmem:[#allocation11 + $0xf8] sm:$0xff] %v661
        $region88: #{hf_model_list_forward.1} parent=63 // pred_fallthru
          _
        %v694 = vld [vmem:[#allocation11] sm:$0xff]
        %v695 = vld [vmem:[#allocation11 + $0x8] sm:$0xff]
        %v696 = vld [vmem:[#allocation11 + $0x10] sm:$0xff]
        %v697 = vld [vmem:[#allocation11 + $0x18] sm:$0xff]
        %v698 = vld [vmem:[#allocation11 + $0x20] sm:$0xff]
        %v699 = vld [vmem:[#allocation11 + $0x28] sm:$0xff]
        %v700 = vld [vmem:[#allocation11 + $0x30] sm:$0xff]
        %v701 = vld [vmem:[#allocation11 + $0x38] sm:$0xff]
        %v702 = vld [vmem:[#allocation11 + $0x40] sm:$0xff]
        %v703 = vld [vmem:[#allocation11 + $0x48] sm:$0xff]
        %v704 = vld [vmem:[#allocation11 + $0x50] sm:$0xff]
        %v705 = vld [vmem:[#allocation11 + $0x58] sm:$0xff]
        %v706 = vld [vmem:[#allocation11 + $0x60] sm:$0xff]
        %v707 = vld [vmem:[#allocation11 + $0x68] sm:$0xff]
        %v708 = vld [vmem:[#allocation11 + $0x70] sm:$0xff]
        %v709 = vld [vmem:[#allocation11 + $0x78] sm:$0xff]
        %v710 = vld [vmem:[#allocation11 + $0x80] sm:$0xff]
        %v711 = vld [vmem:[#allocation11 + $0x88] sm:$0xff]
        %v712 = vld [vmem:[#allocation11 + $0x90] sm:$0xff]
        %v713 = vld [vmem:[#allocation11 + $0x98] sm:$0xff]
        %v714 = vld [vmem:[#allocation11 + $0xa0] sm:$0xff]
        %v715 = vld [vmem:[#allocation11 + $0xa8] sm:$0xff]
        %v716 = vld [vmem:[#allocation11 + $0xb0] sm:$0xff]
        %v717 = vld [vmem:[#allocation11 + $0xb8] sm:$0xff]
        %v718 = vld [vmem:[#allocation11 + $0xc0] sm:$0xff]
        %v719 = vld [vmem:[#allocation11 + $0xc8] sm:$0xff]
        %v720 = vld [vmem:[#allocation11 + $0xd0] sm:$0xff]
        %v721 = vld [vmem:[#allocation11 + $0xd8] sm:$0xff]
        %v722 = vld [vmem:[#allocation11 + $0xe0] sm:$0xff]
        %v723 = vld [vmem:[#allocation11 + $0xe8] sm:$0xff]
        %v724 = vld [vmem:[#allocation11 + $0xf0] sm:$0xff]
        %v725 = vld [vmem:[#allocation11 + $0xf8] sm:$0xff]
        %v726 = vunpack.c.l.bf16 %v694
        %v727 = vunpack.c.h.bf16 %v694
        %v728 = vunpack.c.l.bf16 %v695
        %v729 = vunpack.c.h.bf16 %v695
        %v730 = vunpack.c.l.bf16 %v696
        %v731 = vunpack.c.h.bf16 %v696
        %v732 = vunpack.c.l.bf16 %v697
        %v733 = vunpack.c.h.bf16 %v697
        %v734 = vunpack.c.l.bf16 %v698
        %v735 = vunpack.c.h.bf16 %v698
        %v736 = vunpack.c.l.bf16 %v699
        %v737 = vunpack.c.h.bf16 %v699
        %v738 = vunpack.c.l.bf16 %v700
        %v739 = vunpack.c.h.bf16 %v700
        %v740 = vunpack.c.l.bf16 %v701
        %v741 = vunpack.c.h.bf16 %v701
        %v742 = vunpack.c.l.bf16 %v702
        %v743 = vunpack.c.h.bf16 %v702
        %v744 = vunpack.c.l.bf16 %v703
        %v745 = vunpack.c.h.bf16 %v703
        %v746 = vunpack.c.l.bf16 %v704
        %v747 = vunpack.c.h.bf16 %v704
        %v748 = vunpack.c.l.bf16 %v705
        %v749 = vunpack.c.h.bf16 %v705
        %v750 = vunpack.c.l.bf16 %v706
        %v751 = vunpack.c.h.bf16 %v706
        %v752 = vunpack.c.l.bf16 %v707
        %v753 = vunpack.c.h.bf16 %v707
        %v754 = vunpack.c.l.bf16 %v708
        %v755 = vunpack.c.h.bf16 %v708
        %v756 = vunpack.c.l.bf16 %v709
        %v757 = vunpack.c.h.bf16 %v709
        %v758 = vunpack.c.l.bf16 %v710
        %v759 = vunpack.c.h.bf16 %v710
        %v760 = vunpack.c.l.bf16 %v711
        %v761 = vunpack.c.h.bf16 %v711
        %v762 = vunpack.c.l.bf16 %v712
        %v763 = vunpack.c.h.bf16 %v712
        %v764 = vunpack.c.l.bf16 %v713
        %v765 = vunpack.c.h.bf16 %v713
        %v766 = vunpack.c.l.bf16 %v714
        %v767 = vunpack.c.h.bf16 %v714
        %v768 = vunpack.c.l.bf16 %v715
        %v769 = vunpack.c.h.bf16 %v715
        %v770 = vunpack.c.l.bf16 %v716
        %v771 = vunpack.c.h.bf16 %v716
        %v772 = vunpack.c.l.bf16 %v717
        %v773 = vunpack.c.h.bf16 %v717
        %v774 = vunpack.c.l.bf16 %v718
        %v775 = vunpack.c.h.bf16 %v718
        %v776 = vunpack.c.l.bf16 %v719
        %v777 = vunpack.c.h.bf16 %v719
        %v778 = vunpack.c.l.bf16 %v720
        %v779 = vunpack.c.h.bf16 %v720
        %v780 = vunpack.c.l.bf16 %v721
        %v781 = vunpack.c.h.bf16 %v721
        %v782 = vunpack.c.l.bf16 %v722
        %v783 = vunpack.c.h.bf16 %v722
        %v784 = vunpack.c.l.bf16 %v723
        %v785 = vunpack.c.h.bf16 %v723
        %v786 = vunpack.c.l.bf16 %v724
        %v787 = vunpack.c.h.bf16 %v724
        %v788 = vunpack.c.l.bf16 %v725
        %v789 = vunpack.c.h.bf16 %v725
        %v790 = vadd.f32 %v726, %v727
        %791 = vadd.xlane.f32.xlu0 %v790
        %v792 = vpop.xlane.xlu0 %791
        %v793 = vadd.f32 %v728, %v729
        %794 = vadd.xlane.f32.xlu0 %v793
        %v795 = vpop.xlane.xlu0 %794
        %v796 = vadd.f32 %v730, %v731
        %797 = vadd.xlane.f32.xlu0 %v796
        %v798 = vpop.xlane.xlu0 %797
        %v799 = vadd.f32 %v732, %v733
        %800 = vadd.xlane.f32.xlu0 %v799
        %v801 = vpop.xlane.xlu0 %800
        %v802 = vadd.f32 %v734, %v735
        %803 = vadd.xlane.f32.xlu0 %v802
        %v804 = vpop.xlane.xlu0 %803
        %v805 = vadd.f32 %v736, %v737
        %806 = vadd.xlane.f32.xlu0 %v805
        %v807 = vpop.xlane.xlu0 %806
        %v808 = vadd.f32 %v738, %v739
        %809 = vadd.xlane.f32.xlu0 %v808
        %v810 = vpop.xlane.xlu0 %809
        %v811 = vadd.f32 %v740, %v741
        %812 = vadd.xlane.f32.xlu0 %v811
        %v813 = vpop.xlane.xlu0 %812
        %v814 = vadd.f32 %v742, %v743
        %815 = vadd.xlane.f32.xlu0 %v814
        %v816 = vpop.xlane.xlu0 %815
        %v817 = vadd.f32 %v744, %v745
        %818 = vadd.xlane.f32.xlu0 %v817
        %v819 = vpop.xlane.xlu0 %818
        %v820 = vadd.f32 %v746, %v747
        %821 = vadd.xlane.f32.xlu0 %v820
        %v822 = vpop.xlane.xlu0 %821
        %v823 = vadd.f32 %v748, %v749
        %824 = vadd.xlane.f32.xlu0 %v823
        %v825 = vpop.xlane.xlu0 %824
        %v826 = vadd.f32 %v750, %v751
        %827 = vadd.xlane.f32.xlu0 %v826
        %v828 = vpop.xlane.xlu0 %827
        %v829 = vadd.f32 %v752, %v753
        %830 = vadd.xlane.f32.xlu0 %v829
        %v831 = vpop.xlane.xlu0 %830
        %v832 = vadd.f32 %v754, %v755
        %833 = vadd.xlane.f32.xlu0 %v832
        %v834 = vpop.xlane.xlu0 %833
        %v835 = vadd.f32 %v756, %v757
        %836 = vadd.xlane.f32.xlu0 %v835
        %v837 = vpop.xlane.xlu0 %836
        %v838 = vadd.f32 %v758, %v759
        %839 = vadd.xlane.f32.xlu0 %v838
        %v840 = vpop.xlane.xlu0 %839
        %v841 = vadd.f32 %v760, %v761
        %842 = vadd.xlane.f32.xlu0 %v841
        %v843 = vpop.xlane.xlu0 %842
        %v844 = vadd.f32 %v762, %v763
        %845 = vadd.xlane.f32.xlu0 %v844
        %v846 = vpop.xlane.xlu0 %845
        %v847 = vadd.f32 %v764, %v765
        %848 = vadd.xlane.f32.xlu0 %v847
        %v849 = vpop.xlane.xlu0 %848
        %v850 = vadd.f32 %v766, %v767
        %851 = vadd.xlane.f32.xlu0 %v850
        %v852 = vpop.xlane.xlu0 %851
        %v853 = vadd.f32 %v768, %v769
        %854 = vadd.xlane.f32.xlu0 %v853
        %v855 = vpop.xlane.xlu0 %854
        %v856 = vadd.f32 %v770, %v771
        %857 = vadd.xlane.f32.xlu0 %v856
        %v858 = vpop.xlane.xlu0 %857
        %v859 = vadd.f32 %v772, %v773
        %860 = vadd.xlane.f32.xlu0 %v859
        %v861 = vpop.xlane.xlu0 %860
        %v862 = vadd.f32 %v774, %v775
        %863 = vadd.xlane.f32.xlu0 %v862
        %v864 = vpop.xlane.xlu0 %863
        %v865 = vadd.f32 %v776, %v777
        %866 = vadd.xlane.f32.xlu0 %v865
        %v867 = vpop.xlane.xlu0 %866
        %v868 = vadd.f32 %v778, %v779
        %869 = vadd.xlane.f32.xlu0 %v868
        %v870 = vpop.xlane.xlu0 %869
        %v871 = vadd.f32 %v780, %v781
        %872 = vadd.xlane.f32.xlu0 %v871
        %v873 = vpop.xlane.xlu0 %872
        %v874 = vadd.f32 %v782, %v783
        %875 = vadd.xlane.f32.xlu0 %v874
        %v876 = vpop.xlane.xlu0 %875
        %v877 = vadd.f32 %v784, %v785
        %878 = vadd.xlane.f32.xlu0 %v877
        %v879 = vpop.xlane.xlu0 %878
        %v880 = vadd.f32 %v786, %v787
        %881 = vadd.xlane.f32.xlu0 %v880
        %v882 = vpop.xlane.xlu0 %881
        %v883 = vadd.f32 %v788, %v789
        %884 = vadd.xlane.f32.xlu0 %v883
        %v885 = vpop.xlane.xlu0 %884
        %v886 = vrcp.pop 256.0
        %v887 = vmul.f32 %v792, %v886
        %v888 = vmul.f32 %v795, %v886
        %v889 = vmul.f32 %v798, %v886
        %v890 = vmul.f32 %v801, %v886
        %v891 = vmul.f32 %v804, %v886
        %v892 = vmul.f32 %v807, %v886
        %v893 = vmul.f32 %v810, %v886
        %v894 = vmul.f32 %v813, %v886
        %v895 = vmul.f32 %v816, %v886
        %v896 = vmul.f32 %v819, %v886
        %v897 = vmul.f32 %v822, %v886
        %v898 = vmul.f32 %v825, %v886
        %v899 = vmul.f32 %v828, %v886
        %v900 = vmul.f32 %v831, %v886
        %v901 = vmul.f32 %v834, %v886
        %v902 = vmul.f32 %v837, %v886
        %v903 = vmul.f32 %v840, %v886
        %v904 = vmul.f32 %v843, %v886
        %v905 = vmul.f32 %v846, %v886
        %v906 = vmul.f32 %v849, %v886
        %v907 = vmul.f32 %v852, %v886
        %v908 = vmul.f32 %v855, %v886
        %v909 = vmul.f32 %v858, %v886
        %v910 = vmul.f32 %v861, %v886
        %v911 = vmul.f32 %v864, %v886
        %v912 = vmul.f32 %v867, %v886
        %v913 = vmul.f32 %v870, %v886
        %v914 = vmul.f32 %v873, %v886
        %v915 = vmul.f32 %v876, %v886
        %v916 = vmul.f32 %v879, %v886
        %v917 = vmul.f32 %v882, %v886
        %v918 = vmul.f32 %v885, %v886
        %v919 = vsub.f32 %v726, %v887
        %v920 = vsub.f32 %v727, %v887
        %v921 = vsub.f32 %v728, %v888
        %v922 = vsub.f32 %v729, %v888
        %v923 = vsub.f32 %v730, %v889
        %v924 = vsub.f32 %v731, %v889
        %v925 = vsub.f32 %v732, %v890
        %v926 = vsub.f32 %v733, %v890
        %v927 = vsub.f32 %v734, %v891
        %v928 = vsub.f32 %v735, %v891
        %v929 = vsub.f32 %v736, %v892
        %v930 = vsub.f32 %v737, %v892
        %v931 = vsub.f32 %v738, %v893
        %v932 = vsub.f32 %v739, %v893
        %v933 = vsub.f32 %v740, %v894
        %v934 = vsub.f32 %v741, %v894
        %v935 = vsub.f32 %v742, %v895
        %v936 = vsub.f32 %v743, %v895
        %v937 = vsub.f32 %v744, %v896
        %v938 = vsub.f32 %v745, %v896
        %v939 = vsub.f32 %v746, %v897
        %v940 = vsub.f32 %v747, %v897
        %v941 = vsub.f32 %v748, %v898
        %v942 = vsub.f32 %v749, %v898
        %v943 = vsub.f32 %v750, %v899
        %v944 = vsub.f32 %v751, %v899
        %v945 = vsub.f32 %v752, %v900
        %v946 = vsub.f32 %v753, %v900
        %v947 = vsub.f32 %v754, %v901
        %v948 = vsub.f32 %v755, %v901
        %v949 = vsub.f32 %v756, %v902
        %v950 = vsub.f32 %v757, %v902
        %v951 = vsub.f32 %v758, %v903
        %v952 = vsub.f32 %v759, %v903
        %v953 = vsub.f32 %v760, %v904
        %v954 = vsub.f32 %v761, %v904
        %v955 = vsub.f32 %v762, %v905
        %v956 = vsub.f32 %v763, %v905
        %v957 = vsub.f32 %v764, %v906
        %v958 = vsub.f32 %v765, %v906
        %v959 = vsub.f32 %v766, %v907
        %v960 = vsub.f32 %v767, %v907
        %v961 = vsub.f32 %v768, %v908
        %v962 = vsub.f32 %v769, %v908
        %v963 = vsub.f32 %v770, %v909
        %v964 = vsub.f32 %v771, %v909
        %v965 = vsub.f32 %v772, %v910
        %v966 = vsub.f32 %v773, %v910
        %v967 = vsub.f32 %v774, %v911
        %v968 = vsub.f32 %v775, %v911
        %v969 = vsub.f32 %v776, %v912
        %v970 = vsub.f32 %v777, %v912
        %v971 = vsub.f32 %v778, %v913
        %v972 = vsub.f32 %v779, %v913
        %v973 = vsub.f32 %v780, %v914
        %v974 = vsub.f32 %v781, %v914
        %v975 = vsub.f32 %v782, %v915
        %v976 = vsub.f32 %v783, %v915
        %v977 = vsub.f32 %v784, %v916
        %v978 = vsub.f32 %v785, %v916
        %v979 = vsub.f32 %v786, %v917
        %v980 = vsub.f32 %v787, %v917
        %v981 = vsub.f32 %v788, %v918
        %v982 = vsub.f32 %v789, %v918
        %v983 = vmul.f32 %v919, %v919
        %v984 = vmul.f32 %v920, %v920
        %v985 = vmul.f32 %v921, %v921
        %v986 = vmul.f32 %v922, %v922
        %v987 = vmul.f32 %v923, %v923
        %v988 = vmul.f32 %v924, %v924
        %v989 = vmul.f32 %v925, %v925
        %v990 = vmul.f32 %v926, %v926
        %v991 = vmul.f32 %v927, %v927
        %v992 = vmul.f32 %v928, %v928
        %v993 = vmul.f32 %v929, %v929
        %v994 = vmul.f32 %v930, %v930
        %v995 = vmul.f32 %v931, %v931
        %v996 = vmul.f32 %v932, %v932
        %v997 = vmul.f32 %v933, %v933
        %v998 = vmul.f32 %v934, %v934
        %v999 = vmul.f32 %v935, %v935
        %v1000 = vmul.f32 %v936, %v936
        %v1001 = vmul.f32 %v937, %v937
        %v1002 = vmul.f32 %v938, %v938
        %v1003 = vmul.f32 %v939, %v939
        %v1004 = vmul.f32 %v940, %v940
        %v1005 = vmul.f32 %v941, %v941
        %v1006 = vmul.f32 %v942, %v942
        %v1007 = vmul.f32 %v943, %v943
        %v1008 = vmul.f32 %v944, %v944
        %v1009 = vmul.f32 %v945, %v945
        %v1010 = vmul.f32 %v946, %v946
        %v1011 = vmul.f32 %v947, %v947
        %v1012 = vmul.f32 %v948, %v948
        %v1013 = vmul.f32 %v949, %v949
        %v1014 = vmul.f32 %v950, %v950
        %v1015 = vmul.f32 %v951, %v951
        %v1016 = vmul.f32 %v952, %v952
        %v1017 = vmul.f32 %v953, %v953
        %v1018 = vmul.f32 %v954, %v954
        %v1019 = vmul.f32 %v955, %v955
        %v1020 = vmul.f32 %v956, %v956
        %v1021 = vmul.f32 %v957, %v957
        %v1022 = vmul.f32 %v958, %v958
        %v1023 = vmul.f32 %v959, %v959
        %v1024 = vmul.f32 %v960, %v960
        %v1025 = vmul.f32 %v961, %v961
        %v1026 = vmul.f32 %v962, %v962
        %v1027 = vmul.f32 %v963, %v963
        %v1028 = vmul.f32 %v964, %v964
        %v1029 = vmul.f32 %v965, %v965
        %v1030 = vmul.f32 %v966, %v966
        %v1031 = vmul.f32 %v967, %v967
        %v1032 = vmul.f32 %v968, %v968
        %v1033 = vmul.f32 %v969, %v969
        %v1034 = vmul.f32 %v970, %v970
        %v1035 = vmul.f32 %v971, %v971
        %v1036 = vmul.f32 %v972, %v972
        %v1037 = vmul.f32 %v973, %v973
        %v1038 = vmul.f32 %v974, %v974
        %v1039 = vmul.f32 %v975, %v975
        %v1040 = vmul.f32 %v976, %v976
        %v1041 = vmul.f32 %v977, %v977
        %v1042 = vmul.f32 %v978, %v978
        %v1043 = vmul.f32 %v979, %v979
        %v1044 = vmul.f32 %v980, %v980
        %v1045 = vmul.f32 %v981, %v981
        %v1046 = vmul.f32 %v982, %v982
        %v1047 = vadd.f32 %v983, %v984
        %1048 = vadd.xlane.f32.xlu0 %v1047
        %v1049 = vpop.xlane.xlu0 %1048
        %v1050 = vadd.f32 %v985, %v986
        %1051 = vadd.xlane.f32.xlu0 %v1050
        %v1052 = vpop.xlane.xlu0 %1051
        %v1053 = vadd.f32 %v987, %v988
        %1054 = vadd.xlane.f32.xlu0 %v1053
        %v1055 = vpop.xlane.xlu0 %1054
        %v1056 = vadd.f32 %v989, %v990
        %1057 = vadd.xlane.f32.xlu0 %v1056
        %v1058 = vpop.xlane.xlu0 %1057
        %v1059 = vadd.f32 %v991, %v992
        %1060 = vadd.xlane.f32.xlu0 %v1059
        %v1061 = vpop.xlane.xlu0 %1060
        %v1062 = vadd.f32 %v993, %v994
        %1063 = vadd.xlane.f32.xlu0 %v1062
        %v1064 = vpop.xlane.xlu0 %1063
        %v1065 = vadd.f32 %v995, %v996
        %1066 = vadd.xlane.f32.xlu0 %v1065
        %v1067 = vpop.xlane.xlu0 %1066
        %v1068 = vadd.f32 %v997, %v998
        %1069 = vadd.xlane.f32.xlu0 %v1068
        %v1070 = vpop.xlane.xlu0 %1069
        %v1071 = vadd.f32 %v999, %v1000
        %1072 = vadd.xlane.f32.xlu0 %v1071
        %v1073 = vpop.xlane.xlu0 %1072
        %v1074 = vadd.f32 %v1001, %v1002
        %1075 = vadd.xlane.f32.xlu0 %v1074
        %v1076 = vpop.xlane.xlu0 %1075
        %v1077 = vadd.f32 %v1003, %v1004
        %1078 = vadd.xlane.f32.xlu0 %v1077
        %v1079 = vpop.xlane.xlu0 %1078
        %v1080 = vadd.f32 %v1005, %v1006
        %1081 = vadd.xlane.f32.xlu0 %v1080
        %v1082 = vpop.xlane.xlu0 %1081
        %v1083 = vadd.f32 %v1007, %v1008
        %1084 = vadd.xlane.f32.xlu0 %v1083
        %v1085 = vpop.xlane.xlu0 %1084
        %v1086 = vadd.f32 %v1009, %v1010
        %1087 = vadd.xlane.f32.xlu0 %v1086
        %v1088 = vpop.xlane.xlu0 %1087
        %v1089 = vadd.f32 %v1011, %v1012
        %1090 = vadd.xlane.f32.xlu0 %v1089
        %v1091 = vpop.xlane.xlu0 %1090
        %v1092 = vadd.f32 %v1013, %v1014
        %1093 = vadd.xlane.f32.xlu0 %v1092
        %v1094 = vpop.xlane.xlu0 %1093
        %v1095 = vadd.f32 %v1015, %v1016
        %1096 = vadd.xlane.f32.xlu0 %v1095
        %v1097 = vpop.xlane.xlu0 %1096
        %v1098 = vadd.f32 %v1017, %v1018
        %1099 = vadd.xlane.f32.xlu0 %v1098
        %v1100 = vpop.xlane.xlu0 %1099
        %v1101 = vadd.f32 %v1019, %v1020
        %1102 = vadd.xlane.f32.xlu0 %v1101
        %v1103 = vpop.xlane.xlu0 %1102
        %v1104 = vadd.f32 %v1021, %v1022
        %1105 = vadd.xlane.f32.xlu0 %v1104
        %v1106 = vpop.xlane.xlu0 %1105
        %v1107 = vadd.f32 %v1023, %v1024
        %1108 = vadd.xlane.f32.xlu0 %v1107
        %v1109 = vpop.xlane.xlu0 %1108
        %v1110 = vadd.f32 %v1025, %v1026
        %1111 = vadd.xlane.f32.xlu0 %v1110
        %v1112 = vpop.xlane.xlu0 %1111
        %v1113 = vadd.f32 %v1027, %v1028
        %1114 = vadd.xlane.f32.xlu0 %v1113
        %v1115 = vpop.xlane.xlu0 %1114
        %v1116 = vadd.f32 %v1029, %v1030
        %1117 = vadd.xlane.f32.xlu0 %v1116
        %v1118 = vpop.xlane.xlu0 %1117
        %v1119 = vadd.f32 %v1031, %v1032
        %1120 = vadd.xlane.f32.xlu0 %v1119
        %v1121 = vpop.xlane.xlu0 %1120
        %v1122 = vadd.f32 %v1033, %v1034
        %1123 = vadd.xlane.f32.xlu0 %v1122
        %v1124 = vpop.xlane.xlu0 %1123
        %v1125 = vadd.f32 %v1035, %v1036
        %1126 = vadd.xlane.f32.xlu0 %v1125
        %v1127 = vpop.xlane.xlu0 %1126
        %v1128 = vadd.f32 %v1037, %v1038
        %1129 = vadd.xlane.f32.xlu0 %v1128
        %v1130 = vpop.xlane.xlu0 %1129
        %v1131 = vadd.f32 %v1039, %v1040
        %1132 = vadd.xlane.f32.xlu0 %v1131
        %v1133 = vpop.xlane.xlu0 %1132
        %v1134 = vadd.f32 %v1041, %v1042
        %1135 = vadd.xlane.f32.xlu0 %v1134
        %v1136 = vpop.xlane.xlu0 %1135
        %v1137 = vadd.f32 %v1043, %v1044
        %1138 = vadd.xlane.f32.xlu0 %v1137
        %v1139 = vpop.xlane.xlu0 %1138
        %v1140 = vadd.f32 %v1045, %v1046
        %1141 = vadd.xlane.f32.xlu0 %v1140
        %v1142 = vpop.xlane.xlu0 %1141
        %v1143 = vmul.f32 %v1049, %v886
        %v1144 = vmul.f32 %v1052, %v886
        %v1145 = vmul.f32 %v1055, %v886
        %v1146 = vmul.f32 %v1058, %v886
        %v1147 = vmul.f32 %v1061, %v886
        %v1148 = vmul.f32 %v1064, %v886
        %v1149 = vmul.f32 %v1067, %v886
        %v1150 = vmul.f32 %v1070, %v886
        %v1151 = vmul.f32 %v1073, %v886
        %v1152 = vmul.f32 %v1076, %v886
        %v1153 = vmul.f32 %v1079, %v886
        %v1154 = vmul.f32 %v1082, %v886
        %v1155 = vmul.f32 %v1085, %v886
        %v1156 = vmul.f32 %v1088, %v886
        %v1157 = vmul.f32 %v1091, %v886
        %v1158 = vmul.f32 %v1094, %v886
        %v1159 = vmul.f32 %v1097, %v886
        %v1160 = vmul.f32 %v1100, %v886
        %v1161 = vmul.f32 %v1103, %v886
        %v1162 = vmul.f32 %v1106, %v886
        %v1163 = vmul.f32 %v1109, %v886
        %v1164 = vmul.f32 %v1112, %v886
        %v1165 = vmul.f32 %v1115, %v886
        %v1166 = vmul.f32 %v1118, %v886
        %v1167 = vmul.f32 %v1121, %v886
        %v1168 = vmul.f32 %v1124, %v886
        %v1169 = vmul.f32 %v1127, %v886
        %v1170 = vmul.f32 %v1130, %v886
        %v1171 = vmul.f32 %v1133, %v886
        %v1172 = vmul.f32 %v1136, %v886
        %v1173 = vmul.f32 %v1139, %v886
        %v1174 = vmul.f32 %v1142, %v886
        %v1175 = vadd.f32 %v1143, 1e-05
        %v1176 = vadd.f32 %v1144, 1e-05
        %v1177 = vadd.f32 %v1145, 1e-05
        %v1178 = vadd.f32 %v1146, 1e-05
        %v1179 = vadd.f32 %v1147, 1e-05
        %v1180 = vadd.f32 %v1148, 1e-05
        %v1181 = vadd.f32 %v1149, 1e-05
        %v1182 = vadd.f32 %v1150, 1e-05
        %v1183 = vadd.f32 %v1151, 1e-05
        %v1184 = vadd.f32 %v1152, 1e-05
        %v1185 = vadd.f32 %v1153, 1e-05
        %v1186 = vadd.f32 %v1154, 1e-05
        %v1187 = vadd.f32 %v1155, 1e-05
        %v1188 = vadd.f32 %v1156, 1e-05
        %v1189 = vadd.f32 %v1157, 1e-05
        %v1190 = vadd.f32 %v1158, 1e-05
        %v1191 = vadd.f32 %v1159, 1e-05
        %v1192 = vadd.f32 %v1160, 1e-05
        %v1193 = vadd.f32 %v1161, 1e-05
        %v1194 = vadd.f32 %v1162, 1e-05
        %v1195 = vadd.f32 %v1163, 1e-05
        %v1196 = vadd.f32 %v1164, 1e-05
        %v1197 = vadd.f32 %v1165, 1e-05
        %v1198 = vadd.f32 %v1166, 1e-05
        %v1199 = vadd.f32 %v1167, 1e-05
        %v1200 = vadd.f32 %v1168, 1e-05
        %v1201 = vadd.f32 %v1169, 1e-05
        %v1202 = vadd.f32 %v1170, 1e-05
        %v1203 = vadd.f32 %v1171, 1e-05
        %v1204 = vadd.f32 %v1172, 1e-05
        %v1205 = vadd.f32 %v1173, 1e-05
        %v1206 = vadd.f32 %v1174, 1e-05
        %v1207 = vrsqrt.pop %v1175
        %v1208 = vrsqrt.pop %v1176
        %v1209 = vrsqrt.pop %v1177
        %v1210 = vrsqrt.pop %v1178
        %v1211 = vrsqrt.pop %v1179
        %v1212 = vrsqrt.pop %v1180
        %v1213 = vrsqrt.pop %v1181
        %v1214 = vrsqrt.pop %v1182
        %v1215 = vrsqrt.pop %v1183
        %v1216 = vrsqrt.pop %v1184
        %v1217 = vrsqrt.pop %v1185
        %v1218 = vrsqrt.pop %v1186
        %v1219 = vrsqrt.pop %v1187
        %v1220 = vrsqrt.pop %v1188
        %v1221 = vrsqrt.pop %v1189
        %v1222 = vrsqrt.pop %v1190
        %v1223 = vrsqrt.pop %v1191
        %v1224 = vrsqrt.pop %v1192
        %v1225 = vrsqrt.pop %v1193
        %v1226 = vrsqrt.pop %v1194
        %v1227 = vrsqrt.pop %v1195
        %v1228 = vrsqrt.pop %v1196
        %v1229 = vrsqrt.pop %v1197
        %v1230 = vrsqrt.pop %v1198
        %v1231 = vrsqrt.pop %v1199
        %v1232 = vrsqrt.pop %v1200
        %v1233 = vrsqrt.pop %v1201
        %v1234 = vrsqrt.pop %v1202
        %v1235 = vrsqrt.pop %v1203
        %v1236 = vrsqrt.pop %v1204
        %v1237 = vrsqrt.pop %v1205
        %v1238 = vrsqrt.pop %v1206
        %v1239 = vmul.f32 %v919, %v1207
        %v1240 = vmul.f32 %v920, %v1207
        %v1241 = vmul.f32 %v921, %v1208
        %v1242 = vmul.f32 %v922, %v1208
        %v1243 = vmul.f32 %v923, %v1209
        %v1244 = vmul.f32 %v924, %v1209
        %v1245 = vmul.f32 %v925, %v1210
        %v1246 = vmul.f32 %v926, %v1210
        %v1247 = vmul.f32 %v927, %v1211
        %v1248 = vmul.f32 %v928, %v1211
        %v1249 = vmul.f32 %v929, %v1212
        %v1250 = vmul.f32 %v930, %v1212
        %v1251 = vmul.f32 %v931, %v1213
        %v1252 = vmul.f32 %v932, %v1213
        %v1253 = vmul.f32 %v933, %v1214
        %v1254 = vmul.f32 %v934, %v1214
        %v1255 = vmul.f32 %v935, %v1215
        %v1256 = vmul.f32 %v936, %v1215
        %v1257 = vmul.f32 %v937, %v1216
        %v1258 = vmul.f32 %v938, %v1216
        %v1259 = vmul.f32 %v939, %v1217
        %v1260 = vmul.f32 %v940, %v1217
        %v1261 = vmul.f32 %v941, %v1218
        %v1262 = vmul.f32 %v942, %v1218
        %v1263 = vmul.f32 %v943, %v1219
        %v1264 = vmul.f32 %v944, %v1219
        %v1265 = vmul.f32 %v945, %v1220
        %v1266 = vmul.f32 %v946, %v1220
        %v1267 = vmul.f32 %v947, %v1221
        %v1268 = vmul.f32 %v948, %v1221
        %v1269 = vmul.f32 %v949, %v1222
        %v1270 = vmul.f32 %v950, %v1222
        %v1271 = vmul.f32 %v951, %v1223
        %v1272 = vmul.f32 %v952, %v1223
        %v1273 = vmul.f32 %v953, %v1224
        %v1274 = vmul.f32 %v954, %v1224
        %v1275 = vmul.f32 %v955, %v1225
        %v1276 = vmul.f32 %v956, %v1225
        %v1277 = vmul.f32 %v957, %v1226
        %v1278 = vmul.f32 %v958, %v1226
        %v1279 = vmul.f32 %v959, %v1227
        %v1280 = vmul.f32 %v960, %v1227
        %v1281 = vmul.f32 %v961, %v1228
        %v1282 = vmul.f32 %v962, %v1228
        %v1283 = vmul.f32 %v963, %v1229
        %v1284 = vmul.f32 %v964, %v1229
        %v1285 = vmul.f32 %v965, %v1230
        %v1286 = vmul.f32 %v966, %v1230
        %v1287 = vmul.f32 %v967, %v1231
        %v1288 = vmul.f32 %v968, %v1231
        %v1289 = vmul.f32 %v969, %v1232
        %v1290 = vmul.f32 %v970, %v1232
        %v1291 = vmul.f32 %v971, %v1233
        %v1292 = vmul.f32 %v972, %v1233
        %v1293 = vmul.f32 %v973, %v1234
        %v1294 = vmul.f32 %v974, %v1234
        %v1295 = vmul.f32 %v975, %v1235
        %v1296 = vmul.f32 %v976, %v1235
        %v1297 = vmul.f32 %v977, %v1236
        %v1298 = vmul.f32 %v978, %v1236
        %v1299 = vmul.f32 %v979, %v1237
        %v1300 = vmul.f32 %v980, %v1237
        %v1301 = vmul.f32 %v981, %v1238
        %v1302 = vmul.f32 %v982, %v1238
        %v1303 = vld [vmem:[%s603] sm:$0x3]
        %v1305 = vlaneseq
        %v1306 = vshrl.u32 %v1305, 7
        %v1307 = vsub.s32 0, %v1306
        %v1308 = vrot.slane %v1303, %v1307
        %v1309 = vlaneseq
        %v1310 = vshrl.u32 %v1309, 7
        %v1311 = vsub.s32 1, %v1310
        %v1312 = vrot.slane %v1303, %v1311
        %v1315 = vmul.f32 %v1239, %v1308
        %v1316 = vmul.f32 %v1240, %v1312
        %v1317 = vmul.f32 %v1241, %v1308
        %v1318 = vmul.f32 %v1242, %v1312
        %v1319 = vmul.f32 %v1243, %v1308
        %v1320 = vmul.f32 %v1244, %v1312
        %v1321 = vmul.f32 %v1245, %v1308
        %v1322 = vmul.f32 %v1246, %v1312
        %v1323 = vmul.f32 %v1247, %v1308
        %v1324 = vmul.f32 %v1248, %v1312
        %v1325 = vmul.f32 %v1249, %v1308
        %v1326 = vmul.f32 %v1250, %v1312
        %v1327 = vmul.f32 %v1251, %v1308
        %v1328 = vmul.f32 %v1252, %v1312
        %v1329 = vmul.f32 %v1253, %v1308
        %v1330 = vmul.f32 %v1254, %v1312
        %v1331 = vmul.f32 %v1255, %v1308
        %v1332 = vmul.f32 %v1256, %v1312
        %v1333 = vmul.f32 %v1257, %v1308
        %v1334 = vmul.f32 %v1258, %v1312
        %v1335 = vmul.f32 %v1259, %v1308
        %v1336 = vmul.f32 %v1260, %v1312
        %v1337 = vmul.f32 %v1261, %v1308
        %v1338 = vmul.f32 %v1262, %v1312
        %v1339 = vmul.f32 %v1263, %v1308
        %v1340 = vmul.f32 %v1264, %v1312
        %v1341 = vmul.f32 %v1265, %v1308
        %v1342 = vmul.f32 %v1266, %v1312
        %v1343 = vmul.f32 %v1267, %v1308
        %v1344 = vmul.f32 %v1268, %v1312
        %v1345 = vmul.f32 %v1269, %v1308
        %v1346 = vmul.f32 %v1270, %v1312
        %v1347 = vmul.f32 %v1271, %v1308
        %v1348 = vmul.f32 %v1272, %v1312
        %v1349 = vmul.f32 %v1273, %v1308
        %v1350 = vmul.f32 %v1274, %v1312
        %v1351 = vmul.f32 %v1275, %v1308
        %v1352 = vmul.f32 %v1276, %v1312
        %v1353 = vmul.f32 %v1277, %v1308
        %v1354 = vmul.f32 %v1278, %v1312
        %v1355 = vmul.f32 %v1279, %v1308
        %v1356 = vmul.f32 %v1280, %v1312
        %v1357 = vmul.f32 %v1281, %v1308
        %v1358 = vmul.f32 %v1282, %v1312
        %v1359 = vmul.f32 %v1283, %v1308
        %v1360 = vmul.f32 %v1284, %v1312
        %v1361 = vmul.f32 %v1285, %v1308
        %v1362 = vmul.f32 %v1286, %v1312
        %v1363 = vmul.f32 %v1287, %v1308
        %v1364 = vmul.f32 %v1288, %v1312
        %v1365 = vmul.f32 %v1289, %v1308
        %v1366 = vmul.f32 %v1290, %v1312
        %v1367 = vmul.f32 %v1291, %v1308
        %v1368 = vmul.f32 %v1292, %v1312
        %v1369 = vmul.f32 %v1293, %v1308
        %v1370 = vmul.f32 %v1294, %v1312
        %v1371 = vmul.f32 %v1295, %v1308
        %v1372 = vmul.f32 %v1296, %v1312
        %v1373 = vmul.f32 %v1297, %v1308
        %v1374 = vmul.f32 %v1298, %v1312
        %v1375 = vmul.f32 %v1299, %v1308
        %v1376 = vmul.f32 %v1300, %v1312
        %v1377 = vmul.f32 %v1301, %v1308
        %v1378 = vmul.f32 %v1302, %v1312
        %v1379 = vld [vmem:[%s607] sm:$0x3]
        %v1381 = vlaneseq
        %v1382 = vshrl.u32 %v1381, 7
        %v1383 = vsub.s32 0, %v1382
        %v1384 = vrot.slane %v1379, %v1383
        %v1385 = vlaneseq
        %v1386 = vshrl.u32 %v1385, 7
        %v1387 = vsub.s32 1, %v1386
        %v1388 = vrot.slane %v1379, %v1387
        %v1391 = vadd.f32 %v1315, %v1384
        %v1392 = vadd.f32 %v1316, %v1388
        %v1393 = vadd.f32 %v1317, %v1384
        %v1394 = vadd.f32 %v1318, %v1388
        %v1395 = vadd.f32 %v1319, %v1384
        %v1396 = vadd.f32 %v1320, %v1388
        %v1397 = vadd.f32 %v1321, %v1384
        %v1398 = vadd.f32 %v1322, %v1388
        %v1399 = vadd.f32 %v1323, %v1384
        %v1400 = vadd.f32 %v1324, %v1388
        %v1401 = vadd.f32 %v1325, %v1384
        %v1402 = vadd.f32 %v1326, %v1388
        %v1403 = vadd.f32 %v1327, %v1384
        %v1404 = vadd.f32 %v1328, %v1388
        %v1405 = vadd.f32 %v1329, %v1384
        %v1406 = vadd.f32 %v1330, %v1388
        %v1407 = vadd.f32 %v1331, %v1384
        %v1408 = vadd.f32 %v1332, %v1388
        %v1409 = vadd.f32 %v1333, %v1384
        %v1410 = vadd.f32 %v1334, %v1388
        %v1411 = vadd.f32 %v1335, %v1384
        %v1412 = vadd.f32 %v1336, %v1388
        %v1413 = vadd.f32 %v1337, %v1384
        %v1414 = vadd.f32 %v1338, %v1388
        %v1415 = vadd.f32 %v1339, %v1384
        %v1416 = vadd.f32 %v1340, %v1388
        %v1417 = vadd.f32 %v1341, %v1384
        %v1418 = vadd.f32 %v1342, %v1388
        %v1419 = vadd.f32 %v1343, %v1384
        %v1420 = vadd.f32 %v1344, %v1388
        %v1421 = vadd.f32 %v1345, %v1384
        %v1422 = vadd.f32 %v1346, %v1388
        %v1423 = vadd.f32 %v1347, %v1384
        %v1424 = vadd.f32 %v1348, %v1388
        %v1425 = vadd.f32 %v1349, %v1384
        %v1426 = vadd.f32 %v1350, %v1388
        %v1427 = vadd.f32 %v1351, %v1384
        %v1428 = vadd.f32 %v1352, %v1388
        %v1429 = vadd.f32 %v1353, %v1384
        %v1430 = vadd.f32 %v1354, %v1388
        %v1431 = vadd.f32 %v1355, %v1384
        %v1432 = vadd.f32 %v1356, %v1388
        %v1433 = vadd.f32 %v1357, %v1384
        %v1434 = vadd.f32 %v1358, %v1388
        %v1435 = vadd.f32 %v1359, %v1384
        %v1436 = vadd.f32 %v1360, %v1388
        %v1437 = vadd.f32 %v1361, %v1384
        %v1438 = vadd.f32 %v1362, %v1388
        %v1439 = vadd.f32 %v1363, %v1384
        %v1440 = vadd.f32 %v1364, %v1388
        %v1441 = vadd.f32 %v1365, %v1384
        %v1442 = vadd.f32 %v1366, %v1388
        %v1443 = vadd.f32 %v1367, %v1384
        %v1444 = vadd.f32 %v1368, %v1388
        %v1445 = vadd.f32 %v1369, %v1384
        %v1446 = vadd.f32 %v1370, %v1388
        %v1447 = vadd.f32 %v1371, %v1384
        %v1448 = vadd.f32 %v1372, %v1388
        %v1449 = vadd.f32 %v1373, %v1384
        %v1450 = vadd.f32 %v1374, %v1388
        %v1451 = vadd.f32 %v1375, %v1384
        %v1452 = vadd.f32 %v1376, %v1388
        %v1453 = vadd.f32 %v1377, %v1384
        %v1454 = vadd.f32 %v1378, %v1388
        %v1455 = vpack.c.bf16 %v1393, %v1391
        %v1456 = vpack.c.bf16 %v1394, %v1392
        %v1457 = vpack.c.bf16 %v1397, %v1395
        %v1458 = vpack.c.bf16 %v1398, %v1396
        %v1459 = vpack.c.bf16 %v1401, %v1399
        %v1460 = vpack.c.bf16 %v1402, %v1400
        %v1461 = vpack.c.bf16 %v1405, %v1403
        %v1462 = vpack.c.bf16 %v1406, %v1404
        %v1463 = vpack.c.bf16 %v1409, %v1407
        %v1464 = vpack.c.bf16 %v1410, %v1408
        %v1465 = vpack.c.bf16 %v1413, %v1411
        %v1466 = vpack.c.bf16 %v1414, %v1412
        %v1467 = vpack.c.bf16 %v1417, %v1415
        %v1468 = vpack.c.bf16 %v1418, %v1416
        %v1469 = vpack.c.bf16 %v1421, %v1419
        %v1470 = vpack.c.bf16 %v1422, %v1420
        %v1471 = vpack.c.bf16 %v1425, %v1423
        %v1472 = vpack.c.bf16 %v1426, %v1424
        %v1473 = vpack.c.bf16 %v1429, %v1427
        %v1474 = vpack.c.bf16 %v1430, %v1428
        %v1475 = vpack.c.bf16 %v1433, %v1431
        %v1476 = vpack.c.bf16 %v1434, %v1432
        %v1477 = vpack.c.bf16 %v1437, %v1435
        %v1478 = vpack.c.bf16 %v1438, %v1436
        %v1479 = vpack.c.bf16 %v1441, %v1439
        %v1480 = vpack.c.bf16 %v1442, %v1440
        %v1481 = vpack.c.bf16 %v1445, %v1443
        %v1482 = vpack.c.bf16 %v1446, %v1444
        %v1483 = vpack.c.bf16 %v1449, %v1447
        %v1484 = vpack.c.bf16 %v1450, %v1448
        %v1485 = vpack.c.bf16 %v1453, %v1451
        %v1486 = vpack.c.bf16 %v1454, %v1452
        %v1487 = vld [vmem:[%s499] sm:$0xff]
        %v1488 = vld [vmem:[%s499 + $0x8] sm:$0xff]
        %v1489 = vld [vmem:[%s499 + $0x10] sm:$0xff]
        %v1490 = vld [vmem:[%s499 + $0x18] sm:$0xff]
        %v1491 = vld [vmem:[%s499 + $0x20] sm:$0xff]
        %v1492 = vld [vmem:[%s499 + $0x28] sm:$0xff]
        %v1493 = vld [vmem:[%s499 + $0x30] sm:$0xff]
        %v1494 = vld [vmem:[%s499 + $0x38] sm:$0xff]
        %v1495 = vld [vmem:[%s499 + $0x40] sm:$0xff]
        %v1496 = vld [vmem:[%s499 + $0x48] sm:$0xff]
        %v1497 = vld [vmem:[%s499 + $0x50] sm:$0xff]
        %v1498 = vld [vmem:[%s499 + $0x58] sm:$0xff]
        %v1499 = vld [vmem:[%s499 + $0x60] sm:$0xff]
        %v1500 = vld [vmem:[%s499 + $0x68] sm:$0xff]
        %v1501 = vld [vmem:[%s499 + $0x70] sm:$0xff]
        %v1502 = vld [vmem:[%s499 + $0x78] sm:$0xff]
        %v1503 = vld [vmem:[%s499 + $0x80] sm:$0xff]
        %v1504 = vld [vmem:[%s499 + $0x88] sm:$0xff]
        %v1505 = vld [vmem:[%s499 + $0x90] sm:$0xff]
        %v1506 = vld [vmem:[%s499 + $0x98] sm:$0xff]
        %v1507 = vld [vmem:[%s499 + $0xa0] sm:$0xff]
        %v1508 = vld [vmem:[%s499 + $0xa8] sm:$0xff]
        %v1509 = vld [vmem:[%s499 + $0xb0] sm:$0xff]
        %v1510 = vld [vmem:[%s499 + $0xb8] sm:$0xff]
        %v1511 = vld [vmem:[%s499 + $0xc0] sm:$0xff]
        %v1512 = vld [vmem:[%s499 + $0xc8] sm:$0xff]
        %v1513 = vld [vmem:[%s499 + $0xd0] sm:$0xff]
        %v1514 = vld [vmem:[%s499 + $0xd8] sm:$0xff]
        %v1515 = vld [vmem:[%s499 + $0xe0] sm:$0xff]
        %v1516 = vld [vmem:[%s499 + $0xe8] sm:$0xff]
        %v1517 = vld [vmem:[%s499 + $0xf0] sm:$0xff]
        %v1518 = vld [vmem:[%s499 + $0xf8] sm:$0xff]
        %v1519 = vld [vmem:[%s499 + $0x100] sm:$0xff]
        %v1520 = vld [vmem:[%s499 + $0x108] sm:$0xff]
        %v1521 = vld [vmem:[%s499 + $0x110] sm:$0xff]
        %v1522 = vld [vmem:[%s499 + $0x118] sm:$0xff]
        %v1523 = vld [vmem:[%s499 + $0x120] sm:$0xff]
        %v1524 = vld [vmem:[%s499 + $0x128] sm:$0xff]
        %v1525 = vld [vmem:[%s499 + $0x130] sm:$0xff]
        %v1526 = vld [vmem:[%s499 + $0x138] sm:$0xff]
        %v1527 = vld [vmem:[%s499 + $0x140] sm:$0xff]
        %v1528 = vld [vmem:[%s499 + $0x148] sm:$0xff]
        %v1529 = vld [vmem:[%s499 + $0x150] sm:$0xff]
        %v1530 = vld [vmem:[%s499 + $0x158] sm:$0xff]
        %v1531 = vld [vmem:[%s499 + $0x160] sm:$0xff]
        %v1532 = vld [vmem:[%s499 + $0x168] sm:$0xff]
        %v1533 = vld [vmem:[%s499 + $0x170] sm:$0xff]
        %v1534 = vld [vmem:[%s499 + $0x178] sm:$0xff]
        %v1535 = vld [vmem:[%s499 + $0x180] sm:$0xff]
        %v1536 = vld [vmem:[%s499 + $0x188] sm:$0xff]
        %v1537 = vld [vmem:[%s499 + $0x190] sm:$0xff]
        %v1538 = vld [vmem:[%s499 + $0x198] sm:$0xff]
        %v1539 = vld [vmem:[%s499 + $0x1a0] sm:$0xff]
        %v1540 = vld [vmem:[%s499 + $0x1a8] sm:$0xff]
        %v1541 = vld [vmem:[%s499 + $0x1b0] sm:$0xff]
        %v1542 = vld [vmem:[%s499 + $0x1b8] sm:$0xff]
        %v1543 = vld [vmem:[%s499 + $0x1c0] sm:$0xff]
        %v1544 = vld [vmem:[%s499 + $0x1c8] sm:$0xff]
        %v1545 = vld [vmem:[%s499 + $0x1d0] sm:$0xff]
        %v1546 = vld [vmem:[%s499 + $0x1d8] sm:$0xff]
        %v1547 = vld [vmem:[%s499 + $0x1e0] sm:$0xff]
        %v1548 = vld [vmem:[%s499 + $0x1e8] sm:$0xff]
        %v1549 = vld [vmem:[%s499 + $0x1f0] sm:$0xff]
        %v1550 = vld [vmem:[%s499 + $0x1f8] sm:$0xff]
        %v1551 = vld [vmem:[%s499 + $0x200] sm:$0xff]
        %v1552 = vld [vmem:[%s499 + $0x208] sm:$0xff]
        %v1553 = vld [vmem:[%s499 + $0x210] sm:$0xff]
        %v1554 = vld [vmem:[%s499 + $0x218] sm:$0xff]
        %v1555 = vld [vmem:[%s499 + $0x220] sm:$0xff]
        %v1556 = vld [vmem:[%s499 + $0x228] sm:$0xff]
        %v1557 = vld [vmem:[%s499 + $0x230] sm:$0xff]
        %v1558 = vld [vmem:[%s499 + $0x238] sm:$0xff]
        %v1559 = vld [vmem:[%s499 + $0x240] sm:$0xff]
        %v1560 = vld [vmem:[%s499 + $0x248] sm:$0xff]
        %v1561 = vld [vmem:[%s499 + $0x250] sm:$0xff]
        %v1562 = vld [vmem:[%s499 + $0x258] sm:$0xff]
        %v1563 = vld [vmem:[%s499 + $0x260] sm:$0xff]
        %v1564 = vld [vmem:[%s499 + $0x268] sm:$0xff]
        %v1565 = vld [vmem:[%s499 + $0x270] sm:$0xff]
        %v1566 = vld [vmem:[%s499 + $0x278] sm:$0xff]
        %v1567 = vld [vmem:[%s499 + $0x280] sm:$0xff]
        %v1568 = vld [vmem:[%s499 + $0x288] sm:$0xff]
        %v1569 = vld [vmem:[%s499 + $0x290] sm:$0xff]
        %v1570 = vld [vmem:[%s499 + $0x298] sm:$0xff]
        %v1571 = vld [vmem:[%s499 + $0x2a0] sm:$0xff]
        %v1572 = vld [vmem:[%s499 + $0x2a8] sm:$0xff]
        %v1573 = vld [vmem:[%s499 + $0x2b0] sm:$0xff]
        %v1574 = vld [vmem:[%s499 + $0x2b8] sm:$0xff]
        %v1575 = vld [vmem:[%s499 + $0x2c0] sm:$0xff]
        %v1576 = vld [vmem:[%s499 + $0x2c8] sm:$0xff]
        %v1577 = vld [vmem:[%s499 + $0x2d0] sm:$0xff]
        %v1578 = vld [vmem:[%s499 + $0x2d8] sm:$0xff]
        %v1579 = vld [vmem:[%s499 + $0x2e0] sm:$0xff]
        %v1580 = vld [vmem:[%s499 + $0x2e8] sm:$0xff]
        %v1581 = vld [vmem:[%s499 + $0x2f0] sm:$0xff]
        %v1582 = vld [vmem:[%s499 + $0x2f8] sm:$0xff]
        %v1679 = vunpack.c.l.b16 %v1487
        %v1680 = vunpack.c.h.b16 %v1487
        %v1681 = vunpack.c.l.b16 %v1488
        %v1682 = vunpack.c.h.b16 %v1488
        %v1683 = vunpack.c.l.b16 %v1489
        %v1684 = vunpack.c.h.b16 %v1489
        %v1685 = vunpack.c.l.b16 %v1490
        %v1686 = vunpack.c.h.b16 %v1490
        %v1687 = vunpack.c.l.b16 %v1491
        %v1688 = vunpack.c.h.b16 %v1491
        %v1689 = vunpack.c.l.b16 %v1492
        %v1690 = vunpack.c.h.b16 %v1492
        %v1691 = vunpack.c.l.b16 %v1493
        %v1692 = vunpack.c.h.b16 %v1493
        %v1693 = vunpack.c.l.b16 %v1494
        %v1694 = vunpack.c.h.b16 %v1494
        %v1695 = vunpack.c.l.b16 %v1495
        %v1696 = vunpack.c.h.b16 %v1495
        %v1697 = vunpack.c.l.b16 %v1496
        %v1698 = vunpack.c.h.b16 %v1496
        %v1699 = vunpack.c.l.b16 %v1497
        %v1700 = vunpack.c.h.b16 %v1497
        %v1701 = vunpack.c.l.b16 %v1498
        %v1702 = vunpack.c.h.b16 %v1498
        %v1703 = vunpack.c.l.b16 %v1499
        %v1704 = vunpack.c.h.b16 %v1499
        %v1705 = vunpack.c.l.b16 %v1500
        %v1706 = vunpack.c.h.b16 %v1500
        %v1707 = vunpack.c.l.b16 %v1501
        %v1708 = vunpack.c.h.b16 %v1501
        %v1709 = vunpack.c.l.b16 %v1502
        %v1710 = vunpack.c.h.b16 %v1502
        %v1711 = vunpack.c.l.b16 %v1503
        %v1712 = vunpack.c.h.b16 %v1503
        %v1713 = vunpack.c.l.b16 %v1504
        %v1714 = vunpack.c.h.b16 %v1504
        %v1715 = vunpack.c.l.b16 %v1505
        %v1716 = vunpack.c.h.b16 %v1505
        %v1717 = vunpack.c.l.b16 %v1506
        %v1718 = vunpack.c.h.b16 %v1506
        %v1719 = vunpack.c.l.b16 %v1507
        %v1720 = vunpack.c.h.b16 %v1507
        %v1721 = vunpack.c.l.b16 %v1508
        %v1722 = vunpack.c.h.b16 %v1508
        %v1723 = vunpack.c.l.b16 %v1509
        %v1724 = vunpack.c.h.b16 %v1509
        %v1725 = vunpack.c.l.b16 %v1510
        %v1726 = vunpack.c.h.b16 %v1510
        %v1727 = vunpack.c.l.b16 %v1511
        %v1728 = vunpack.c.h.b16 %v1511
        %v1729 = vunpack.c.l.b16 %v1512
        %v1730 = vunpack.c.h.b16 %v1512
        %v1731 = vunpack.c.l.b16 %v1513
        %v1732 = vunpack.c.h.b16 %v1513
        %v1733 = vunpack.c.l.b16 %v1514
        %v1734 = vunpack.c.h.b16 %v1514
        %v1735 = vunpack.c.l.b16 %v1515
        %v1736 = vunpack.c.h.b16 %v1515
        %v1737 = vunpack.c.l.b16 %v1516
        %v1738 = vunpack.c.h.b16 %v1516
        %v1739 = vunpack.c.l.b16 %v1517
        %v1740 = vunpack.c.h.b16 %v1517
        %v1741 = vunpack.c.l.b16 %v1518
        %v1742 = vunpack.c.h.b16 %v1518
        %v1743 = vunpack.c.l.b16 %v1519
        %v1744 = vunpack.c.h.b16 %v1519
        %v1745 = vunpack.c.l.b16 %v1520
        %v1746 = vunpack.c.h.b16 %v1520
        %v1747 = vunpack.c.l.b16 %v1521
        %v1748 = vunpack.c.h.b16 %v1521
        %v1749 = vunpack.c.l.b16 %v1522
        %v1750 = vunpack.c.h.b16 %v1522
        %v1751 = vunpack.c.l.b16 %v1523
        %v1752 = vunpack.c.h.b16 %v1523
        %v1753 = vunpack.c.l.b16 %v1524
        %v1754 = vunpack.c.h.b16 %v1524
        %v1755 = vunpack.c.l.b16 %v1525
        %v1756 = vunpack.c.h.b16 %v1525
        %v1757 = vunpack.c.l.b16 %v1526
        %v1758 = vunpack.c.h.b16 %v1526
        %v1759 = vunpack.c.l.b16 %v1527
        %v1760 = vunpack.c.h.b16 %v1527
        %v1761 = vunpack.c.l.b16 %v1528
        %v1762 = vunpack.c.h.b16 %v1528
        %v1763 = vunpack.c.l.b16 %v1529
        %v1764 = vunpack.c.h.b16 %v1529
        %v1765 = vunpack.c.l.b16 %v1530
        %v1766 = vunpack.c.h.b16 %v1530
        %v1767 = vunpack.c.l.b16 %v1531
        %v1768 = vunpack.c.h.b16 %v1531
        %v1769 = vunpack.c.l.b16 %v1532
        %v1770 = vunpack.c.h.b16 %v1532
        %v1771 = vunpack.c.l.b16 %v1533
        %v1772 = vunpack.c.h.b16 %v1533
        %v1773 = vunpack.c.l.b16 %v1534
        %v1774 = vunpack.c.h.b16 %v1534
        %v1775 = vunpack.c.l.b16 %v1535
        %v1776 = vunpack.c.h.b16 %v1535
        %v1777 = vunpack.c.l.b16 %v1536
        %v1778 = vunpack.c.h.b16 %v1536
        %v1779 = vunpack.c.l.b16 %v1537
        %v1780 = vunpack.c.h.b16 %v1537
        %v1781 = vunpack.c.l.b16 %v1538
        %v1782 = vunpack.c.h.b16 %v1538
        %v1783 = vunpack.c.l.b16 %v1539
        %v1784 = vunpack.c.h.b16 %v1539
        %v1785 = vunpack.c.l.b16 %v1540
        %v1786 = vunpack.c.h.b16 %v1540
        %v1787 = vunpack.c.l.b16 %v1541
        %v1788 = vunpack.c.h.b16 %v1541
        %v1789 = vunpack.c.l.b16 %v1542
        %v1790 = vunpack.c.h.b16 %v1542
        %v1791 = vunpack.c.l.b16 %v1543
        %v1792 = vunpack.c.h.b16 %v1543
        %v1793 = vunpack.c.l.b16 %v1544
        %v1794 = vunpack.c.h.b16 %v1544
        %v1795 = vunpack.c.l.b16 %v1545
        %v1796 = vunpack.c.h.b16 %v1545
        %v1797 = vunpack.c.l.b16 %v1546
        %v1798 = vunpack.c.h.b16 %v1546
        %v1799 = vunpack.c.l.b16 %v1547
        %v1800 = vunpack.c.h.b16 %v1547
        %v1801 = vunpack.c.l.b16 %v1548
        %v1802 = vunpack.c.h.b16 %v1548
        %v1803 = vunpack.c.l.b16 %v1549
        %v1804 = vunpack.c.h.b16 %v1549
        %v1805 = vunpack.c.l.b16 %v1550
        %v1806 = vunpack.c.h.b16 %v1550
        %v1807 = vunpack.c.l.b16 %v1551
        %v1808 = vunpack.c.h.b16 %v1551
        %v1809 = vunpack.c.l.b16 %v1552
        %v1810 = vunpack.c.h.b16 %v1552
        %v1811 = vunpack.c.l.b16 %v1553
        %v1812 = vunpack.c.h.b16 %v1553
        %v1813 = vunpack.c.l.b16 %v1554
        %v1814 = vunpack.c.h.b16 %v1554
        %v1815 = vunpack.c.l.b16 %v1555
        %v1816 = vunpack.c.h.b16 %v1555
        %v1817 = vunpack.c.l.b16 %v1556
        %v1818 = vunpack.c.h.b16 %v1556
        %v1819 = vunpack.c.l.b16 %v1557
        %v1820 = vunpack.c.h.b16 %v1557
        %v1821 = vunpack.c.l.b16 %v1558
        %v1822 = vunpack.c.h.b16 %v1558
        %v1823 = vunpack.c.l.b16 %v1559
        %v1824 = vunpack.c.h.b16 %v1559
        %v1825 = vunpack.c.l.b16 %v1560
        %v1826 = vunpack.c.h.b16 %v1560
        %v1827 = vunpack.c.l.b16 %v1561
        %v1828 = vunpack.c.h.b16 %v1561
        %v1829 = vunpack.c.l.b16 %v1562
        %v1830 = vunpack.c.h.b16 %v1562
        %v1831 = vunpack.c.l.b16 %v1563
        %v1832 = vunpack.c.h.b16 %v1563
        %v1833 = vunpack.c.l.b16 %v1564
        %v1834 = vunpack.c.h.b16 %v1564
        %v1835 = vunpack.c.l.b16 %v1565
        %v1836 = vunpack.c.h.b16 %v1565
        %v1837 = vunpack.c.l.b16 %v1566
        %v1838 = vunpack.c.h.b16 %v1566
        %v1839 = vunpack.c.l.b16 %v1567
        %v1840 = vunpack.c.h.b16 %v1567
        %v1841 = vunpack.c.l.b16 %v1568
        %v1842 = vunpack.c.h.b16 %v1568
        %v1843 = vunpack.c.l.b16 %v1569
        %v1844 = vunpack.c.h.b16 %v1569
        %v1845 = vunpack.c.l.b16 %v1570
        %v1846 = vunpack.c.h.b16 %v1570
        %v1847 = vunpack.c.l.b16 %v1571
        %v1848 = vunpack.c.h.b16 %v1571
        %v1849 = vunpack.c.l.b16 %v1572
        %v1850 = vunpack.c.h.b16 %v1572
        %v1851 = vunpack.c.l.b16 %v1573
        %v1852 = vunpack.c.h.b16 %v1573
        %v1853 = vunpack.c.l.b16 %v1574
        %v1854 = vunpack.c.h.b16 %v1574
        %v1855 = vunpack.c.l.b16 %v1575
        %v1856 = vunpack.c.h.b16 %v1575
        %v1857 = vunpack.c.l.b16 %v1576
        %v1858 = vunpack.c.h.b16 %v1576
        %v1859 = vunpack.c.l.b16 %v1577
        %v1860 = vunpack.c.h.b16 %v1577
        %v1861 = vunpack.c.l.b16 %v1578
        %v1862 = vunpack.c.h.b16 %v1578
        %v1863 = vunpack.c.l.b16 %v1579
        %v1864 = vunpack.c.h.b16 %v1579
        %v1865 = vunpack.c.l.b16 %v1580
        %v1866 = vunpack.c.h.b16 %v1580
        %v1867 = vunpack.c.l.b16 %v1581
        %v1868 = vunpack.c.h.b16 %v1581
        %v1869 = vunpack.c.l.b16 %v1582
        %v1870 = vunpack.c.h.b16 %v1582
        %v1871 = vpack.c.b16 %v1685, %v1679
        %v1872 = vpack.c.b16 %v1686, %v1680
        %v1873 = vpack.c.b16 %v1687, %v1681
        %v1874 = vpack.c.b16 %v1688, %v1682
        %v1875 = vpack.c.b16 %v1689, %v1683
        %v1876 = vpack.c.b16 %v1690, %v1684
        %v1877 = vpack.c.b16 %v1697, %v1691
        %v1878 = vpack.c.b16 %v1698, %v1692
        %v1879 = vpack.c.b16 %v1699, %v1693
        %v1880 = vpack.c.b16 %v1700, %v1694
        %v1881 = vpack.c.b16 %v1701, %v1695
        %v1882 = vpack.c.b16 %v1702, %v1696
        %v1883 = vpack.c.b16 %v1709, %v1703
        %v1884 = vpack.c.b16 %v1710, %v1704
        %v1885 = vpack.c.b16 %v1711, %v1705
        %v1886 = vpack.c.b16 %v1712, %v1706
        %v1887 = vpack.c.b16 %v1713, %v1707
        %v1888 = vpack.c.b16 %v1714, %v1708
        %v1889 = vpack.c.b16 %v1721, %v1715
        %v1890 = vpack.c.b16 %v1722, %v1716
        %v1891 = vpack.c.b16 %v1723, %v1717
        %v1892 = vpack.c.b16 %v1724, %v1718
        %v1893 = vpack.c.b16 %v1725, %v1719
        %v1894 = vpack.c.b16 %v1726, %v1720
        %v1895 = vpack.c.b16 %v1733, %v1727
        %v1896 = vpack.c.b16 %v1734, %v1728
        %v1897 = vpack.c.b16 %v1735, %v1729
        %v1898 = vpack.c.b16 %v1736, %v1730
        %v1899 = vpack.c.b16 %v1737, %v1731
        %v1900 = vpack.c.b16 %v1738, %v1732
        %v1901 = vpack.c.b16 %v1745, %v1739
        %v1902 = vpack.c.b16 %v1746, %v1740
        %v1903 = vpack.c.b16 %v1747, %v1741
        %v1904 = vpack.c.b16 %v1748, %v1742
        %v1905 = vpack.c.b16 %v1749, %v1743
        %v1906 = vpack.c.b16 %v1750, %v1744
        %v1907 = vpack.c.b16 %v1757, %v1751
        %v1908 = vpack.c.b16 %v1758, %v1752
        %v1909 = vpack.c.b16 %v1759, %v1753
        %v1910 = vpack.c.b16 %v1760, %v1754
        %v1911 = vpack.c.b16 %v1761, %v1755
        %v1912 = vpack.c.b16 %v1762, %v1756
        %v1913 = vpack.c.b16 %v1769, %v1763
        %v1914 = vpack.c.b16 %v1770, %v1764
        %v1915 = vpack.c.b16 %v1771, %v1765
        %v1916 = vpack.c.b16 %v1772, %v1766
        %v1917 = vpack.c.b16 %v1773, %v1767
        %v1918 = vpack.c.b16 %v1774, %v1768
        %v1919 = vpack.c.b16 %v1781, %v1775
        %v1920 = vpack.c.b16 %v1782, %v1776
        %v1921 = vpack.c.b16 %v1783, %v1777
        %v1922 = vpack.c.b16 %v1784, %v1778
        %v1923 = vpack.c.b16 %v1785, %v1779
        %v1924 = vpack.c.b16 %v1786, %v1780
        %v1925 = vpack.c.b16 %v1793, %v1787
        %v1926 = vpack.c.b16 %v1794, %v1788
        %v1927 = vpack.c.b16 %v1795, %v1789
        %v1928 = vpack.c.b16 %v1796, %v1790
        %v1929 = vpack.c.b16 %v1797, %v1791
        %v1930 = vpack.c.b16 %v1798, %v1792
        %v1931 = vpack.c.b16 %v1805, %v1799
        %v1932 = vpack.c.b16 %v1806, %v1800
        %v1933 = vpack.c.b16 %v1807, %v1801
        %v1934 = vpack.c.b16 %v1808, %v1802
        %v1935 = vpack.c.b16 %v1809, %v1803
        %v1936 = vpack.c.b16 %v1810, %v1804
        %v1937 = vpack.c.b16 %v1817, %v1811
        %v1938 = vpack.c.b16 %v1818, %v1812
        %v1939 = vpack.c.b16 %v1819, %v1813
        %v1940 = vpack.c.b16 %v1820, %v1814
        %v1941 = vpack.c.b16 %v1821, %v1815
        %v1942 = vpack.c.b16 %v1822, %v1816
        %v1943 = vpack.c.b16 %v1829, %v1823
        %v1944 = vpack.c.b16 %v1830, %v1824
        %v1945 = vpack.c.b16 %v1831, %v1825
        %v1946 = vpack.c.b16 %v1832, %v1826
        %v1947 = vpack.c.b16 %v1833, %v1827
        %v1948 = vpack.c.b16 %v1834, %v1828
        %v1949 = vpack.c.b16 %v1841, %v1835
        %v1950 = vpack.c.b16 %v1842, %v1836
        %v1951 = vpack.c.b16 %v1843, %v1837
        %v1952 = vpack.c.b16 %v1844, %v1838
        %v1953 = vpack.c.b16 %v1845, %v1839
        %v1954 = vpack.c.b16 %v1846, %v1840
        %v1955 = vpack.c.b16 %v1853, %v1847
        %v1956 = vpack.c.b16 %v1854, %v1848
        %v1957 = vpack.c.b16 %v1855, %v1849
        %v1958 = vpack.c.b16 %v1856, %v1850
        %v1959 = vpack.c.b16 %v1857, %v1851
        %v1960 = vpack.c.b16 %v1858, %v1852
        %v1961 = vpack.c.b16 %v1865, %v1859
        %v1962 = vpack.c.b16 %v1866, %v1860
        %v1963 = vpack.c.b16 %v1867, %v1861
        %v1964 = vpack.c.b16 %v1868, %v1862
        %v1965 = vpack.c.b16 %v1869, %v1863
        %v1966 = vpack.c.b16 %v1870, %v1864
        %2063 = vmatprep.subr.bf16.mxu0 %v1872
        %2064 = vmatpush1.bf16.msra.mxu0 %v1871
        %2065 = vmatprep.subr.bf16.mxu0 %v1878
        %2066 = vmatpush1.bf16.msra.mxu0 %v1877
        %2067 = vmatprep.subr.bf16.mxu0 %v1884
        %2068 = vmatpush1.bf16.msra.mxu0 %v1883
        %2069 = vmatprep.subr.bf16.mxu0 %v1890
        %2070 = vmatpush1.bf16.msra.mxu0 %v1889
        %2071 = vmatprep.subr.bf16.mxu0 %v1896
        %2072 = vmatpush1.bf16.msra.mxu0 %v1895
        %2073 = vmatprep.subr.bf16.mxu0 %v1902
        %2074 = vmatpush1.bf16.msra.mxu0 %v1901
        %2075 = vmatprep.subr.bf16.mxu0 %v1908
        %2076 = vmatpush1.bf16.msra.mxu0 %v1907
        %2077 = vmatprep.subr.bf16.mxu0 %v1914
        %2078 = vmatpush1.bf16.msra.mxu0 %v1913
        %2079 = vmatprep.subr.bf16.mxu0 %v1920
        %2080 = vmatpush1.bf16.msra.mxu0 %v1919
        %2081 = vmatprep.subr.bf16.mxu0 %v1926
        %2082 = vmatpush1.bf16.msra.mxu0 %v1925
        %2083 = vmatprep.subr.bf16.mxu0 %v1932
        %2084 = vmatpush1.bf16.msra.mxu0 %v1931
        %2085 = vmatprep.subr.bf16.mxu0 %v1938
        %2086 = vmatpush1.bf16.msra.mxu0 %v1937
        %2087 = vmatprep.subr.bf16.mxu0 %v1944
        %2088 = vmatpush1.bf16.msra.mxu0 %v1943
        %2089 = vmatprep.subr.bf16.mxu0 %v1950
        %2090 = vmatpush1.bf16.msra.mxu0 %v1949
        %2091 = vmatprep.subr.bf16.mxu0 %v1956
        %2092 = vmatpush1.bf16.msra.mxu0 %v1955
        %2093 = vmatprep.subr.bf16.mxu0 %v1962
        %2094 = vmatpush1.bf16.msra.mxu0 %v1961
        %2095 = vmatprep.mubr.bf16.mxu0 %v1456
        %2096 = vmatmul.mubr.bf16.gmra.mrb[0].mxu0 %v1455
        %v2097 = vpop.f32.mrb[0].mxu0
        %v2098 = vadd.f32 0.0, %v2097
        %v2099 = vpop.f32.mrb[0].mxu0
        %v2100 = vadd.f32 0.0, %v2099
        %v2101 = vpop.f32.mrb[0].mxu0
        %v2102 = vadd.f32 0.0, %v2101
        %v2103 = vpop.f32.mrb[0].mxu0
        %v2104 = vadd.f32 0.0, %v2103
        %2105 = vmatprep.mubr.bf16.mxu0 %v1458
        %2106 = vmatmul.mubr.bf16.gmra.mrb[0].mxu0 %v1457
        %v2107 = vpop.f32.mrb[0].mxu0
        %v2108 = vadd.f32 0.0, %v2107
        %v2109 = vpop.f32.mrb[0].mxu0
        %v2110 = vadd.f32 0.0, %v2109
        %v2111 = vpop.f32.mrb[0].mxu0
        %v2112 = vadd.f32 0.0, %v2111
        %v2113 = vpop.f32.mrb[0].mxu0
        %v2114 = vadd.f32 0.0, %v2113
        %2115 = vmatprep.mubr.bf16.mxu0 %v1460
        %2116 = vmatmul.mubr.bf16.gmra.mrb[0].mxu0 %v1459
        %v2117 = vpop.f32.mrb[0].mxu0
        %v2118 = vadd.f32 0.0, %v2117
        %v2119 = vpop.f32.mrb[0].mxu0
        %v2120 = vadd.f32 0.0, %v2119
        %v2121 = vpop.f32.mrb[0].mxu0
        %v2122 = vadd.f32 0.0, %v2121
        %v2123 = vpop.f32.mrb[0].mxu0
        %v2124 = vadd.f32 0.0, %v2123
        %2125 = vmatprep.mubr.bf16.mxu0 %v1462
        %2126 = vmatmul.mubr.bf16.gmra.mrb[0].mxu0 %v1461
        %v2127 = vpop.f32.mrb[0].mxu0
        %v2128 = vadd.f32 0.0, %v2127
        %v2129 = vpop.f32.mrb[0].mxu0
        %v2130 = vadd.f32 0.0, %v2129
        %v2131 = vpop.f32.mrb[0].mxu0
        %v2132 = vadd.f32 0.0, %v2131
        %v2133 = vpop.f32.mrb[0].mxu0
        %v2134 = vadd.f32 0.0, %v2133
        %2135 = vmatprep.mubr.bf16.mxu0 %v1464
        %2136 = vmatmul.mubr.bf16.gmra.mrb[0].mxu0 %v1463
        %v2137 = vpop.f32.mrb[0].mxu0
        %v2138 = vadd.f32 0.0, %v2137
        %v2139 = vpop.f32.mrb[0].mxu0
        %v2140 = vadd.f32 0.0, %v2139
        %v2141 = vpop.f32.mrb[0].mxu0
        %v2142 = vadd.f32 0.0, %v2141
        %v2143 = vpop.f32.mrb[0].mxu0
        %v2144 = vadd.f32 0.0, %v2143
        %2145 = vmatprep.mubr.bf16.mxu0 %v1466
        %2146 = vmatmul.mubr.bf16.gmra.mrb[0].mxu0 %v1465
        %v2147 = vpop.f32.mrb[0].mxu0
        %v2148 = vadd.f32 0.0, %v2147
        %v2149 = vpop.f32.mrb[0].mxu0
        %v2150 = vadd.f32 0.0, %v2149
        %v2151 = vpop.f32.mrb[0].mxu0
        %v2152 = vadd.f32 0.0, %v2151
        %v2153 = vpop.f32.mrb[0].mxu0
        %v2154 = vadd.f32 0.0, %v2153
        %2155 = vmatprep.mubr.bf16.mxu0 %v1468
        %2156 = vmatmul.mubr.bf16.gmra.mrb[0].mxu0 %v1467
        %v2157 = vpop.f32.mrb[0].mxu0
        %v2158 = vadd.f32 0.0, %v2157
        %v2159 = vpop.f32.mrb[0].mxu0
        %v2160 = vadd.f32 0.0, %v2159
        %v2161 = vpop.f32.mrb[0].mxu0
        %v2162 = vadd.f32 0.0, %v2161
        %v2163 = vpop.f32.mrb[0].mxu0
        %v2164 = vadd.f32 0.0, %v2163
        %2165 = vmatprep.mubr.bf16.mxu0 %v1470
        %2166 = vmatmul.mubr.bf16.gmra.mrb[0].mxu0 %v1469
        %v2167 = vpop.f32.mrb[0].mxu0
        %v2168 = vadd.f32 0.0, %v2167
        %v2169 = vpop.f32.mrb[0].mxu0
        %v2170 = vadd.f32 0.0, %v2169
        %v2171 = vpop.f32.mrb[0].mxu0
        %v2172 = vadd.f32 0.0, %v2171
        %v2173 = vpop.f32.mrb[0].mxu0
        %v2174 = vadd.f32 0.0, %v2173
        %2175 = vmatprep.mubr.bf16.mxu0 %v1472
        %2176 = vmatmul.mubr.bf16.gmra.mrb[0].mxu0 %v1471
        %v2177 = vpop.f32.mrb[0].mxu0
        %v2178 = vadd.f32 0.0, %v2177
        %v2179 = vpop.f32.mrb[0].mxu0
        %v2180 = vadd.f32 0.0, %v2179
        %v2181 = vpop.f32.mrb[0].mxu0
        %v2182 = vadd.f32 0.0, %v2181
        %v2183 = vpop.f32.mrb[0].mxu0
        %v2184 = vadd.f32 0.0, %v2183
        %2185 = vmatprep.mubr.bf16.mxu0 %v1474
        %2186 = vmatmul.mubr.bf16.gmra.mrb[0].mxu0 %v1473
        %v2187 = vpop.f32.mrb[0].mxu0
        %v2188 = vadd.f32 0.0, %v2187
        %v2189 = vpop.f32.mrb[0].mxu0
        %v2190 = vadd.f32 0.0, %v2189
        %v2191 = vpop.f32.mrb[0].mxu0
        %v2192 = vadd.f32 0.0, %v2191
        %v2193 = vpop.f32.mrb[0].mxu0
        %v2194 = vadd.f32 0.0, %v2193
        %2195 = vmatprep.mubr.bf16.mxu0 %v1476
        %2196 = vmatmul.mubr.bf16.gmra.mrb[0].mxu0 %v1475
        %v2197 = vpop.f32.mrb[0].mxu0
        %v2198 = vadd.f32 0.0, %v2197
        %v2199 = vpop.f32.mrb[0].mxu0
        %v2200 = vadd.f32 0.0, %v2199
        %v2201 = vpop.f32.mrb[0].mxu0
        %v2202 = vadd.f32 0.0, %v2201
        %v2203 = vpop.f32.mrb[0].mxu0
        %v2204 = vadd.f32 0.0, %v2203
        %2205 = vmatprep.mubr.bf16.mxu0 %v1478
        %2206 = vmatmul.mubr.bf16.gmra.mrb[0].mxu0 %v1477
        %v2207 = vpop.f32.mrb[0].mxu0
        %v2208 = vadd.f32 0.0, %v2207
        %v2209 = vpop.f32.mrb[0].mxu0
        %v2210 = vadd.f32 0.0, %v2209
        %v2211 = vpop.f32.mrb[0].mxu0
        %v2212 = vadd.f32 0.0, %v2211
        %v2213 = vpop.f32.mrb[0].mxu0
        %v2214 = vadd.f32 0.0, %v2213
        %2215 = vmatprep.mubr.bf16.mxu0 %v1480
        %2216 = vmatmul.mubr.bf16.gmra.mrb[0].mxu0 %v1479
        %v2217 = vpop.f32.mrb[0].mxu0
        %v2218 = vadd.f32 0.0, %v2217
        %v2219 = vpop.f32.mrb[0].mxu0
        %v2220 = vadd.f32 0.0, %v2219
        %v2221 = vpop.f32.mrb[0].mxu0
        %v2222 = vadd.f32 0.0, %v2221
        %v2223 = vpop.f32.mrb[0].mxu0
        %v2224 = vadd.f32 0.0, %v2223
        %2225 = vmatprep.mubr.bf16.mxu0 %v1482
        %2226 = vmatmul.mubr.bf16.gmra.mrb[0].mxu0 %v1481
        %v2227 = vpop.f32.mrb[0].mxu0
        %v2228 = vadd.f32 0.0, %v2227
        %v2229 = vpop.f32.mrb[0].mxu0
        %v2230 = vadd.f32 0.0, %v2229
        %v2231 = vpop.f32.mrb[0].mxu0
        %v2232 = vadd.f32 0.0, %v2231
        %v2233 = vpop.f32.mrb[0].mxu0
        %v2234 = vadd.f32 0.0, %v2233
        %2235 = vmatprep.mubr.bf16.mxu0 %v1484
        %2236 = vmatmul.mubr.bf16.gmra.mrb[0].mxu0 %v1483
        %v2237 = vpop.f32.mrb[0].mxu0
        %v2238 = vadd.f32 0.0, %v2237
        %v2239 = vpop.f32.mrb[0].mxu0
        %v2240 = vadd.f32 0.0, %v2239
        %v2241 = vpop.f32.mrb[0].mxu0
        %v2242 = vadd.f32 0.0, %v2241
        %v2243 = vpop.f32.mrb[0].mxu0
        %v2244 = vadd.f32 0.0, %v2243
        %2245 = vmatprep.mubr.bf16.mxu0 %v1486
        %2246 = vmatmul.mubr.bf16.gmra.mrb[0].mxu0 %v1485
        %v2247 = vpop.f32.mrb[0].mxu0
        %v2248 = vadd.f32 0.0, %v2247
        %v2249 = vpop.f32.mrb[0].mxu0
        %v2250 = vadd.f32 0.0, %v2249
        %v2251 = vpop.f32.mrb[0].mxu0
        %v2252 = vadd.f32 0.0, %v2251
        %v2253 = vpop.f32.mrb[0].mxu0
        %v2254 = vadd.f32 0.0, %v2253
        %2255 = vdwg.mxu0
        %2256 = vmatprep.subr.bf16.mxu0 %v1874
        %2257 = vmatpush1.bf16.msra.mxu0 %v1873
        %2258 = vmatprep.subr.bf16.mxu0 %v1880
        %2259 = vmatpush1.bf16.msra.mxu0 %v1879
        %2260 = vmatprep.subr.bf16.mxu0 %v1886
        %2261 = vmatpush1.bf16.msra.mxu0 %v1885
        %2262 = vmatprep.subr.bf16.mxu0 %v1892
        %2263 = vmatpush1.bf16.msra.mxu0 %v1891
        %2264 = vmatprep.subr.bf16.mxu0 %v1898
        %2265 = vmatpush1.bf16.msra.mxu0 %v1897
        %2266 = vmatprep.subr.bf16.mxu0 %v1904
        %2267 = vmatpush1.bf16.msra.mxu0 %v1903
        %2268 = vmatprep.subr.bf16.mxu0 %v1910
        %2269 = vmatpush1.bf16.msra.mxu0 %v1909
        %2270 = vmatprep.subr.bf16.mxu0 %v1916
        %2271 = vmatpush1.bf16.msra.mxu0 %v1915
        %2272 = vmatprep.subr.bf16.mxu0 %v1922
        %2273 = vmatpush1.bf16.msra.mxu0 %v1921
        %2274 = vmatprep.subr.bf16.mxu0 %v1928
        %2275 = vmatpush1.bf16.msra.mxu0 %v1927
        %2276 = vmatprep.subr.bf16.mxu0 %v1934
        %2277 = vmatpush1.bf16.msra.mxu0 %v1933
        %2278 = vmatprep.subr.bf16.mxu0 %v1940
        %2279 = vmatpush1.bf16.msra.mxu0 %v1939
        %2280 = vmatprep.subr.bf16.mxu0 %v1946
        %2281 = vmatpush1.bf16.msra.mxu0 %v1945
        %2282 = vmatprep.subr.bf16.mxu0 %v1952
        %2283 = vmatpush1.bf16.msra.mxu0 %v1951
        %2284 = vmatprep.subr.bf16.mxu0 %v1958
        %2285 = vmatpush1.bf16.msra.mxu0 %v1957
        %2286 = vmatprep.subr.bf16.mxu0 %v1964
        %2287 = vmatpush1.bf16.msra.mxu0 %v1963
        %2288 = vmatprep.mubr.bf16.mxu0 %v1456
        %2289 = vmatmul.mubr.bf16.gmra.mrb[0].mxu0 %v1455
        %v2290 = vpop.f32.mrb[0].mxu0
        %v2291 = vadd.f32 0.0, %v2290
        %v2292 = vpop.f32.mrb[0].mxu0
        %v2293 = vadd.f32 0.0, %v2292
        %v2294 = vpop.f32.mrb[0].mxu0
        %v2295 = vadd.f32 0.0, %v2294
        %v2296 = vpop.f32.mrb[0].mxu0
        %v2297 = vadd.f32 0.0, %v2296
        %2298 = vmatprep.mubr.bf16.mxu0 %v1458
        %2299 = vmatmul.mubr.bf16.gmra.mrb[0].mxu0 %v1457
        %v2300 = vpop.f32.mrb[0].mxu0
        %v2301 = vadd.f32 0.0, %v2300
        %v2302 = vpop.f32.mrb[0].mxu0
        %v2303 = vadd.f32 0.0, %v2302
        %v2304 = vpop.f32.mrb[0].mxu0
        %v2305 = vadd.f32 0.0, %v2304
        %v2306 = vpop.f32.mrb[0].mxu0
        %v2307 = vadd.f32 0.0, %v2306
        %2308 = vmatprep.mubr.bf16.mxu0 %v1460
        %2309 = vmatmul.mubr.bf16.gmra.mrb[0].mxu0 %v1459
        %v2310 = vpop.f32.mrb[0].mxu0
        %v2311 = vadd.f32 0.0, %v2310
        %v2312 = vpop.f32.mrb[0].mxu0
        %v2313 = vadd.f32 0.0, %v2312
        %v2314 = vpop.f32.mrb[0].mxu0
        %v2315 = vadd.f32 0.0, %v2314
        %v2316 = vpop.f32.mrb[0].mxu0
        %v2317 = vadd.f32 0.0, %v2316
        %2318 = vmatprep.mubr.bf16.mxu0 %v1462
        %2319 = vmatmul.mubr.bf16.gmra.mrb[0].mxu0 %v1461
        %v2320 = vpop.f32.mrb[0].mxu0
        %v2321 = vadd.f32 0.0, %v2320
        %v2322 = vpop.f32.mrb[0].mxu0
        %v2323 = vadd.f32 0.0, %v2322
        %v2324 = vpop.f32.mrb[0].mxu0
        %v2325 = vadd.f32 0.0, %v2324
        %v2326 = vpop.f32.mrb[0].mxu0
        %v2327 = vadd.f32 0.0, %v2326
        %2328 = vmatprep.mubr.bf16.mxu0 %v1464
        %2329 = vmatmul.mubr.bf16.gmra.mrb[0].mxu0 %v1463
        %v2330 = vpop.f32.mrb[0].mxu0
        %v2331 = vadd.f32 0.0, %v2330
        %v2332 = vpop.f32.mrb[0].mxu0
        %v2333 = vadd.f32 0.0, %v2332
        %v2334 = vpop.f32.mrb[0].mxu0
        %v2335 = vadd.f32 0.0, %v2334
        %v2336 = vpop.f32.mrb[0].mxu0
        %v2337 = vadd.f32 0.0, %v2336
        %2338 = vmatprep.mubr.bf16.mxu0 %v1466
        %2339 = vmatmul.mubr.bf16.gmra.mrb[0].mxu0 %v1465
        %v2340 = vpop.f32.mrb[0].mxu0
        %v2341 = vadd.f32 0.0, %v2340
        %v2342 = vpop.f32.mrb[0].mxu0
        %v2343 = vadd.f32 0.0, %v2342
        %v2344 = vpop.f32.mrb[0].mxu0
        %v2345 = vadd.f32 0.0, %v2344
        %v2346 = vpop.f32.mrb[0].mxu0
        %v2347 = vadd.f32 0.0, %v2346
        %2348 = vmatprep.mubr.bf16.mxu0 %v1468
        %2349 = vmatmul.mubr.bf16.gmra.mrb[0].mxu0 %v1467
        %v2350 = vpop.f32.mrb[0].mxu0
        %v2351 = vadd.f32 0.0, %v2350
        %v2352 = vpop.f32.mrb[0].mxu0
        %v2353 = vadd.f32 0.0, %v2352
        %v2354 = vpop.f32.mrb[0].mxu0
        %v2355 = vadd.f32 0.0, %v2354
        %v2356 = vpop.f32.mrb[0].mxu0
        %v2357 = vadd.f32 0.0, %v2356
        %2358 = vmatprep.mubr.bf16.mxu0 %v1470
        %2359 = vmatmul.mubr.bf16.gmra.mrb[0].mxu0 %v1469
        %v2360 = vpop.f32.mrb[0].mxu0
        %v2361 = vadd.f32 0.0, %v2360
        %v2362 = vpop.f32.mrb[0].mxu0
        %v2363 = vadd.f32 0.0, %v2362
        %v2364 = vpop.f32.mrb[0].mxu0
        %v2365 = vadd.f32 0.0, %v2364
        %v2366 = vpop.f32.mrb[0].mxu0
        %v2367 = vadd.f32 0.0, %v2366
        %2368 = vmatprep.mubr.bf16.mxu0 %v1472
        %2369 = vmatmul.mubr.bf16.gmra.mrb[0].mxu0 %v1471
        %v2370 = vpop.f32.mrb[0].mxu0
        %v2371 = vadd.f32 0.0, %v2370
        %v2372 = vpop.f32.mrb[0].mxu0
        %v2373 = vadd.f32 0.0, %v2372
        %v2374 = vpop.f32.mrb[0].mxu0
        %v2375 = vadd.f32 0.0, %v2374
        %v2376 = vpop.f32.mrb[0].mxu0
        %v2377 = vadd.f32 0.0, %v2376
        %2378 = vmatprep.mubr.bf16.mxu0 %v1474
        %2379 = vmatmul.mubr.bf16.gmra.mrb[0].mxu0 %v1473
        %v2380 = vpop.f32.mrb[0].mxu0
        %v2381 = vadd.f32 0.0, %v2380
        %v2382 = vpop.f32.mrb[0].mxu0
        %v2383 = vadd.f32 0.0, %v2382
        %v2384 = vpop.f32.mrb[0].mxu0
        %v2385 = vadd.f32 0.0, %v2384
        %v2386 = vpop.f32.mrb[0].mxu0
        %v2387 = vadd.f32 0.0, %v2386
        %2388 = vmatprep.mubr.bf16.mxu0 %v1476
        %2389 = vmatmul.mubr.bf16.gmra.mrb[0].mxu0 %v1475
        %v2390 = vpop.f32.mrb[0].mxu0
        %v2391 = vadd.f32 0.0, %v2390
        %v2392 = vpop.f32.mrb[0].mxu0
        %v2393 = vadd.f32 0.0, %v2392
        %v2394 = vpop.f32.mrb[0].mxu0
        %v2395 = vadd.f32 0.0, %v2394
        %v2396 = vpop.f32.mrb[0].mxu0
        %v2397 = vadd.f32 0.0, %v2396
        %2398 = vmatprep.mubr.bf16.mxu0 %v1478
        %2399 = vmatmul.mubr.bf16.gmra.mrb[0].mxu0 %v1477
        %v2400 = vpop.f32.mrb[0].mxu0
        %v2401 = vadd.f32 0.0, %v2400
        %v2402 = vpop.f32.mrb[0].mxu0
        %v2403 = vadd.f32 0.0, %v2402
        %v2404 = vpop.f32.mrb[0].mxu0
        %v2405 = vadd.f32 0.0, %v2404
        %v2406 = vpop.f32.mrb[0].mxu0
        %v2407 = vadd.f32 0.0, %v2406
        %2408 = vmatprep.mubr.bf16.mxu0 %v1480
        %2409 = vmatmul.mubr.bf16.gmra.mrb[0].mxu0 %v1479
        %v2410 = vpop.f32.mrb[0].mxu0
        %v2411 = vadd.f32 0.0, %v2410
        %v2412 = vpop.f32.mrb[0].mxu0
        %v2413 = vadd.f32 0.0, %v2412
        %v2414 = vpop.f32.mrb[0].mxu0
        %v2415 = vadd.f32 0.0, %v2414
        %v2416 = vpop.f32.mrb[0].mxu0
        %v2417 = vadd.f32 0.0, %v2416
        %2418 = vmatprep.mubr.bf16.mxu0 %v1482
        %2419 = vmatmul.mubr.bf16.gmra.mrb[0].mxu0 %v1481
        %v2420 = vpop.f32.mrb[0].mxu0
        %v2421 = vadd.f32 0.0, %v2420
        %v2422 = vpop.f32.mrb[0].mxu0
        %v2423 = vadd.f32 0.0, %v2422
        %v2424 = vpop.f32.mrb[0].mxu0
        %v2425 = vadd.f32 0.0, %v2424
        %v2426 = vpop.f32.mrb[0].mxu0
        %v2427 = vadd.f32 0.0, %v2426
        %2428 = vmatprep.mubr.bf16.mxu0 %v1484
        %2429 = vmatmul.mubr.bf16.gmra.mrb[0].mxu0 %v1483
        %v2430 = vpop.f32.mrb[0].mxu0
        %v2431 = vadd.f32 0.0, %v2430
        %v2432 = vpop.f32.mrb[0].mxu0
        %v2433 = vadd.f32 0.0, %v2432
        %v2434 = vpop.f32.mrb[0].mxu0
        %v2435 = vadd.f32 0.0, %v2434
        %v2436 = vpop.f32.mrb[0].mxu0
        %v2437 = vadd.f32 0.0, %v2436
        %2438 = vmatprep.mubr.bf16.mxu0 %v1486
        %2439 = vmatmul.mubr.bf16.gmra.mrb[0].mxu0 %v1485
        %v2440 = vpop.f32.mrb[0].mxu0
        %v2441 = vadd.f32 0.0, %v2440
        %v2442 = vpop.f32.mrb[0].mxu0
        %v2443 = vadd.f32 0.0, %v2442
        %v2444 = vpop.f32.mrb[0].mxu0
        %v2445 = vadd.f32 0.0, %v2444
        %v2446 = vpop.f32.mrb[0].mxu0
        %v2447 = vadd.f32 0.0, %v2446
        %2448 = vdwg.mxu0
        %2449 = vmatprep.subr.bf16.mxu0 %v1876
        %2450 = vmatpush1.bf16.msra.mxu0 %v1875
        %2451 = vmatprep.subr.bf16.mxu0 %v1882
        %2452 = vmatpush1.bf16.msra.mxu0 %v1881
        %2453 = vmatprep.subr.bf16.mxu0 %v1888
        %2454 = vmatpush1.bf16.msra.mxu0 %v1887
        %2455 = vmatprep.subr.bf16.mxu0 %v1894
        %2456 = vmatpush1.bf16.msra.mxu0 %v1893
        %2457 = vmatprep.subr.bf16.mxu0 %v1900
        %2458 = vmatpush1.bf16.msra.mxu0 %v1899
        %2459 = vmatprep.subr.bf16.mxu0 %v1906
        %2460 = vmatpush1.bf16.msra.mxu0 %v1905
        %2461 = vmatprep.subr.bf16.mxu0 %v1912
        %2462 = vmatpush1.bf16.msra.mxu0 %v1911
        %2463 = vmatprep.subr.bf16.mxu0 %v1918
        %2464 = vmatpush1.bf16.msra.mxu0 %v1917
        %2465 = vmatprep.subr.bf16.mxu0 %v1924
        %2466 = vmatpush1.bf16.msra.mxu0 %v1923
        %2467 = vmatprep.subr.bf16.mxu0 %v1930
        %2468 = vmatpush1.bf16.msra.mxu0 %v1929
        %2469 = vmatprep.subr.bf16.mxu0 %v1936
        %2470 = vmatpush1.bf16.msra.mxu0 %v1935
        %2471 = vmatprep.subr.bf16.mxu0 %v1942
        %2472 = vmatpush1.bf16.msra.mxu0 %v1941
        %2473 = vmatprep.subr.bf16.mxu0 %v1948
        %2474 = vmatpush1.bf16.msra.mxu0 %v1947
        %2475 = vmatprep.subr.bf16.mxu0 %v1954
        %2476 = vmatpush1.bf16.msra.mxu0 %v1953
        %2477 = vmatprep.subr.bf16.mxu0 %v1960
        %2478 = vmatpush1.bf16.msra.mxu0 %v1959
        %2479 = vmatprep.subr.bf16.mxu0 %v1966
        %2480 = vmatpush1.bf16.msra.mxu0 %v1965
        %2481 = vmatprep.mubr.bf16.mxu0 %v1456
        %2482 = vmatmul.mubr.bf16.gmra.mrb[0].mxu0 %v1455
        %v2483 = vpop.f32.mrb[0].mxu0
        %v2484 = vadd.f32 0.0, %v2483
        %v2485 = vpop.f32.mrb[0].mxu0
        %v2486 = vadd.f32 0.0, %v2485
        %v2487 = vpop.f32.mrb[0].mxu0
        %v2488 = vadd.f32 0.0, %v2487
        %v2489 = vpop.f32.mrb[0].mxu0
        %v2490 = vadd.f32 0.0, %v2489
        %2491 = vmatprep.mubr.bf16.mxu0 %v1458
        %2492 = vmatmul.mubr.bf16.gmra.mrb[0].mxu0 %v1457
        %v2493 = vpop.f32.mrb[0].mxu0
        %v2494 = vadd.f32 0.0, %v2493
        %v2495 = vpop.f32.mrb[0].mxu0
        %v2496 = vadd.f32 0.0, %v2495
        %v2497 = vpop.f32.mrb[0].mxu0
        %v2498 = vadd.f32 0.0, %v2497
        %v2499 = vpop.f32.mrb[0].mxu0
        %v2500 = vadd.f32 0.0, %v2499
        %2501 = vmatprep.mubr.bf16.mxu0 %v1460
        %2502 = vmatmul.mubr.bf16.gmra.mrb[0].mxu0 %v1459
        %v2503 = vpop.f32.mrb[0].mxu0
        %v2504 = vadd.f32 0.0, %v2503
        %v2505 = vpop.f32.mrb[0].mxu0
        %v2506 = vadd.f32 0.0, %v2505
        %v2507 = vpop.f32.mrb[0].mxu0
        %v2508 = vadd.f32 0.0, %v2507
        %v2509 = vpop.f32.mrb[0].mxu0
        %v2510 = vadd.f32 0.0, %v2509
        %2511 = vmatprep.mubr.bf16.mxu0 %v1462
        %2512 = vmatmul.mubr.bf16.gmra.mrb[0].mxu0 %v1461
        %v2513 = vpop.f32.mrb[0].mxu0
        %v2514 = vadd.f32 0.0, %v2513
        %v2515 = vpop.f32.mrb[0].mxu0
        %v2516 = vadd.f32 0.0, %v2515
        %v2517 = vpop.f32.mrb[0].mxu0
        %v2518 = vadd.f32 0.0, %v2517
        %v2519 = vpop.f32.mrb[0].mxu0
        %v2520 = vadd.f32 0.0, %v2519
        %2521 = vmatprep.mubr.bf16.mxu0 %v1464
        %2522 = vmatmul.mubr.bf16.gmra.mrb[0].mxu0 %v1463
        %v2523 = vpop.f32.mrb[0].mxu0
        %v2524 = vadd.f32 0.0, %v2523
        %v2525 = vpop.f32.mrb[0].mxu0
        %v2526 = vadd.f32 0.0, %v2525
        %v2527 = vpop.f32.mrb[0].mxu0
        %v2528 = vadd.f32 0.0, %v2527
        %v2529 = vpop.f32.mrb[0].mxu0
        %v2530 = vadd.f32 0.0, %v2529
        %2531 = vmatprep.mubr.bf16.mxu0 %v1466
        %2532 = vmatmul.mubr.bf16.gmra.mrb[0].mxu0 %v1465
        %v2533 = vpop.f32.mrb[0].mxu0
        %v2534 = vadd.f32 0.0, %v2533
        %v2535 = vpop.f32.mrb[0].mxu0
        %v2536 = vadd.f32 0.0, %v2535
        %v2537 = vpop.f32.mrb[0].mxu0
        %v2538 = vadd.f32 0.0, %v2537
        %v2539 = vpop.f32.mrb[0].mxu0
        %v2540 = vadd.f32 0.0, %v2539
        %2541 = vmatprep.mubr.bf16.mxu0 %v1468
        %2542 = vmatmul.mubr.bf16.gmra.mrb[0].mxu0 %v1467
        %v2543 = vpop.f32.mrb[0].mxu0
        %v2544 = vadd.f32 0.0, %v2543
        %v2545 = vpop.f32.mrb[0].mxu0
        %v2546 = vadd.f32 0.0, %v2545
        %v2547 = vpop.f32.mrb[0].mxu0
        %v2548 = vadd.f32 0.0, %v2547
        %v2549 = vpop.f32.mrb[0].mxu0
        %v2550 = vadd.f32 0.0, %v2549
        %2551 = vmatprep.mubr.bf16.mxu0 %v1470
        %2552 = vmatmul.mubr.bf16.gmra.mrb[0].mxu0 %v1469
        %v2553 = vpop.f32.mrb[0].mxu0
        %v2554 = vadd.f32 0.0, %v2553
        %v2555 = vpop.f32.mrb[0].mxu0
        %v2556 = vadd.f32 0.0, %v2555
        %v2557 = vpop.f32.mrb[0].mxu0
        %v2558 = vadd.f32 0.0, %v2557
        %v2559 = vpop.f32.mrb[0].mxu0
        %v2560 = vadd.f32 0.0, %v2559
        %2561 = vmatprep.mubr.bf16.mxu0 %v1472
        %2562 = vmatmul.mubr.bf16.gmra.mrb[0].mxu0 %v1471
        %v2563 = vpop.f32.mrb[0].mxu0
        %v2564 = vadd.f32 0.0, %v2563
        %v2565 = vpop.f32.mrb[0].mxu0
        %v2566 = vadd.f32 0.0, %v2565
        %v2567 = vpop.f32.mrb[0].mxu0
        %v2568 = vadd.f32 0.0, %v2567
        %v2569 = vpop.f32.mrb[0].mxu0
        %v2570 = vadd.f32 0.0, %v2569
        %2571 = vmatprep.mubr.bf16.mxu0 %v1474
        %2572 = vmatmul.mubr.bf16.gmra.mrb[0].mxu0 %v1473
        %v2573 = vpop.f32.mrb[0].mxu0
        %v2574 = vadd.f32 0.0, %v2573
        %v2575 = vpop.f32.mrb[0].mxu0
        %v2576 = vadd.f32 0.0, %v2575
        %v2577 = vpop.f32.mrb[0].mxu0
        %v2578 = vadd.f32 0.0, %v2577
        %v2579 = vpop.f32.mrb[0].mxu0
        %v2580 = vadd.f32 0.0, %v2579
        %2581 = vmatprep.mubr.bf16.mxu0 %v1476
        %2582 = vmatmul.mubr.bf16.gmra.mrb[0].mxu0 %v1475
        %v2583 = vpop.f32.mrb[0].mxu0
        %v2584 = vadd.f32 0.0, %v2583
        %v2585 = vpop.f32.mrb[0].mxu0
        %v2586 = vadd.f32 0.0, %v2585
        %v2587 = vpop.f32.mrb[0].mxu0
        %v2588 = vadd.f32 0.0, %v2587
        %v2589 = vpop.f32.mrb[0].mxu0
        %v2590 = vadd.f32 0.0, %v2589
        %2591 = vmatprep.mubr.bf16.mxu0 %v1478
        %2592 = vmatmul.mubr.bf16.gmra.mrb[0].mxu0 %v1477
        %v2593 = vpop.f32.mrb[0].mxu0
        %v2594 = vadd.f32 0.0, %v2593
        %v2595 = vpop.f32.mrb[0].mxu0
        %v2596 = vadd.f32 0.0, %v2595
        %v2597 = vpop.f32.mrb[0].mxu0
        %v2598 = vadd.f32 0.0, %v2597
        %v2599 = vpop.f32.mrb[0].mxu0
        %v2600 = vadd.f32 0.0, %v2599
        %2601 = vmatprep.mubr.bf16.mxu0 %v1480
        %2602 = vmatmul.mubr.bf16.gmra.mrb[0].mxu0 %v1479
        %v2603 = vpop.f32.mrb[0].mxu0
        %v2604 = vadd.f32 0.0, %v2603
        %v2605 = vpop.f32.mrb[0].mxu0
        %v2606 = vadd.f32 0.0, %v2605
        %v2607 = vpop.f32.mrb[0].mxu0
        %v2608 = vadd.f32 0.0, %v2607
        %v2609 = vpop.f32.mrb[0].mxu0
        %v2610 = vadd.f32 0.0, %v2609
        %2611 = vmatprep.mubr.bf16.mxu0 %v1482
        %2612 = vmatmul.mubr.bf16.gmra.mrb[0].mxu0 %v1481
        %v2613 = vpop.f32.mrb[0].mxu0
        %v2614 = vadd.f32 0.0, %v2613
        %v2615 = vpop.f32.mrb[0].mxu0
        %v2616 = vadd.f32 0.0, %v2615
        %v2617 = vpop.f32.mrb[0].mxu0
        %v2618 = vadd.f32 0.0, %v2617
        %v2619 = vpop.f32.mrb[0].mxu0
        %v2620 = vadd.f32 0.0, %v2619
        %2621 = vmatprep.mubr.bf16.mxu0 %v1484
        %2622 = vmatmul.mubr.bf16.gmra.mrb[0].mxu0 %v1483
        %v2623 = vpop.f32.mrb[0].mxu0
        %v2624 = vadd.f32 0.0, %v2623
        %v2625 = vpop.f32.mrb[0].mxu0
        %v2626 = vadd.f32 0.0, %v2625
        %v2627 = vpop.f32.mrb[0].mxu0
        %v2628 = vadd.f32 0.0, %v2627
        %v2629 = vpop.f32.mrb[0].mxu0
        %v2630 = vadd.f32 0.0, %v2629
        %2631 = vmatprep.mubr.bf16.mxu0 %v1486
        %2632 = vmatmul.mubr.bf16.gmra.mrb[0].mxu0 %v1485
        %v2633 = vpop.f32.mrb[0].mxu0
        %v2634 = vadd.f32 0.0, %v2633
        %v2635 = vpop.f32.mrb[0].mxu0
        %v2636 = vadd.f32 0.0, %v2635
        %v2637 = vpop.f32.mrb[0].mxu0
        %v2638 = vadd.f32 0.0, %v2637
        %v2639 = vpop.f32.mrb[0].mxu0
        %v2640 = vadd.f32 0.0, %v2639
        %2641 = vdwg.mxu0
        %v2642 = vpack.c.bf16 %v2102, %v2098
        %v2643 = vpack.c.bf16 %v2104, %v2100
        %v2644 = vpack.c.bf16 %v2295, %v2291
        %v2645 = vpack.c.bf16 %v2297, %v2293
        %v2646 = vpack.c.bf16 %v2488, %v2484
        %v2647 = vpack.c.bf16 %v2490, %v2486
        %v2648 = vpack.c.bf16 %v2112, %v2108
        %v2649 = vpack.c.bf16 %v2114, %v2110
        %v2650 = vpack.c.bf16 %v2305, %v2301
        %v2651 = vpack.c.bf16 %v2307, %v2303
        %v2652 = vpack.c.bf16 %v2498, %v2494
        %v2653 = vpack.c.bf16 %v2500, %v2496
        %v2654 = vpack.c.bf16 %v2122, %v2118
        %v2655 = vpack.c.bf16 %v2124, %v2120
        %v2656 = vpack.c.bf16 %v2315, %v2311
        %v2657 = vpack.c.bf16 %v2317, %v2313
        %v2658 = vpack.c.bf16 %v2508, %v2504
        %v2659 = vpack.c.bf16 %v2510, %v2506
        %v2660 = vpack.c.bf16 %v2132, %v2128
        %v2661 = vpack.c.bf16 %v2134, %v2130
        %v2662 = vpack.c.bf16 %v2325, %v2321
        %v2663 = vpack.c.bf16 %v2327, %v2323
        %v2664 = vpack.c.bf16 %v2518, %v2514
        %v2665 = vpack.c.bf16 %v2520, %v2516
        %v2666 = vpack.c.bf16 %v2142, %v2138
        %v2667 = vpack.c.bf16 %v2144, %v2140
        %v2668 = vpack.c.bf16 %v2335, %v2331
        %v2669 = vpack.c.bf16 %v2337, %v2333
        %v2670 = vpack.c.bf16 %v2528, %v2524
        %v2671 = vpack.c.bf16 %v2530, %v2526
        %v2672 = vpack.c.bf16 %v2152, %v2148
        %v2673 = vpack.c.bf16 %v2154, %v2150
        %v2674 = vpack.c.bf16 %v2345, %v2341
        %v2675 = vpack.c.bf16 %v2347, %v2343
        %v2676 = vpack.c.bf16 %v2538, %v2534
        %v2677 = vpack.c.bf16 %v2540, %v2536
        %v2678 = vpack.c.bf16 %v2162, %v2158
        %v2679 = vpack.c.bf16 %v2164, %v2160
        %v2680 = vpack.c.bf16 %v2355, %v2351
        %v2681 = vpack.c.bf16 %v2357, %v2353
        %v2682 = vpack.c.bf16 %v2548, %v2544
        %v2683 = vpack.c.bf16 %v2550, %v2546
        %v2684 = vpack.c.bf16 %v2172, %v2168
        %v2685 = vpack.c.bf16 %v2174, %v2170
        %v2686 = vpack.c.bf16 %v2365, %v2361
        %v2687 = vpack.c.bf16 %v2367, %v2363
        %v2688 = vpack.c.bf16 %v2558, %v2554
        %v2689 = vpack.c.bf16 %v2560, %v2556
        %v2690 = vpack.c.bf16 %v2182, %v2178
        %v2691 = vpack.c.bf16 %v2184, %v2180
        %v2692 = vpack.c.bf16 %v2375, %v2371
        %v2693 = vpack.c.bf16 %v2377, %v2373
        %v2694 = vpack.c.bf16 %v2568, %v2564
        %v2695 = vpack.c.bf16 %v2570, %v2566
        %v2696 = vpack.c.bf16 %v2192, %v2188
        %v2697 = vpack.c.bf16 %v2194, %v2190
        %v2698 = vpack.c.bf16 %v2385, %v2381
        %v2699 = vpack.c.bf16 %v2387, %v2383
        %v2700 = vpack.c.bf16 %v2578, %v2574
        %v2701 = vpack.c.bf16 %v2580, %v2576
        %v2702 = vpack.c.bf16 %v2202, %v2198
        %v2703 = vpack.c.bf16 %v2204, %v2200
        %v2704 = vpack.c.bf16 %v2395, %v2391
        %v2705 = vpack.c.bf16 %v2397, %v2393
        %v2706 = vpack.c.bf16 %v2588, %v2584
        %v2707 = vpack.c.bf16 %v2590, %v2586
        %v2708 = vpack.c.bf16 %v2212, %v2208
        %v2709 = vpack.c.bf16 %v2214, %v2210
        %v2710 = vpack.c.bf16 %v2405, %v2401
        %v2711 = vpack.c.bf16 %v2407, %v2403
        %v2712 = vpack.c.bf16 %v2598, %v2594
        %v2713 = vpack.c.bf16 %v2600, %v2596
        %v2714 = vpack.c.bf16 %v2222, %v2218
        %v2715 = vpack.c.bf16 %v2224, %v2220
        %v2716 = vpack.c.bf16 %v2415, %v2411
        %v2717 = vpack.c.bf16 %v2417, %v2413
        %v2718 = vpack.c.bf16 %v2608, %v2604
        %v2719 = vpack.c.bf16 %v2610, %v2606
        %v2720 = vpack.c.bf16 %v2232, %v2228
        %v2721 = vpack.c.bf16 %v2234, %v2230
        %v2722 = vpack.c.bf16 %v2425, %v2421
        %v2723 = vpack.c.bf16 %v2427, %v2423
        %v2724 = vpack.c.bf16 %v2618, %v2614
        %v2725 = vpack.c.bf16 %v2620, %v2616
        %v2726 = vpack.c.bf16 %v2242, %v2238
        %v2727 = vpack.c.bf16 %v2244, %v2240
        %v2728 = vpack.c.bf16 %v2435, %v2431
        %v2729 = vpack.c.bf16 %v2437, %v2433
        %v2730 = vpack.c.bf16 %v2628, %v2624
        %v2731 = vpack.c.bf16 %v2630, %v2626
        %v2732 = vpack.c.bf16 %v2252, %v2248
        %v2733 = vpack.c.bf16 %v2254, %v2250
        %v2734 = vpack.c.bf16 %v2445, %v2441
        %v2735 = vpack.c.bf16 %v2447, %v2443
        %v2736 = vpack.c.bf16 %v2638, %v2634
        %v2737 = vpack.c.bf16 %v2640, %v2636
        %v2738 = vld [vmem:[%s612] sm:$0xff]
        %v2739 = vld [vmem:[%s612 + $0x8] sm:$0xff]
        %v2740 = vld [vmem:[%s612 + $0x10] sm:$0xff]
        %v2741 = vld [vmem:[%s612 + $0x18] sm:$0xff]
        %v2742 = vld [vmem:[%s612 + $0x20] sm:$0xff]
        %v2743 = vld [vmem:[%s612 + $0x28] sm:$0xff]
        %v2744 = vld [vmem:[%s612 + $0x30] sm:$0xff]
        %v2745 = vld [vmem:[%s612 + $0x38] sm:$0xff]
        %v2746 = vld [vmem:[%s612 + $0x40] sm:$0xff]
        %v2747 = vld [vmem:[%s612 + $0x48] sm:$0xff]
        %v2748 = vld [vmem:[%s612 + $0x50] sm:$0xff]
        %v2749 = vld [vmem:[%s612 + $0x58] sm:$0xff]
        %v2750 = vld [vmem:[%s612 + $0x60] sm:$0xff]
        %v2751 = vld [vmem:[%s612 + $0x68] sm:$0xff]
        %v2752 = vld [vmem:[%s612 + $0x70] sm:$0xff]
        %v2753 = vld [vmem:[%s612 + $0x78] sm:$0xff]
        %v2754 = vld [vmem:[%s612 + $0x80] sm:$0xff]
        %v2755 = vld [vmem:[%s612 + $0x88] sm:$0xff]
        %v2756 = vld [vmem:[%s612 + $0x90] sm:$0xff]
        %v2757 = vld [vmem:[%s612 + $0x98] sm:$0xff]
        %v2758 = vld [vmem:[%s612 + $0xa0] sm:$0xff]
        %v2759 = vld [vmem:[%s612 + $0xa8] sm:$0xff]
        %v2760 = vld [vmem:[%s612 + $0xb0] sm:$0xff]
        %v2761 = vld [vmem:[%s612 + $0xb8] sm:$0xff]
        %v2762 = vld [vmem:[%s612 + $0xc0] sm:$0xff]
        %v2763 = vld [vmem:[%s612 + $0xc8] sm:$0xff]
        %v2764 = vld [vmem:[%s612 + $0xd0] sm:$0xff]
        %v2765 = vld [vmem:[%s612 + $0xd8] sm:$0xff]
        %v2766 = vld [vmem:[%s612 + $0xe0] sm:$0xff]
        %v2767 = vld [vmem:[%s612 + $0xe8] sm:$0xff]
        %v2768 = vld [vmem:[%s612 + $0xf0] sm:$0xff]
        %v2769 = vld [vmem:[%s612 + $0xf8] sm:$0xff]
        %2770 = vmatprep.subr.bf16.mxu0 0
        %2771 = vmatpush1.bf16.xpose.msra.mxu0 %v2644
        %2772 = vmatprep.subr.bf16.mxu0 0
        %2773 = vmatpush1.bf16.xpose.msra.mxu0 %v2650
        %2774 = vmatprep.subr.bf16.mxu0 0
        %2775 = vmatpush1.bf16.xpose.msra.mxu0 %v2656
        %2776 = vmatprep.subr.bf16.mxu0 0
        %2777 = vmatpush1.bf16.xpose.msra.mxu0 %v2662
        %2778 = vmatprep.subr.bf16.mxu0 0
        %2779 = vmatpush1.bf16.xpose.msra.mxu0 %v2668
        %2780 = vmatprep.subr.bf16.mxu0 0
        %2781 = vmatpush1.bf16.xpose.msra.mxu0 %v2674
        %2782 = vmatprep.subr.bf16.mxu0 0
        %2783 = vmatpush1.bf16.xpose.msra.mxu0 %v2680
        %2784 = vmatprep.subr.bf16.mxu0 0
        %2785 = vmatpush1.bf16.xpose.msra.mxu0 %v2686
        %2786 = vmatprep.subr.bf16.mxu0 0
        %2787 = vmatpush1.bf16.xpose.msra.mxu0 0
        %2788 = vmatprep.subr.bf16.mxu0 0
        %2789 = vmatpush1.bf16.xpose.msra.mxu0 0
        %2790 = vmatprep.subr.bf16.mxu0 0
        %2791 = vmatpush1.bf16.xpose.msra.mxu0 0
        %2792 = vmatprep.subr.bf16.mxu0 0
        %2793 = vmatpush1.bf16.xpose.msra.mxu0 0
        %2794 = vmatprep.subr.bf16.mxu0 0
        %2795 = vmatpush1.bf16.xpose.msra.mxu0 0
        %2796 = vmatprep.subr.bf16.mxu0 0
        %2797 = vmatpush1.bf16.xpose.msra.mxu0 0
        %2798 = vmatprep.subr.bf16.mxu0 0
        %2799 = vmatpush1.bf16.xpose.msra.mxu0 0
        %2800 = vmatprep.subr.bf16.mxu0 0
        %2801 = vmatpush1.bf16.xpose.msra.mxu0 0
        %2802 = vmatprep.mubr.bf16.mxu0 0
        %2803 = vmatmul.mubr.bf16.gmra.mrb[0].mxu0 %v2642
        %v2804 = vpop.f32.mrb[0].mxu0
        %v2805 = vadd.f32 0.0, %v2804
        %v2806 = vpop.f32.mrb[0].mxu0
        %v2807 = vpop.f32.mrb[0].mxu0
        %v2808 = vadd.f32 0.0, %v2807
        %v2809 = vpop.f32.mrb[0].mxu0
        %2810 = vmatprep.mubr.bf16.mxu0 0
        %2811 = vmatmul.mubr.bf16.gmra.mrb[0].mxu0 %v2648
        %v2812 = vpop.f32.mrb[0].mxu0
        %v2813 = vadd.f32 0.0, %v2812
        %v2814 = vpop.f32.mrb[0].mxu0
        %v2815 = vpop.f32.mrb[0].mxu0
        %v2816 = vadd.f32 0.0, %v2815
        %v2817 = vpop.f32.mrb[0].mxu0
        %2818 = vmatprep.mubr.bf16.mxu0 0
        %2819 = vmatmul.mubr.bf16.gmra.mrb[0].mxu0 %v2654
        %v2820 = vpop.f32.mrb[0].mxu0
        %v2821 = vadd.f32 0.0, %v2820
        %v2822 = vpop.f32.mrb[0].mxu0
        %v2823 = vpop.f32.mrb[0].mxu0
        %v2824 = vadd.f32 0.0, %v2823
        %v2825 = vpop.f32.mrb[0].mxu0
        %2826 = vmatprep.mubr.bf16.mxu0 0
        %2827 = vmatmul.mubr.bf16.gmra.mrb[0].mxu0 %v2660
        %v2828 = vpop.f32.mrb[0].mxu0
        %v2829 = vadd.f32 0.0, %v2828
        %v2830 = vpop.f32.mrb[0].mxu0
        %v2831 = vpop.f32.mrb[0].mxu0
        %v2832 = vadd.f32 0.0, %v2831
        %v2833 = vpop.f32.mrb[0].mxu0
        %2834 = vmatprep.mubr.bf16.mxu0 0
        %2835 = vmatmul.mubr.bf16.gmra.mrb[0].mxu0 %v2666
        %v2836 = vpop.f32.mrb[0].mxu0
        %v2837 = vadd.f32 0.0, %v2836
        %v2838 = vpop.f32.mrb[0].mxu0
        %v2839 = vpop.f32.mrb[0].mxu0
        %v2840 = vadd.f32 0.0, %v2839
        %v2841 = vpop.f32.mrb[0].mxu0
        %2842 = vmatprep.mubr.bf16.mxu0 0
        %2843 = vmatmul.mubr.bf16.gmra.mrb[0].mxu0 %v2672
        %v2844 = vpop.f32.mrb[0].mxu0
        %v2845 = vadd.f32 0.0, %v2844
        %v2846 = vpop.f32.mrb[0].mxu0
        %v2847 = vpop.f32.mrb[0].mxu0
        %v2848 = vadd.f32 0.0, %v2847
        %v2849 = vpop.f32.mrb[0].mxu0
        %2850 = vmatprep.mubr.bf16.mxu0 0
        %2851 = vmatmul.mubr.bf16.gmra.mrb[0].mxu0 %v2678
        %v2852 = vpop.f32.mrb[0].mxu0
        %v2853 = vadd.f32 0.0, %v2852
        %v2854 = vpop.f32.mrb[0].mxu0
        %v2855 = vpop.f32.mrb[0].mxu0
        %v2856 = vadd.f32 0.0, %v2855
        %v2857 = vpop.f32.mrb[0].mxu0
        %2858 = vmatprep.mubr.bf16.mxu0 0
        %2859 = vmatmul.mubr.bf16.gmra.mrb[0].mxu0 %v2684
        %v2860 = vpop.f32.mrb[0].mxu0
        %v2861 = vadd.f32 0.0, %v2860
        %v2862 = vpop.f32.mrb[0].mxu0
        %v2863 = vpop.f32.mrb[0].mxu0
        %v2864 = vadd.f32 0.0, %v2863
        %v2865 = vpop.f32.mrb[0].mxu0
        %2866 = vdwg.mxu0
        %2867 = vmatprep.subr.bf16.mxu0 0
        %2868 = vmatpush1.bf16.xpose.msra.mxu0 %v2692
        %2869 = vmatprep.subr.bf16.mxu0 0
        %2870 = vmatpush1.bf16.xpose.msra.mxu0 %v2698
        %2871 = vmatprep.subr.bf16.mxu0 0
        %2872 = vmatpush1.bf16.xpose.msra.mxu0 %v2704
        %2873 = vmatprep.subr.bf16.mxu0 0
        %2874 = vmatpush1.bf16.xpose.msra.mxu0 %v2710
        %2875 = vmatprep.subr.bf16.mxu0 0
        %2876 = vmatpush1.bf16.xpose.msra.mxu0 %v2716
        %2877 = vmatprep.subr.bf16.mxu0 0
        %2878 = vmatpush1.bf16.xpose.msra.mxu0 %v2722
        %2879 = vmatprep.subr.bf16.mxu0 0
        %2880 = vmatpush1.bf16.xpose.msra.mxu0 %v2728
        %2881 = vmatprep.subr.bf16.mxu0 0
        %2882 = vmatpush1.bf16.xpose.msra.mxu0 %v2734
        %2883 = vmatprep.subr.bf16.mxu0 0
        %2884 = vmatpush1.bf16.xpose.msra.mxu0 0
        %2885 = vmatprep.subr.bf16.mxu0 0
        %2886 = vmatpush1.bf16.xpose.msra.mxu0 0
        %2887 = vmatprep.subr.bf16.mxu0 0
        %2888 = vmatpush1.bf16.xpose.msra.mxu0 0
        %2889 = vmatprep.subr.bf16.mxu0 0
        %2890 = vmatpush1.bf16.xpose.msra.mxu0 0
        %2891 = vmatprep.subr.bf16.mxu0 0
        %2892 = vmatpush1.bf16.xpose.msra.mxu0 0
        %2893 = vmatprep.subr.bf16.mxu0 0
        %2894 = vmatpush1.bf16.xpose.msra.mxu0 0
        %2895 = vmatprep.subr.bf16.mxu0 0
        %2896 = vmatpush1.bf16.xpose.msra.mxu0 0
        %2897 = vmatprep.subr.bf16.mxu0 0
        %2898 = vmatpush1.bf16.xpose.msra.mxu0 0
        %2899 = vmatprep.mubr.bf16.mxu0 0
        %2900 = vmatmul.mubr.bf16.gmra.mrb[0].mxu0 %v2690
        %v2901 = vpop.f32.mrb[0].mxu0
        %v2902 = vadd.f32 0.0, %v2901
        %v2903 = vpop.f32.mrb[0].mxu0
        %v2904 = vpop.f32.mrb[0].mxu0
        %v2905 = vadd.f32 0.0, %v2904
        %v2906 = vpop.f32.mrb[0].mxu0
        %2907 = vmatprep.mubr.bf16.mxu0 0
        %2908 = vmatmul.mubr.bf16.gmra.mrb[0].mxu0 %v2696
        %v2909 = vpop.f32.mrb[0].mxu0
        %v2910 = vadd.f32 0.0, %v2909
        %v2911 = vpop.f32.mrb[0].mxu0
        %v2912 = vpop.f32.mrb[0].mxu0
        %v2913 = vadd.f32 0.0, %v2912
        %v2914 = vpop.f32.mrb[0].mxu0
        %2915 = vmatprep.mubr.bf16.mxu0 0
        %2916 = vmatmul.mubr.bf16.gmra.mrb[0].mxu0 %v2702
        %v2917 = vpop.f32.mrb[0].mxu0
        %v2918 = vadd.f32 0.0, %v2917
        %v2919 = vpop.f32.mrb[0].mxu0
        %v2920 = vpop.f32.mrb[0].mxu0
        %v2921 = vadd.f32 0.0, %v2920
        %v2922 = vpop.f32.mrb[0].mxu0
        %2923 = vmatprep.mubr.bf16.mxu0 0
        %2924 = vmatmul.mubr.bf16.gmra.mrb[0].mxu0 %v2708
        %v2925 = vpop.f32.mrb[0].mxu0
        %v2926 = vadd.f32 0.0, %v2925
        %v2927 = vpop.f32.mrb[0].mxu0
        %v2928 = vpop.f32.mrb[0].mxu0
        %v2929 = vadd.f32 0.0, %v2928
        %v2930 = vpop.f32.mrb[0].mxu0
        %2931 = vmatprep.mubr.bf16.mxu0 0
        %2932 = vmatmul.mubr.bf16.gmra.mrb[0].mxu0 %v2714
        %v2933 = vpop.f32.mrb[0].mxu0
        %v2934 = vadd.f32 0.0, %v2933
        %v2935 = vpop.f32.mrb[0].mxu0
        %v2936 = vpop.f32.mrb[0].mxu0
        %v2937 = vadd.f32 0.0, %v2936
        %v2938 = vpop.f32.mrb[0].mxu0
        %2939 = vmatprep.mubr.bf16.mxu0 0
        %2940 = vmatmul.mubr.bf16.gmra.mrb[0].mxu0 %v2720
        %v2941 = vpop.f32.mrb[0].mxu0
        %v2942 = vadd.f32 0.0, %v2941
        %v2943 = vpop.f32.mrb[0].mxu0
        %v2944 = vpop.f32.mrb[0].mxu0
        %v2945 = vadd.f32 0.0, %v2944
        %v2946 = vpop.f32.mrb[0].mxu0
        %2947 = vmatprep.mubr.bf16.mxu0 0
        %2948 = vmatmul.mubr.bf16.gmra.mrb[0].mxu0 %v2726
        %v2949 = vpop.f32.mrb[0].mxu0
        %v2950 = vadd.f32 0.0, %v2949
        %v2951 = vpop.f32.mrb[0].mxu0
        %v2952 = vpop.f32.mrb[0].mxu0
        %v2953 = vadd.f32 0.0, %v2952
        %v2954 = vpop.f32.mrb[0].mxu0
        %2955 = vmatprep.mubr.bf16.mxu0 0
        %2956 = vmatmul.mubr.bf16.gmra.mrb[0].mxu0 %v2732
        %v2957 = vpop.f32.mrb[0].mxu0
        %v2958 = vadd.f32 0.0, %v2957
        %v2959 = vpop.f32.mrb[0].mxu0
        %v2960 = vpop.f32.mrb[0].mxu0
        %v2961 = vadd.f32 0.0, %v2960
        %v2962 = vpop.f32.mrb[0].mxu0
        %2963 = vdwg.mxu0
        %2964 = vmax.xlane.f32.xlu0 %v2805
        %v2965 = vpop.xlane.xlu0 %2964
        %2966 = vmax.xlane.f32.xlu0 %v2808
        %v2967 = vpop.xlane.xlu0 %2966
        %2968 = vmax.xlane.f32.xlu0 %v2813
        %v2969 = vpop.xlane.xlu0 %2968
        %2970 = vmax.xlane.f32.xlu0 %v2816
        %v2971 = vpop.xlane.xlu0 %2970
        %2972 = vmax.xlane.f32.xlu0 %v2821
        %v2973 = vpop.xlane.xlu0 %2972
        %2974 = vmax.xlane.f32.xlu0 %v2824
        %v2975 = vpop.xlane.xlu0 %2974
        %2976 = vmax.xlane.f32.xlu0 %v2829
        %v2977 = vpop.xlane.xlu0 %2976
        %2978 = vmax.xlane.f32.xlu0 %v2832
        %v2979 = vpop.xlane.xlu0 %2978
        %2980 = vmax.xlane.f32.xlu0 %v2837
        %v2981 = vpop.xlane.xlu0 %2980
        %2982 = vmax.xlane.f32.xlu0 %v2840
        %v2983 = vpop.xlane.xlu0 %2982
        %2984 = vmax.xlane.f32.xlu0 %v2845
        %v2985 = vpop.xlane.xlu0 %2984
        %2986 = vmax.xlane.f32.xlu0 %v2848
        %v2987 = vpop.xlane.xlu0 %2986
        %2988 = vmax.xlane.f32.xlu0 %v2853
        %v2989 = vpop.xlane.xlu0 %2988
        %2990 = vmax.xlane.f32.xlu0 %v2856
        %v2991 = vpop.xlane.xlu0 %2990
        %2992 = vmax.xlane.f32.xlu0 %v2861
        %v2993 = vpop.xlane.xlu0 %2992
        %2994 = vmax.xlane.f32.xlu0 %v2864
        %v2995 = vpop.xlane.xlu0 %2994
        %2996 = vmax.xlane.f32.xlu0 %v2902
        %v2997 = vpop.xlane.xlu0 %2996
        %2998 = vmax.xlane.f32.xlu0 %v2905
        %v2999 = vpop.xlane.xlu0 %2998
        %3000 = vmax.xlane.f32.xlu0 %v2910
        %v3001 = vpop.xlane.xlu0 %3000
        %3002 = vmax.xlane.f32.xlu0 %v2913
        %v3003 = vpop.xlane.xlu0 %3002
        %3004 = vmax.xlane.f32.xlu0 %v2918
        %v3005 = vpop.xlane.xlu0 %3004
        %3006 = vmax.xlane.f32.xlu0 %v2921
        %v3007 = vpop.xlane.xlu0 %3006
        %3008 = vmax.xlane.f32.xlu0 %v2926
        %v3009 = vpop.xlane.xlu0 %3008
        %3010 = vmax.xlane.f32.xlu0 %v2929
        %v3011 = vpop.xlane.xlu0 %3010
        %3012 = vmax.xlane.f32.xlu0 %v2934
        %v3013 = vpop.xlane.xlu0 %3012
        %3014 = vmax.xlane.f32.xlu0 %v2937
        %v3015 = vpop.xlane.xlu0 %3014
        %3016 = vmax.xlane.f32.xlu0 %v2942
        %v3017 = vpop.xlane.xlu0 %3016
        %3018 = vmax.xlane.f32.xlu0 %v2945
        %v3019 = vpop.xlane.xlu0 %3018
        %3020 = vmax.xlane.f32.xlu0 %v2950
        %v3021 = vpop.xlane.xlu0 %3020
        %3022 = vmax.xlane.f32.xlu0 %v2953
        %v3023 = vpop.xlane.xlu0 %3022
        %3024 = vmax.xlane.f32.xlu0 %v2958
        %v3025 = vpop.xlane.xlu0 %3024
        %3026 = vmax.xlane.f32.xlu0 %v2961
        %v3027 = vpop.xlane.xlu0 %3026
        %v3028 = vsub.f32 %v2805, %v2965
        %v3029 = vsub.f32 %v2808, %v2967
        %v3030 = vsub.f32 %v2813, %v2969
        %v3031 = vsub.f32 %v2816, %v2971
        %v3032 = vsub.f32 %v2821, %v2973
        %v3033 = vsub.f32 %v2824, %v2975
        %v3034 = vsub.f32 %v2829, %v2977
        %v3035 = vsub.f32 %v2832, %v2979
        %v3036 = vsub.f32 %v2837, %v2981
        %v3037 = vsub.f32 %v2840, %v2983
        %v3038 = vsub.f32 %v2845, %v2985
        %v3039 = vsub.f32 %v2848, %v2987
        %v3040 = vsub.f32 %v2853, %v2989
        %v3041 = vsub.f32 %v2856, %v2991
        %v3042 = vsub.f32 %v2861, %v2993
        %v3043 = vsub.f32 %v2864, %v2995
        %v3044 = vsub.f32 %v2902, %v2997
        %v3045 = vsub.f32 %v2905, %v2999
        %v3046 = vsub.f32 %v2910, %v3001
        %v3047 = vsub.f32 %v2913, %v3003
        %v3048 = vsub.f32 %v2918, %v3005
        %v3049 = vsub.f32 %v2921, %v3007
        %v3050 = vsub.f32 %v2926, %v3009
        %v3051 = vsub.f32 %v2929, %v3011
        %v3052 = vsub.f32 %v2934, %v3013
        %v3053 = vsub.f32 %v2937, %v3015
        %v3054 = vsub.f32 %v2942, %v3017
        %v3055 = vsub.f32 %v2945, %v3019
        %v3056 = vsub.f32 %v2950, %v3021
        %v3057 = vsub.f32 %v2953, %v3023
        %v3058 = vsub.f32 %v2958, %v3025
        %v3059 = vsub.f32 %v2961, %v3027
        %v3060 = vmul.f32 %v3028, 1.442695
        %v3061 = vpow.pop %v3060
        %v3062 = vmul.f32 %v3029, 1.442695
        %v3063 = vpow.pop %v3062
        %v3064 = vmul.f32 %v3030, 1.442695
        %v3065 = vpow.pop %v3064
        %v3066 = vmul.f32 %v3031, 1.442695
        %v3067 = vpow.pop %v3066
        %v3068 = vmul.f32 %v3032, 1.442695
        %v3069 = vpow.pop %v3068
        %v3070 = vmul.f32 %v3033, 1.442695
        %v3071 = vpow.pop %v3070
        %v3072 = vmul.f32 %v3034, 1.442695
        %v3073 = vpow.pop %v3072
        %v3074 = vmul.f32 %v3035, 1.442695
        %v3075 = vpow.pop %v3074
        %v3076 = vmul.f32 %v3036, 1.442695
        %v3077 = vpow.pop %v3076
        %v3078 = vmul.f32 %v3037, 1.442695
        %v3079 = vpow.pop %v3078
        %v3080 = vmul.f32 %v3038, 1.442695
        %v3081 = vpow.pop %v3080
        %v3082 = vmul.f32 %v3039, 1.442695
        %v3083 = vpow.pop %v3082
        %v3084 = vmul.f32 %v3040, 1.442695
        %v3085 = vpow.pop %v3084
        %v3086 = vmul.f32 %v3041, 1.442695
        %v3087 = vpow.pop %v3086
        %v3088 = vmul.f32 %v3042, 1.442695
        %v3089 = vpow.pop %v3088
        %v3090 = vmul.f32 %v3043, 1.442695
        %v3091 = vpow.pop %v3090
        %v3092 = vmul.f32 %v3044, 1.442695
        %v3093 = vpow.pop %v3092
        %v3094 = vmul.f32 %v3045, 1.442695
        %v3095 = vpow.pop %v3094
        %v3096 = vmul.f32 %v3046, 1.442695
        %v3097 = vpow.pop %v3096
        %v3098 = vmul.f32 %v3047, 1.442695
        %v3099 = vpow.pop %v3098
        %v3100 = vmul.f32 %v3048, 1.442695
        %v3101 = vpow.pop %v3100
        %v3102 = vmul.f32 %v3049, 1.442695
        %v3103 = vpow.pop %v3102
        %v3104 = vmul.f32 %v3050, 1.442695
        %v3105 = vpow.pop %v3104
        %v3106 = vmul.f32 %v3051, 1.442695
        %v3107 = vpow.pop %v3106
        %v3108 = vmul.f32 %v3052, 1.442695
        %v3109 = vpow.pop %v3108
        %v3110 = vmul.f32 %v3053, 1.442695
        %v3111 = vpow.pop %v3110
        %v3112 = vmul.f32 %v3054, 1.442695
        %v3113 = vpow.pop %v3112
        %v3114 = vmul.f32 %v3055, 1.442695
        %v3115 = vpow.pop %v3114
        %v3116 = vmul.f32 %v3056, 1.442695
        %v3117 = vpow.pop %v3116
        %v3118 = vmul.f32 %v3057, 1.442695
        %v3119 = vpow.pop %v3118
        %v3120 = vmul.f32 %v3058, 1.442695
        %v3121 = vpow.pop %v3120
        %v3122 = vmul.f32 %v3059, 1.442695
        %v3123 = vpow.pop %v3122
        %3124 = vadd.xlane.f32.xlu0 %v3061
        %v3125 = vpop.xlane.xlu0 %3124
        %3126 = vadd.xlane.f32.xlu0 %v3063
        %v3127 = vpop.xlane.xlu0 %3126
        %3128 = vadd.xlane.f32.xlu0 %v3065
        %v3129 = vpop.xlane.xlu0 %3128
        %3130 = vadd.xlane.f32.xlu0 %v3067
        %v3131 = vpop.xlane.xlu0 %3130
        %3132 = vadd.xlane.f32.xlu0 %v3069
        %v3133 = vpop.xlane.xlu0 %3132
        %3134 = vadd.xlane.f32.xlu0 %v3071
        %v3135 = vpop.xlane.xlu0 %3134
        %3136 = vadd.xlane.f32.xlu0 %v3073
        %v3137 = vpop.xlane.xlu0 %3136
        %3138 = vadd.xlane.f32.xlu0 %v3075
        %v3139 = vpop.xlane.xlu0 %3138
        %3140 = vadd.xlane.f32.xlu0 %v3077
        %v3141 = vpop.xlane.xlu0 %3140
        %3142 = vadd.xlane.f32.xlu0 %v3079
        %v3143 = vpop.xlane.xlu0 %3142
        %3144 = vadd.xlane.f32.xlu0 %v3081
        %v3145 = vpop.xlane.xlu0 %3144
        %3146 = vadd.xlane.f32.xlu0 %v3083
        %v3147 = vpop.xlane.xlu0 %3146
        %3148 = vadd.xlane.f32.xlu0 %v3085
        %v3149 = vpop.xlane.xlu0 %3148
        %3150 = vadd.xlane.f32.xlu0 %v3087
        %v3151 = vpop.xlane.xlu0 %3150
        %3152 = vadd.xlane.f32.xlu0 %v3089
        %v3153 = vpop.xlane.xlu0 %3152
        %3154 = vadd.xlane.f32.xlu0 %v3091
        %v3155 = vpop.xlane.xlu0 %3154
        %3156 = vadd.xlane.f32.xlu0 %v3093
        %v3157 = vpop.xlane.xlu0 %3156
        %3158 = vadd.xlane.f32.xlu0 %v3095
        %v3159 = vpop.xlane.xlu0 %3158
        %3160 = vadd.xlane.f32.xlu0 %v3097
        %v3161 = vpop.xlane.xlu0 %3160
        %3162 = vadd.xlane.f32.xlu0 %v3099
        %v3163 = vpop.xlane.xlu0 %3162
        %3164 = vadd.xlane.f32.xlu0 %v3101
        %v3165 = vpop.xlane.xlu0 %3164
        %3166 = vadd.xlane.f32.xlu0 %v3103
        %v3167 = vpop.xlane.xlu0 %3166
        %3168 = vadd.xlane.f32.xlu0 %v3105
        %v3169 = vpop.xlane.xlu0 %3168
        %3170 = vadd.xlane.f32.xlu0 %v3107
        %v3171 = vpop.xlane.xlu0 %3170
        %3172 = vadd.xlane.f32.xlu0 %v3109
        %v3173 = vpop.xlane.xlu0 %3172
        %3174 = vadd.xlane.f32.xlu0 %v3111
        %v3175 = vpop.xlane.xlu0 %3174
        %3176 = vadd.xlane.f32.xlu0 %v3113
        %v3177 = vpop.xlane.xlu0 %3176
        %3178 = vadd.xlane.f32.xlu0 %v3115
        %v3179 = vpop.xlane.xlu0 %3178
        %3180 = vadd.xlane.f32.xlu0 %v3117
        %v3181 = vpop.xlane.xlu0 %3180
        %3182 = vadd.xlane.f32.xlu0 %v3119
        %v3183 = vpop.xlane.xlu0 %3182
        %3184 = vadd.xlane.f32.xlu0 %v3121
        %v3185 = vpop.xlane.xlu0 %3184
        %3186 = vadd.xlane.f32.xlu0 %v3123
        %v3187 = vpop.xlane.xlu0 %3186
        %v3188 = vrcp.pop %v3125
        %v3189 = vrcp.pop %v3127
        %v3190 = vrcp.pop %v3129
        %v3191 = vrcp.pop %v3131
        %v3192 = vrcp.pop %v3133
        %v3193 = vrcp.pop %v3135
        %v3194 = vrcp.pop %v3137
        %v3195 = vrcp.pop %v3139
        %v3196 = vrcp.pop %v3141
        %v3197 = vrcp.pop %v3143
        %v3198 = vrcp.pop %v3145
        %v3199 = vrcp.pop %v3147
        %v3200 = vrcp.pop %v3149
        %v3201 = vrcp.pop %v3151
        %v3202 = vrcp.pop %v3153
        %v3203 = vrcp.pop %v3155
        %v3204 = vrcp.pop %v3157
        %v3205 = vrcp.pop %v3159
        %v3206 = vrcp.pop %v3161
        %v3207 = vrcp.pop %v3163
        %v3208 = vrcp.pop %v3165
        %v3209 = vrcp.pop %v3167
        %v3210 = vrcp.pop %v3169
        %v3211 = vrcp.pop %v3171
        %v3212 = vrcp.pop %v3173
        %v3213 = vrcp.pop %v3175
        %v3214 = vrcp.pop %v3177
        %v3215 = vrcp.pop %v3179
        %v3216 = vrcp.pop %v3181
        %v3217 = vrcp.pop %v3183
        %v3218 = vrcp.pop %v3185
        %v3219 = vrcp.pop %v3187
        %v3220 = vmul.f32 %v3061, %v3188
        %v3221 = vmul.f32 %v3063, %v3189
        %v3222 = vmul.f32 %v3065, %v3190
        %v3223 = vmul.f32 %v3067, %v3191
        %v3224 = vmul.f32 %v3069, %v3192
        %v3225 = vmul.f32 %v3071, %v3193
        %v3226 = vmul.f32 %v3073, %v3194
        %v3227 = vmul.f32 %v3075, %v3195
        %v3228 = vmul.f32 %v3077, %v3196
        %v3229 = vmul.f32 %v3079, %v3197
        %v3230 = vmul.f32 %v3081, %v3198
        %v3231 = vmul.f32 %v3083, %v3199
        %v3232 = vmul.f32 %v3085, %v3200
        %v3233 = vmul.f32 %v3087, %v3201
        %v3234 = vmul.f32 %v3089, %v3202
        %v3235 = vmul.f32 %v3091, %v3203
        %v3236 = vmul.f32 %v3093, %v3204
        %v3237 = vmul.f32 %v3095, %v3205
        %v3238 = vmul.f32 %v3097, %v3206
        %v3239 = vmul.f32 %v3099, %v3207
        %v3240 = vmul.f32 %v3101, %v3208
        %v3241 = vmul.f32 %v3103, %v3209
        %v3242 = vmul.f32 %v3105, %v3210
        %v3243 = vmul.f32 %v3107, %v3211
        %v3244 = vmul.f32 %v3109, %v3212
        %v3245 = vmul.f32 %v3111, %v3213
        %v3246 = vmul.f32 %v3113, %v3214
        %v3247 = vmul.f32 %v3115, %v3215
        %v3248 = vmul.f32 %v3117, %v3216
        %v3249 = vmul.f32 %v3119, %v3217
        %v3250 = vmul.f32 %v3121, %v3218
        %v3251 = vmul.f32 %v3123, %v3219
        %v3252 = vpack.c.bf16 %v3221, %v3220
        %v3253 = vpack.c.bf16 %v3223, %v3222
        %v3254 = vpack.c.bf16 %v3225, %v3224
        %v3255 = vpack.c.bf16 %v3227, %v3226
        %v3256 = vpack.c.bf16 %v3229, %v3228
        %v3257 = vpack.c.bf16 %v3231, %v3230
        %v3258 = vpack.c.bf16 %v3233, %v3232
        %v3259 = vpack.c.bf16 %v3235, %v3234
        %v3260 = vpack.c.bf16 %v3237, %v3236
        %v3261 = vpack.c.bf16 %v3239, %v3238
        %v3262 = vpack.c.bf16 %v3241, %v3240
        %v3263 = vpack.c.bf16 %v3243, %v3242
        %v3264 = vpack.c.bf16 %v3245, %v3244
        %v3265 = vpack.c.bf16 %v3247, %v3246
        %v3266 = vpack.c.bf16 %v3249, %v3248
        %v3267 = vpack.c.bf16 %v3251, %v3250
        %3268 = vmatprep.subr.bf16.mxu0 0
        %3269 = vmatpush1.bf16.msra.mxu0 %v2646
        %3270 = vmatprep.subr.bf16.mxu0 0
        %3271 = vmatpush1.bf16.msra.mxu0 %v2652
        %3272 = vmatprep.subr.bf16.mxu0 0
        %3273 = vmatpush1.bf16.msra.mxu0 %v2658
        %3274 = vmatprep.subr.bf16.mxu0 0
        %3275 = vmatpush1.bf16.msra.mxu0 %v2664
        %3276 = vmatprep.subr.bf16.mxu0 0
        %3277 = vmatpush1.bf16.msra.mxu0 %v2670
        %3278 = vmatprep.subr.bf16.mxu0 0
        %3279 = vmatpush1.bf16.msra.mxu0 %v2676
        %3280 = vmatprep.subr.bf16.mxu0 0
        %3281 = vmatpush1.bf16.msra.mxu0 %v2682
        %3282 = vmatprep.subr.bf16.mxu0 0
        %3283 = vmatpush1.bf16.msra.mxu0 %v2688
        %3284 = vmatprep.subr.bf16.mxu0 0
        %3285 = vmatpush1.bf16.msra.mxu0 0
        %3286 = vmatprep.subr.bf16.mxu0 0
        %3287 = vmatpush1.bf16.msra.mxu0 0
        %3288 = vmatprep.subr.bf16.mxu0 0
        %3289 = vmatpush1.bf16.msra.mxu0 0
        %3290 = vmatprep.subr.bf16.mxu0 0
        %3291 = vmatpush1.bf16.msra.mxu0 0
        %3292 = vmatprep.subr.bf16.mxu0 0
        %3293 = vmatpush1.bf16.msra.mxu0 0
        %3294 = vmatprep.subr.bf16.mxu0 0
        %3295 = vmatpush1.bf16.msra.mxu0 0
        %3296 = vmatprep.subr.bf16.mxu0 0
        %3297 = vmatpush1.bf16.msra.mxu0 0
        %3298 = vmatprep.subr.bf16.mxu0 0
        %3299 = vmatpush1.bf16.msra.mxu0 0
        %3300 = vmatprep.mubr.bf16.mxu0 0
        %3301 = vmatmul.mubr.bf16.gmra.mrb[0].mxu0 %v3252
        %v3302 = vpop.f32.mrb[0].mxu0
        %v3303 = vadd.f32 0.0, %v3302
        %v3304 = vpop.f32.mrb[0].mxu0
        %v3305 = vpop.f32.mrb[0].mxu0
        %v3306 = vadd.f32 0.0, %v3305
        %v3307 = vpop.f32.mrb[0].mxu0
        %3308 = vmatprep.mubr.bf16.mxu0 0
        %3309 = vmatmul.mubr.bf16.gmra.mrb[0].mxu0 %v3253
        %v3310 = vpop.f32.mrb[0].mxu0
        %v3311 = vadd.f32 0.0, %v3310
        %v3312 = vpop.f32.mrb[0].mxu0
        %v3313 = vpop.f32.mrb[0].mxu0
        %v3314 = vadd.f32 0.0, %v3313
        %v3315 = vpop.f32.mrb[0].mxu0
        %3316 = vmatprep.mubr.bf16.mxu0 0
        %3317 = vmatmul.mubr.bf16.gmra.mrb[0].mxu0 %v3254
        %v3318 = vpop.f32.mrb[0].mxu0
        %v3319 = vadd.f32 0.0, %v3318
        %v3320 = vpop.f32.mrb[0].mxu0
        %v3321 = vpop.f32.mrb[0].mxu0
        %v3322 = vadd.f32 0.0, %v3321
        %v3323 = vpop.f32.mrb[0].mxu0
        %3324 = vmatprep.mubr.bf16.mxu0 0
        %3325 = vmatmul.mubr.bf16.gmra.mrb[0].mxu0 %v3255
        %v3326 = vpop.f32.mrb[0].mxu0
        %v3327 = vadd.f32 0.0, %v3326
        %v3328 = vpop.f32.mrb[0].mxu0
        %v3329 = vpop.f32.mrb[0].mxu0
        %v3330 = vadd.f32 0.0, %v3329
        %v3331 = vpop.f32.mrb[0].mxu0
        %3332 = vmatprep.mubr.bf16.mxu0 0
        %3333 = vmatmul.mubr.bf16.gmra.mrb[0].mxu0 %v3256
        %v3334 = vpop.f32.mrb[0].mxu0
        %v3335 = vadd.f32 0.0, %v3334
        %v3336 = vpop.f32.mrb[0].mxu0
        %v3337 = vpop.f32.mrb[0].mxu0
        %v3338 = vadd.f32 0.0, %v3337
        %v3339 = vpop.f32.mrb[0].mxu0
        %3340 = vmatprep.mubr.bf16.mxu0 0
        %3341 = vmatmul.mubr.bf16.gmra.mrb[0].mxu0 %v3257
        %v3342 = vpop.f32.mrb[0].mxu0
        %v3343 = vadd.f32 0.0, %v3342
        %v3344 = vpop.f32.mrb[0].mxu0
        %v3345 = vpop.f32.mrb[0].mxu0
        %v3346 = vadd.f32 0.0, %v3345
        %v3347 = vpop.f32.mrb[0].mxu0
        %3348 = vmatprep.mubr.bf16.mxu0 0
        %3349 = vmatmul.mubr.bf16.gmra.mrb[0].mxu0 %v3258
        %v3350 = vpop.f32.mrb[0].mxu0
        %v3351 = vadd.f32 0.0, %v3350
        %v3352 = vpop.f32.mrb[0].mxu0
        %v3353 = vpop.f32.mrb[0].mxu0
        %v3354 = vadd.f32 0.0, %v3353
        %v3355 = vpop.f32.mrb[0].mxu0
        %3356 = vmatprep.mubr.bf16.mxu0 0
        %3357 = vmatmul.mubr.bf16.gmra.mrb[0].mxu0 %v3259
        %v3358 = vpop.f32.mrb[0].mxu0
        %v3359 = vadd.f32 0.0, %v3358
        %v3360 = vpop.f32.mrb[0].mxu0
        %v3361 = vpop.f32.mrb[0].mxu0
        %v3362 = vadd.f32 0.0, %v3361
        %v3363 = vpop.f32.mrb[0].mxu0
        %3364 = vdwg.mxu0
        %3365 = vmatprep.subr.bf16.mxu0 0
        %3366 = vmatpush1.bf16.msra.mxu0 %v2694
        %3367 = vmatprep.subr.bf16.mxu0 0
        %3368 = vmatpush1.bf16.msra.mxu0 %v2700
        %3369 = vmatprep.subr.bf16.mxu0 0
        %3370 = vmatpush1.bf16.msra.mxu0 %v2706
        %3371 = vmatprep.subr.bf16.mxu0 0
        %3372 = vmatpush1.bf16.msra.mxu0 %v2712
        %3373 = vmatprep.subr.bf16.mxu0 0
        %3374 = vmatpush1.bf16.msra.mxu0 %v2718
        %3375 = vmatprep.subr.bf16.mxu0 0
        %3376 = vmatpush1.bf16.msra.mxu0 %v2724
        %3377 = vmatprep.subr.bf16.mxu0 0
        %3378 = vmatpush1.bf16.msra.mxu0 %v2730
        %3379 = vmatprep.subr.bf16.mxu0 0
        %3380 = vmatpush1.bf16.msra.mxu0 %v2736
        %3381 = vmatprep.subr.bf16.mxu0 0
        %3382 = vmatpush1.bf16.msra.mxu0 0
        %3383 = vmatprep.subr.bf16.mxu0 0
        %3384 = vmatpush1.bf16.msra.mxu0 0
        %3385 = vmatprep.subr.bf16.mxu0 0
        %3386 = vmatpush1.bf16.msra.mxu0 0
        %3387 = vmatprep.subr.bf16.mxu0 0
        %3388 = vmatpush1.bf16.msra.mxu0 0
        %3389 = vmatprep.subr.bf16.mxu0 0
        %3390 = vmatpush1.bf16.msra.mxu0 0
        %3391 = vmatprep.subr.bf16.mxu0 0
        %3392 = vmatpush1.bf16.msra.mxu0 0
        %3393 = vmatprep.subr.bf16.mxu0 0
        %3394 = vmatpush1.bf16.msra.mxu0 0
        %3395 = vmatprep.subr.bf16.mxu0 0
        %3396 = vmatpush1.bf16.msra.mxu0 0
        %3397 = vmatprep.mubr.bf16.mxu0 0
        %3398 = vmatmul.mubr.bf16.gmra.mrb[0].mxu0 %v3260
        %v3399 = vpop.f32.mrb[0].mxu0
        %v3400 = vadd.f32 0.0, %v3399
        %v3401 = vpop.f32.mrb[0].mxu0
        %v3402 = vpop.f32.mrb[0].mxu0
        %v3403 = vadd.f32 0.0, %v3402
        %v3404 = vpop.f32.mrb[0].mxu0
        %3405 = vmatprep.mubr.bf16.mxu0 0
        %3406 = vmatmul.mubr.bf16.gmra.mrb[0].mxu0 %v3261
        %v3407 = vpop.f32.mrb[0].mxu0
        %v3408 = vadd.f32 0.0, %v3407
        %v3409 = vpop.f32.mrb[0].mxu0
        %v3410 = vpop.f32.mrb[0].mxu0
        %v3411 = vadd.f32 0.0, %v3410
        %v3412 = vpop.f32.mrb[0].mxu0
        %3413 = vmatprep.mubr.bf16.mxu0 0
        %3414 = vmatmul.mubr.bf16.gmra.mrb[0].mxu0 %v3262
        %v3415 = vpop.f32.mrb[0].mxu0
        %v3416 = vadd.f32 0.0, %v3415
        %v3417 = vpop.f32.mrb[0].mxu0
        %v3418 = vpop.f32.mrb[0].mxu0
        %v3419 = vadd.f32 0.0, %v3418
        %v3420 = vpop.f32.mrb[0].mxu0
        %3421 = vmatprep.mubr.bf16.mxu0 0
        %3422 = vmatmul.mubr.bf16.gmra.mrb[0].mxu0 %v3263
        %v3423 = vpop.f32.mrb[0].mxu0
        %v3424 = vadd.f32 0.0, %v3423
        %v3425 = vpop.f32.mrb[0].mxu0
        %v3426 = vpop.f32.mrb[0].mxu0
        %v3427 = vadd.f32 0.0, %v3426
        %v3428 = vpop.f32.mrb[0].mxu0
        %3429 = vmatprep.mubr.bf16.mxu0 0
        %3430 = vmatmul.mubr.bf16.gmra.mrb[0].mxu0 %v3264
        %v3431 = vpop.f32.mrb[0].mxu0
        %v3432 = vadd.f32 0.0, %v3431
        %v3433 = vpop.f32.mrb[0].mxu0
        %v3434 = vpop.f32.mrb[0].mxu0
        %v3435 = vadd.f32 0.0, %v3434
        %v3436 = vpop.f32.mrb[0].mxu0
        %3437 = vmatprep.mubr.bf16.mxu0 0
        %3438 = vmatmul.mubr.bf16.gmra.mrb[0].mxu0 %v3265
        %v3439 = vpop.f32.mrb[0].mxu0
        %v3440 = vadd.f32 0.0, %v3439
        %v3441 = vpop.f32.mrb[0].mxu0
        %v3442 = vpop.f32.mrb[0].mxu0
        %v3443 = vadd.f32 0.0, %v3442
        %v3444 = vpop.f32.mrb[0].mxu0
        %3445 = vmatprep.mubr.bf16.mxu0 0
        %3446 = vmatmul.mubr.bf16.gmra.mrb[0].mxu0 %v3266
        %v3447 = vpop.f32.mrb[0].mxu0
        %v3448 = vadd.f32 0.0, %v3447
        %v3449 = vpop.f32.mrb[0].mxu0
        %v3450 = vpop.f32.mrb[0].mxu0
        %v3451 = vadd.f32 0.0, %v3450
        %v3452 = vpop.f32.mrb[0].mxu0
        %3453 = vmatprep.mubr.bf16.mxu0 0
        %3454 = vmatmul.mubr.bf16.gmra.mrb[0].mxu0 %v3267
        %v3455 = vpop.f32.mrb[0].mxu0
        %v3456 = vadd.f32 0.0, %v3455
        %v3457 = vpop.f32.mrb[0].mxu0
        %v3458 = vpop.f32.mrb[0].mxu0
        %v3459 = vadd.f32 0.0, %v3458
        %v3460 = vpop.f32.mrb[0].mxu0
        %3461 = vdwg.mxu0
        %v3462 = vpack.c.bf16 %v3306, %v3303
        %v3463 = vpack.c.bf16 %v3314, %v3311
        %v3464 = vpack.c.bf16 %v3322, %v3319
        %v3465 = vpack.c.bf16 %v3330, %v3327
        %v3466 = vpack.c.bf16 %v3338, %v3335
        %v3467 = vpack.c.bf16 %v3346, %v3343
        %v3468 = vpack.c.bf16 %v3354, %v3351
        %v3469 = vpack.c.bf16 %v3362, %v3359
        %v3470 = vpack.c.bf16 %v3403, %v3400
        %v3471 = vpack.c.bf16 %v3411, %v3408
        %v3472 = vpack.c.bf16 %v3419, %v3416
        %v3473 = vpack.c.bf16 %v3427, %v3424
        %v3474 = vpack.c.bf16 %v3435, %v3432
        %v3475 = vpack.c.bf16 %v3443, %v3440
        %v3476 = vpack.c.bf16 %v3451, %v3448
        %v3477 = vpack.c.bf16 %v3459, %v3456
        %3478 = vmatprep.subr.bf16.mxu0 0
        %3479 = vmatpush1.bf16.xpose.msra.mxu0 %v2645
        %3480 = vmatprep.subr.bf16.mxu0 0
        %3481 = vmatpush1.bf16.xpose.msra.mxu0 %v2651
        %3482 = vmatprep.subr.bf16.mxu0 0
        %3483 = vmatpush1.bf16.xpose.msra.mxu0 %v2657
        %3484 = vmatprep.subr.bf16.mxu0 0
        %3485 = vmatpush1.bf16.xpose.msra.mxu0 %v2663
        %3486 = vmatprep.subr.bf16.mxu0 0
        %3487 = vmatpush1.bf16.xpose.msra.mxu0 %v2669
        %3488 = vmatprep.subr.bf16.mxu0 0
        %3489 = vmatpush1.bf16.xpose.msra.mxu0 %v2675
        %3490 = vmatprep.subr.bf16.mxu0 0
        %3491 = vmatpush1.bf16.xpose.msra.mxu0 %v2681
        %3492 = vmatprep.subr.bf16.mxu0 0
        %3493 = vmatpush1.bf16.xpose.msra.mxu0 %v2687
        %3494 = vmatprep.subr.bf16.mxu0 0
        %3495 = vmatpush1.bf16.xpose.msra.mxu0 0
        %3496 = vmatprep.subr.bf16.mxu0 0
        %3497 = vmatpush1.bf16.xpose.msra.mxu0 0
        %3498 = vmatprep.subr.bf16.mxu0 0
        %3499 = vmatpush1.bf16.xpose.msra.mxu0 0
        %3500 = vmatprep.subr.bf16.mxu0 0
        %3501 = vmatpush1.bf16.xpose.msra.mxu0 0
        %3502 = vmatprep.subr.bf16.mxu0 0
        %3503 = vmatpush1.bf16.xpose.msra.mxu0 0
        %3504 = vmatprep.subr.bf16.mxu0 0
        %3505 = vmatpush1.bf16.xpose.msra.mxu0 0
        %3506 = vmatprep.subr.bf16.mxu0 0
        %3507 = vmatpush1.bf16.xpose.msra.mxu0 0
        %3508 = vmatprep.subr.bf16.mxu0 0
        %3509 = vmatpush1.bf16.xpose.msra.mxu0 0
        %3510 = vmatprep.mubr.bf16.mxu0 0
        %3511 = vmatmul.mubr.bf16.gmra.mrb[0].mxu0 %v2643
        %v3512 = vpop.f32.mrb[0].mxu0
        %v3513 = vadd.f32 0.0, %v3512
        %v3514 = vpop.f32.mrb[0].mxu0
        %v3515 = vpop.f32.mrb[0].mxu0
        %v3516 = vadd.f32 0.0, %v3515
        %v3517 = vpop.f32.mrb[0].mxu0
        %3518 = vmatprep.mubr.bf16.mxu0 0
        %3519 = vmatmul.mubr.bf16.gmra.mrb[0].mxu0 %v2649
        %v3520 = vpop.f32.mrb[0].mxu0
        %v3521 = vadd.f32 0.0, %v3520
        %v3522 = vpop.f32.mrb[0].mxu0
        %v3523 = vpop.f32.mrb[0].mxu0
        %v3524 = vadd.f32 0.0, %v3523
        %v3525 = vpop.f32.mrb[0].mxu0
        %3526 = vmatprep.mubr.bf16.mxu0 0
        %3527 = vmatmul.mubr.bf16.gmra.mrb[0].mxu0 %v2655
        %v3528 = vpop.f32.mrb[0].mxu0
        %v3529 = vadd.f32 0.0, %v3528
        %v3530 = vpop.f32.mrb[0].mxu0
        %v3531 = vpop.f32.mrb[0].mxu0
        %v3532 = vadd.f32 0.0, %v3531
        %v3533 = vpop.f32.mrb[0].mxu0
        %3534 = vmatprep.mubr.bf16.mxu0 0
        %3535 = vmatmul.mubr.bf16.gmra.mrb[0].mxu0 %v2661
        %v3536 = vpop.f32.mrb[0].mxu0
        %v3537 = vadd.f32 0.0, %v3536
        %v3538 = vpop.f32.mrb[0].mxu0
        %v3539 = vpop.f32.mrb[0].mxu0
        %v3540 = vadd.f32 0.0, %v3539
        %v3541 = vpop.f32.mrb[0].mxu0
        %3542 = vmatprep.mubr.bf16.mxu0 0
        %3543 = vmatmul.mubr.bf16.gmra.mrb[0].mxu0 %v2667
        %v3544 = vpop.f32.mrb[0].mxu0
        %v3545 = vadd.f32 0.0, %v3544
        %v3546 = vpop.f32.mrb[0].mxu0
        %v3547 = vpop.f32.mrb[0].mxu0
        %v3548 = vadd.f32 0.0, %v3547
        %v3549 = vpop.f32.mrb[0].mxu0
        %3550 = vmatprep.mubr.bf16.mxu0 0
        %3551 = vmatmul.mubr.bf16.gmra.mrb[0].mxu0 %v2673
        %v3552 = vpop.f32.mrb[0].mxu0
        %v3553 = vadd.f32 0.0, %v3552
        %v3554 = vpop.f32.mrb[0].mxu0
        %v3555 = vpop.f32.mrb[0].mxu0
        %v3556 = vadd.f32 0.0, %v3555
        %v3557 = vpop.f32.mrb[0].mxu0
        %3558 = vmatprep.mubr.bf16.mxu0 0
        %3559 = vmatmul.mubr.bf16.gmra.mrb[0].mxu0 %v2679
        %v3560 = vpop.f32.mrb[0].mxu0
        %v3561 = vadd.f32 0.0, %v3560
        %v3562 = vpop.f32.mrb[0].mxu0
        %v3563 = vpop.f32.mrb[0].mxu0
        %v3564 = vadd.f32 0.0, %v3563
        %v3565 = vpop.f32.mrb[0].mxu0
        %3566 = vmatprep.mubr.bf16.mxu0 0
        %3567 = vmatmul.mubr.bf16.gmra.mrb[0].mxu0 %v2685
        %v3568 = vpop.f32.mrb[0].mxu0
        %v3569 = vadd.f32 0.0, %v3568
        %v3570 = vpop.f32.mrb[0].mxu0
        %v3571 = vpop.f32.mrb[0].mxu0
        %v3572 = vadd.f32 0.0, %v3571
        %v3573 = vpop.f32.mrb[0].mxu0
        %3574 = vdwg.mxu0
        %3575 = vmatprep.subr.bf16.mxu0 0
        %3576 = vmatpush1.bf16.xpose.msra.mxu0 %v2693
        %3577 = vmatprep.subr.bf16.mxu0 0
        %3578 = vmatpush1.bf16.xpose.msra.mxu0 %v2699
        %3579 = vmatprep.subr.bf16.mxu0 0
        %3580 = vmatpush1.bf16.xpose.msra.mxu0 %v2705
        %3581 = vmatprep.subr.bf16.mxu0 0
        %3582 = vmatpush1.bf16.xpose.msra.mxu0 %v2711
        %3583 = vmatprep.subr.bf16.mxu0 0
        %3584 = vmatpush1.bf16.xpose.msra.mxu0 %v2717
        %3585 = vmatprep.subr.bf16.mxu0 0
        %3586 = vmatpush1.bf16.xpose.msra.mxu0 %v2723
        %3587 = vmatprep.subr.bf16.mxu0 0
        %3588 = vmatpush1.bf16.xpose.msra.mxu0 %v2729
        %3589 = vmatprep.subr.bf16.mxu0 0
        %3590 = vmatpush1.bf16.xpose.msra.mxu0 %v2735
        %3591 = vmatprep.subr.bf16.mxu0 0
        %3592 = vmatpush1.bf16.xpose.msra.mxu0 0
        %3593 = vmatprep.subr.bf16.mxu0 0
        %3594 = vmatpush1.bf16.xpose.msra.mxu0 0
        %3595 = vmatprep.subr.bf16.mxu0 0
        %3596 = vmatpush1.bf16.xpose.msra.mxu0 0
        %3597 = vmatprep.subr.bf16.mxu0 0
        %3598 = vmatpush1.bf16.xpose.msra.mxu0 0
        %3599 = vmatprep.subr.bf16.mxu0 0
        %3600 = vmatpush1.bf16.xpose.msra.mxu0 0
        %3601 = vmatprep.subr.bf16.mxu0 0
        %3602 = vmatpush1.bf16.xpose.msra.mxu0 0
        %3603 = vmatprep.subr.bf16.mxu0 0
        %3604 = vmatpush1.bf16.xpose.msra.mxu0 0
        %3605 = vmatprep.subr.bf16.mxu0 0
        %3606 = vmatpush1.bf16.xpose.msra.mxu0 0
        %3607 = vmatprep.mubr.bf16.mxu0 0
        %3608 = vmatmul.mubr.bf16.gmra.mrb[0].mxu0 %v2691
        %v3609 = vpop.f32.mrb[0].mxu0
        %v3610 = vadd.f32 0.0, %v3609
        %v3611 = vpop.f32.mrb[0].mxu0
        %v3612 = vpop.f32.mrb[0].mxu0
        %v3613 = vadd.f32 0.0, %v3612
        %v3614 = vpop.f32.mrb[0].mxu0
        %3615 = vmatprep.mubr.bf16.mxu0 0
        %3616 = vmatmul.mubr.bf16.gmra.mrb[0].mxu0 %v2697
        %v3617 = vpop.f32.mrb[0].mxu0
        %v3618 = vadd.f32 0.0, %v3617
        %v3619 = vpop.f32.mrb[0].mxu0
        %v3620 = vpop.f32.mrb[0].mxu0
        %v3621 = vadd.f32 0.0, %v3620
        %v3622 = vpop.f32.mrb[0].mxu0
        %3623 = vmatprep.mubr.bf16.mxu0 0
        %3624 = vmatmul.mubr.bf16.gmra.mrb[0].mxu0 %v2703
        %v3625 = vpop.f32.mrb[0].mxu0
        %v3626 = vadd.f32 0.0, %v3625
        %v3627 = vpop.f32.mrb[0].mxu0
        %v3628 = vpop.f32.mrb[0].mxu0
        %v3629 = vadd.f32 0.0, %v3628
        %v3630 = vpop.f32.mrb[0].mxu0
        %3631 = vmatprep.mubr.bf16.mxu0 0
        %3632 = vmatmul.mubr.bf16.gmra.mrb[0].mxu0 %v2709
        %v3633 = vpop.f32.mrb[0].mxu0
        %v3634 = vadd.f32 0.0, %v3633
        %v3635 = vpop.f32.mrb[0].mxu0
        %v3636 = vpop.f32.mrb[0].mxu0
        %v3637 = vadd.f32 0.0, %v3636
        %v3638 = vpop.f32.mrb[0].mxu0
        %3639 = vmatprep.mubr.bf16.mxu0 0
        %3640 = vmatmul.mubr.bf16.gmra.mrb[0].mxu0 %v2715
        %v3641 = vpop.f32.mrb[0].mxu0
        %v3642 = vadd.f32 0.0, %v3641
        %v3643 = vpop.f32.mrb[0].mxu0
        %v3644 = vpop.f32.mrb[0].mxu0
        %v3645 = vadd.f32 0.0, %v3644
        %v3646 = vpop.f32.mrb[0].mxu0
        %3647 = vmatprep.mubr.bf16.mxu0 0
        %3648 = vmatmul.mubr.bf16.gmra.mrb[0].mxu0 %v2721
        %v3649 = vpop.f32.mrb[0].mxu0
        %v3650 = vadd.f32 0.0, %v3649
        %v3651 = vpop.f32.mrb[0].mxu0
        %v3652 = vpop.f32.mrb[0].mxu0
        %v3653 = vadd.f32 0.0, %v3652
        %v3654 = vpop.f32.mrb[0].mxu0
        %3655 = vmatprep.mubr.bf16.mxu0 0
        %3656 = vmatmul.mubr.bf16.gmra.mrb[0].mxu0 %v2727
        %v3657 = vpop.f32.mrb[0].mxu0
        %v3658 = vadd.f32 0.0, %v3657
        %v3659 = vpop.f32.mrb[0].mxu0
        %v3660 = vpop.f32.mrb[0].mxu0
        %v3661 = vadd.f32 0.0, %v3660
        %v3662 = vpop.f32.mrb[0].mxu0
        %3663 = vmatprep.mubr.bf16.mxu0 0
        %3664 = vmatmul.mubr.bf16.gmra.mrb[0].mxu0 %v2733
        %v3665 = vpop.f32.mrb[0].mxu0
        %v3666 = vadd.f32 0.0, %v3665
        %v3667 = vpop.f32.mrb[0].mxu0
        %v3668 = vpop.f32.mrb[0].mxu0
        %v3669 = vadd.f32 0.0, %v3668
        %v3670 = vpop.f32.mrb[0].mxu0
        %3671 = vdwg.mxu0
        %3672 = vmax.xlane.f32.xlu0 %v3513
        %v3673 = vpop.xlane.xlu0 %3672
        %3674 = vmax.xlane.f32.xlu0 %v3516
        %v3675 = vpop.xlane.xlu0 %3674
        %3676 = vmax.xlane.f32.xlu0 %v3521
        %v3677 = vpop.xlane.xlu0 %3676
        %3678 = vmax.xlane.f32.xlu0 %v3524
        %v3679 = vpop.xlane.xlu0 %3678
        %3680 = vmax.xlane.f32.xlu0 %v3529
        %v3681 = vpop.xlane.xlu0 %3680
        %3682 = vmax.xlane.f32.xlu0 %v3532
        %v3683 = vpop.xlane.xlu0 %3682
        %3684 = vmax.xlane.f32.xlu0 %v3537
        %v3685 = vpop.xlane.xlu0 %3684
        %3686 = vmax.xlane.f32.xlu0 %v3540
        %v3687 = vpop.xlane.xlu0 %3686
        %3688 = vmax.xlane.f32.xlu0 %v3545
        %v3689 = vpop.xlane.xlu0 %3688
        %3690 = vmax.xlane.f32.xlu0 %v3548
        %v3691 = vpop.xlane.xlu0 %3690
        %3692 = vmax.xlane.f32.xlu0 %v3553
        %v3693 = vpop.xlane.xlu0 %3692
        %3694 = vmax.xlane.f32.xlu0 %v3556
        %v3695 = vpop.xlane.xlu0 %3694
        %3696 = vmax.xlane.f32.xlu0 %v3561
        %v3697 = vpop.xlane.xlu0 %3696
        %3698 = vmax.xlane.f32.xlu0 %v3564
        %v3699 = vpop.xlane.xlu0 %3698
        %3700 = vmax.xlane.f32.xlu0 %v3569
        %v3701 = vpop.xlane.xlu0 %3700
        %3702 = vmax.xlane.f32.xlu0 %v3572
        %v3703 = vpop.xlane.xlu0 %3702
        %3704 = vmax.xlane.f32.xlu0 %v3610
        %v3705 = vpop.xlane.xlu0 %3704
        %3706 = vmax.xlane.f32.xlu0 %v3613
        %v3707 = vpop.xlane.xlu0 %3706
        %3708 = vmax.xlane.f32.xlu0 %v3618
        %v3709 = vpop.xlane.xlu0 %3708
        %3710 = vmax.xlane.f32.xlu0 %v3621
        %v3711 = vpop.xlane.xlu0 %3710
        %3712 = vmax.xlane.f32.xlu0 %v3626
        %v3713 = vpop.xlane.xlu0 %3712
        %3714 = vmax.xlane.f32.xlu0 %v3629
        %v3715 = vpop.xlane.xlu0 %3714
        %3716 = vmax.xlane.f32.xlu0 %v3634
        %v3717 = vpop.xlane.xlu0 %3716
        %3718 = vmax.xlane.f32.xlu0 %v3637
        %v3719 = vpop.xlane.xlu0 %3718
        %3720 = vmax.xlane.f32.xlu0 %v3642
        %v3721 = vpop.xlane.xlu0 %3720
        %3722 = vmax.xlane.f32.xlu0 %v3645
        %v3723 = vpop.xlane.xlu0 %3722
        %3724 = vmax.xlane.f32.xlu0 %v3650
        %v3725 = vpop.xlane.xlu0 %3724
        %3726 = vmax.xlane.f32.xlu0 %v3653
        %v3727 = vpop.xlane.xlu0 %3726
        %3728 = vmax.xlane.f32.xlu0 %v3658
        %v3729 = vpop.xlane.xlu0 %3728
        %3730 = vmax.xlane.f32.xlu0 %v3661
        %v3731 = vpop.xlane.xlu0 %3730
        %3732 = vmax.xlane.f32.xlu0 %v3666
        %v3733 = vpop.xlane.xlu0 %3732
        %3734 = vmax.xlane.f32.xlu0 %v3669
        %v3735 = vpop.xlane.xlu0 %3734
        %v3736 = vsub.f32 %v3513, %v3673
        %v3737 = vsub.f32 %v3516, %v3675
        %v3738 = vsub.f32 %v3521, %v3677
        %v3739 = vsub.f32 %v3524, %v3679
        %v3740 = vsub.f32 %v3529, %v3681
        %v3741 = vsub.f32 %v3532, %v3683
        %v3742 = vsub.f32 %v3537, %v3685
        %v3743 = vsub.f32 %v3540, %v3687
        %v3744 = vsub.f32 %v3545, %v3689
        %v3745 = vsub.f32 %v3548, %v3691
        %v3746 = vsub.f32 %v3553, %v3693
        %v3747 = vsub.f32 %v3556, %v3695
        %v3748 = vsub.f32 %v3561, %v3697
        %v3749 = vsub.f32 %v3564, %v3699
        %v3750 = vsub.f32 %v3569, %v3701
        %v3751 = vsub.f32 %v3572, %v3703
        %v3752 = vsub.f32 %v3610, %v3705
        %v3753 = vsub.f32 %v3613, %v3707
        %v3754 = vsub.f32 %v3618, %v3709
        %v3755 = vsub.f32 %v3621, %v3711
        %v3756 = vsub.f32 %v3626, %v3713
        %v3757 = vsub.f32 %v3629, %v3715
        %v3758 = vsub.f32 %v3634, %v3717
        %v3759 = vsub.f32 %v3637, %v3719
        %v3760 = vsub.f32 %v3642, %v3721
        %v3761 = vsub.f32 %v3645, %v3723
        %v3762 = vsub.f32 %v3650, %v3725
        %v3763 = vsub.f32 %v3653, %v3727
        %v3764 = vsub.f32 %v3658, %v3729
        %v3765 = vsub.f32 %v3661, %v3731
        %v3766 = vsub.f32 %v3666, %v3733
        %v3767 = vsub.f32 %v3669, %v3735
        %v3768 = vmul.f32 %v3736, 1.442695
        %v3769 = vpow.pop %v3768
        %v3770 = vmul.f32 %v3737, 1.442695
        %v3771 = vpow.pop %v3770
        %v3772 = vmul.f32 %v3738, 1.442695
        %v3773 = vpow.pop %v3772
        %v3774 = vmul.f32 %v3739, 1.442695
        %v3775 = vpow.pop %v3774
        %v3776 = vmul.f32 %v3740, 1.442695
        %v3777 = vpow.pop %v3776
        %v3778 = vmul.f32 %v3741, 1.442695
        %v3779 = vpow.pop %v3778
        %v3780 = vmul.f32 %v3742, 1.442695
        %v3781 = vpow.pop %v3780
        %v3782 = vmul.f32 %v3743, 1.442695
        %v3783 = vpow.pop %v3782
        %v3784 = vmul.f32 %v3744, 1.442695
        %v3785 = vpow.pop %v3784
        %v3786 = vmul.f32 %v3745, 1.442695
        %v3787 = vpow.pop %v3786
        %v3788 = vmul.f32 %v3746, 1.442695
        %v3789 = vpow.pop %v3788
        %v3790 = vmul.f32 %v3747, 1.442695
        %v3791 = vpow.pop %v3790
        %v3792 = vmul.f32 %v3748, 1.442695
        %v3793 = vpow.pop %v3792
        %v3794 = vmul.f32 %v3749, 1.442695
        %v3795 = vpow.pop %v3794
        %v3796 = vmul.f32 %v3750, 1.442695
        %v3797 = vpow.pop %v3796
        %v3798 = vmul.f32 %v3751, 1.442695
        %v3799 = vpow.pop %v3798
        %v3800 = vmul.f32 %v3752, 1.442695
        %v3801 = vpow.pop %v3800
        %v3802 = vmul.f32 %v3753, 1.442695
        %v3803 = vpow.pop %v3802
        %v3804 = vmul.f32 %v3754, 1.442695
        %v3805 = vpow.pop %v3804
        %v3806 = vmul.f32 %v3755, 1.442695
        %v3807 = vpow.pop %v3806
        %v3808 = vmul.f32 %v3756, 1.442695
        %v3809 = vpow.pop %v3808
        %v3810 = vmul.f32 %v3757, 1.442695
        %v3811 = vpow.pop %v3810
        %v3812 = vmul.f32 %v3758, 1.442695
        %v3813 = vpow.pop %v3812
        %v3814 = vmul.f32 %v3759, 1.442695
        %v3815 = vpow.pop %v3814
        %v3816 = vmul.f32 %v3760, 1.442695
        %v3817 = vpow.pop %v3816
        %v3818 = vmul.f32 %v3761, 1.442695
        %v3819 = vpow.pop %v3818
        %v3820 = vmul.f32 %v3762, 1.442695
        %v3821 = vpow.pop %v3820
        %v3822 = vmul.f32 %v3763, 1.442695
        %v3823 = vpow.pop %v3822
        %v3824 = vmul.f32 %v3764, 1.442695
        %v3825 = vpow.pop %v3824
        %v3826 = vmul.f32 %v3765, 1.442695
        %v3827 = vpow.pop %v3826
        %v3828 = vmul.f32 %v3766, 1.442695
        %v3829 = vpow.pop %v3828
        %v3830 = vmul.f32 %v3767, 1.442695
        %v3831 = vpow.pop %v3830
        %3832 = vadd.xlane.f32.xlu0 %v3769
        %v3833 = vpop.xlane.xlu0 %3832
        %3834 = vadd.xlane.f32.xlu0 %v3771
        %v3835 = vpop.xlane.xlu0 %3834
        %3836 = vadd.xlane.f32.xlu0 %v3773
        %v3837 = vpop.xlane.xlu0 %3836
        %3838 = vadd.xlane.f32.xlu0 %v3775
        %v3839 = vpop.xlane.xlu0 %3838
        %3840 = vadd.xlane.f32.xlu0 %v3777
        %v3841 = vpop.xlane.xlu0 %3840
        %3842 = vadd.xlane.f32.xlu0 %v3779
        %v3843 = vpop.xlane.xlu0 %3842
        %3844 = vadd.xlane.f32.xlu0 %v3781
        %v3845 = vpop.xlane.xlu0 %3844
        %3846 = vadd.xlane.f32.xlu0 %v3783
        %v3847 = vpop.xlane.xlu0 %3846
        %3848 = vadd.xlane.f32.xlu0 %v3785
        %v3849 = vpop.xlane.xlu0 %3848
        %3850 = vadd.xlane.f32.xlu0 %v3787
        %v3851 = vpop.xlane.xlu0 %3850
        %3852 = vadd.xlane.f32.xlu0 %v3789
        %v3853 = vpop.xlane.xlu0 %3852
        %3854 = vadd.xlane.f32.xlu0 %v3791
        %v3855 = vpop.xlane.xlu0 %3854
        %3856 = vadd.xlane.f32.xlu0 %v3793
        %v3857 = vpop.xlane.xlu0 %3856
        %3858 = vadd.xlane.f32.xlu0 %v3795
        %v3859 = vpop.xlane.xlu0 %3858
        %3860 = vadd.xlane.f32.xlu0 %v3797
        %v3861 = vpop.xlane.xlu0 %3860
        %3862 = vadd.xlane.f32.xlu0 %v3799
        %v3863 = vpop.xlane.xlu0 %3862
        %3864 = vadd.xlane.f32.xlu0 %v3801
        %v3865 = vpop.xlane.xlu0 %3864
        %3866 = vadd.xlane.f32.xlu0 %v3803
        %v3867 = vpop.xlane.xlu0 %3866
        %3868 = vadd.xlane.f32.xlu0 %v3805
        %v3869 = vpop.xlane.xlu0 %3868
        %3870 = vadd.xlane.f32.xlu0 %v3807
        %v3871 = vpop.xlane.xlu0 %3870
        %3872 = vadd.xlane.f32.xlu0 %v3809
        %v3873 = vpop.xlane.xlu0 %3872
        %3874 = vadd.xlane.f32.xlu0 %v3811
        %v3875 = vpop.xlane.xlu0 %3874
        %3876 = vadd.xlane.f32.xlu0 %v3813
        %v3877 = vpop.xlane.xlu0 %3876
        %3878 = vadd.xlane.f32.xlu0 %v3815
        %v3879 = vpop.xlane.xlu0 %3878
        %3880 = vadd.xlane.f32.xlu0 %v3817
        %v3881 = vpop.xlane.xlu0 %3880
        %3882 = vadd.xlane.f32.xlu0 %v3819
        %v3883 = vpop.xlane.xlu0 %3882
        %3884 = vadd.xlane.f32.xlu0 %v3821
        %v3885 = vpop.xlane.xlu0 %3884
        %3886 = vadd.xlane.f32.xlu0 %v3823
        %v3887 = vpop.xlane.xlu0 %3886
        %3888 = vadd.xlane.f32.xlu0 %v3825
        %v3889 = vpop.xlane.xlu0 %3888
        %3890 = vadd.xlane.f32.xlu0 %v3827
        %v3891 = vpop.xlane.xlu0 %3890
        %3892 = vadd.xlane.f32.xlu0 %v3829
        %v3893 = vpop.xlane.xlu0 %3892
        %3894 = vadd.xlane.f32.xlu0 %v3831
        %v3895 = vpop.xlane.xlu0 %3894
        %v3896 = vrcp.pop %v3833
        %v3897 = vrcp.pop %v3835
        %v3898 = vrcp.pop %v3837
        %v3899 = vrcp.pop %v3839
        %v3900 = vrcp.pop %v3841
        %v3901 = vrcp.pop %v3843
        %v3902 = vrcp.pop %v3845
        %v3903 = vrcp.pop %v3847
        %v3904 = vrcp.pop %v3849
        %v3905 = vrcp.pop %v3851
        %v3906 = vrcp.pop %v3853
        %v3907 = vrcp.pop %v3855
        %v3908 = vrcp.pop %v3857
        %v3909 = vrcp.pop %v3859
        %v3910 = vrcp.pop %v3861
        %v3911 = vrcp.pop %v3863
        %v3912 = vrcp.pop %v3865
        %v3913 = vrcp.pop %v3867
        %v3914 = vrcp.pop %v3869
        %v3915 = vrcp.pop %v3871
        %v3916 = vrcp.pop %v3873
        %v3917 = vrcp.pop %v3875
        %v3918 = vrcp.pop %v3877
        %v3919 = vrcp.pop %v3879
        %v3920 = vrcp.pop %v3881
        %v3921 = vrcp.pop %v3883
        %v3922 = vrcp.pop %v3885
        %v3923 = vrcp.pop %v3887
        %v3924 = vrcp.pop %v3889
        %v3925 = vrcp.pop %v3891
        %v3926 = vrcp.pop %v3893
        %v3927 = vrcp.pop %v3895
        %v3928 = vmul.f32 %v3769, %v3896
        %v3929 = vmul.f32 %v3771, %v3897
        %v3930 = vmul.f32 %v3773, %v3898
        %v3931 = vmul.f32 %v3775, %v3899
        %v3932 = vmul.f32 %v3777, %v3900
        %v3933 = vmul.f32 %v3779, %v3901
        %v3934 = vmul.f32 %v3781, %v3902
        %v3935 = vmul.f32 %v3783, %v3903
        %v3936 = vmul.f32 %v3785, %v3904
        %v3937 = vmul.f32 %v3787, %v3905
        %v3938 = vmul.f32 %v3789, %v3906
        %v3939 = vmul.f32 %v3791, %v3907
        %v3940 = vmul.f32 %v3793, %v3908
        %v3941 = vmul.f32 %v3795, %v3909
        %v3942 = vmul.f32 %v3797, %v3910
        %v3943 = vmul.f32 %v3799, %v3911
        %v3944 = vmul.f32 %v3801, %v3912
        %v3945 = vmul.f32 %v3803, %v3913
        %v3946 = vmul.f32 %v3805, %v3914
        %v3947 = vmul.f32 %v3807, %v3915
        %v3948 = vmul.f32 %v3809, %v3916
        %v3949 = vmul.f32 %v3811, %v3917
        %v3950 = vmul.f32 %v3813, %v3918
        %v3951 = vmul.f32 %v3815, %v3919
        %v3952 = vmul.f32 %v3817, %v3920
        %v3953 = vmul.f32 %v3819, %v3921
        %v3954 = vmul.f32 %v3821, %v3922
        %v3955 = vmul.f32 %v3823, %v3923
        %v3956 = vmul.f32 %v3825, %v3924
        %v3957 = vmul.f32 %v3827, %v3925
        %v3958 = vmul.f32 %v3829, %v3926
        %v3959 = vmul.f32 %v3831, %v3927
        %v3960 = vpack.c.bf16 %v3929, %v3928
        %v3961 = vpack.c.bf16 %v3931, %v3930
        %v3962 = vpack.c.bf16 %v3933, %v3932
        %v3963 = vpack.c.bf16 %v3935, %v3934
        %v3964 = vpack.c.bf16 %v3937, %v3936
        %v3965 = vpack.c.bf16 %v3939, %v3938
        %v3966 = vpack.c.bf16 %v3941, %v3940
        %v3967 = vpack.c.bf16 %v3943, %v3942
        %v3968 = vpack.c.bf16 %v3945, %v3944
        %v3969 = vpack.c.bf16 %v3947, %v3946
        %v3970 = vpack.c.bf16 %v3949, %v3948
        %v3971 = vpack.c.bf16 %v3951, %v3950
        %v3972 = vpack.c.bf16 %v3953, %v3952
        %v3973 = vpack.c.bf16 %v3955, %v3954
        %v3974 = vpack.c.bf16 %v3957, %v3956
        %v3975 = vpack.c.bf16 %v3959, %v3958
        %3976 = vmatprep.subr.bf16.mxu0 0
        %3977 = vmatpush1.bf16.msra.mxu0 %v2647
        %3978 = vmatprep.subr.bf16.mxu0 0
        %3979 = vmatpush1.bf16.msra.mxu0 %v2653
        %3980 = vmatprep.subr.bf16.mxu0 0
        %3981 = vmatpush1.bf16.msra.mxu0 %v2659
        %3982 = vmatprep.subr.bf16.mxu0 0
        %3983 = vmatpush1.bf16.msra.mxu0 %v2665
        %3984 = vmatprep.subr.bf16.mxu0 0
        %3985 = vmatpush1.bf16.msra.mxu0 %v2671
        %3986 = vmatprep.subr.bf16.mxu0 0
        %3987 = vmatpush1.bf16.msra.mxu0 %v2677
        %3988 = vmatprep.subr.bf16.mxu0 0
        %3989 = vmatpush1.bf16.msra.mxu0 %v2683
        %3990 = vmatprep.subr.bf16.mxu0 0
        %3991 = vmatpush1.bf16.msra.mxu0 %v2689
        %3992 = vmatprep.subr.bf16.mxu0 0
        %3993 = vmatpush1.bf16.msra.mxu0 0
        %3994 = vmatprep.subr.bf16.mxu0 0
        %3995 = vmatpush1.bf16.msra.mxu0 0
        %3996 = vmatprep.subr.bf16.mxu0 0
        %3997 = vmatpush1.bf16.msra.mxu0 0
        %3998 = vmatprep.subr.bf16.mxu0 0
        %3999 = vmatpush1.bf16.msra.mxu0 0
        %4000 = vmatprep.subr.bf16.mxu0 0
        %4001 = vmatpush1.bf16.msra.mxu0 0
        %4002 = vmatprep.subr.bf16.mxu0 0
        %4003 = vmatpush1.bf16.msra.mxu0 0
        %4004 = vmatprep.subr.bf16.mxu0 0
        %4005 = vmatpush1.bf16.msra.mxu0 0
        %4006 = vmatprep.subr.bf16.mxu0 0
        %4007 = vmatpush1.bf16.msra.mxu0 0
        %4008 = vmatprep.mubr.bf16.mxu0 0
        %4009 = vmatmul.mubr.bf16.gmra.mrb[0].mxu0 %v3960
        %v4010 = vpop.f32.mrb[0].mxu0
        %v4011 = vadd.f32 0.0, %v4010
        %v4012 = vpop.f32.mrb[0].mxu0
        %v4013 = vpop.f32.mrb[0].mxu0
        %v4014 = vadd.f32 0.0, %v4013
        %v4015 = vpop.f32.mrb[0].mxu0
        %4016 = vmatprep.mubr.bf16.mxu0 0
        %4017 = vmatmul.mubr.bf16.gmra.mrb[0].mxu0 %v3961
        %v4018 = vpop.f32.mrb[0].mxu0
        %v4019 = vadd.f32 0.0, %v4018
        %v4020 = vpop.f32.mrb[0].mxu0
        %v4021 = vpop.f32.mrb[0].mxu0
        %v4022 = vadd.f32 0.0, %v4021
        %v4023 = vpop.f32.mrb[0].mxu0
        %4024 = vmatprep.mubr.bf16.mxu0 0
        %4025 = vmatmul.mubr.bf16.gmra.mrb[0].mxu0 %v3962
        %v4026 = vpop.f32.mrb[0].mxu0
        %v4027 = vadd.f32 0.0, %v4026
        %v4028 = vpop.f32.mrb[0].mxu0
        %v4029 = vpop.f32.mrb[0].mxu0
        %v4030 = vadd.f32 0.0, %v4029
        %v4031 = vpop.f32.mrb[0].mxu0
        %4032 = vmatprep.mubr.bf16.mxu0 0
        %4033 = vmatmul.mubr.bf16.gmra.mrb[0].mxu0 %v3963
        %v4034 = vpop.f32.mrb[0].mxu0
        %v4035 = vadd.f32 0.0, %v4034
        %v4036 = vpop.f32.mrb[0].mxu0
        %v4037 = vpop.f32.mrb[0].mxu0
        %v4038 = vadd.f32 0.0, %v4037
        %v4039 = vpop.f32.mrb[0].mxu0
        %4040 = vmatprep.mubr.bf16.mxu0 0
        %4041 = vmatmul.mubr.bf16.gmra.mrb[0].mxu0 %v3964
        %v4042 = vpop.f32.mrb[0].mxu0
        %v4043 = vadd.f32 0.0, %v4042
        %v4044 = vpop.f32.mrb[0].mxu0
        %v4045 = vpop.f32.mrb[0].mxu0
        %v4046 = vadd.f32 0.0, %v4045
        %v4047 = vpop.f32.mrb[0].mxu0
        %4048 = vmatprep.mubr.bf16.mxu0 0
        %4049 = vmatmul.mubr.bf16.gmra.mrb[0].mxu0 %v3965
        %v4050 = vpop.f32.mrb[0].mxu0
        %v4051 = vadd.f32 0.0, %v4050
        %v4052 = vpop.f32.mrb[0].mxu0
        %v4053 = vpop.f32.mrb[0].mxu0
        %v4054 = vadd.f32 0.0, %v4053
        %v4055 = vpop.f32.mrb[0].mxu0
        %4056 = vmatprep.mubr.bf16.mxu0 0
        %4057 = vmatmul.mubr.bf16.gmra.mrb[0].mxu0 %v3966
        %v4058 = vpop.f32.mrb[0].mxu0
        %v4059 = vadd.f32 0.0, %v4058
        %v4060 = vpop.f32.mrb[0].mxu0
        %v4061 = vpop.f32.mrb[0].mxu0
        %v4062 = vadd.f32 0.0, %v4061
        %v4063 = vpop.f32.mrb[0].mxu0
        %4064 = vmatprep.mubr.bf16.mxu0 0
        %4065 = vmatmul.mubr.bf16.gmra.mrb[0].mxu0 %v3967
        %v4066 = vpop.f32.mrb[0].mxu0
        %v4067 = vadd.f32 0.0, %v4066
        %v4068 = vpop.f32.mrb[0].mxu0
        %v4069 = vpop.f32.mrb[0].mxu0
        %v4070 = vadd.f32 0.0, %v4069
        %v4071 = vpop.f32.mrb[0].mxu0
        %4072 = vdwg.mxu0
        %4073 = vmatprep.subr.bf16.mxu0 0
        %4074 = vmatpush1.bf16.msra.mxu0 %v2695
        %4075 = vmatprep.subr.bf16.mxu0 0
        %4076 = vmatpush1.bf16.msra.mxu0 %v2701
        %4077 = vmatprep.subr.bf16.mxu0 0
        %4078 = vmatpush1.bf16.msra.mxu0 %v2707
        %4079 = vmatprep.subr.bf16.mxu0 0
        %4080 = vmatpush1.bf16.msra.mxu0 %v2713
        %4081 = vmatprep.subr.bf16.mxu0 0
        %4082 = vmatpush1.bf16.msra.mxu0 %v2719
        %4083 = vmatprep.subr.bf16.mxu0 0
        %4084 = vmatpush1.bf16.msra.mxu0 %v2725
        %4085 = vmatprep.subr.bf16.mxu0 0
        %4086 = vmatpush1.bf16.msra.mxu0 %v2731
        %4087 = vmatprep.subr.bf16.mxu0 0
        %4088 = vmatpush1.bf16.msra.mxu0 %v2737
        %4089 = vmatprep.subr.bf16.mxu0 0
        %4090 = vmatpush1.bf16.msra.mxu0 0
        %4091 = vmatprep.subr.bf16.mxu0 0
        %4092 = vmatpush1.bf16.msra.mxu0 0
        %4093 = vmatprep.subr.bf16.mxu0 0
        %4094 = vmatpush1.bf16.msra.mxu0 0
        %4095 = vmatprep.subr.bf16.mxu0 0
        %4096 = vmatpush1.bf16.msra.mxu0 0
        %4097 = vmatprep.subr.bf16.mxu0 0
        %4098 = vmatpush1.bf16.msra.mxu0 0
        %4099 = vmatprep.subr.bf16.mxu0 0
        %4100 = vmatpush1.bf16.msra.mxu0 0
        %4101 = vmatprep.subr.bf16.mxu0 0
        %4102 = vmatpush1.bf16.msra.mxu0 0
        %4103 = vmatprep.subr.bf16.mxu0 0
        %4104 = vmatpush1.bf16.msra.mxu0 0
        %4105 = vmatprep.mubr.bf16.mxu0 0
        %4106 = vmatmul.mubr.bf16.gmra.mrb[0].mxu0 %v3968
        %v4107 = vpop.f32.mrb[0].mxu0
        %v4108 = vadd.f32 0.0, %v4107
        %v4109 = vpop.f32.mrb[0].mxu0
        %v4110 = vpop.f32.mrb[0].mxu0
        %v4111 = vadd.f32 0.0, %v4110
        %v4112 = vpop.f32.mrb[0].mxu0
        %4113 = vmatprep.mubr.bf16.mxu0 0
        %4114 = vmatmul.mubr.bf16.gmra.mrb[0].mxu0 %v3969
        %v4115 = vpop.f32.mrb[0].mxu0
        %v4116 = vadd.f32 0.0, %v4115
        %v4117 = vpop.f32.mrb[0].mxu0
        %v4118 = vpop.f32.mrb[0].mxu0
        %v4119 = vadd.f32 0.0, %v4118
        %v4120 = vpop.f32.mrb[0].mxu0
        %4121 = vmatprep.mubr.bf16.mxu0 0
        %4122 = vmatmul.mubr.bf16.gmra.mrb[0].mxu0 %v3970
        %v4123 = vpop.f32.mrb[0].mxu0
        %v4124 = vadd.f32 0.0, %v4123
        %v4125 = vpop.f32.mrb[0].mxu0
        %v4126 = vpop.f32.mrb[0].mxu0
        %v4127 = vadd.f32 0.0, %v4126
        %v4128 = vpop.f32.mrb[0].mxu0
        %4129 = vmatprep.mubr.bf16.mxu0 0
        %4130 = vmatmul.mubr.bf16.gmra.mrb[0].mxu0 %v3971
        %v4131 = vpop.f32.mrb[0].mxu0
        %v4132 = vadd.f32 0.0, %v4131
        %v4133 = vpop.f32.mrb[0].mxu0
        %v4134 = vpop.f32.mrb[0].mxu0
        %v4135 = vadd.f32 0.0, %v4134
        %v4136 = vpop.f32.mrb[0].mxu0
        %4137 = vmatprep.mubr.bf16.mxu0 0
        %4138 = vmatmul.mubr.bf16.gmra.mrb[0].mxu0 %v3972
        %v4139 = vpop.f32.mrb[0].mxu0
        %v4140 = vadd.f32 0.0, %v4139
        %v4141 = vpop.f32.mrb[0].mxu0
        %v4142 = vpop.f32.mrb[0].mxu0
        %v4143 = vadd.f32 0.0, %v4142
        %v4144 = vpop.f32.mrb[0].mxu0
        %4145 = vmatprep.mubr.bf16.mxu0 0
        %4146 = vmatmul.mubr.bf16.gmra.mrb[0].mxu0 %v3973
        %v4147 = vpop.f32.mrb[0].mxu0
        %v4148 = vadd.f32 0.0, %v4147
        %v4149 = vpop.f32.mrb[0].mxu0
        %v4150 = vpop.f32.mrb[0].mxu0
        %v4151 = vadd.f32 0.0, %v4150
        %v4152 = vpop.f32.mrb[0].mxu0
        %4153 = vmatprep.mubr.bf16.mxu0 0
        %4154 = vmatmul.mubr.bf16.gmra.mrb[0].mxu0 %v3974
        %v4155 = vpop.f32.mrb[0].mxu0
        %v4156 = vadd.f32 0.0, %v4155
        %v4157 = vpop.f32.mrb[0].mxu0
        %v4158 = vpop.f32.mrb[0].mxu0
        %v4159 = vadd.f32 0.0, %v4158
        %v4160 = vpop.f32.mrb[0].mxu0
        %4161 = vmatprep.mubr.bf16.mxu0 0
        %4162 = vmatmul.mubr.bf16.gmra.mrb[0].mxu0 %v3975
        %v4163 = vpop.f32.mrb[0].mxu0
        %v4164 = vadd.f32 0.0, %v4163
        %v4165 = vpop.f32.mrb[0].mxu0
        %v4166 = vpop.f32.mrb[0].mxu0
        %v4167 = vadd.f32 0.0, %v4166
        %v4168 = vpop.f32.mrb[0].mxu0
        %4169 = vdwg.mxu0
        %v4170 = vpack.c.bf16 %v4014, %v4011
        %v4171 = vpack.c.bf16 %v4022, %v4019
        %v4172 = vpack.c.bf16 %v4030, %v4027
        %v4173 = vpack.c.bf16 %v4038, %v4035
        %v4174 = vpack.c.bf16 %v4046, %v4043
        %v4175 = vpack.c.bf16 %v4054, %v4051
        %v4176 = vpack.c.bf16 %v4062, %v4059
        %v4177 = vpack.c.bf16 %v4070, %v4067
        %v4178 = vpack.c.bf16 %v4111, %v4108
        %v4179 = vpack.c.bf16 %v4119, %v4116
        %v4180 = vpack.c.bf16 %v4127, %v4124
        %v4181 = vpack.c.bf16 %v4135, %v4132
        %v4182 = vpack.c.bf16 %v4143, %v4140
        %v4183 = vpack.c.bf16 %v4151, %v4148
        %v4184 = vpack.c.bf16 %v4159, %v4156
        %v4185 = vpack.c.bf16 %v4167, %v4164
        %v4202 = vunpack.c.l.b16 %v2754
        %v4203 = vunpack.c.h.b16 %v2754
        %v4204 = vunpack.c.l.b16 %v2755
        %v4205 = vunpack.c.h.b16 %v2755
        %v4206 = vunpack.c.l.b16 %v2756
        %v4207 = vunpack.c.h.b16 %v2756
        %v4208 = vunpack.c.l.b16 %v2757
        %v4209 = vunpack.c.h.b16 %v2757
        %v4210 = vunpack.c.l.b16 %v2758
        %v4211 = vunpack.c.h.b16 %v2758
        %v4212 = vunpack.c.l.b16 %v2759
        %v4213 = vunpack.c.h.b16 %v2759
        %v4214 = vunpack.c.l.b16 %v2760
        %v4215 = vunpack.c.h.b16 %v2760
        %v4216 = vunpack.c.l.b16 %v2761
        %v4217 = vunpack.c.h.b16 %v2761
        %v4218 = vunpack.c.l.b16 %v2762
        %v4219 = vunpack.c.h.b16 %v2762
        %v4220 = vunpack.c.l.b16 %v2763
        %v4221 = vunpack.c.h.b16 %v2763
        %v4222 = vunpack.c.l.b16 %v2764
        %v4223 = vunpack.c.h.b16 %v2764
        %v4224 = vunpack.c.l.b16 %v2765
        %v4225 = vunpack.c.h.b16 %v2765
        %v4226 = vunpack.c.l.b16 %v2766
        %v4227 = vunpack.c.h.b16 %v2766
        %v4228 = vunpack.c.l.b16 %v2767
        %v4229 = vunpack.c.h.b16 %v2767
        %v4230 = vunpack.c.l.b16 %v2768
        %v4231 = vunpack.c.h.b16 %v2768
        %v4232 = vunpack.c.l.b16 %v2769
        %v4233 = vunpack.c.h.b16 %v2769
        %v4234 = vpack.c.b16 %v4204, %v4202
        %v4235 = vpack.c.b16 %v4205, %v4203
        %v4236 = vpack.c.b16 %v4208, %v4206
        %v4237 = vpack.c.b16 %v4209, %v4207
        %v4238 = vpack.c.b16 %v4212, %v4210
        %v4239 = vpack.c.b16 %v4213, %v4211
        %v4240 = vpack.c.b16 %v4216, %v4214
        %v4241 = vpack.c.b16 %v4217, %v4215
        %v4242 = vpack.c.b16 %v4220, %v4218
        %v4243 = vpack.c.b16 %v4221, %v4219
        %v4244 = vpack.c.b16 %v4224, %v4222
        %v4245 = vpack.c.b16 %v4225, %v4223
        %v4246 = vpack.c.b16 %v4228, %v4226
        %v4247 = vpack.c.b16 %v4229, %v4227
        %v4248 = vpack.c.b16 %v4232, %v4230
        %v4249 = vpack.c.b16 %v4233, %v4231
        %4266 = vmatprep.subr.bf16.mxu0 %v4235
        %4267 = vmatpush1.bf16.msra.mxu0 %v4234
        %4268 = vmatprep.subr.bf16.mxu0 %v4237
        %4269 = vmatpush1.bf16.msra.mxu0 %v4236
        %4270 = vmatprep.subr.bf16.mxu0 %v4239
        %4271 = vmatpush1.bf16.msra.mxu0 %v4238
        %4272 = vmatprep.subr.bf16.mxu0 %v4241
        %4273 = vmatpush1.bf16.msra.mxu0 %v4240
        %4274 = vmatprep.subr.bf16.mxu0 %v4243
        %4275 = vmatpush1.bf16.msra.mxu0 %v4242
        %4276 = vmatprep.subr.bf16.mxu0 %v4245
        %4277 = vmatpush1.bf16.msra.mxu0 %v4244
        %4278 = vmatprep.subr.bf16.mxu0 %v4247
        %4279 = vmatpush1.bf16.msra.mxu0 %v4246
        %4280 = vmatprep.subr.bf16.mxu0 %v4249
        %4281 = vmatpush1.bf16.msra.mxu0 %v4248
        %4282 = vmatprep.subr.bf16.mxu0 0
        %4283 = vmatpush1.bf16.msra.mxu0 0
        %4284 = vmatprep.subr.bf16.mxu0 0
        %4285 = vmatpush1.bf16.msra.mxu0 0
        %4286 = vmatprep.subr.bf16.mxu0 0
        %4287 = vmatpush1.bf16.msra.mxu0 0
        %4288 = vmatprep.subr.bf16.mxu0 0
        %4289 = vmatpush1.bf16.msra.mxu0 0
        %4290 = vmatprep.subr.bf16.mxu0 0
        %4291 = vmatpush1.bf16.msra.mxu0 0
        %4292 = vmatprep.subr.bf16.mxu0 0
        %4293 = vmatpush1.bf16.msra.mxu0 0
        %4294 = vmatprep.subr.bf16.mxu0 0
        %4295 = vmatpush1.bf16.msra.mxu0 0
        %4296 = vmatprep.subr.bf16.mxu0 0
        %4297 = vmatpush1.bf16.msra.mxu0 0
        %4298 = vmatprep.mubr.bf16.mxu0 0
        %4299 = vmatmul.mubr.bf16.gmra.mrb[0].mxu0 %v4170
        %v4300 = vpop.f32.mrb[0].mxu0
        %v4301 = vadd.f32 0.0, %v4300
        %v4302 = vpop.f32.mrb[0].mxu0
        %v4303 = vadd.f32 0.0, %v4302
        %v4304 = vpop.f32.mrb[0].mxu0
        %v4305 = vadd.f32 0.0, %v4304
        %v4306 = vpop.f32.mrb[0].mxu0
        %v4307 = vadd.f32 0.0, %v4306
        %4308 = vmatprep.mubr.bf16.mxu0 0
        %4309 = vmatmul.mubr.bf16.gmra.mrb[0].mxu0 %v4171
        %v4310 = vpop.f32.mrb[0].mxu0
        %v4311 = vadd.f32 0.0, %v4310
        %v4312 = vpop.f32.mrb[0].mxu0
        %v4313 = vadd.f32 0.0, %v4312
        %v4314 = vpop.f32.mrb[0].mxu0
        %v4315 = vadd.f32 0.0, %v4314
        %v4316 = vpop.f32.mrb[0].mxu0
        %v4317 = vadd.f32 0.0, %v4316
        %4318 = vmatprep.mubr.bf16.mxu0 0
        %4319 = vmatmul.mubr.bf16.gmra.mrb[0].mxu0 %v4172
        %v4320 = vpop.f32.mrb[0].mxu0
        %v4321 = vadd.f32 0.0, %v4320
        %v4322 = vpop.f32.mrb[0].mxu0
        %v4323 = vadd.f32 0.0, %v4322
        %v4324 = vpop.f32.mrb[0].mxu0
        %v4325 = vadd.f32 0.0, %v4324
        %v4326 = vpop.f32.mrb[0].mxu0
        %v4327 = vadd.f32 0.0, %v4326
        %4328 = vmatprep.mubr.bf16.mxu0 0
        %4329 = vmatmul.mubr.bf16.gmra.mrb[0].mxu0 %v4173
        %v4330 = vpop.f32.mrb[0].mxu0
        %v4331 = vadd.f32 0.0, %v4330
        %v4332 = vpop.f32.mrb[0].mxu0
        %v4333 = vadd.f32 0.0, %v4332
        %v4334 = vpop.f32.mrb[0].mxu0
        %v4335 = vadd.f32 0.0, %v4334
        %v4336 = vpop.f32.mrb[0].mxu0
        %v4337 = vadd.f32 0.0, %v4336
        %4338 = vmatprep.mubr.bf16.mxu0 0
        %4339 = vmatmul.mubr.bf16.gmra.mrb[0].mxu0 %v4174
        %v4340 = vpop.f32.mrb[0].mxu0
        %v4341 = vadd.f32 0.0, %v4340
        %v4342 = vpop.f32.mrb[0].mxu0
        %v4343 = vadd.f32 0.0, %v4342
        %v4344 = vpop.f32.mrb[0].mxu0
        %v4345 = vadd.f32 0.0, %v4344
        %v4346 = vpop.f32.mrb[0].mxu0
        %v4347 = vadd.f32 0.0, %v4346
        %4348 = vmatprep.mubr.bf16.mxu0 0
        %4349 = vmatmul.mubr.bf16.gmra.mrb[0].mxu0 %v4175
        %v4350 = vpop.f32.mrb[0].mxu0
        %v4351 = vadd.f32 0.0, %v4350
        %v4352 = vpop.f32.mrb[0].mxu0
        %v4353 = vadd.f32 0.0, %v4352
        %v4354 = vpop.f32.mrb[0].mxu0
        %v4355 = vadd.f32 0.0, %v4354
        %v4356 = vpop.f32.mrb[0].mxu0
        %v4357 = vadd.f32 0.0, %v4356
        %4358 = vmatprep.mubr.bf16.mxu0 0
        %4359 = vmatmul.mubr.bf16.gmra.mrb[0].mxu0 %v4176
        %v4360 = vpop.f32.mrb[0].mxu0
        %v4361 = vadd.f32 0.0, %v4360
        %v4362 = vpop.f32.mrb[0].mxu0
        %v4363 = vadd.f32 0.0, %v4362
        %v4364 = vpop.f32.mrb[0].mxu0
        %v4365 = vadd.f32 0.0, %v4364
        %v4366 = vpop.f32.mrb[0].mxu0
        %v4367 = vadd.f32 0.0, %v4366
        %4368 = vmatprep.mubr.bf16.mxu0 0
        %4369 = vmatmul.mubr.bf16.gmra.mrb[0].mxu0 %v4177
        %v4370 = vpop.f32.mrb[0].mxu0
        %v4371 = vadd.f32 0.0, %v4370
        %v4372 = vpop.f32.mrb[0].mxu0
        %v4373 = vadd.f32 0.0, %v4372
        %v4374 = vpop.f32.mrb[0].mxu0
        %v4375 = vadd.f32 0.0, %v4374
        %v4376 = vpop.f32.mrb[0].mxu0
        %v4377 = vadd.f32 0.0, %v4376
        %4378 = vmatprep.mubr.bf16.mxu0 0
        %4379 = vmatmul.mubr.bf16.gmra.mrb[0].mxu0 %v4178
        %v4380 = vpop.f32.mrb[0].mxu0
        %v4381 = vadd.f32 0.0, %v4380
        %v4382 = vpop.f32.mrb[0].mxu0
        %v4383 = vadd.f32 0.0, %v4382
        %v4384 = vpop.f32.mrb[0].mxu0
        %v4385 = vadd.f32 0.0, %v4384
        %v4386 = vpop.f32.mrb[0].mxu0
        %v4387 = vadd.f32 0.0, %v4386
        %4388 = vmatprep.mubr.bf16.mxu0 0
        %4389 = vmatmul.mubr.bf16.gmra.mrb[0].mxu0 %v4179
        %v4390 = vpop.f32.mrb[0].mxu0
        %v4391 = vadd.f32 0.0, %v4390
        %v4392 = vpop.f32.mrb[0].mxu0
        %v4393 = vadd.f32 0.0, %v4392
        %v4394 = vpop.f32.mrb[0].mxu0
        %v4395 = vadd.f32 0.0, %v4394
        %v4396 = vpop.f32.mrb[0].mxu0
        %v4397 = vadd.f32 0.0, %v4396
        %4398 = vmatprep.mubr.bf16.mxu0 0
        %4399 = vmatmul.mubr.bf16.gmra.mrb[0].mxu0 %v4180
        %v4400 = vpop.f32.mrb[0].mxu0
        %v4401 = vadd.f32 0.0, %v4400
        %v4402 = vpop.f32.mrb[0].mxu0
        %v4403 = vadd.f32 0.0, %v4402
        %v4404 = vpop.f32.mrb[0].mxu0
        %v4405 = vadd.f32 0.0, %v4404
        %v4406 = vpop.f32.mrb[0].mxu0
        %v4407 = vadd.f32 0.0, %v4406
        %4408 = vmatprep.mubr.bf16.mxu0 0
        %4409 = vmatmul.mubr.bf16.gmra.mrb[0].mxu0 %v4181
        %v4410 = vpop.f32.mrb[0].mxu0
        %v4411 = vadd.f32 0.0, %v4410
        %v4412 = vpop.f32.mrb[0].mxu0
        %v4413 = vadd.f32 0.0, %v4412
        %v4414 = vpop.f32.mrb[0].mxu0
        %v4415 = vadd.f32 0.0, %v4414
        %v4416 = vpop.f32.mrb[0].mxu0
        %v4417 = vadd.f32 0.0, %v4416
        %4418 = vmatprep.mubr.bf16.mxu0 0
        %4419 = vmatmul.mubr.bf16.gmra.mrb[0].mxu0 %v4182
        %v4420 = vpop.f32.mrb[0].mxu0
        %v4421 = vadd.f32 0.0, %v4420
        %v4422 = vpop.f32.mrb[0].mxu0
        %v4423 = vadd.f32 0.0, %v4422
        %v4424 = vpop.f32.mrb[0].mxu0
        %v4425 = vadd.f32 0.0, %v4424
        %v4426 = vpop.f32.mrb[0].mxu0
        %v4427 = vadd.f32 0.0, %v4426
        %4428 = vmatprep.mubr.bf16.mxu0 0
        %4429 = vmatmul.mubr.bf16.gmra.mrb[0].mxu0 %v4183
        %v4430 = vpop.f32.mrb[0].mxu0
        %v4431 = vadd.f32 0.0, %v4430
        %v4432 = vpop.f32.mrb[0].mxu0
        %v4433 = vadd.f32 0.0, %v4432
        %v4434 = vpop.f32.mrb[0].mxu0
        %v4435 = vadd.f32 0.0, %v4434
        %v4436 = vpop.f32.mrb[0].mxu0
        %v4437 = vadd.f32 0.0, %v4436
        %4438 = vmatprep.mubr.bf16.mxu0 0
        %4439 = vmatmul.mubr.bf16.gmra.mrb[0].mxu0 %v4184
        %v4440 = vpop.f32.mrb[0].mxu0
        %v4441 = vadd.f32 0.0, %v4440
        %v4442 = vpop.f32.mrb[0].mxu0
        %v4443 = vadd.f32 0.0, %v4442
        %v4444 = vpop.f32.mrb[0].mxu0
        %v4445 = vadd.f32 0.0, %v4444
        %v4446 = vpop.f32.mrb[0].mxu0
        %v4447 = vadd.f32 0.0, %v4446
        %4448 = vmatprep.mubr.bf16.mxu0 0
        %4449 = vmatmul.mubr.bf16.gmra.mrb[0].mxu0 %v4185
        %v4450 = vpop.f32.mrb[0].mxu0
        %v4451 = vadd.f32 0.0, %v4450
        %v4452 = vpop.f32.mrb[0].mxu0
        %v4453 = vadd.f32 0.0, %v4452
        %v4454 = vpop.f32.mrb[0].mxu0
        %v4455 = vadd.f32 0.0, %v4454
        %v4456 = vpop.f32.mrb[0].mxu0
        %v4457 = vadd.f32 0.0, %v4456
        %4458 = vdwg.mxu0
        %v4475 = vunpack.c.l.b16 %v2738
        %v4476 = vunpack.c.h.b16 %v2738
        %v4477 = vunpack.c.l.b16 %v2739
        %v4478 = vunpack.c.h.b16 %v2739
        %v4479 = vunpack.c.l.b16 %v2740
        %v4480 = vunpack.c.h.b16 %v2740
        %v4481 = vunpack.c.l.b16 %v2741
        %v4482 = vunpack.c.h.b16 %v2741
        %v4483 = vunpack.c.l.b16 %v2742
        %v4484 = vunpack.c.h.b16 %v2742
        %v4485 = vunpack.c.l.b16 %v2743
        %v4486 = vunpack.c.h.b16 %v2743
        %v4487 = vunpack.c.l.b16 %v2744
        %v4488 = vunpack.c.h.b16 %v2744
        %v4489 = vunpack.c.l.b16 %v2745
        %v4490 = vunpack.c.h.b16 %v2745
        %v4491 = vunpack.c.l.b16 %v2746
        %v4492 = vunpack.c.h.b16 %v2746
        %v4493 = vunpack.c.l.b16 %v2747
        %v4494 = vunpack.c.h.b16 %v2747
        %v4495 = vunpack.c.l.b16 %v2748
        %v4496 = vunpack.c.h.b16 %v2748
        %v4497 = vunpack.c.l.b16 %v2749
        %v4498 = vunpack.c.h.b16 %v2749
        %v4499 = vunpack.c.l.b16 %v2750
        %v4500 = vunpack.c.h.b16 %v2750
        %v4501 = vunpack.c.l.b16 %v2751
        %v4502 = vunpack.c.h.b16 %v2751
        %v4503 = vunpack.c.l.b16 %v2752
        %v4504 = vunpack.c.h.b16 %v2752
        %v4505 = vunpack.c.l.b16 %v2753
        %v4506 = vunpack.c.h.b16 %v2753
        %v4507 = vpack.c.b16 %v4477, %v4475
        %v4508 = vpack.c.b16 %v4478, %v4476
        %v4509 = vpack.c.b16 %v4481, %v4479
        %v4510 = vpack.c.b16 %v4482, %v4480
        %v4511 = vpack.c.b16 %v4485, %v4483
        %v4512 = vpack.c.b16 %v4486, %v4484
        %v4513 = vpack.c.b16 %v4489, %v4487
        %v4514 = vpack.c.b16 %v4490, %v4488
        %v4515 = vpack.c.b16 %v4493, %v4491
        %v4516 = vpack.c.b16 %v4494, %v4492
        %v4517 = vpack.c.b16 %v4497, %v4495
        %v4518 = vpack.c.b16 %v4498, %v4496
        %v4519 = vpack.c.b16 %v4501, %v4499
        %v4520 = vpack.c.b16 %v4502, %v4500
        %v4521 = vpack.c.b16 %v4505, %v4503
        %v4522 = vpack.c.b16 %v4506, %v4504
        %4539 = vmatprep.subr.bf16.mxu0 %v4508
        %4540 = vmatpush1.bf16.msra.mxu0 %v4507
        %4541 = vmatprep.subr.bf16.mxu0 %v4510
        %4542 = vmatpush1.bf16.msra.mxu0 %v4509
        %4543 = vmatprep.subr.bf16.mxu0 %v4512
        %4544 = vmatpush1.bf16.msra.mxu0 %v4511
        %4545 = vmatprep.subr.bf16.mxu0 %v4514
        %4546 = vmatpush1.bf16.msra.mxu0 %v4513
        %4547 = vmatprep.subr.bf16.mxu0 %v4516
        %4548 = vmatpush1.bf16.msra.mxu0 %v4515
        %4549 = vmatprep.subr.bf16.mxu0 %v4518
        %4550 = vmatpush1.bf16.msra.mxu0 %v4517
        %4551 = vmatprep.subr.bf16.mxu0 %v4520
        %4552 = vmatpush1.bf16.msra.mxu0 %v4519
        %4553 = vmatprep.subr.bf16.mxu0 %v4522
        %4554 = vmatpush1.bf16.msra.mxu0 %v4521
        %4555 = vmatprep.subr.bf16.mxu0 0
        %4556 = vmatpush1.bf16.msra.mxu0 0
        %4557 = vmatprep.subr.bf16.mxu0 0
        %4558 = vmatpush1.bf16.msra.mxu0 0
        %4559 = vmatprep.subr.bf16.mxu0 0
        %4560 = vmatpush1.bf16.msra.mxu0 0
        %4561 = vmatprep.subr.bf16.mxu0 0
        %4562 = vmatpush1.bf16.msra.mxu0 0
        %4563 = vmatprep.subr.bf16.mxu0 0
        %4564 = vmatpush1.bf16.msra.mxu0 0
        %4565 = vmatprep.subr.bf16.mxu0 0
        %4566 = vmatpush1.bf16.msra.mxu0 0
        %4567 = vmatprep.subr.bf16.mxu0 0
        %4568 = vmatpush1.bf16.msra.mxu0 0
        %4569 = vmatprep.subr.bf16.mxu0 0
        %4570 = vmatpush1.bf16.msra.mxu0 0
        %4571 = vmatprep.mubr.bf16.mxu0 0
        %4572 = vmatmul.mubr.bf16.gmra.mrb[0].mxu0 %v3462
        %v4573 = vpop.f32.mrb[0].mxu0
        %v4574 = vadd.f32 %v4301, %v4573
        %v4575 = vpop.f32.mrb[0].mxu0
        %v4576 = vadd.f32 %v4303, %v4575
        %v4577 = vpop.f32.mrb[0].mxu0
        %v4578 = vadd.f32 %v4305, %v4577
        %v4579 = vpop.f32.mrb[0].mxu0
        %v4580 = vadd.f32 %v4307, %v4579
        %4581 = vmatprep.mubr.bf16.mxu0 0
        %4582 = vmatmul.mubr.bf16.gmra.mrb[0].mxu0 %v3463
        %v4583 = vpop.f32.mrb[0].mxu0
        %v4584 = vadd.f32 %v4311, %v4583
        %v4585 = vpop.f32.mrb[0].mxu0
        %v4586 = vadd.f32 %v4313, %v4585
        %v4587 = vpop.f32.mrb[0].mxu0
        %v4588 = vadd.f32 %v4315, %v4587
        %v4589 = vpop.f32.mrb[0].mxu0
        %v4590 = vadd.f32 %v4317, %v4589
        %4591 = vmatprep.mubr.bf16.mxu0 0
        %4592 = vmatmul.mubr.bf16.gmra.mrb[0].mxu0 %v3464
        %v4593 = vpop.f32.mrb[0].mxu0
        %v4594 = vadd.f32 %v4321, %v4593
        %v4595 = vpop.f32.mrb[0].mxu0
        %v4596 = vadd.f32 %v4323, %v4595
        %v4597 = vpop.f32.mrb[0].mxu0
        %v4598 = vadd.f32 %v4325, %v4597
        %v4599 = vpop.f32.mrb[0].mxu0
        %v4600 = vadd.f32 %v4327, %v4599
        %4601 = vmatprep.mubr.bf16.mxu0 0
        %4602 = vmatmul.mubr.bf16.gmra.mrb[0].mxu0 %v3465
        %v4603 = vpop.f32.mrb[0].mxu0
        %v4604 = vadd.f32 %v4331, %v4603
        %v4605 = vpop.f32.mrb[0].mxu0
        %v4606 = vadd.f32 %v4333, %v4605
        %v4607 = vpop.f32.mrb[0].mxu0
        %v4608 = vadd.f32 %v4335, %v4607
        %v4609 = vpop.f32.mrb[0].mxu0
        %v4610 = vadd.f32 %v4337, %v4609
        %4611 = vmatprep.mubr.bf16.mxu0 0
        %4612 = vmatmul.mubr.bf16.gmra.mrb[0].mxu0 %v3466
        %v4613 = vpop.f32.mrb[0].mxu0
        %v4614 = vadd.f32 %v4341, %v4613
        %v4615 = vpop.f32.mrb[0].mxu0
        %v4616 = vadd.f32 %v4343, %v4615
        %v4617 = vpop.f32.mrb[0].mxu0
        %v4618 = vadd.f32 %v4345, %v4617
        %v4619 = vpop.f32.mrb[0].mxu0
        %v4620 = vadd.f32 %v4347, %v4619
        %4621 = vmatprep.mubr.bf16.mxu0 0
        %4622 = vmatmul.mubr.bf16.gmra.mrb[0].mxu0 %v3467
        %v4623 = vpop.f32.mrb[0].mxu0
        %v4624 = vadd.f32 %v4351, %v4623
        %v4625 = vpop.f32.mrb[0].mxu0
        %v4626 = vadd.f32 %v4353, %v4625
        %v4627 = vpop.f32.mrb[0].mxu0
        %v4628 = vadd.f32 %v4355, %v4627
        %v4629 = vpop.f32.mrb[0].mxu0
        %v4630 = vadd.f32 %v4357, %v4629
        %4631 = vmatprep.mubr.bf16.mxu0 0
        %4632 = vmatmul.mubr.bf16.gmra.mrb[0].mxu0 %v3468
        %v4633 = vpop.f32.mrb[0].mxu0
        %v4634 = vadd.f32 %v4361, %v4633
        %v4635 = vpop.f32.mrb[0].mxu0
        %v4636 = vadd.f32 %v4363, %v4635
        %v4637 = vpop.f32.mrb[0].mxu0
        %v4638 = vadd.f32 %v4365, %v4637
        %v4639 = vpop.f32.mrb[0].mxu0
        %v4640 = vadd.f32 %v4367, %v4639
        %4641 = vmatprep.mubr.bf16.mxu0 0
        %4642 = vmatmul.mubr.bf16.gmra.mrb[0].mxu0 %v3469
        %v4643 = vpop.f32.mrb[0].mxu0
        %v4644 = vadd.f32 %v4371, %v4643
        %v4645 = vpop.f32.mrb[0].mxu0
        %v4646 = vadd.f32 %v4373, %v4645
        %v4647 = vpop.f32.mrb[0].mxu0
        %v4648 = vadd.f32 %v4375, %v4647
        %v4649 = vpop.f32.mrb[0].mxu0
        %v4650 = vadd.f32 %v4377, %v4649
        %4651 = vmatprep.mubr.bf16.mxu0 0
        %4652 = vmatmul.mubr.bf16.gmra.mrb[0].mxu0 %v3470
        %v4653 = vpop.f32.mrb[0].mxu0
        %v4654 = vadd.f32 %v4381, %v4653
        %v4655 = vpop.f32.mrb[0].mxu0
        %v4656 = vadd.f32 %v4383, %v4655
        %v4657 = vpop.f32.mrb[0].mxu0
        %v4658 = vadd.f32 %v4385, %v4657
        %v4659 = vpop.f32.mrb[0].mxu0
        %v4660 = vadd.f32 %v4387, %v4659
        %4661 = vmatprep.mubr.bf16.mxu0 0
        %4662 = vmatmul.mubr.bf16.gmra.mrb[0].mxu0 %v3471
        %v4663 = vpop.f32.mrb[0].mxu0
        %v4664 = vadd.f32 %v4391, %v4663
        %v4665 = vpop.f32.mrb[0].mxu0
        %v4666 = vadd.f32 %v4393, %v4665
        %v4667 = vpop.f32.mrb[0].mxu0
        %v4668 = vadd.f32 %v4395, %v4667
        %v4669 = vpop.f32.mrb[0].mxu0
        %v4670 = vadd.f32 %v4397, %v4669
        %4671 = vmatprep.mubr.bf16.mxu0 0
        %4672 = vmatmul.mubr.bf16.gmra.mrb[0].mxu0 %v3472
        %v4673 = vpop.f32.mrb[0].mxu0
        %v4674 = vadd.f32 %v4401, %v4673
        %v4675 = vpop.f32.mrb[0].mxu0
        %v4676 = vadd.f32 %v4403, %v4675
        %v4677 = vpop.f32.mrb[0].mxu0
        %v4678 = vadd.f32 %v4405, %v4677
        %v4679 = vpop.f32.mrb[0].mxu0
        %v4680 = vadd.f32 %v4407, %v4679
        %4681 = vmatprep.mubr.bf16.mxu0 0
        %4682 = vmatmul.mubr.bf16.gmra.mrb[0].mxu0 %v3473
        %v4683 = vpop.f32.mrb[0].mxu0
        %v4684 = vadd.f32 %v4411, %v4683
        %v4685 = vpop.f32.mrb[0].mxu0
        %v4686 = vadd.f32 %v4413, %v4685
        %v4687 = vpop.f32.mrb[0].mxu0
        %v4688 = vadd.f32 %v4415, %v4687
        %v4689 = vpop.f32.mrb[0].mxu0
        %v4690 = vadd.f32 %v4417, %v4689
        %4691 = vmatprep.mubr.bf16.mxu0 0
        %4692 = vmatmul.mubr.bf16.gmra.mrb[0].mxu0 %v3474
        %v4693 = vpop.f32.mrb[0].mxu0
        %v4694 = vadd.f32 %v4421, %v4693
        %v4695 = vpop.f32.mrb[0].mxu0
        %v4696 = vadd.f32 %v4423, %v4695
        %v4697 = vpop.f32.mrb[0].mxu0
        %v4698 = vadd.f32 %v4425, %v4697
        %v4699 = vpop.f32.mrb[0].mxu0
        %v4700 = vadd.f32 %v4427, %v4699
        %4701 = vmatprep.mubr.bf16.mxu0 0
        %4702 = vmatmul.mubr.bf16.gmra.mrb[0].mxu0 %v3475
        %v4703 = vpop.f32.mrb[0].mxu0
        %v4704 = vadd.f32 %v4431, %v4703
        %v4705 = vpop.f32.mrb[0].mxu0
        %v4706 = vadd.f32 %v4433, %v4705
        %v4707 = vpop.f32.mrb[0].mxu0
        %v4708 = vadd.f32 %v4435, %v4707
        %v4709 = vpop.f32.mrb[0].mxu0
        %v4710 = vadd.f32 %v4437, %v4709
        %4711 = vmatprep.mubr.bf16.mxu0 0
        %4712 = vmatmul.mubr.bf16.gmra.mrb[0].mxu0 %v3476
        %v4713 = vpop.f32.mrb[0].mxu0
        %v4714 = vadd.f32 %v4441, %v4713
        %v4715 = vpop.f32.mrb[0].mxu0
        %v4716 = vadd.f32 %v4443, %v4715
        %v4717 = vpop.f32.mrb[0].mxu0
        %v4718 = vadd.f32 %v4445, %v4717
        %v4719 = vpop.f32.mrb[0].mxu0
        %v4720 = vadd.f32 %v4447, %v4719
        %4721 = vmatprep.mubr.bf16.mxu0 0
        %4722 = vmatmul.mubr.bf16.gmra.mrb[0].mxu0 %v3477
        %v4723 = vpop.f32.mrb[0].mxu0
        %v4724 = vadd.f32 %v4451, %v4723
        %v4725 = vpop.f32.mrb[0].mxu0
        %v4726 = vadd.f32 %v4453, %v4725
        %v4727 = vpop.f32.mrb[0].mxu0
        %v4728 = vadd.f32 %v4455, %v4727
        %v4729 = vpop.f32.mrb[0].mxu0
        %v4730 = vadd.f32 %v4457, %v4729
        %4731 = vdwg.mxu0
        %v4732 = vadd.f32 %v726, %v4574
        %v4733 = vadd.f32 %v727, %v4576
        %v4734 = vadd.f32 %v728, %v4578
        %v4735 = vadd.f32 %v729, %v4580
        %v4736 = vadd.f32 %v730, %v4584
        %v4737 = vadd.f32 %v731, %v4586
        %v4738 = vadd.f32 %v732, %v4588
        %v4739 = vadd.f32 %v733, %v4590
        %v4740 = vadd.f32 %v734, %v4594
        %v4741 = vadd.f32 %v735, %v4596
        %v4742 = vadd.f32 %v736, %v4598
        %v4743 = vadd.f32 %v737, %v4600
        %v4744 = vadd.f32 %v738, %v4604
        %v4745 = vadd.f32 %v739, %v4606
        %v4746 = vadd.f32 %v740, %v4608
        %v4747 = vadd.f32 %v741, %v4610
        %v4748 = vadd.f32 %v742, %v4614
        %v4749 = vadd.f32 %v743, %v4616
        %v4750 = vadd.f32 %v744, %v4618
        %v4751 = vadd.f32 %v745, %v4620
        %v4752 = vadd.f32 %v746, %v4624
        %v4753 = vadd.f32 %v747, %v4626
        %v4754 = vadd.f32 %v748, %v4628
        %v4755 = vadd.f32 %v749, %v4630
        %v4756 = vadd.f32 %v750, %v4634
        %v4757 = vadd.f32 %v751, %v4636
        %v4758 = vadd.f32 %v752, %v4638
        %v4759 = vadd.f32 %v753, %v4640
        %v4760 = vadd.f32 %v754, %v4644
        %v4761 = vadd.f32 %v755, %v4646
        %v4762 = vadd.f32 %v756, %v4648
        %v4763 = vadd.f32 %v757, %v4650
        %v4764 = vadd.f32 %v758, %v4654
        %v4765 = vadd.f32 %v759, %v4656
        %v4766 = vadd.f32 %v760, %v4658
        %v4767 = vadd.f32 %v761, %v4660
        %v4768 = vadd.f32 %v762, %v4664
        %v4769 = vadd.f32 %v763, %v4666
        %v4770 = vadd.f32 %v764, %v4668
        %v4771 = vadd.f32 %v765, %v4670
        %v4772 = vadd.f32 %v766, %v4674
        %v4773 = vadd.f32 %v767, %v4676
        %v4774 = vadd.f32 %v768, %v4678
        %v4775 = vadd.f32 %v769, %v4680
        %v4776 = vadd.f32 %v770, %v4684
        %v4777 = vadd.f32 %v771, %v4686
        %v4778 = vadd.f32 %v772, %v4688
        %v4779 = vadd.f32 %v773, %v4690
        %v4780 = vadd.f32 %v774, %v4694
        %v4781 = vadd.f32 %v775, %v4696
        %v4782 = vadd.f32 %v776, %v4698
        %v4783 = vadd.f32 %v777, %v4700
        %v4784 = vadd.f32 %v778, %v4704
        %v4785 = vadd.f32 %v779, %v4706
        %v4786 = vadd.f32 %v780, %v4708
        %v4787 = vadd.f32 %v781, %v4710
        %v4788 = vadd.f32 %v782, %v4714
        %v4789 = vadd.f32 %v783, %v4716
        %v4790 = vadd.f32 %v784, %v4718
        %v4791 = vadd.f32 %v785, %v4720
        %v4792 = vadd.f32 %v786, %v4724
        %v4793 = vadd.f32 %v787, %v4726
        %v4794 = vadd.f32 %v788, %v4728
        %v4795 = vadd.f32 %v789, %v4730
        %v4796 = vadd.f32 %v4732, %v4733
        %4797 = vadd.xlane.f32.xlu0 %v4796
        %v4798 = vpop.xlane.xlu0 %4797
        %v4799 = vadd.f32 %v4734, %v4735
        %4800 = vadd.xlane.f32.xlu0 %v4799
        %v4801 = vpop.xlane.xlu0 %4800
        %v4802 = vadd.f32 %v4736, %v4737
        %4803 = vadd.xlane.f32.xlu0 %v4802
        %v4804 = vpop.xlane.xlu0 %4803
        %v4805 = vadd.f32 %v4738, %v4739
        %4806 = vadd.xlane.f32.xlu0 %v4805
        %v4807 = vpop.xlane.xlu0 %4806
        %v4808 = vadd.f32 %v4740, %v4741
        %4809 = vadd.xlane.f32.xlu0 %v4808
        %v4810 = vpop.xlane.xlu0 %4809
        %v4811 = vadd.f32 %v4742, %v4743
        %4812 = vadd.xlane.f32.xlu0 %v4811
        %v4813 = vpop.xlane.xlu0 %4812
        %v4814 = vadd.f32 %v4744, %v4745
        %4815 = vadd.xlane.f32.xlu0 %v4814
        %v4816 = vpop.xlane.xlu0 %4815
        %v4817 = vadd.f32 %v4746, %v4747
        %4818 = vadd.xlane.f32.xlu0 %v4817
        %v4819 = vpop.xlane.xlu0 %4818
        %v4820 = vadd.f32 %v4748, %v4749
        %4821 = vadd.xlane.f32.xlu0 %v4820
        %v4822 = vpop.xlane.xlu0 %4821
        %v4823 = vadd.f32 %v4750, %v4751
        %4824 = vadd.xlane.f32.xlu0 %v4823
        %v4825 = vpop.xlane.xlu0 %4824
        %v4826 = vadd.f32 %v4752, %v4753
        %4827 = vadd.xlane.f32.xlu0 %v4826
        %v4828 = vpop.xlane.xlu0 %4827
        %v4829 = vadd.f32 %v4754, %v4755
        %4830 = vadd.xlane.f32.xlu0 %v4829
        %v4831 = vpop.xlane.xlu0 %4830
        %v4832 = vadd.f32 %v4756, %v4757
        %4833 = vadd.xlane.f32.xlu0 %v4832
        %v4834 = vpop.xlane.xlu0 %4833
        %v4835 = vadd.f32 %v4758, %v4759
        %4836 = vadd.xlane.f32.xlu0 %v4835
        %v4837 = vpop.xlane.xlu0 %4836
        %v4838 = vadd.f32 %v4760, %v4761
        %4839 = vadd.xlane.f32.xlu0 %v4838
        %v4840 = vpop.xlane.xlu0 %4839
        %v4841 = vadd.f32 %v4762, %v4763
        %4842 = vadd.xlane.f32.xlu0 %v4841
        %v4843 = vpop.xlane.xlu0 %4842
        %v4844 = vadd.f32 %v4764, %v4765
        %4845 = vadd.xlane.f32.xlu0 %v4844
        %v4846 = vpop.xlane.xlu0 %4845
        %v4847 = vadd.f32 %v4766, %v4767
        %4848 = vadd.xlane.f32.xlu0 %v4847
        %v4849 = vpop.xlane.xlu0 %4848
        %v4850 = vadd.f32 %v4768, %v4769
        %4851 = vadd.xlane.f32.xlu0 %v4850
        %v4852 = vpop.xlane.xlu0 %4851
        %v4853 = vadd.f32 %v4770, %v4771
        %4854 = vadd.xlane.f32.xlu0 %v4853
        %v4855 = vpop.xlane.xlu0 %4854
        %v4856 = vadd.f32 %v4772, %v4773
        %4857 = vadd.xlane.f32.xlu0 %v4856
        %v4858 = vpop.xlane.xlu0 %4857
        %v4859 = vadd.f32 %v4774, %v4775
        %4860 = vadd.xlane.f32.xlu0 %v4859
        %v4861 = vpop.xlane.xlu0 %4860
        %v4862 = vadd.f32 %v4776, %v4777
        %4863 = vadd.xlane.f32.xlu0 %v4862
        %v4864 = vpop.xlane.xlu0 %4863
        %v4865 = vadd.f32 %v4778, %v4779
        %4866 = vadd.xlane.f32.xlu0 %v4865
        %v4867 = vpop.xlane.xlu0 %4866
        %v4868 = vadd.f32 %v4780, %v4781
        %4869 = vadd.xlane.f32.xlu0 %v4868
        %v4870 = vpop.xlane.xlu0 %4869
        %v4871 = vadd.f32 %v4782, %v4783
        %4872 = vadd.xlane.f32.xlu0 %v4871
        %v4873 = vpop.xlane.xlu0 %4872
        %v4874 = vadd.f32 %v4784, %v4785
        %4875 = vadd.xlane.f32.xlu0 %v4874
        %v4876 = vpop.xlane.xlu0 %4875
        %v4877 = vadd.f32 %v4786, %v4787
        %4878 = vadd.xlane.f32.xlu0 %v4877
        %v4879 = vpop.xlane.xlu0 %4878
        %v4880 = vadd.f32 %v4788, %v4789
        %4881 = vadd.xlane.f32.xlu0 %v4880
        %v4882 = vpop.xlane.xlu0 %4881
        %v4883 = vadd.f32 %v4790, %v4791
        %4884 = vadd.xlane.f32.xlu0 %v4883
        %v4885 = vpop.xlane.xlu0 %4884
        %v4886 = vadd.f32 %v4792, %v4793
        %4887 = vadd.xlane.f32.xlu0 %v4886
        %v4888 = vpop.xlane.xlu0 %4887
        %v4889 = vadd.f32 %v4794, %v4795
        %4890 = vadd.xlane.f32.xlu0 %v4889
        %v4891 = vpop.xlane.xlu0 %4890
        %v4892 = vmul.f32 %v4798, %v886
        %v4893 = vmul.f32 %v4801, %v886
        %v4894 = vmul.f32 %v4804, %v886
        %v4895 = vmul.f32 %v4807, %v886
        %v4896 = vmul.f32 %v4810, %v886
        %v4897 = vmul.f32 %v4813, %v886
        %v4898 = vmul.f32 %v4816, %v886
        %v4899 = vmul.f32 %v4819, %v886
        %v4900 = vmul.f32 %v4822, %v886
        %v4901 = vmul.f32 %v4825, %v886
        %v4902 = vmul.f32 %v4828, %v886
        %v4903 = vmul.f32 %v4831, %v886
        %v4904 = vmul.f32 %v4834, %v886
        %v4905 = vmul.f32 %v4837, %v886
        %v4906 = vmul.f32 %v4840, %v886
        %v4907 = vmul.f32 %v4843, %v886
        %v4908 = vmul.f32 %v4846, %v886
        %v4909 = vmul.f32 %v4849, %v886
        %v4910 = vmul.f32 %v4852, %v886
        %v4911 = vmul.f32 %v4855, %v886
        %v4912 = vmul.f32 %v4858, %v886
        %v4913 = vmul.f32 %v4861, %v886
        %v4914 = vmul.f32 %v4864, %v886
        %v4915 = vmul.f32 %v4867, %v886
        %v4916 = vmul.f32 %v4870, %v886
        %v4917 = vmul.f32 %v4873, %v886
        %v4918 = vmul.f32 %v4876, %v886
        %v4919 = vmul.f32 %v4879, %v886
        %v4920 = vmul.f32 %v4882, %v886
        %v4921 = vmul.f32 %v4885, %v886
        %v4922 = vmul.f32 %v4888, %v886
        %v4923 = vmul.f32 %v4891, %v886
        %v4924 = vsub.f32 %v4732, %v4892
        %v4925 = vsub.f32 %v4733, %v4892
        %v4926 = vsub.f32 %v4734, %v4893
        %v4927 = vsub.f32 %v4735, %v4893
        %v4928 = vsub.f32 %v4736, %v4894
        %v4929 = vsub.f32 %v4737, %v4894
        %v4930 = vsub.f32 %v4738, %v4895
        %v4931 = vsub.f32 %v4739, %v4895
        %v4932 = vsub.f32 %v4740, %v4896
        %v4933 = vsub.f32 %v4741, %v4896
        %v4934 = vsub.f32 %v4742, %v4897
        %v4935 = vsub.f32 %v4743, %v4897
        %v4936 = vsub.f32 %v4744, %v4898
        %v4937 = vsub.f32 %v4745, %v4898
        %v4938 = vsub.f32 %v4746, %v4899
        %v4939 = vsub.f32 %v4747, %v4899
        %v4940 = vsub.f32 %v4748, %v4900
        %v4941 = vsub.f32 %v4749, %v4900
        %v4942 = vsub.f32 %v4750, %v4901
        %v4943 = vsub.f32 %v4751, %v4901
        %v4944 = vsub.f32 %v4752, %v4902
        %v4945 = vsub.f32 %v4753, %v4902
        %v4946 = vsub.f32 %v4754, %v4903
        %v4947 = vsub.f32 %v4755, %v4903
        %v4948 = vsub.f32 %v4756, %v4904
        %v4949 = vsub.f32 %v4757, %v4904
        %v4950 = vsub.f32 %v4758, %v4905
        %v4951 = vsub.f32 %v4759, %v4905
        %v4952 = vsub.f32 %v4760, %v4906
        %v4953 = vsub.f32 %v4761, %v4906
        %v4954 = vsub.f32 %v4762, %v4907
        %v4955 = vsub.f32 %v4763, %v4907
        %v4956 = vsub.f32 %v4764, %v4908
        %v4957 = vsub.f32 %v4765, %v4908
        %v4958 = vsub.f32 %v4766, %v4909
        %v4959 = vsub.f32 %v4767, %v4909
        %v4960 = vsub.f32 %v4768, %v4910
        %v4961 = vsub.f32 %v4769, %v4910
        %v4962 = vsub.f32 %v4770, %v4911
        %v4963 = vsub.f32 %v4771, %v4911
        %v4964 = vsub.f32 %v4772, %v4912
        %v4965 = vsub.f32 %v4773, %v4912
        %v4966 = vsub.f32 %v4774, %v4913
        %v4967 = vsub.f32 %v4775, %v4913
        %v4968 = vsub.f32 %v4776, %v4914
        %v4969 = vsub.f32 %v4777, %v4914
        %v4970 = vsub.f32 %v4778, %v4915
        %v4971 = vsub.f32 %v4779, %v4915
        %v4972 = vsub.f32 %v4780, %v4916
        %v4973 = vsub.f32 %v4781, %v4916
        %v4974 = vsub.f32 %v4782, %v4917
        %v4975 = vsub.f32 %v4783, %v4917
        %v4976 = vsub.f32 %v4784, %v4918
        %v4977 = vsub.f32 %v4785, %v4918
        %v4978 = vsub.f32 %v4786, %v4919
        %v4979 = vsub.f32 %v4787, %v4919
        %v4980 = vsub.f32 %v4788, %v4920
        %v4981 = vsub.f32 %v4789, %v4920
        %v4982 = vsub.f32 %v4790, %v4921
        %v4983 = vsub.f32 %v4791, %v4921
        %v4984 = vsub.f32 %v4792, %v4922
        %v4985 = vsub.f32 %v4793, %v4922
        %v4986 = vsub.f32 %v4794, %v4923
        %v4987 = vsub.f32 %v4795, %v4923
        %v4988 = vmul.f32 %v4924, %v4924
        %v4989 = vmul.f32 %v4925, %v4925
        %v4990 = vmul.f32 %v4926, %v4926
        %v4991 = vmul.f32 %v4927, %v4927
        %v4992 = vmul.f32 %v4928, %v4928
        %v4993 = vmul.f32 %v4929, %v4929
        %v4994 = vmul.f32 %v4930, %v4930
        %v4995 = vmul.f32 %v4931, %v4931
        %v4996 = vmul.f32 %v4932, %v4932
        %v4997 = vmul.f32 %v4933, %v4933
        %v4998 = vmul.f32 %v4934, %v4934
        %v4999 = vmul.f32 %v4935, %v4935
        %v5000 = vmul.f32 %v4936, %v4936
        %v5001 = vmul.f32 %v4937, %v4937
        %v5002 = vmul.f32 %v4938, %v4938
        %v5003 = vmul.f32 %v4939, %v4939
        %v5004 = vmul.f32 %v4940, %v4940
        %v5005 = vmul.f32 %v4941, %v4941
        %v5006 = vmul.f32 %v4942, %v4942
        %v5007 = vmul.f32 %v4943, %v4943
        %v5008 = vmul.f32 %v4944, %v4944
        %v5009 = vmul.f32 %v4945, %v4945
        %v5010 = vmul.f32 %v4946, %v4946
        %v5011 = vmul.f32 %v4947, %v4947
        %v5012 = vmul.f32 %v4948, %v4948
        %v5013 = vmul.f32 %v4949, %v4949
        %v5014 = vmul.f32 %v4950, %v4950
        %v5015 = vmul.f32 %v4951, %v4951
        %v5016 = vmul.f32 %v4952, %v4952
        %v5017 = vmul.f32 %v4953, %v4953
        %v5018 = vmul.f32 %v4954, %v4954
        %v5019 = vmul.f32 %v4955, %v4955
        %v5020 = vmul.f32 %v4956, %v4956
        %v5021 = vmul.f32 %v4957, %v4957
        %v5022 = vmul.f32 %v4958, %v4958
        %v5023 = vmul.f32 %v4959, %v4959
        %v5024 = vmul.f32 %v4960, %v4960
        %v5025 = vmul.f32 %v4961, %v4961
        %v5026 = vmul.f32 %v4962, %v4962
        %v5027 = vmul.f32 %v4963, %v4963
        %v5028 = vmul.f32 %v4964, %v4964
        %v5029 = vmul.f32 %v4965, %v4965
        %v5030 = vmul.f32 %v4966, %v4966
        %v5031 = vmul.f32 %v4967, %v4967
        %v5032 = vmul.f32 %v4968, %v4968
        %v5033 = vmul.f32 %v4969, %v4969
        %v5034 = vmul.f32 %v4970, %v4970
        %v5035 = vmul.f32 %v4971, %v4971
        %v5036 = vmul.f32 %v4972, %v4972
        %v5037 = vmul.f32 %v4973, %v4973
        %v5038 = vmul.f32 %v4974, %v4974
        %v5039 = vmul.f32 %v4975, %v4975
        %v5040 = vmul.f32 %v4976, %v4976
        %v5041 = vmul.f32 %v4977, %v4977
        %v5042 = vmul.f32 %v4978, %v4978
        %v5043 = vmul.f32 %v4979, %v4979
        %v5044 = vmul.f32 %v4980, %v4980
        %v5045 = vmul.f32 %v4981, %v4981
        %v5046 = vmul.f32 %v4982, %v4982
        %v5047 = vmul.f32 %v4983, %v4983
        %v5048 = vmul.f32 %v4984, %v4984
        %v5049 = vmul.f32 %v4985, %v4985
        %v5050 = vmul.f32 %v4986, %v4986
        %v5051 = vmul.f32 %v4987, %v4987
        %v5052 = vadd.f32 %v4988, %v4989
        %5053 = vadd.xlane.f32.xlu0 %v5052
        %v5054 = vpop.xlane.xlu0 %5053
        %v5055 = vadd.f32 %v4990, %v4991
        %5056 = vadd.xlane.f32.xlu0 %v5055
        %v5057 = vpop.xlane.xlu0 %5056
        %v5058 = vadd.f32 %v4992, %v4993
        %5059 = vadd.xlane.f32.xlu0 %v5058
        %v5060 = vpop.xlane.xlu0 %5059
        %v5061 = vadd.f32 %v4994, %v4995
        %5062 = vadd.xlane.f32.xlu0 %v5061
        %v5063 = vpop.xlane.xlu0 %5062
        %v5064 = vadd.f32 %v4996, %v4997
        %5065 = vadd.xlane.f32.xlu0 %v5064
        %v5066 = vpop.xlane.xlu0 %5065
        %v5067 = vadd.f32 %v4998, %v4999
        %5068 = vadd.xlane.f32.xlu0 %v5067
        %v5069 = vpop.xlane.xlu0 %5068
        %v5070 = vadd.f32 %v5000, %v5001
        %5071 = vadd.xlane.f32.xlu0 %v5070
        %v5072 = vpop.xlane.xlu0 %5071
        %v5073 = vadd.f32 %v5002, %v5003
        %5074 = vadd.xlane.f32.xlu0 %v5073
        %v5075 = vpop.xlane.xlu0 %5074
        %v5076 = vadd.f32 %v5004, %v5005
        %5077 = vadd.xlane.f32.xlu0 %v5076
        %v5078 = vpop.xlane.xlu0 %5077
        %v5079 = vadd.f32 %v5006, %v5007
        %5080 = vadd.xlane.f32.xlu0 %v5079
        %v5081 = vpop.xlane.xlu0 %5080
        %v5082 = vadd.f32 %v5008, %v5009
        %5083 = vadd.xlane.f32.xlu0 %v5082
        %v5084 = vpop.xlane.xlu0 %5083
        %v5085 = vadd.f32 %v5010, %v5011
        %5086 = vadd.xlane.f32.xlu0 %v5085
        %v5087 = vpop.xlane.xlu0 %5086
        %v5088 = vadd.f32 %v5012, %v5013
        %5089 = vadd.xlane.f32.xlu0 %v5088
        %v5090 = vpop.xlane.xlu0 %5089
        %v5091 = vadd.f32 %v5014, %v5015
        %5092 = vadd.xlane.f32.xlu0 %v5091
        %v5093 = vpop.xlane.xlu0 %5092
        %v5094 = vadd.f32 %v5016, %v5017
        %5095 = vadd.xlane.f32.xlu0 %v5094
        %v5096 = vpop.xlane.xlu0 %5095
        %v5097 = vadd.f32 %v5018, %v5019
        %5098 = vadd.xlane.f32.xlu0 %v5097
        %v5099 = vpop.xlane.xlu0 %5098
        %v5100 = vadd.f32 %v5020, %v5021
        %5101 = vadd.xlane.f32.xlu0 %v5100
        %v5102 = vpop.xlane.xlu0 %5101
        %v5103 = vadd.f32 %v5022, %v5023
        %5104 = vadd.xlane.f32.xlu0 %v5103
        %v5105 = vpop.xlane.xlu0 %5104
        %v5106 = vadd.f32 %v5024, %v5025
        %5107 = vadd.xlane.f32.xlu0 %v5106
        %v5108 = vpop.xlane.xlu0 %5107
        %v5109 = vadd.f32 %v5026, %v5027
        %5110 = vadd.xlane.f32.xlu0 %v5109
        %v5111 = vpop.xlane.xlu0 %5110
        %v5112 = vadd.f32 %v5028, %v5029
        %5113 = vadd.xlane.f32.xlu0 %v5112
        %v5114 = vpop.xlane.xlu0 %5113
        %v5115 = vadd.f32 %v5030, %v5031
        %5116 = vadd.xlane.f32.xlu0 %v5115
        %v5117 = vpop.xlane.xlu0 %5116
        %v5118 = vadd.f32 %v5032, %v5033
        %5119 = vadd.xlane.f32.xlu0 %v5118
        %v5120 = vpop.xlane.xlu0 %5119
        %v5121 = vadd.f32 %v5034, %v5035
        %5122 = vadd.xlane.f32.xlu0 %v5121
        %v5123 = vpop.xlane.xlu0 %5122
        %v5124 = vadd.f32 %v5036, %v5037
        %5125 = vadd.xlane.f32.xlu0 %v5124
        %v5126 = vpop.xlane.xlu0 %5125
        %v5127 = vadd.f32 %v5038, %v5039
        %5128 = vadd.xlane.f32.xlu0 %v5127
        %v5129 = vpop.xlane.xlu0 %5128
        %v5130 = vadd.f32 %v5040, %v5041
        %5131 = vadd.xlane.f32.xlu0 %v5130
        %v5132 = vpop.xlane.xlu0 %5131
        %v5133 = vadd.f32 %v5042, %v5043
        %5134 = vadd.xlane.f32.xlu0 %v5133
        %v5135 = vpop.xlane.xlu0 %5134
        %v5136 = vadd.f32 %v5044, %v5045
        %5137 = vadd.xlane.f32.xlu0 %v5136
        %v5138 = vpop.xlane.xlu0 %5137
        %v5139 = vadd.f32 %v5046, %v5047
        %5140 = vadd.xlane.f32.xlu0 %v5139
        %v5141 = vpop.xlane.xlu0 %5140
        %v5142 = vadd.f32 %v5048, %v5049
        %5143 = vadd.xlane.f32.xlu0 %v5142
        %v5144 = vpop.xlane.xlu0 %5143
        %v5145 = vadd.f32 %v5050, %v5051
        %5146 = vadd.xlane.f32.xlu0 %v5145
        %v5147 = vpop.xlane.xlu0 %5146
        %v5148 = vmul.f32 %v5054, %v886
        %v5149 = vmul.f32 %v5057, %v886
        %v5150 = vmul.f32 %v5060, %v886
        %v5151 = vmul.f32 %v5063, %v886
        %v5152 = vmul.f32 %v5066, %v886
        %v5153 = vmul.f32 %v5069, %v886
        %v5154 = vmul.f32 %v5072, %v886
        %v5155 = vmul.f32 %v5075, %v886
        %v5156 = vmul.f32 %v5078, %v886
        %v5157 = vmul.f32 %v5081, %v886
        %v5158 = vmul.f32 %v5084, %v886
        %v5159 = vmul.f32 %v5087, %v886
        %v5160 = vmul.f32 %v5090, %v886
        %v5161 = vmul.f32 %v5093, %v886
        %v5162 = vmul.f32 %v5096, %v886
        %v5163 = vmul.f32 %v5099, %v886
        %v5164 = vmul.f32 %v5102, %v886
        %v5165 = vmul.f32 %v5105, %v886
        %v5166 = vmul.f32 %v5108, %v886
        %v5167 = vmul.f32 %v5111, %v886
        %v5168 = vmul.f32 %v5114, %v886
        %v5169 = vmul.f32 %v5117, %v886
        %v5170 = vmul.f32 %v5120, %v886
        %v5171 = vmul.f32 %v5123, %v886
        %v5172 = vmul.f32 %v5126, %v886
        %v5173 = vmul.f32 %v5129, %v886
        %v5174 = vmul.f32 %v5132, %v886
        %v5175 = vmul.f32 %v5135, %v886
        %v5176 = vmul.f32 %v5138, %v886
        %v5177 = vmul.f32 %v5141, %v886
        %v5178 = vmul.f32 %v5144, %v886
        %v5179 = vmul.f32 %v5147, %v886
        %v5180 = vadd.f32 %v5148, 1e-05
        %v5181 = vadd.f32 %v5149, 1e-05
        %v5182 = vadd.f32 %v5150, 1e-05
        %v5183 = vadd.f32 %v5151, 1e-05
        %v5184 = vadd.f32 %v5152, 1e-05
        %v5185 = vadd.f32 %v5153, 1e-05
        %v5186 = vadd.f32 %v5154, 1e-05
        %v5187 = vadd.f32 %v5155, 1e-05
        %v5188 = vadd.f32 %v5156, 1e-05
        %v5189 = vadd.f32 %v5157, 1e-05
        %v5190 = vadd.f32 %v5158, 1e-05
        %v5191 = vadd.f32 %v5159, 1e-05
        %v5192 = vadd.f32 %v5160, 1e-05
        %v5193 = vadd.f32 %v5161, 1e-05
        %v5194 = vadd.f32 %v5162, 1e-05
        %v5195 = vadd.f32 %v5163, 1e-05
        %v5196 = vadd.f32 %v5164, 1e-05
        %v5197 = vadd.f32 %v5165, 1e-05
        %v5198 = vadd.f32 %v5166, 1e-05
        %v5199 = vadd.f32 %v5167, 1e-05
        %v5200 = vadd.f32 %v5168, 1e-05
        %v5201 = vadd.f32 %v5169, 1e-05
        %v5202 = vadd.f32 %v5170, 1e-05
        %v5203 = vadd.f32 %v5171, 1e-05
        %v5204 = vadd.f32 %v5172, 1e-05
        %v5205 = vadd.f32 %v5173, 1e-05
        %v5206 = vadd.f32 %v5174, 1e-05
        %v5207 = vadd.f32 %v5175, 1e-05
        %v5208 = vadd.f32 %v5176, 1e-05
        %v5209 = vadd.f32 %v5177, 1e-05
        %v5210 = vadd.f32 %v5178, 1e-05
        %v5211 = vadd.f32 %v5179, 1e-05
        %v5212 = vrsqrt.pop %v5180
        %v5213 = vrsqrt.pop %v5181
        %v5214 = vrsqrt.pop %v5182
        %v5215 = vrsqrt.pop %v5183
        %v5216 = vrsqrt.pop %v5184
        %v5217 = vrsqrt.pop %v5185
        %v5218 = vrsqrt.pop %v5186
        %v5219 = vrsqrt.pop %v5187
        %v5220 = vrsqrt.pop %v5188
        %v5221 = vrsqrt.pop %v5189
        %v5222 = vrsqrt.pop %v5190
        %v5223 = vrsqrt.pop %v5191
        %v5224 = vrsqrt.pop %v5192
        %v5225 = vrsqrt.pop %v5193
        %v5226 = vrsqrt.pop %v5194
        %v5227 = vrsqrt.pop %v5195
        %v5228 = vrsqrt.pop %v5196
        %v5229 = vrsqrt.pop %v5197
        %v5230 = vrsqrt.pop %v5198
        %v5231 = vrsqrt.pop %v5199
        %v5232 = vrsqrt.pop %v5200
        %v5233 = vrsqrt.pop %v5201
        %v5234 = vrsqrt.pop %v5202
        %v5235 = vrsqrt.pop %v5203
        %v5236 = vrsqrt.pop %v5204
        %v5237 = vrsqrt.pop %v5205
        %v5238 = vrsqrt.pop %v5206
        %v5239 = vrsqrt.pop %v5207
        %v5240 = vrsqrt.pop %v5208
        %v5241 = vrsqrt.pop %v5209
        %v5242 = vrsqrt.pop %v5210
        %v5243 = vrsqrt.pop %v5211
        %v5244 = vmul.f32 %v4924, %v5212
        %v5245 = vmul.f32 %v4925, %v5212
        %v5246 = vmul.f32 %v4926, %v5213
        %v5247 = vmul.f32 %v4927, %v5213
        %v5248 = vmul.f32 %v4928, %v5214
        %v5249 = vmul.f32 %v4929, %v5214
        %v5250 = vmul.f32 %v4930, %v5215
        %v5251 = vmul.f32 %v4931, %v5215
        %v5252 = vmul.f32 %v4932, %v5216
        %v5253 = vmul.f32 %v4933, %v5216
        %v5254 = vmul.f32 %v4934, %v5217
        %v5255 = vmul.f32 %v4935, %v5217
        %v5256 = vmul.f32 %v4936, %v5218
        %v5257 = vmul.f32 %v4937, %v5218
        %v5258 = vmul.f32 %v4938, %v5219
        %v5259 = vmul.f32 %v4939, %v5219
        %v5260 = vmul.f32 %v4940, %v5220
        %v5261 = vmul.f32 %v4941, %v5220
        %v5262 = vmul.f32 %v4942, %v5221
        %v5263 = vmul.f32 %v4943, %v5221
        %v5264 = vmul.f32 %v4944, %v5222
        %v5265 = vmul.f32 %v4945, %v5222
        %v5266 = vmul.f32 %v4946, %v5223
        %v5267 = vmul.f32 %v4947, %v5223
        %v5268 = vmul.f32 %v4948, %v5224
        %v5269 = vmul.f32 %v4949, %v5224
        %v5270 = vmul.f32 %v4950, %v5225
        %v5271 = vmul.f32 %v4951, %v5225
        %v5272 = vmul.f32 %v4952, %v5226
        %v5273 = vmul.f32 %v4953, %v5226
        %v5274 = vmul.f32 %v4954, %v5227
        %v5275 = vmul.f32 %v4955, %v5227
        %v5276 = vmul.f32 %v4956, %v5228
        %v5277 = vmul.f32 %v4957, %v5228
        %v5278 = vmul.f32 %v4958, %v5229
        %v5279 = vmul.f32 %v4959, %v5229
        %v5280 = vmul.f32 %v4960, %v5230
        %v5281 = vmul.f32 %v4961, %v5230
        %v5282 = vmul.f32 %v4962, %v5231
        %v5283 = vmul.f32 %v4963, %v5231
        %v5284 = vmul.f32 %v4964, %v5232
        %v5285 = vmul.f32 %v4965, %v5232
        %v5286 = vmul.f32 %v4966, %v5233
        %v5287 = vmul.f32 %v4967, %v5233
        %v5288 = vmul.f32 %v4968, %v5234
        %v5289 = vmul.f32 %v4969, %v5234
        %v5290 = vmul.f32 %v4970, %v5235
        %v5291 = vmul.f32 %v4971, %v5235
        %v5292 = vmul.f32 %v4972, %v5236
        %v5293 = vmul.f32 %v4973, %v5236
        %v5294 = vmul.f32 %v4974, %v5237
        %v5295 = vmul.f32 %v4975, %v5237
        %v5296 = vmul.f32 %v4976, %v5238
        %v5297 = vmul.f32 %v4977, %v5238
        %v5298 = vmul.f32 %v4978, %v5239
        %v5299 = vmul.f32 %v4979, %v5239
        %v5300 = vmul.f32 %v4980, %v5240
        %v5301 = vmul.f32 %v4981, %v5240
        %v5302 = vmul.f32 %v4982, %v5241
        %v5303 = vmul.f32 %v4983, %v5241
        %v5304 = vmul.f32 %v4984, %v5242
        %v5305 = vmul.f32 %v4985, %v5242
        %v5306 = vmul.f32 %v4986, %v5243
        %v5307 = vmul.f32 %v4987, %v5243
        %v5308 = vld [vmem:[%s616] sm:$0x3]
        %v5310 = vlaneseq
        %v5311 = vshrl.u32 %v5310, 7
        %v5312 = vsub.s32 0, %v5311
        %v5313 = vrot.slane %v5308, %v5312
        %v5314 = vlaneseq
        %v5315 = vshrl.u32 %v5314, 7
        %v5316 = vsub.s32 1, %v5315
        %v5317 = vrot.slane %v5308, %v5316
        %v5320 = vmul.f32 %v5244, %v5313
        %v5321 = vmul.f32 %v5245, %v5317
        %v5322 = vmul.f32 %v5246, %v5313
        %v5323 = vmul.f32 %v5247, %v5317
        %v5324 = vmul.f32 %v5248, %v5313
        %v5325 = vmul.f32 %v5249, %v5317
        %v5326 = vmul.f32 %v5250, %v5313
        %v5327 = vmul.f32 %v5251, %v5317
        %v5328 = vmul.f32 %v5252, %v5313
        %v5329 = vmul.f32 %v5253, %v5317
        %v5330 = vmul.f32 %v5254, %v5313
        %v5331 = vmul.f32 %v5255, %v5317
        %v5332 = vmul.f32 %v5256, %v5313
        %v5333 = vmul.f32 %v5257, %v5317
        %v5334 = vmul.f32 %v5258, %v5313
        %v5335 = vmul.f32 %v5259, %v5317
        %v5336 = vmul.f32 %v5260, %v5313
        %v5337 = vmul.f32 %v5261, %v5317
        %v5338 = vmul.f32 %v5262, %v5313
        %v5339 = vmul.f32 %v5263, %v5317
        %v5340 = vmul.f32 %v5264, %v5313
        %v5341 = vmul.f32 %v5265, %v5317
        %v5342 = vmul.f32 %v5266, %v5313
        %v5343 = vmul.f32 %v5267, %v5317
        %v5344 = vmul.f32 %v5268, %v5313
        %v5345 = vmul.f32 %v5269, %v5317
        %v5346 = vmul.f32 %v5270, %v5313
        %v5347 = vmul.f32 %v5271, %v5317
        %v5348 = vmul.f32 %v5272, %v5313
        %v5349 = vmul.f32 %v5273, %v5317
        %v5350 = vmul.f32 %v5274, %v5313
        %v5351 = vmul.f32 %v5275, %v5317
        %v5352 = vmul.f32 %v5276, %v5313
        %v5353 = vmul.f32 %v5277, %v5317
        %v5354 = vmul.f32 %v5278, %v5313
        %v5355 = vmul.f32 %v5279, %v5317
        %v5356 = vmul.f32 %v5280, %v5313
        %v5357 = vmul.f32 %v5281, %v5317
        %v5358 = vmul.f32 %v5282, %v5313
        %v5359 = vmul.f32 %v5283, %v5317
        %v5360 = vmul.f32 %v5284, %v5313
        %v5361 = vmul.f32 %v5285, %v5317
        %v5362 = vmul.f32 %v5286, %v5313
        %v5363 = vmul.f32 %v5287, %v5317
        %v5364 = vmul.f32 %v5288, %v5313
        %v5365 = vmul.f32 %v5289, %v5317
        %v5366 = vmul.f32 %v5290, %v5313
        %v5367 = vmul.f32 %v5291, %v5317
        %v5368 = vmul.f32 %v5292, %v5313
        %v5369 = vmul.f32 %v5293, %v5317
        %v5370 = vmul.f32 %v5294, %v5313
        %v5371 = vmul.f32 %v5295, %v5317
        %v5372 = vmul.f32 %v5296, %v5313
        %v5373 = vmul.f32 %v5297, %v5317
        %v5374 = vmul.f32 %v5298, %v5313
        %v5375 = vmul.f32 %v5299, %v5317
        %v5376 = vmul.f32 %v5300, %v5313
        %v5377 = vmul.f32 %v5301, %v5317
        %v5378 = vmul.f32 %v5302, %v5313
        %v5379 = vmul.f32 %v5303, %v5317
        %v5380 = vmul.f32 %v5304, %v5313
        %v5381 = vmul.f32 %v5305, %v5317
        %v5382 = vmul.f32 %v5306, %v5313
        %v5383 = vmul.f32 %v5307, %v5317
        %v5384 = vld [vmem:[%s620] sm:$0x3]
        %v5386 = vlaneseq
        %v5387 = vshrl.u32 %v5386, 7
        %v5388 = vsub.s32 0, %v5387
        %v5389 = vrot.slane %v5384, %v5388
        %v5390 = vlaneseq
        %v5391 = vshrl.u32 %v5390, 7
        %v5392 = vsub.s32 1, %v5391
        %v5393 = vrot.slane %v5384, %v5392
        %v5396 = vadd.f32 %v5320, %v5389
        %v5397 = vadd.f32 %v5321, %v5393
        %v5398 = vadd.f32 %v5322, %v5389
        %v5399 = vadd.f32 %v5323, %v5393
        %v5400 = vadd.f32 %v5324, %v5389
        %v5401 = vadd.f32 %v5325, %v5393
        %v5402 = vadd.f32 %v5326, %v5389
        %v5403 = vadd.f32 %v5327, %v5393
        %v5404 = vadd.f32 %v5328, %v5389
        %v5405 = vadd.f32 %v5329, %v5393
        %v5406 = vadd.f32 %v5330, %v5389
        %v5407 = vadd.f32 %v5331, %v5393
        %v5408 = vadd.f32 %v5332, %v5389
        %v5409 = vadd.f32 %v5333, %v5393
        %v5410 = vadd.f32 %v5334, %v5389
        %v5411 = vadd.f32 %v5335, %v5393
        %v5412 = vadd.f32 %v5336, %v5389
        %v5413 = vadd.f32 %v5337, %v5393
        %v5414 = vadd.f32 %v5338, %v5389
        %v5415 = vadd.f32 %v5339, %v5393
        %v5416 = vadd.f32 %v5340, %v5389
        %v5417 = vadd.f32 %v5341, %v5393
        %v5418 = vadd.f32 %v5342, %v5389
        %v5419 = vadd.f32 %v5343, %v5393
        %v5420 = vadd.f32 %v5344, %v5389
        %v5421 = vadd.f32 %v5345, %v5393
        %v5422 = vadd.f32 %v5346, %v5389
        %v5423 = vadd.f32 %v5347, %v5393
        %v5424 = vadd.f32 %v5348, %v5389
        %v5425 = vadd.f32 %v5349, %v5393
        %v5426 = vadd.f32 %v5350, %v5389
        %v5427 = vadd.f32 %v5351, %v5393
        %v5428 = vadd.f32 %v5352, %v5389
        %v5429 = vadd.f32 %v5353, %v5393
        %v5430 = vadd.f32 %v5354, %v5389
        %v5431 = vadd.f32 %v5355, %v5393
        %v5432 = vadd.f32 %v5356, %v5389
        %v5433 = vadd.f32 %v5357, %v5393
        %v5434 = vadd.f32 %v5358, %v5389
        %v5435 = vadd.f32 %v5359, %v5393
        %v5436 = vadd.f32 %v5360, %v5389
        %v5437 = vadd.f32 %v5361, %v5393
        %v5438 = vadd.f32 %v5362, %v5389
        %v5439 = vadd.f32 %v5363, %v5393
        %v5440 = vadd.f32 %v5364, %v5389
        %v5441 = vadd.f32 %v5365, %v5393
        %v5442 = vadd.f32 %v5366, %v5389
        %v5443 = vadd.f32 %v5367, %v5393
        %v5444 = vadd.f32 %v5368, %v5389
        %v5445 = vadd.f32 %v5369, %v5393
        %v5446 = vadd.f32 %v5370, %v5389
        %v5447 = vadd.f32 %v5371, %v5393
        %v5448 = vadd.f32 %v5372, %v5389
        %v5449 = vadd.f32 %v5373, %v5393
        %v5450 = vadd.f32 %v5374, %v5389
        %v5451 = vadd.f32 %v5375, %v5393
        %v5452 = vadd.f32 %v5376, %v5389
        %v5453 = vadd.f32 %v5377, %v5393
        %v5454 = vadd.f32 %v5378, %v5389
        %v5455 = vadd.f32 %v5379, %v5393
        %v5456 = vadd.f32 %v5380, %v5389
        %v5457 = vadd.f32 %v5381, %v5393
        %v5458 = vadd.f32 %v5382, %v5389
        %v5459 = vadd.f32 %v5383, %v5393
        %v5460 = vpack.c.bf16 %v5398, %v5396
        %v5461 = vpack.c.bf16 %v5399, %v5397
        %v5462 = vpack.c.bf16 %v5402, %v5400
        %v5463 = vpack.c.bf16 %v5403, %v5401
        %v5464 = vpack.c.bf16 %v5406, %v5404
        %v5465 = vpack.c.bf16 %v5407, %v5405
        %v5466 = vpack.c.bf16 %v5410, %v5408
        %v5467 = vpack.c.bf16 %v5411, %v5409
        %v5468 = vpack.c.bf16 %v5414, %v5412
        %v5469 = vpack.c.bf16 %v5415, %v5413
        %v5470 = vpack.c.bf16 %v5418, %v5416
        %v5471 = vpack.c.bf16 %v5419, %v5417
        %v5472 = vpack.c.bf16 %v5422, %v5420
        %v5473 = vpack.c.bf16 %v5423, %v5421
        %v5474 = vpack.c.bf16 %v5426, %v5424
        %v5475 = vpack.c.bf16 %v5427, %v5425
        %v5476 = vpack.c.bf16 %v5430, %v5428
        %v5477 = vpack.c.bf16 %v5431, %v5429
        %v5478 = vpack.c.bf16 %v5434, %v5432
        %v5479 = vpack.c.bf16 %v5435, %v5433
        %v5480 = vpack.c.bf16 %v5438, %v5436
        %v5481 = vpack.c.bf16 %v5439, %v5437
        %v5482 = vpack.c.bf16 %v5442, %v5440
        %v5483 = vpack.c.bf16 %v5443, %v5441
        %v5484 = vpack.c.bf16 %v5446, %v5444
        %v5485 = vpack.c.bf16 %v5447, %v5445
        %v5486 = vpack.c.bf16 %v5450, %v5448
        %v5487 = vpack.c.bf16 %v5451, %v5449
        %v5488 = vpack.c.bf16 %v5454, %v5452
        %v5489 = vpack.c.bf16 %v5455, %v5453
        %v5490 = vpack.c.bf16 %v5458, %v5456
        %v5491 = vpack.c.bf16 %v5459, %v5457
        %v5492 = vld [vmem:[%s508] sm:$0xff]
        %v5493 = vld [vmem:[%s508 + $0x8] sm:$0xff]
        %v5494 = vld [vmem:[%s508 + $0x10] sm:$0xff]
        %v5495 = vld [vmem:[%s508 + $0x18] sm:$0xff]
        %v5496 = vld [vmem:[%s508 + $0x20] sm:$0xff]
        %v5497 = vld [vmem:[%s508 + $0x28] sm:$0xff]
        %v5498 = vld [vmem:[%s508 + $0x30] sm:$0xff]
        %v5499 = vld [vmem:[%s508 + $0x38] sm:$0xff]
        %v5500 = vld [vmem:[%s508 + $0x40] sm:$0xff]
        %v5501 = vld [vmem:[%s508 + $0x48] sm:$0xff]
        %v5502 = vld [vmem:[%s508 + $0x50] sm:$0xff]
        %v5503 = vld [vmem:[%s508 + $0x58] sm:$0xff]
        %v5504 = vld [vmem:[%s508 + $0x60] sm:$0xff]
        %v5505 = vld [vmem:[%s508 + $0x68] sm:$0xff]
        %v5506 = vld [vmem:[%s508 + $0x70] sm:$0xff]
        %v5507 = vld [vmem:[%s508 + $0x78] sm:$0xff]
        %v5508 = vld [vmem:[%s508 + $0x80] sm:$0xff]
        %v5509 = vld [vmem:[%s508 + $0x88] sm:$0xff]
        %v5510 = vld [vmem:[%s508 + $0x90] sm:$0xff]
        %v5511 = vld [vmem:[%s508 + $0x98] sm:$0xff]
        %v5512 = vld [vmem:[%s508 + $0xa0] sm:$0xff]
        %v5513 = vld [vmem:[%s508 + $0xa8] sm:$0xff]
        %v5514 = vld [vmem:[%s508 + $0xb0] sm:$0xff]
        %v5515 = vld [vmem:[%s508 + $0xb8] sm:$0xff]
        %v5516 = vld [vmem:[%s508 + $0xc0] sm:$0xff]
        %v5517 = vld [vmem:[%s508 + $0xc8] sm:$0xff]
        %v5518 = vld [vmem:[%s508 + $0xd0] sm:$0xff]
        %v5519 = vld [vmem:[%s508 + $0xd8] sm:$0xff]
        %v5520 = vld [vmem:[%s508 + $0xe0] sm:$0xff]
        %v5521 = vld [vmem:[%s508 + $0xe8] sm:$0xff]
        %v5522 = vld [vmem:[%s508 + $0xf0] sm:$0xff]
        %v5523 = vld [vmem:[%s508 + $0xf8] sm:$0xff]
        %v5524 = vld [vmem:[%s508 + $0x100] sm:$0xff]
        %v5525 = vld [vmem:[%s508 + $0x108] sm:$0xff]
        %v5526 = vld [vmem:[%s508 + $0x110] sm:$0xff]
        %v5527 = vld [vmem:[%s508 + $0x118] sm:$0xff]
        %v5528 = vld [vmem:[%s508 + $0x120] sm:$0xff]
        %v5529 = vld [vmem:[%s508 + $0x128] sm:$0xff]
        %v5530 = vld [vmem:[%s508 + $0x130] sm:$0xff]
        %v5531 = vld [vmem:[%s508 + $0x138] sm:$0xff]
        %v5532 = vld [vmem:[%s508 + $0x140] sm:$0xff]
        %v5533 = vld [vmem:[%s508 + $0x148] sm:$0xff]
        %v5534 = vld [vmem:[%s508 + $0x150] sm:$0xff]
        %v5535 = vld [vmem:[%s508 + $0x158] sm:$0xff]
        %v5536 = vld [vmem:[%s508 + $0x160] sm:$0xff]
        %v5537 = vld [vmem:[%s508 + $0x168] sm:$0xff]
        %v5538 = vld [vmem:[%s508 + $0x170] sm:$0xff]
        %v5539 = vld [vmem:[%s508 + $0x178] sm:$0xff]
        %v5540 = vld [vmem:[%s508 + $0x180] sm:$0xff]
        %v5541 = vld [vmem:[%s508 + $0x188] sm:$0xff]
        %v5542 = vld [vmem:[%s508 + $0x190] sm:$0xff]
        %v5543 = vld [vmem:[%s508 + $0x198] sm:$0xff]
        %v5544 = vld [vmem:[%s508 + $0x1a0] sm:$0xff]
        %v5545 = vld [vmem:[%s508 + $0x1a8] sm:$0xff]
        %v5546 = vld [vmem:[%s508 + $0x1b0] sm:$0xff]
        %v5547 = vld [vmem:[%s508 + $0x1b8] sm:$0xff]
        %v5548 = vld [vmem:[%s508 + $0x1c0] sm:$0xff]
        %v5549 = vld [vmem:[%s508 + $0x1c8] sm:$0xff]
        %v5550 = vld [vmem:[%s508 + $0x1d0] sm:$0xff]
        %v5551 = vld [vmem:[%s508 + $0x1d8] sm:$0xff]
        %v5552 = vld [vmem:[%s508 + $0x1e0] sm:$0xff]
        %v5553 = vld [vmem:[%s508 + $0x1e8] sm:$0xff]
        %v5554 = vld [vmem:[%s508 + $0x1f0] sm:$0xff]
        %v5555 = vld [vmem:[%s508 + $0x1f8] sm:$0xff]
        %v5556 = vld [vmem:[%s508 + $0x200] sm:$0xff]
        %v5557 = vld [vmem:[%s508 + $0x208] sm:$0xff]
        %v5558 = vld [vmem:[%s508 + $0x210] sm:$0xff]
        %v5559 = vld [vmem:[%s508 + $0x218] sm:$0xff]
        %v5560 = vld [vmem:[%s508 + $0x220] sm:$0xff]
        %v5561 = vld [vmem:[%s508 + $0x228] sm:$0xff]
        %v5562 = vld [vmem:[%s508 + $0x230] sm:$0xff]
        %v5563 = vld [vmem:[%s508 + $0x238] sm:$0xff]
        %v5564 = vld [vmem:[%s508 + $0x240] sm:$0xff]
        %v5565 = vld [vmem:[%s508 + $0x248] sm:$0xff]
        %v5566 = vld [vmem:[%s508 + $0x250] sm:$0xff]
        %v5567 = vld [vmem:[%s508 + $0x258] sm:$0xff]
        %v5568 = vld [vmem:[%s508 + $0x260] sm:$0xff]
        %v5569 = vld [vmem:[%s508 + $0x268] sm:$0xff]
        %v5570 = vld [vmem:[%s508 + $0x270] sm:$0xff]
        %v5571 = vld [vmem:[%s508 + $0x278] sm:$0xff]
        %v5572 = vld [vmem:[%s508 + $0x280] sm:$0xff]
        %v5573 = vld [vmem:[%s508 + $0x288] sm:$0xff]
        %v5574 = vld [vmem:[%s508 + $0x290] sm:$0xff]
        %v5575 = vld [vmem:[%s508 + $0x298] sm:$0xff]
        %v5576 = vld [vmem:[%s508 + $0x2a0] sm:$0xff]
        %v5577 = vld [vmem:[%s508 + $0x2a8] sm:$0xff]
        %v5578 = vld [vmem:[%s508 + $0x2b0] sm:$0xff]
        %v5579 = vld [vmem:[%s508 + $0x2b8] sm:$0xff]
        %v5580 = vld [vmem:[%s508 + $0x2c0] sm:$0xff]
        %v5581 = vld [vmem:[%s508 + $0x2c8] sm:$0xff]
        %v5582 = vld [vmem:[%s508 + $0x2d0] sm:$0xff]
        %v5583 = vld [vmem:[%s508 + $0x2d8] sm:$0xff]
        %v5584 = vld [vmem:[%s508 + $0x2e0] sm:$0xff]
        %v5585 = vld [vmem:[%s508 + $0x2e8] sm:$0xff]
        %v5586 = vld [vmem:[%s508 + $0x2f0] sm:$0xff]
        %v5587 = vld [vmem:[%s508 + $0x2f8] sm:$0xff]
        %v5588 = vld [vmem:[%s508 + $0x300] sm:$0xff]
        %v5589 = vld [vmem:[%s508 + $0x308] sm:$0xff]
        %v5590 = vld [vmem:[%s508 + $0x310] sm:$0xff]
        %v5591 = vld [vmem:[%s508 + $0x318] sm:$0xff]
        %v5592 = vld [vmem:[%s508 + $0x320] sm:$0xff]
        %v5593 = vld [vmem:[%s508 + $0x328] sm:$0xff]
        %v5594 = vld [vmem:[%s508 + $0x330] sm:$0xff]
        %v5595 = vld [vmem:[%s508 + $0x338] sm:$0xff]
        %v5596 = vld [vmem:[%s508 + $0x340] sm:$0xff]
        %v5597 = vld [vmem:[%s508 + $0x348] sm:$0xff]
        %v5598 = vld [vmem:[%s508 + $0x350] sm:$0xff]
        %v5599 = vld [vmem:[%s508 + $0x358] sm:$0xff]
        %v5600 = vld [vmem:[%s508 + $0x360] sm:$0xff]
        %v5601 = vld [vmem:[%s508 + $0x368] sm:$0xff]
        %v5602 = vld [vmem:[%s508 + $0x370] sm:$0xff]
        %v5603 = vld [vmem:[%s508 + $0x378] sm:$0xff]
        %v5604 = vld [vmem:[%s508 + $0x380] sm:$0xff]
        %v5605 = vld [vmem:[%s508 + $0x388] sm:$0xff]
        %v5606 = vld [vmem:[%s508 + $0x390] sm:$0xff]
        %v5607 = vld [vmem:[%s508 + $0x398] sm:$0xff]
        %v5608 = vld [vmem:[%s508 + $0x3a0] sm:$0xff]
        %v5609 = vld [vmem:[%s508 + $0x3a8] sm:$0xff]
        %v5610 = vld [vmem:[%s508 + $0x3b0] sm:$0xff]
        %v5611 = vld [vmem:[%s508 + $0x3b8] sm:$0xff]
        %v5612 = vld [vmem:[%s508 + $0x3c0] sm:$0xff]
        %v5613 = vld [vmem:[%s508 + $0x3c8] sm:$0xff]
        %v5614 = vld [vmem:[%s508 + $0x3d0] sm:$0xff]
        %v5615 = vld [vmem:[%s508 + $0x3d8] sm:$0xff]
        %v5616 = vld [vmem:[%s508 + $0x3e0] sm:$0xff]
        %v5617 = vld [vmem:[%s508 + $0x3e8] sm:$0xff]
        %v5618 = vld [vmem:[%s508 + $0x3f0] sm:$0xff]
        %v5619 = vld [vmem:[%s508 + $0x3f8] sm:$0xff]
        %v5620 = vld [vmem:[%s624] sm:$0xff]
        %v5622 = vlaneseq
        %v5623 = vshrl.u32 %v5622, 7
        %v5624 = vsub.s32 0, %v5623
        %v5625 = vrot.slane %v5620, %v5624
        %v5626 = vlaneseq
        %v5627 = vshrl.u32 %v5626, 7
        %v5628 = vsub.s32 1, %v5627
        %v5629 = vrot.slane %v5620, %v5628
        %v5630 = vlaneseq
        %v5631 = vshrl.u32 %v5630, 7
        %v5632 = vsub.s32 2, %v5631
        %v5633 = vrot.slane %v5620, %v5632
        %v5634 = vlaneseq
        %v5635 = vshrl.u32 %v5634, 7
        %v5636 = vsub.s32 3, %v5635
        %v5637 = vrot.slane %v5620, %v5636
        %v5638 = vlaneseq
        %v5639 = vshrl.u32 %v5638, 7
        %v5640 = vsub.s32 4, %v5639
        %v5641 = vrot.slane %v5620, %v5640
        %v5642 = vlaneseq
        %v5643 = vshrl.u32 %v5642, 7
        %v5644 = vsub.s32 5, %v5643
        %v5645 = vrot.slane %v5620, %v5644
        %v5646 = vlaneseq
        %v5647 = vshrl.u32 %v5646, 7
        %v5648 = vsub.s32 6, %v5647
        %v5649 = vrot.slane %v5620, %v5648
        %v5650 = vlaneseq
        %v5651 = vshrl.u32 %v5650, 7
        %v5652 = vsub.s32 7, %v5651
        %v5653 = vrot.slane %v5620, %v5652
        %v5790 = vunpack.c.l.b16 %v5492
        %v5791 = vunpack.c.h.b16 %v5492
        %v5792 = vunpack.c.l.b16 %v5493
        %v5793 = vunpack.c.h.b16 %v5493
        %v5794 = vunpack.c.l.b16 %v5494
        %v5795 = vunpack.c.h.b16 %v5494
        %v5796 = vunpack.c.l.b16 %v5495
        %v5797 = vunpack.c.h.b16 %v5495
        %v5798 = vunpack.c.l.b16 %v5496
        %v5799 = vunpack.c.h.b16 %v5496
        %v5800 = vunpack.c.l.b16 %v5497
        %v5801 = vunpack.c.h.b16 %v5497
        %v5802 = vunpack.c.l.b16 %v5498
        %v5803 = vunpack.c.h.b16 %v5498
        %v5804 = vunpack.c.l.b16 %v5499
        %v5805 = vunpack.c.h.b16 %v5499
        %v5806 = vunpack.c.l.b16 %v5500
        %v5807 = vunpack.c.h.b16 %v5500
        %v5808 = vunpack.c.l.b16 %v5501
        %v5809 = vunpack.c.h.b16 %v5501
        %v5810 = vunpack.c.l.b16 %v5502
        %v5811 = vunpack.c.h.b16 %v5502
        %v5812 = vunpack.c.l.b16 %v5503
        %v5813 = vunpack.c.h.b16 %v5503
        %v5814 = vunpack.c.l.b16 %v5504
        %v5815 = vunpack.c.h.b16 %v5504
        %v5816 = vunpack.c.l.b16 %v5505
        %v5817 = vunpack.c.h.b16 %v5505
        %v5818 = vunpack.c.l.b16 %v5506
        %v5819 = vunpack.c.h.b16 %v5506
        %v5820 = vunpack.c.l.b16 %v5507
        %v5821 = vunpack.c.h.b16 %v5507
        %v5822 = vunpack.c.l.b16 %v5508
        %v5823 = vunpack.c.h.b16 %v5508
        %v5824 = vunpack.c.l.b16 %v5509
        %v5825 = vunpack.c.h.b16 %v5509
        %v5826 = vunpack.c.l.b16 %v5510
        %v5827 = vunpack.c.h.b16 %v5510
        %v5828 = vunpack.c.l.b16 %v5511
        %v5829 = vunpack.c.h.b16 %v5511
        %v5830 = vunpack.c.l.b16 %v5512
        %v5831 = vunpack.c.h.b16 %v5512
        %v5832 = vunpack.c.l.b16 %v5513
        %v5833 = vunpack.c.h.b16 %v5513
        %v5834 = vunpack.c.l.b16 %v5514
        %v5835 = vunpack.c.h.b16 %v5514
        %v5836 = vunpack.c.l.b16 %v5515
        %v5837 = vunpack.c.h.b16 %v5515
        %v5838 = vunpack.c.l.b16 %v5516
        %v5839 = vunpack.c.h.b16 %v5516
        %v5840 = vunpack.c.l.b16 %v5517
        %v5841 = vunpack.c.h.b16 %v5517
        %v5842 = vunpack.c.l.b16 %v5518
        %v5843 = vunpack.c.h.b16 %v5518
        %v5844 = vunpack.c.l.b16 %v5519
        %v5845 = vunpack.c.h.b16 %v5519
        %v5846 = vunpack.c.l.b16 %v5520
        %v5847 = vunpack.c.h.b16 %v5520
        %v5848 = vunpack.c.l.b16 %v5521
        %v5849 = vunpack.c.h.b16 %v5521
        %v5850 = vunpack.c.l.b16 %v5522
        %v5851 = vunpack.c.h.b16 %v5522
        %v5852 = vunpack.c.l.b16 %v5523
        %v5853 = vunpack.c.h.b16 %v5523
        %v5854 = vunpack.c.l.b16 %v5524
        %v5855 = vunpack.c.h.b16 %v5524
        %v5856 = vunpack.c.l.b16 %v5525
        %v5857 = vunpack.c.h.b16 %v5525
        %v5858 = vunpack.c.l.b16 %v5526
        %v5859 = vunpack.c.h.b16 %v5526
        %v5860 = vunpack.c.l.b16 %v5527
        %v5861 = vunpack.c.h.b16 %v5527
        %v5862 = vunpack.c.l.b16 %v5528
        %v5863 = vunpack.c.h.b16 %v5528
        %v5864 = vunpack.c.l.b16 %v5529
        %v5865 = vunpack.c.h.b16 %v5529
        %v5866 = vunpack.c.l.b16 %v5530
        %v5867 = vunpack.c.h.b16 %v5530
        %v5868 = vunpack.c.l.b16 %v5531
        %v5869 = vunpack.c.h.b16 %v5531
        %v5870 = vunpack.c.l.b16 %v5532
        %v5871 = vunpack.c.h.b16 %v5532
        %v5872 = vunpack.c.l.b16 %v5533
        %v5873 = vunpack.c.h.b16 %v5533
        %v5874 = vunpack.c.l.b16 %v5534
        %v5875 = vunpack.c.h.b16 %v5534
        %v5876 = vunpack.c.l.b16 %v5535
        %v5877 = vunpack.c.h.b16 %v5535
        %v5878 = vunpack.c.l.b16 %v5536
        %v5879 = vunpack.c.h.b16 %v5536
        %v5880 = vunpack.c.l.b16 %v5537
        %v5881 = vunpack.c.h.b16 %v5537
        %v5882 = vunpack.c.l.b16 %v5538
        %v5883 = vunpack.c.h.b16 %v5538
        %v5884 = vunpack.c.l.b16 %v5539
        %v5885 = vunpack.c.h.b16 %v5539
        %v5886 = vunpack.c.l.b16 %v5540
        %v5887 = vunpack.c.h.b16 %v5540
        %v5888 = vunpack.c.l.b16 %v5541
        %v5889 = vunpack.c.h.b16 %v5541
        %v5890 = vunpack.c.l.b16 %v5542
        %v5891 = vunpack.c.h.b16 %v5542
        %v5892 = vunpack.c.l.b16 %v5543
        %v5893 = vunpack.c.h.b16 %v5543
        %v5894 = vunpack.c.l.b16 %v5544
        %v5895 = vunpack.c.h.b16 %v5544
        %v5896 = vunpack.c.l.b16 %v5545
        %v5897 = vunpack.c.h.b16 %v5545
        %v5898 = vunpack.c.l.b16 %v5546
        %v5899 = vunpack.c.h.b16 %v5546
        %v5900 = vunpack.c.l.b16 %v5547
        %v5901 = vunpack.c.h.b16 %v5547
        %v5902 = vunpack.c.l.b16 %v5548
        %v5903 = vunpack.c.h.b16 %v5548
        %v5904 = vunpack.c.l.b16 %v5549
        %v5905 = vunpack.c.h.b16 %v5549
        %v5906 = vunpack.c.l.b16 %v5550
        %v5907 = vunpack.c.h.b16 %v5550
        %v5908 = vunpack.c.l.b16 %v5551
        %v5909 = vunpack.c.h.b16 %v5551
        %v5910 = vunpack.c.l.b16 %v5552
        %v5911 = vunpack.c.h.b16 %v5552
        %v5912 = vunpack.c.l.b16 %v5553
        %v5913 = vunpack.c.h.b16 %v5553
        %v5914 = vunpack.c.l.b16 %v5554
        %v5915 = vunpack.c.h.b16 %v5554
        %v5916 = vunpack.c.l.b16 %v5555
        %v5917 = vunpack.c.h.b16 %v5555
        %v5918 = vunpack.c.l.b16 %v5556
        %v5919 = vunpack.c.h.b16 %v5556
        %v5920 = vunpack.c.l.b16 %v5557
        %v5921 = vunpack.c.h.b16 %v5557
        %v5922 = vunpack.c.l.b16 %v5558
        %v5923 = vunpack.c.h.b16 %v5558
        %v5924 = vunpack.c.l.b16 %v5559
        %v5925 = vunpack.c.h.b16 %v5559
        %v5926 = vunpack.c.l.b16 %v5560
        %v5927 = vunpack.c.h.b16 %v5560
        %v5928 = vunpack.c.l.b16 %v5561
        %v5929 = vunpack.c.h.b16 %v5561
        %v5930 = vunpack.c.l.b16 %v5562
        %v5931 = vunpack.c.h.b16 %v5562
        %v5932 = vunpack.c.l.b16 %v5563
        %v5933 = vunpack.c.h.b16 %v5563
        %v5934 = vunpack.c.l.b16 %v5564
        %v5935 = vunpack.c.h.b16 %v5564
        %v5936 = vunpack.c.l.b16 %v5565
        %v5937 = vunpack.c.h.b16 %v5565
        %v5938 = vunpack.c.l.b16 %v5566
        %v5939 = vunpack.c.h.b16 %v5566
        %v5940 = vunpack.c.l.b16 %v5567
        %v5941 = vunpack.c.h.b16 %v5567
        %v5942 = vunpack.c.l.b16 %v5568
        %v5943 = vunpack.c.h.b16 %v5568
        %v5944 = vunpack.c.l.b16 %v5569
        %v5945 = vunpack.c.h.b16 %v5569
        %v5946 = vunpack.c.l.b16 %v5570
        %v5947 = vunpack.c.h.b16 %v5570
        %v5948 = vunpack.c.l.b16 %v5571
        %v5949 = vunpack.c.h.b16 %v5571
        %v5950 = vunpack.c.l.b16 %v5572
        %v5951 = vunpack.c.h.b16 %v5572
        %v5952 = vunpack.c.l.b16 %v5573
        %v5953 = vunpack.c.h.b16 %v5573
        %v5954 = vunpack.c.l.b16 %v5574
        %v5955 = vunpack.c.h.b16 %v5574
        %v5956 = vunpack.c.l.b16 %v5575
        %v5957 = vunpack.c.h.b16 %v5575
        %v5958 = vunpack.c.l.b16 %v5576
        %v5959 = vunpack.c.h.b16 %v5576
        %v5960 = vunpack.c.l.b16 %v5577
        %v5961 = vunpack.c.h.b16 %v5577
        %v5962 = vunpack.c.l.b16 %v5578
        %v5963 = vunpack.c.h.b16 %v5578
        %v5964 = vunpack.c.l.b16 %v5579
        %v5965 = vunpack.c.h.b16 %v5579
        %v5966 = vunpack.c.l.b16 %v5580
        %v5967 = vunpack.c.h.b16 %v5580
        %v5968 = vunpack.c.l.b16 %v5581
        %v5969 = vunpack.c.h.b16 %v5581
        %v5970 = vunpack.c.l.b16 %v5582
        %v5971 = vunpack.c.h.b16 %v5582
        %v5972 = vunpack.c.l.b16 %v5583
        %v5973 = vunpack.c.h.b16 %v5583
        %v5974 = vunpack.c.l.b16 %v5584
        %v5975 = vunpack.c.h.b16 %v5584
        %v5976 = vunpack.c.l.b16 %v5585
        %v5977 = vunpack.c.h.b16 %v5585
        %v5978 = vunpack.c.l.b16 %v5586
        %v5979 = vunpack.c.h.b16 %v5586
        %v5980 = vunpack.c.l.b16 %v5587
        %v5981 = vunpack.c.h.b16 %v5587
        %v5982 = vunpack.c.l.b16 %v5588
        %v5983 = vunpack.c.h.b16 %v5588
        %v5984 = vunpack.c.l.b16 %v5589
        %v5985 = vunpack.c.h.b16 %v5589
        %v5986 = vunpack.c.l.b16 %v5590
        %v5987 = vunpack.c.h.b16 %v5590
        %v5988 = vunpack.c.l.b16 %v5591
        %v5989 = vunpack.c.h.b16 %v5591
        %v5990 = vunpack.c.l.b16 %v5592
        %v5991 = vunpack.c.h.b16 %v5592
        %v5992 = vunpack.c.l.b16 %v5593
        %v5993 = vunpack.c.h.b16 %v5593
        %v5994 = vunpack.c.l.b16 %v5594
        %v5995 = vunpack.c.h.b16 %v5594
        %v5996 = vunpack.c.l.b16 %v5595
        %v5997 = vunpack.c.h.b16 %v5595
        %v5998 = vunpack.c.l.b16 %v5596
        %v5999 = vunpack.c.h.b16 %v5596
        %v6000 = vunpack.c.l.b16 %v5597
        %v6001 = vunpack.c.h.b16 %v5597
        %v6002 = vunpack.c.l.b16 %v5598
        %v6003 = vunpack.c.h.b16 %v5598
        %v6004 = vunpack.c.l.b16 %v5599
        %v6005 = vunpack.c.h.b16 %v5599
        %v6006 = vunpack.c.l.b16 %v5600
        %v6007 = vunpack.c.h.b16 %v5600
        %v6008 = vunpack.c.l.b16 %v5601
        %v6009 = vunpack.c.h.b16 %v5601
        %v6010 = vunpack.c.l.b16 %v5602
        %v6011 = vunpack.c.h.b16 %v5602
        %v6012 = vunpack.c.l.b16 %v5603
        %v6013 = vunpack.c.h.b16 %v5603
        %v6014 = vunpack.c.l.b16 %v5604
        %v6015 = vunpack.c.h.b16 %v5604
        %v6016 = vunpack.c.l.b16 %v5605
        %v6017 = vunpack.c.h.b16 %v5605
        %v6018 = vunpack.c.l.b16 %v5606
        %v6019 = vunpack.c.h.b16 %v5606
        %v6020 = vunpack.c.l.b16 %v5607
        %v6021 = vunpack.c.h.b16 %v5607
        %v6022 = vunpack.c.l.b16 %v5608
        %v6023 = vunpack.c.h.b16 %v5608
        %v6024 = vunpack.c.l.b16 %v5609
        %v6025 = vunpack.c.h.b16 %v5609
        %v6026 = vunpack.c.l.b16 %v5610
        %v6027 = vunpack.c.h.b16 %v5610
        %v6028 = vunpack.c.l.b16 %v5611
        %v6029 = vunpack.c.h.b16 %v5611
        %v6030 = vunpack.c.l.b16 %v5612
        %v6031 = vunpack.c.h.b16 %v5612
        %v6032 = vunpack.c.l.b16 %v5613
        %v6033 = vunpack.c.h.b16 %v5613
        %v6034 = vunpack.c.l.b16 %v5614
        %v6035 = vunpack.c.h.b16 %v5614
        %v6036 = vunpack.c.l.b16 %v5615
        %v6037 = vunpack.c.h.b16 %v5615
        %v6038 = vunpack.c.l.b16 %v5616
        %v6039 = vunpack.c.h.b16 %v5616
        %v6040 = vunpack.c.l.b16 %v5617
        %v6041 = vunpack.c.h.b16 %v5617
        %v6042 = vunpack.c.l.b16 %v5618
        %v6043 = vunpack.c.h.b16 %v5618
        %v6044 = vunpack.c.l.b16 %v5619
        %v6045 = vunpack.c.h.b16 %v5619
        %v6046 = vpack.c.b16 %v5798, %v5790
        %v6047 = vpack.c.b16 %v5799, %v5791
        %v6048 = vpack.c.b16 %v5800, %v5792
        %v6049 = vpack.c.b16 %v5801, %v5793
        %v6050 = vpack.c.b16 %v5802, %v5794
        %v6051 = vpack.c.b16 %v5803, %v5795
        %v6052 = vpack.c.b16 %v5804, %v5796
        %v6053 = vpack.c.b16 %v5805, %v5797
        %v6054 = vpack.c.b16 %v5814, %v5806
        %v6055 = vpack.c.b16 %v5815, %v5807
        %v6056 = vpack.c.b16 %v5816, %v5808
        %v6057 = vpack.c.b16 %v5817, %v5809
        %v6058 = vpack.c.b16 %v5818, %v5810
        %v6059 = vpack.c.b16 %v5819, %v5811
        %v6060 = vpack.c.b16 %v5820, %v5812
        %v6061 = vpack.c.b16 %v5821, %v5813
        %v6062 = vpack.c.b16 %v5830, %v5822
        %v6063 = vpack.c.b16 %v5831, %v5823
        %v6064 = vpack.c.b16 %v5832, %v5824
        %v6065 = vpack.c.b16 %v5833, %v5825
        %v6066 = vpack.c.b16 %v5834, %v5826
        %v6067 = vpack.c.b16 %v5835, %v5827
        %v6068 = vpack.c.b16 %v5836, %v5828
        %v6069 = vpack.c.b16 %v5837, %v5829
        %v6070 = vpack.c.b16 %v5846, %v5838
        %v6071 = vpack.c.b16 %v5847, %v5839
        %v6072 = vpack.c.b16 %v5848, %v5840
        %v6073 = vpack.c.b16 %v5849, %v5841
        %v6074 = vpack.c.b16 %v5850, %v5842
        %v6075 = vpack.c.b16 %v5851, %v5843
        %v6076 = vpack.c.b16 %v5852, %v5844
        %v6077 = vpack.c.b16 %v5853, %v5845
        %v6078 = vpack.c.b16 %v5862, %v5854
        %v6079 = vpack.c.b16 %v5863, %v5855
        %v6080 = vpack.c.b16 %v5864, %v5856
        %v6081 = vpack.c.b16 %v5865, %v5857
        %v6082 = vpack.c.b16 %v5866, %v5858
        %v6083 = vpack.c.b16 %v5867, %v5859
        %v6084 = vpack.c.b16 %v5868, %v5860
        %v6085 = vpack.c.b16 %v5869, %v5861
        %v6086 = vpack.c.b16 %v5878, %v5870
        %v6087 = vpack.c.b16 %v5879, %v5871
        %v6088 = vpack.c.b16 %v5880, %v5872
        %v6089 = vpack.c.b16 %v5881, %v5873
        %v6090 = vpack.c.b16 %v5882, %v5874
        %v6091 = vpack.c.b16 %v5883, %v5875
        %v6092 = vpack.c.b16 %v5884, %v5876
        %v6093 = vpack.c.b16 %v5885, %v5877
        %v6094 = vpack.c.b16 %v5894, %v5886
        %v6095 = vpack.c.b16 %v5895, %v5887
        %v6096 = vpack.c.b16 %v5896, %v5888
        %v6097 = vpack.c.b16 %v5897, %v5889
        %v6098 = vpack.c.b16 %v5898, %v5890
        %v6099 = vpack.c.b16 %v5899, %v5891
        %v6100 = vpack.c.b16 %v5900, %v5892
        %v6101 = vpack.c.b16 %v5901, %v5893
        %v6102 = vpack.c.b16 %v5910, %v5902
        %v6103 = vpack.c.b16 %v5911, %v5903
        %v6104 = vpack.c.b16 %v5912, %v5904
        %v6105 = vpack.c.b16 %v5913, %v5905
        %v6106 = vpack.c.b16 %v5914, %v5906
        %v6107 = vpack.c.b16 %v5915, %v5907
        %v6108 = vpack.c.b16 %v5916, %v5908
        %v6109 = vpack.c.b16 %v5917, %v5909
        %v6110 = vpack.c.b16 %v5926, %v5918
        %v6111 = vpack.c.b16 %v5927, %v5919
        %v6112 = vpack.c.b16 %v5928, %v5920
        %v6113 = vpack.c.b16 %v5929, %v5921
        %v6114 = vpack.c.b16 %v5930, %v5922
        %v6115 = vpack.c.b16 %v5931, %v5923
        %v6116 = vpack.c.b16 %v5932, %v5924
        %v6117 = vpack.c.b16 %v5933, %v5925
        %v6118 = vpack.c.b16 %v5942, %v5934
        %v6119 = vpack.c.b16 %v5943, %v5935
        %v6120 = vpack.c.b16 %v5944, %v5936
        %v6121 = vpack.c.b16 %v5945, %v5937
        %v6122 = vpack.c.b16 %v5946, %v5938
        %v6123 = vpack.c.b16 %v5947, %v5939
        %v6124 = vpack.c.b16 %v5948, %v5940
        %v6125 = vpack.c.b16 %v5949, %v5941
        %v6126 = vpack.c.b16 %v5958, %v5950
        %v6127 = vpack.c.b16 %v5959, %v5951
        %v6128 = vpack.c.b16 %v5960, %v5952
        %v6129 = vpack.c.b16 %v5961, %v5953
        %v6130 = vpack.c.b16 %v5962, %v5954
        %v6131 = vpack.c.b16 %v5963, %v5955
        %v6132 = vpack.c.b16 %v5964, %v5956
        %v6133 = vpack.c.b16 %v5965, %v5957
        %v6134 = vpack.c.b16 %v5974, %v5966
        %v6135 = vpack.c.b16 %v5975, %v5967
        %v6136 = vpack.c.b16 %v5976, %v5968
        %v6137 = vpack.c.b16 %v5977, %v5969
        %v6138 = vpack.c.b16 %v5978, %v5970
        %v6139 = vpack.c.b16 %v5979, %v5971
        %v6140 = vpack.c.b16 %v5980, %v5972
        %v6141 = vpack.c.b16 %v5981, %v5973
        %v6142 = vpack.c.b16 %v5990, %v5982
        %v6143 = vpack.c.b16 %v5991, %v5983
        %v6144 = vpack.c.b16 %v5992, %v5984
        %v6145 = vpack.c.b16 %v5993, %v5985
        %v6146 = vpack.c.b16 %v5994, %v5986
        %v6147 = vpack.c.b16 %v5995, %v5987
        %v6148 = vpack.c.b16 %v5996, %v5988
        %v6149 = vpack.c.b16 %v5997, %v5989
        %v6150 = vpack.c.b16 %v6006, %v5998
        %v6151 = vpack.c.b16 %v6007, %v5999
        %v6152 = vpack.c.b16 %v6008, %v6000
        %v6153 = vpack.c.b16 %v6009, %v6001
        %v6154 = vpack.c.b16 %v6010, %v6002
        %v6155 = vpack.c.b16 %v6011, %v6003
        %v6156 = vpack.c.b16 %v6012, %v6004
        %v6157 = vpack.c.b16 %v6013, %v6005
        %v6158 = vpack.c.b16 %v6022, %v6014
        %v6159 = vpack.c.b16 %v6023, %v6015
        %v6160 = vpack.c.b16 %v6024, %v6016
        %v6161 = vpack.c.b16 %v6025, %v6017
        %v6162 = vpack.c.b16 %v6026, %v6018
        %v6163 = vpack.c.b16 %v6027, %v6019
        %v6164 = vpack.c.b16 %v6028, %v6020
        %v6165 = vpack.c.b16 %v6029, %v6021
        %v6166 = vpack.c.b16 %v6038, %v6030
        %v6167 = vpack.c.b16 %v6039, %v6031
        %v6168 = vpack.c.b16 %v6040, %v6032
        %v6169 = vpack.c.b16 %v6041, %v6033
        %v6170 = vpack.c.b16 %v6042, %v6034
        %v6171 = vpack.c.b16 %v6043, %v6035
        %v6172 = vpack.c.b16 %v6044, %v6036
        %v6173 = vpack.c.b16 %v6045, %v6037
        %6302 = vmatprep.subr.bf16.mxu0 %v6047
        %6303 = vmatpush1.bf16.msra.mxu0 %v6046
        %6304 = vmatprep.subr.bf16.mxu0 %v6055
        %6305 = vmatpush1.bf16.msra.mxu0 %v6054
        %6306 = vmatprep.subr.bf16.mxu0 %v6063
        %6307 = vmatpush1.bf16.msra.mxu0 %v6062
        %6308 = vmatprep.subr.bf16.mxu0 %v6071
        %6309 = vmatpush1.bf16.msra.mxu0 %v6070
        %6310 = vmatprep.subr.bf16.mxu0 %v6079
        %6311 = vmatpush1.bf16.msra.mxu0 %v6078
        %6312 = vmatprep.subr.bf16.mxu0 %v6087
        %6313 = vmatpush1.bf16.msra.mxu0 %v6086
        %6314 = vmatprep.subr.bf16.mxu0 %v6095
        %6315 = vmatpush1.bf16.msra.mxu0 %v6094
        %6316 = vmatprep.subr.bf16.mxu0 %v6103
        %6317 = vmatpush1.bf16.msra.mxu0 %v6102
        %6318 = vmatprep.subr.bf16.mxu0 %v6111
        %6319 = vmatpush1.bf16.msra.mxu0 %v6110
        %6320 = vmatprep.subr.bf16.mxu0 %v6119
        %6321 = vmatpush1.bf16.msra.mxu0 %v6118
        %6322 = vmatprep.subr.bf16.mxu0 %v6127
        %6323 = vmatpush1.bf16.msra.mxu0 %v6126
        %6324 = vmatprep.subr.bf16.mxu0 %v6135
        %6325 = vmatpush1.bf16.msra.mxu0 %v6134
        %6326 = vmatprep.subr.bf16.mxu0 %v6143
        %6327 = vmatpush1.bf16.msra.mxu0 %v6142
        %6328 = vmatprep.subr.bf16.mxu0 %v6151
        %6329 = vmatpush1.bf16.msra.mxu0 %v6150
        %6330 = vmatprep.subr.bf16.mxu0 %v6159
        %6331 = vmatpush1.bf16.msra.mxu0 %v6158
        %6332 = vmatprep.subr.bf16.mxu0 %v6167
        %6333 = vmatpush1.bf16.msra.mxu0 %v6166
        %6334 = vmatprep.mubr.bf16.mxu0 %v5461
        %6335 = vmatmul.mubr.bf16.gmra.mrb[0].mxu0 %v5460
        %v6336 = vpop.f32.mrb[0].mxu0
        %v6337 = vadd.f32 %v5625, %v6336
        %v6338 = vpop.f32.mrb[0].mxu0
        %v6339 = vadd.f32 %v5629, %v6338
        %v6340 = vpop.f32.mrb[0].mxu0
        %v6341 = vadd.f32 %v5625, %v6340
        %v6342 = vpop.f32.mrb[0].mxu0
        %v6343 = vadd.f32 %v5629, %v6342
        %6344 = vmatprep.mubr.bf16.mxu0 %v5463
        %6345 = vmatmul.mubr.bf16.gmra.mrb[0].mxu0 %v5462
        %v6346 = vpop.f32.mrb[0].mxu0
        %v6347 = vadd.f32 %v5625, %v6346
        %v6348 = vpop.f32.mrb[0].mxu0
        %v6349 = vadd.f32 %v5629, %v6348
        %v6350 = vpop.f32.mrb[0].mxu0
        %v6351 = vadd.f32 %v5625, %v6350
        %v6352 = vpop.f32.mrb[0].mxu0
        %v6353 = vadd.f32 %v5629, %v6352
        %6354 = vmatprep.mubr.bf16.mxu0 %v5465
        %6355 = vmatmul.mubr.bf16.gmra.mrb[0].mxu0 %v5464
        %v6356 = vpop.f32.mrb[0].mxu0
        %v6357 = vadd.f32 %v5625, %v6356
        %v6358 = vpop.f32.mrb[0].mxu0
        %v6359 = vadd.f32 %v5629, %v6358
        %v6360 = vpop.f32.mrb[0].mxu0
        %v6361 = vadd.f32 %v5625, %v6360
        %v6362 = vpop.f32.mrb[0].mxu0
        %v6363 = vadd.f32 %v5629, %v6362
        %6364 = vmatprep.mubr.bf16.mxu0 %v5467
        %6365 = vmatmul.mubr.bf16.gmra.mrb[0].mxu0 %v5466
        %v6366 = vpop.f32.mrb[0].mxu0
        %v6367 = vadd.f32 %v5625, %v6366
        %v6368 = vpop.f32.mrb[0].mxu0
        %v6369 = vadd.f32 %v5629, %v6368
        %v6370 = vpop.f32.mrb[0].mxu0
        %v6371 = vadd.f32 %v5625, %v6370
        %v6372 = vpop.f32.mrb[0].mxu0
        %v6373 = vadd.f32 %v5629, %v6372
        %6374 = vmatprep.mubr.bf16.mxu0 %v5469
        %6375 = vmatmul.mubr.bf16.gmra.mrb[0].mxu0 %v5468
        %v6376 = vpop.f32.mrb[0].mxu0
        %v6377 = vadd.f32 %v5625, %v6376
        %v6378 = vpop.f32.mrb[0].mxu0
        %v6379 = vadd.f32 %v5629, %v6378
        %v6380 = vpop.f32.mrb[0].mxu0
        %v6381 = vadd.f32 %v5625, %v6380
        %v6382 = vpop.f32.mrb[0].mxu0
        %v6383 = vadd.f32 %v5629, %v6382
        %6384 = vmatprep.mubr.bf16.mxu0 %v5471
        %6385 = vmatmul.mubr.bf16.gmra.mrb[0].mxu0 %v5470
        %v6386 = vpop.f32.mrb[0].mxu0
        %v6387 = vadd.f32 %v5625, %v6386
        %v6388 = vpop.f32.mrb[0].mxu0
        %v6389 = vadd.f32 %v5629, %v6388
        %v6390 = vpop.f32.mrb[0].mxu0
        %v6391 = vadd.f32 %v5625, %v6390
        %v6392 = vpop.f32.mrb[0].mxu0
        %v6393 = vadd.f32 %v5629, %v6392
        %6394 = vmatprep.mubr.bf16.mxu0 %v5473
        %6395 = vmatmul.mubr.bf16.gmra.mrb[0].mxu0 %v5472
        %v6396 = vpop.f32.mrb[0].mxu0
        %v6397 = vadd.f32 %v5625, %v6396
        %v6398 = vpop.f32.mrb[0].mxu0
        %v6399 = vadd.f32 %v5629, %v6398
        %v6400 = vpop.f32.mrb[0].mxu0
        %v6401 = vadd.f32 %v5625, %v6400
        %v6402 = vpop.f32.mrb[0].mxu0
        %v6403 = vadd.f32 %v5629, %v6402
        %6404 = vmatprep.mubr.bf16.mxu0 %v5475
        %6405 = vmatmul.mubr.bf16.gmra.mrb[0].mxu0 %v5474
        %v6406 = vpop.f32.mrb[0].mxu0
        %v6407 = vadd.f32 %v5625, %v6406
        %v6408 = vpop.f32.mrb[0].mxu0
        %v6409 = vadd.f32 %v5629, %v6408
        %v6410 = vpop.f32.mrb[0].mxu0
        %v6411 = vadd.f32 %v5625, %v6410
        %v6412 = vpop.f32.mrb[0].mxu0
        %v6413 = vadd.f32 %v5629, %v6412
        %6414 = vmatprep.mubr.bf16.mxu0 %v5477
        %6415 = vmatmul.mubr.bf16.gmra.mrb[0].mxu0 %v5476
        %v6416 = vpop.f32.mrb[0].mxu0
        %v6417 = vadd.f32 %v5625, %v6416
        %v6418 = vpop.f32.mrb[0].mxu0
        %v6419 = vadd.f32 %v5629, %v6418
        %v6420 = vpop.f32.mrb[0].mxu0
        %v6421 = vadd.f32 %v5625, %v6420
        %v6422 = vpop.f32.mrb[0].mxu0
        %v6423 = vadd.f32 %v5629, %v6422
        %6424 = vmatprep.mubr.bf16.mxu0 %v5479
        %6425 = vmatmul.mubr.bf16.gmra.mrb[0].mxu0 %v5478
        %v6426 = vpop.f32.mrb[0].mxu0
        %v6427 = vadd.f32 %v5625, %v6426
        %v6428 = vpop.f32.mrb[0].mxu0
        %v6429 = vadd.f32 %v5629, %v6428
        %v6430 = vpop.f32.mrb[0].mxu0
        %v6431 = vadd.f32 %v5625, %v6430
        %v6432 = vpop.f32.mrb[0].mxu0
        %v6433 = vadd.f32 %v5629, %v6432
        %6434 = vmatprep.mubr.bf16.mxu0 %v5481
        %6435 = vmatmul.mubr.bf16.gmra.mrb[0].mxu0 %v5480
        %v6436 = vpop.f32.mrb[0].mxu0
        %v6437 = vadd.f32 %v5625, %v6436
        %v6438 = vpop.f32.mrb[0].mxu0
        %v6439 = vadd.f32 %v5629, %v6438
        %v6440 = vpop.f32.mrb[0].mxu0
        %v6441 = vadd.f32 %v5625, %v6440
        %v6442 = vpop.f32.mrb[0].mxu0
        %v6443 = vadd.f32 %v5629, %v6442
        %6444 = vmatprep.mubr.bf16.mxu0 %v5483
        %6445 = vmatmul.mubr.bf16.gmra.mrb[0].mxu0 %v5482
        %v6446 = vpop.f32.mrb[0].mxu0
        %v6447 = vadd.f32 %v5625, %v6446
        %v6448 = vpop.f32.mrb[0].mxu0
        %v6449 = vadd.f32 %v5629, %v6448
        %v6450 = vpop.f32.mrb[0].mxu0
        %v6451 = vadd.f32 %v5625, %v6450
        %v6452 = vpop.f32.mrb[0].mxu0
        %v6453 = vadd.f32 %v5629, %v6452
        %6454 = vmatprep.mubr.bf16.mxu0 %v5485
        %6455 = vmatmul.mubr.bf16.gmra.mrb[0].mxu0 %v5484
        %v6456 = vpop.f32.mrb[0].mxu0
        %v6457 = vadd.f32 %v5625, %v6456
        %v6458 = vpop.f32.mrb[0].mxu0
        %v6459 = vadd.f32 %v5629, %v6458
        %v6460 = vpop.f32.mrb[0].mxu0
        %v6461 = vadd.f32 %v5625, %v6460
        %v6462 = vpop.f32.mrb[0].mxu0
        %v6463 = vadd.f32 %v5629, %v6462
        %6464 = vmatprep.mubr.bf16.mxu0 %v5487
        %6465 = vmatmul.mubr.bf16.gmra.mrb[0].mxu0 %v5486
        %v6466 = vpop.f32.mrb[0].mxu0
        %v6467 = vadd.f32 %v5625, %v6466
        %v6468 = vpop.f32.mrb[0].mxu0
        %v6469 = vadd.f32 %v5629, %v6468
        %v6470 = vpop.f32.mrb[0].mxu0
        %v6471 = vadd.f32 %v5625, %v6470
        %v6472 = vpop.f32.mrb[0].mxu0
        %v6473 = vadd.f32 %v5629, %v6472
        %6474 = vmatprep.mubr.bf16.mxu0 %v5489
        %6475 = vmatmul.mubr.bf16.gmra.mrb[0].mxu0 %v5488
        %v6476 = vpop.f32.mrb[0].mxu0
        %v6477 = vadd.f32 %v5625, %v6476
        %v6478 = vpop.f32.mrb[0].mxu0
        %v6479 = vadd.f32 %v5629, %v6478
        %v6480 = vpop.f32.mrb[0].mxu0
        %v6481 = vadd.f32 %v5625, %v6480
        %v6482 = vpop.f32.mrb[0].mxu0
        %v6483 = vadd.f32 %v5629, %v6482
        %6484 = vmatprep.mubr.bf16.mxu0 %v5491
        %6485 = vmatmul.mubr.bf16.gmra.mrb[0].mxu0 %v5490
        %v6486 = vpop.f32.mrb[0].mxu0
        %v6487 = vadd.f32 %v5625, %v6486
        %v6488 = vpop.f32.mrb[0].mxu0
        %v6489 = vadd.f32 %v5629, %v6488
        %v6490 = vpop.f32.mrb[0].mxu0
        %v6491 = vadd.f32 %v5625, %v6490
        %v6492 = vpop.f32.mrb[0].mxu0
        %v6493 = vadd.f32 %v5629, %v6492
        %6494 = vdwg.mxu0
        %6495 = vmatprep.subr.bf16.mxu0 %v6049
        %6496 = vmatpush1.bf16.msra.mxu0 %v6048
        %6497 = vmatprep.subr.bf16.mxu0 %v6057
        %6498 = vmatpush1.bf16.msra.mxu0 %v6056
        %6499 = vmatprep.subr.bf16.mxu0 %v6065
        %6500 = vmatpush1.bf16.msra.mxu0 %v6064
        %6501 = vmatprep.subr.bf16.mxu0 %v6073
        %6502 = vmatpush1.bf16.msra.mxu0 %v6072
        %6503 = vmatprep.subr.bf16.mxu0 %v6081
        %6504 = vmatpush1.bf16.msra.mxu0 %v6080
        %6505 = vmatprep.subr.bf16.mxu0 %v6089
        %6506 = vmatpush1.bf16.msra.mxu0 %v6088
        %6507 = vmatprep.subr.bf16.mxu0 %v6097
        %6508 = vmatpush1.bf16.msra.mxu0 %v6096
        %6509 = vmatprep.subr.bf16.mxu0 %v6105
        %6510 = vmatpush1.bf16.msra.mxu0 %v6104
        %6511 = vmatprep.subr.bf16.mxu0 %v6113
        %6512 = vmatpush1.bf16.msra.mxu0 %v6112
        %6513 = vmatprep.subr.bf16.mxu0 %v6121
        %6514 = vmatpush1.bf16.msra.mxu0 %v6120
        %6515 = vmatprep.subr.bf16.mxu0 %v6129
        %6516 = vmatpush1.bf16.msra.mxu0 %v6128
        %6517 = vmatprep.subr.bf16.mxu0 %v6137
        %6518 = vmatpush1.bf16.msra.mxu0 %v6136
        %6519 = vmatprep.subr.bf16.mxu0 %v6145
        %6520 = vmatpush1.bf16.msra.mxu0 %v6144
        %6521 = vmatprep.subr.bf16.mxu0 %v6153
        %6522 = vmatpush1.bf16.msra.mxu0 %v6152
        %6523 = vmatprep.subr.bf16.mxu0 %v6161
        %6524 = vmatpush1.bf16.msra.mxu0 %v6160
        %6525 = vmatprep.subr.bf16.mxu0 %v6169
        %6526 = vmatpush1.bf16.msra.mxu0 %v6168
        %6527 = vmatprep.mubr.bf16.mxu0 %v5461
        %6528 = vmatmul.mubr.bf16.gmra.mrb[0].mxu0 %v5460
        %v6529 = vpop.f32.mrb[0].mxu0
        %v6530 = vadd.f32 %v5633, %v6529
        %v6531 = vpop.f32.mrb[0].mxu0
        %v6532 = vadd.f32 %v5637, %v6531
        %v6533 = vpop.f32.mrb[0].mxu0
        %v6534 = vadd.f32 %v5633, %v6533
        %v6535 = vpop.f32.mrb[0].mxu0
        %v6536 = vadd.f32 %v5637, %v6535
        %6537 = vmatprep.mubr.bf16.mxu0 %v5463
        %6538 = vmatmul.mubr.bf16.gmra.mrb[0].mxu0 %v5462
        %v6539 = vpop.f32.mrb[0].mxu0
        %v6540 = vadd.f32 %v5633, %v6539
        %v6541 = vpop.f32.mrb[0].mxu0
        %v6542 = vadd.f32 %v5637, %v6541
        %v6543 = vpop.f32.mrb[0].mxu0
        %v6544 = vadd.f32 %v5633, %v6543
        %v6545 = vpop.f32.mrb[0].mxu0
        %v6546 = vadd.f32 %v5637, %v6545
        %6547 = vmatprep.mubr.bf16.mxu0 %v5465
        %6548 = vmatmul.mubr.bf16.gmra.mrb[0].mxu0 %v5464
        %v6549 = vpop.f32.mrb[0].mxu0
        %v6550 = vadd.f32 %v5633, %v6549
        %v6551 = vpop.f32.mrb[0].mxu0
        %v6552 = vadd.f32 %v5637, %v6551
        %v6553 = vpop.f32.mrb[0].mxu0
        %v6554 = vadd.f32 %v5633, %v6553
        %v6555 = vpop.f32.mrb[0].mxu0
        %v6556 = vadd.f32 %v5637, %v6555
        %6557 = vmatprep.mubr.bf16.mxu0 %v5467
        %6558 = vmatmul.mubr.bf16.gmra.mrb[0].mxu0 %v5466
        %v6559 = vpop.f32.mrb[0].mxu0
        %v6560 = vadd.f32 %v5633, %v6559
        %v6561 = vpop.f32.mrb[0].mxu0
        %v6562 = vadd.f32 %v5637, %v6561
        %v6563 = vpop.f32.mrb[0].mxu0
        %v6564 = vadd.f32 %v5633, %v6563
        %v6565 = vpop.f32.mrb[0].mxu0
        %v6566 = vadd.f32 %v5637, %v6565
        %6567 = vmatprep.mubr.bf16.mxu0 %v5469
        %6568 = vmatmul.mubr.bf16.gmra.mrb[0].mxu0 %v5468
        %v6569 = vpop.f32.mrb[0].mxu0
        %v6570 = vadd.f32 %v5633, %v6569
        %v6571 = vpop.f32.mrb[0].mxu0
        %v6572 = vadd.f32 %v5637, %v6571
        %v6573 = vpop.f32.mrb[0].mxu0
        %v6574 = vadd.f32 %v5633, %v6573
        %v6575 = vpop.f32.mrb[0].mxu0
        %v6576 = vadd.f32 %v5637, %v6575
        %6577 = vmatprep.mubr.bf16.mxu0 %v5471
        %6578 = vmatmul.mubr.bf16.gmra.mrb[0].mxu0 %v5470
        %v6579 = vpop.f32.mrb[0].mxu0
        %v6580 = vadd.f32 %v5633, %v6579
        %v6581 = vpop.f32.mrb[0].mxu0
        %v6582 = vadd.f32 %v5637, %v6581
        %v6583 = vpop.f32.mrb[0].mxu0
        %v6584 = vadd.f32 %v5633, %v6583
        %v6585 = vpop.f32.mrb[0].mxu0
        %v6586 = vadd.f32 %v5637, %v6585
        %6587 = vmatprep.mubr.bf16.mxu0 %v5473
        %6588 = vmatmul.mubr.bf16.gmra.mrb[0].mxu0 %v5472
        %v6589 = vpop.f32.mrb[0].mxu0
        %v6590 = vadd.f32 %v5633, %v6589
        %v6591 = vpop.f32.mrb[0].mxu0
        %v6592 = vadd.f32 %v5637, %v6591
        %v6593 = vpop.f32.mrb[0].mxu0
        %v6594 = vadd.f32 %v5633, %v6593
        %v6595 = vpop.f32.mrb[0].mxu0
        %v6596 = vadd.f32 %v5637, %v6595
        %6597 = vmatprep.mubr.bf16.mxu0 %v5475
        %6598 = vmatmul.mubr.bf16.gmra.mrb[0].mxu0 %v5474
        %v6599 = vpop.f32.mrb[0].mxu0
        %v6600 = vadd.f32 %v5633, %v6599
        %v6601 = vpop.f32.mrb[0].mxu0
        %v6602 = vadd.f32 %v5637, %v6601
        %v6603 = vpop.f32.mrb[0].mxu0
        %v6604 = vadd.f32 %v5633, %v6603
        %v6605 = vpop.f32.mrb[0].mxu0
        %v6606 = vadd.f32 %v5637, %v6605
        %6607 = vmatprep.mubr.bf16.mxu0 %v5477
        %6608 = vmatmul.mubr.bf16.gmra.mrb[0].mxu0 %v5476
        %v6609 = vpop.f32.mrb[0].mxu0
        %v6610 = vadd.f32 %v5633, %v6609
        %v6611 = vpop.f32.mrb[0].mxu0
        %v6612 = vadd.f32 %v5637, %v6611
        %v6613 = vpop.f32.mrb[0].mxu0
        %v6614 = vadd.f32 %v5633, %v6613
        %v6615 = vpop.f32.mrb[0].mxu0
        %v6616 = vadd.f32 %v5637, %v6615
        %6617 = vmatprep.mubr.bf16.mxu0 %v5479
        %6618 = vmatmul.mubr.bf16.gmra.mrb[0].mxu0 %v5478
        %v6619 = vpop.f32.mrb[0].mxu0
        %v6620 = vadd.f32 %v5633, %v6619
        %v6621 = vpop.f32.mrb[0].mxu0
        %v6622 = vadd.f32 %v5637, %v6621
        %v6623 = vpop.f32.mrb[0].mxu0
        %v6624 = vadd.f32 %v5633, %v6623
        %v6625 = vpop.f32.mrb[0].mxu0
        %v6626 = vadd.f32 %v5637, %v6625
        %6627 = vmatprep.mubr.bf16.mxu0 %v5481
        %6628 = vmatmul.mubr.bf16.gmra.mrb[0].mxu0 %v5480
        %v6629 = vpop.f32.mrb[0].mxu0
        %v6630 = vadd.f32 %v5633, %v6629
        %v6631 = vpop.f32.mrb[0].mxu0
        %v6632 = vadd.f32 %v5637, %v6631
        %v6633 = vpop.f32.mrb[0].mxu0
        %v6634 = vadd.f32 %v5633, %v6633
        %v6635 = vpop.f32.mrb[0].mxu0
        %v6636 = vadd.f32 %v5637, %v6635
        %6637 = vmatprep.mubr.bf16.mxu0 %v5483
        %6638 = vmatmul.mubr.bf16.gmra.mrb[0].mxu0 %v5482
        %v6639 = vpop.f32.mrb[0].mxu0
        %v6640 = vadd.f32 %v5633, %v6639
        %v6641 = vpop.f32.mrb[0].mxu0
        %v6642 = vadd.f32 %v5637, %v6641
        %v6643 = vpop.f32.mrb[0].mxu0
        %v6644 = vadd.f32 %v5633, %v6643
        %v6645 = vpop.f32.mrb[0].mxu0
        %v6646 = vadd.f32 %v5637, %v6645
        %6647 = vmatprep.mubr.bf16.mxu0 %v5485
        %6648 = vmatmul.mubr.bf16.gmra.mrb[0].mxu0 %v5484
        %v6649 = vpop.f32.mrb[0].mxu0
        %v6650 = vadd.f32 %v5633, %v6649
        %v6651 = vpop.f32.mrb[0].mxu0
        %v6652 = vadd.f32 %v5637, %v6651
        %v6653 = vpop.f32.mrb[0].mxu0
        %v6654 = vadd.f32 %v5633, %v6653
        %v6655 = vpop.f32.mrb[0].mxu0
        %v6656 = vadd.f32 %v5637, %v6655
        %6657 = vmatprep.mubr.bf16.mxu0 %v5487
        %6658 = vmatmul.mubr.bf16.gmra.mrb[0].mxu0 %v5486
        %v6659 = vpop.f32.mrb[0].mxu0
        %v6660 = vadd.f32 %v5633, %v6659
        %v6661 = vpop.f32.mrb[0].mxu0
        %v6662 = vadd.f32 %v5637, %v6661
        %v6663 = vpop.f32.mrb[0].mxu0
        %v6664 = vadd.f32 %v5633, %v6663
        %v6665 = vpop.f32.mrb[0].mxu0
        %v6666 = vadd.f32 %v5637, %v6665
        %6667 = vmatprep.mubr.bf16.mxu0 %v5489
        %6668 = vmatmul.mubr.bf16.gmra.mrb[0].mxu0 %v5488
        %v6669 = vpop.f32.mrb[0].mxu0
        %v6670 = vadd.f32 %v5633, %v6669
        %v6671 = vpop.f32.mrb[0].mxu0
        %v6672 = vadd.f32 %v5637, %v6671
        %v6673 = vpop.f32.mrb[0].mxu0
        %v6674 = vadd.f32 %v5633, %v6673
        %v6675 = vpop.f32.mrb[0].mxu0
        %v6676 = vadd.f32 %v5637, %v6675
        %6677 = vmatprep.mubr.bf16.mxu0 %v5491
        %6678 = vmatmul.mubr.bf16.gmra.mrb[0].mxu0 %v5490
        %v6679 = vpop.f32.mrb[0].mxu0
        %v6680 = vadd.f32 %v5633, %v6679
        %v6681 = vpop.f32.mrb[0].mxu0
        %v6682 = vadd.f32 %v5637, %v6681
        %v6683 = vpop.f32.mrb[0].mxu0
        %v6684 = vadd.f32 %v5633, %v6683
        %v6685 = vpop.f32.mrb[0].mxu0
        %v6686 = vadd.f32 %v5637, %v6685
        %6687 = vdwg.mxu0
        %6688 = vmatprep.subr.bf16.mxu0 %v6051
        %6689 = vmatpush1.bf16.msra.mxu0 %v6050
        %6690 = vmatprep.subr.bf16.mxu0 %v6059
        %6691 = vmatpush1.bf16.msra.mxu0 %v6058
        %6692 = vmatprep.subr.bf16.mxu0 %v6067
        %6693 = vmatpush1.bf16.msra.mxu0 %v6066
        %6694 = vmatprep.subr.bf16.mxu0 %v6075
        %6695 = vmatpush1.bf16.msra.mxu0 %v6074
        %6696 = vmatprep.subr.bf16.mxu0 %v6083
        %6697 = vmatpush1.bf16.msra.mxu0 %v6082
        %6698 = vmatprep.subr.bf16.mxu0 %v6091
        %6699 = vmatpush1.bf16.msra.mxu0 %v6090
        %6700 = vmatprep.subr.bf16.mxu0 %v6099
        %6701 = vmatpush1.bf16.msra.mxu0 %v6098
        %6702 = vmatprep.subr.bf16.mxu0 %v6107
        %6703 = vmatpush1.bf16.msra.mxu0 %v6106
        %6704 = vmatprep.subr.bf16.mxu0 %v6115
        %6705 = vmatpush1.bf16.msra.mxu0 %v6114
        %6706 = vmatprep.subr.bf16.mxu0 %v6123
        %6707 = vmatpush1.bf16.msra.mxu0 %v6122
        %6708 = vmatprep.subr.bf16.mxu0 %v6131
        %6709 = vmatpush1.bf16.msra.mxu0 %v6130
        %6710 = vmatprep.subr.bf16.mxu0 %v6139
        %6711 = vmatpush1.bf16.msra.mxu0 %v6138
        %6712 = vmatprep.subr.bf16.mxu0 %v6147
        %6713 = vmatpush1.bf16.msra.mxu0 %v6146
        %6714 = vmatprep.subr.bf16.mxu0 %v6155
        %6715 = vmatpush1.bf16.msra.mxu0 %v6154
        %6716 = vmatprep.subr.bf16.mxu0 %v6163
        %6717 = vmatpush1.bf16.msra.mxu0 %v6162
        %6718 = vmatprep.subr.bf16.mxu0 %v6171
        %6719 = vmatpush1.bf16.msra.mxu0 %v6170
        %6720 = vmatprep.mubr.bf16.mxu0 %v5461
        %6721 = vmatmul.mubr.bf16.gmra.mrb[0].mxu0 %v5460
        %v6722 = vpop.f32.mrb[0].mxu0
        %v6723 = vadd.f32 %v5641, %v6722
        %v6724 = vpop.f32.mrb[0].mxu0
        %v6725 = vadd.f32 %v5645, %v6724
        %v6726 = vpop.f32.mrb[0].mxu0
        %v6727 = vadd.f32 %v5641, %v6726
        %v6728 = vpop.f32.mrb[0].mxu0
        %v6729 = vadd.f32 %v5645, %v6728
        %6730 = vmatprep.mubr.bf16.mxu0 %v5463
        %6731 = vmatmul.mubr.bf16.gmra.mrb[0].mxu0 %v5462
        %v6732 = vpop.f32.mrb[0].mxu0
        %v6733 = vadd.f32 %v5641, %v6732
        %v6734 = vpop.f32.mrb[0].mxu0
        %v6735 = vadd.f32 %v5645, %v6734
        %v6736 = vpop.f32.mrb[0].mxu0
        %v6737 = vadd.f32 %v5641, %v6736
        %v6738 = vpop.f32.mrb[0].mxu0
        %v6739 = vadd.f32 %v5645, %v6738
        %6740 = vmatprep.mubr.bf16.mxu0 %v5465
        %6741 = vmatmul.mubr.bf16.gmra.mrb[0].mxu0 %v5464
        %v6742 = vpop.f32.mrb[0].mxu0
        %v6743 = vadd.f32 %v5641, %v6742
        %v6744 = vpop.f32.mrb[0].mxu0
        %v6745 = vadd.f32 %v5645, %v6744
        %v6746 = vpop.f32.mrb[0].mxu0
        %v6747 = vadd.f32 %v5641, %v6746
        %v6748 = vpop.f32.mrb[0].mxu0
        %v6749 = vadd.f32 %v5645, %v6748
        %6750 = vmatprep.mubr.bf16.mxu0 %v5467
        %6751 = vmatmul.mubr.bf16.gmra.mrb[0].mxu0 %v5466
        %v6752 = vpop.f32.mrb[0].mxu0
        %v6753 = vadd.f32 %v5641, %v6752
        %v6754 = vpop.f32.mrb[0].mxu0
        %v6755 = vadd.f32 %v5645, %v6754
        %v6756 = vpop.f32.mrb[0].mxu0
        %v6757 = vadd.f32 %v5641, %v6756
        %v6758 = vpop.f32.mrb[0].mxu0
        %v6759 = vadd.f32 %v5645, %v6758
        %6760 = vmatprep.mubr.bf16.mxu0 %v5469
        %6761 = vmatmul.mubr.bf16.gmra.mrb[0].mxu0 %v5468
        %v6762 = vpop.f32.mrb[0].mxu0
        %v6763 = vadd.f32 %v5641, %v6762
        %v6764 = vpop.f32.mrb[0].mxu0
        %v6765 = vadd.f32 %v5645, %v6764
        %v6766 = vpop.f32.mrb[0].mxu0
        %v6767 = vadd.f32 %v5641, %v6766
        %v6768 = vpop.f32.mrb[0].mxu0
        %v6769 = vadd.f32 %v5645, %v6768
        %6770 = vmatprep.mubr.bf16.mxu0 %v5471
        %6771 = vmatmul.mubr.bf16.gmra.mrb[0].mxu0 %v5470
        %v6772 = vpop.f32.mrb[0].mxu0
        %v6773 = vadd.f32 %v5641, %v6772
        %v6774 = vpop.f32.mrb[0].mxu0
        %v6775 = vadd.f32 %v5645, %v6774
        %v6776 = vpop.f32.mrb[0].mxu0
        %v6777 = vadd.f32 %v5641, %v6776
        %v6778 = vpop.f32.mrb[0].mxu0
        %v6779 = vadd.f32 %v5645, %v6778
        %6780 = vmatprep.mubr.bf16.mxu0 %v5473
        %6781 = vmatmul.mubr.bf16.gmra.mrb[0].mxu0 %v5472
        %v6782 = vpop.f32.mrb[0].mxu0
        %v6783 = vadd.f32 %v5641, %v6782
        %v6784 = vpop.f32.mrb[0].mxu0
        %v6785 = vadd.f32 %v5645, %v6784
        %v6786 = vpop.f32.mrb[0].mxu0
        %v6787 = vadd.f32 %v5641, %v6786
        %v6788 = vpop.f32.mrb[0].mxu0
        %v6789 = vadd.f32 %v5645, %v6788
        %6790 = vmatprep.mubr.bf16.mxu0 %v5475
        %6791 = vmatmul.mubr.bf16.gmra.mrb[0].mxu0 %v5474
        %v6792 = vpop.f32.mrb[0].mxu0
        %v6793 = vadd.f32 %v5641, %v6792
        %v6794 = vpop.f32.mrb[0].mxu0
        %v6795 = vadd.f32 %v5645, %v6794
        %v6796 = vpop.f32.mrb[0].mxu0
        %v6797 = vadd.f32 %v5641, %v6796
        %v6798 = vpop.f32.mrb[0].mxu0
        %v6799 = vadd.f32 %v5645, %v6798
        %6800 = vmatprep.mubr.bf16.mxu0 %v5477
        %6801 = vmatmul.mubr.bf16.gmra.mrb[0].mxu0 %v5476
        %v6802 = vpop.f32.mrb[0].mxu0
        %v6803 = vadd.f32 %v5641, %v6802
        %v6804 = vpop.f32.mrb[0].mxu0
        %v6805 = vadd.f32 %v5645, %v6804
        %v6806 = vpop.f32.mrb[0].mxu0
        %v6807 = vadd.f32 %v5641, %v6806
        %v6808 = vpop.f32.mrb[0].mxu0
        %v6809 = vadd.f32 %v5645, %v6808
        %6810 = vmatprep.mubr.bf16.mxu0 %v5479
        %6811 = vmatmul.mubr.bf16.gmra.mrb[0].mxu0 %v5478
        %v6812 = vpop.f32.mrb[0].mxu0
        %v6813 = vadd.f32 %v5641, %v6812
        %v6814 = vpop.f32.mrb[0].mxu0
        %v6815 = vadd.f32 %v5645, %v6814
        %v6816 = vpop.f32.mrb[0].mxu0
        %v6817 = vadd.f32 %v5641, %v6816
        %v6818 = vpop.f32.mrb[0].mxu0
        %v6819 = vadd.f32 %v5645, %v6818
        %6820 = vmatprep.mubr.bf16.mxu0 %v5481
        %6821 = vmatmul.mubr.bf16.gmra.mrb[0].mxu0 %v5480
        %v6822 = vpop.f32.mrb[0].mxu0
        %v6823 = vadd.f32 %v5641, %v6822
        %v6824 = vpop.f32.mrb[0].mxu0
        %v6825 = vadd.f32 %v5645, %v6824
        %v6826 = vpop.f32.mrb[0].mxu0
        %v6827 = vadd.f32 %v5641, %v6826
        %v6828 = vpop.f32.mrb[0].mxu0
        %v6829 = vadd.f32 %v5645, %v6828
        %6830 = vmatprep.mubr.bf16.mxu0 %v5483
        %6831 = vmatmul.mubr.bf16.gmra.mrb[0].mxu0 %v5482
        %v6832 = vpop.f32.mrb[0].mxu0
        %v6833 = vadd.f32 %v5641, %v6832
        %v6834 = vpop.f32.mrb[0].mxu0
        %v6835 = vadd.f32 %v5645, %v6834
        %v6836 = vpop.f32.mrb[0].mxu0
        %v6837 = vadd.f32 %v5641, %v6836
        %v6838 = vpop.f32.mrb[0].mxu0
        %v6839 = vadd.f32 %v5645, %v6838
        %6840 = vmatprep.mubr.bf16.mxu0 %v5485
        %6841 = vmatmul.mubr.bf16.gmra.mrb[0].mxu0 %v5484
        %v6842 = vpop.f32.mrb[0].mxu0
        %v6843 = vadd.f32 %v5641, %v6842
        %v6844 = vpop.f32.mrb[0].mxu0
        %v6845 = vadd.f32 %v5645, %v6844
        %v6846 = vpop.f32.mrb[0].mxu0
        %v6847 = vadd.f32 %v5641, %v6846
        %v6848 = vpop.f32.mrb[0].mxu0
        %v6849 = vadd.f32 %v5645, %v6848
        %6850 = vmatprep.mubr.bf16.mxu0 %v5487
        %6851 = vmatmul.mubr.bf16.gmra.mrb[0].mxu0 %v5486
        %v6852 = vpop.f32.mrb[0].mxu0
        %v6853 = vadd.f32 %v5641, %v6852
        %v6854 = vpop.f32.mrb[0].mxu0
        %v6855 = vadd.f32 %v5645, %v6854
        %v6856 = vpop.f32.mrb[0].mxu0
        %v6857 = vadd.f32 %v5641, %v6856
        %v6858 = vpop.f32.mrb[0].mxu0
        %v6859 = vadd.f32 %v5645, %v6858
        %6860 = vmatprep.mubr.bf16.mxu0 %v5489
        %6861 = vmatmul.mubr.bf16.gmra.mrb[0].mxu0 %v5488
        %v6862 = vpop.f32.mrb[0].mxu0
        %v6863 = vadd.f32 %v5641, %v6862
        %v6864 = vpop.f32.mrb[0].mxu0
        %v6865 = vadd.f32 %v5645, %v6864
        %v6866 = vpop.f32.mrb[0].mxu0
        %v6867 = vadd.f32 %v5641, %v6866
        %v6868 = vpop.f32.mrb[0].mxu0
        %v6869 = vadd.f32 %v5645, %v6868
        %6870 = vmatprep.mubr.bf16.mxu0 %v5491
        %6871 = vmatmul.mubr.bf16.gmra.mrb[0].mxu0 %v5490
        %v6872 = vpop.f32.mrb[0].mxu0
        %v6873 = vadd.f32 %v5641, %v6872
        %v6874 = vpop.f32.mrb[0].mxu0
        %v6875 = vadd.f32 %v5645, %v6874
        %v6876 = vpop.f32.mrb[0].mxu0
        %v6877 = vadd.f32 %v5641, %v6876
        %v6878 = vpop.f32.mrb[0].mxu0
        %v6879 = vadd.f32 %v5645, %v6878
        %6880 = vdwg.mxu0
        %6881 = vmatprep.subr.bf16.mxu0 %v6053
        %6882 = vmatpush1.bf16.msra.mxu0 %v6052
        %6883 = vmatprep.subr.bf16.mxu0 %v6061
        %6884 = vmatpush1.bf16.msra.mxu0 %v6060
        %6885 = vmatprep.subr.bf16.mxu0 %v6069
        %6886 = vmatpush1.bf16.msra.mxu0 %v6068
        %6887 = vmatprep.subr.bf16.mxu0 %v6077
        %6888 = vmatpush1.bf16.msra.mxu0 %v6076
        %6889 = vmatprep.subr.bf16.mxu0 %v6085
        %6890 = vmatpush1.bf16.msra.mxu0 %v6084
        %6891 = vmatprep.subr.bf16.mxu0 %v6093
        %6892 = vmatpush1.bf16.msra.mxu0 %v6092
        %6893 = vmatprep.subr.bf16.mxu0 %v6101
        %6894 = vmatpush1.bf16.msra.mxu0 %v6100
        %6895 = vmatprep.subr.bf16.mxu0 %v6109
        %6896 = vmatpush1.bf16.msra.mxu0 %v6108
        %6897 = vmatprep.subr.bf16.mxu0 %v6117
        %6898 = vmatpush1.bf16.msra.mxu0 %v6116
        %6899 = vmatprep.subr.bf16.mxu0 %v6125
        %6900 = vmatpush1.bf16.msra.mxu0 %v6124
        %6901 = vmatprep.subr.bf16.mxu0 %v6133
        %6902 = vmatpush1.bf16.msra.mxu0 %v6132
        %6903 = vmatprep.subr.bf16.mxu0 %v6141
        %6904 = vmatpush1.bf16.msra.mxu0 %v6140
        %6905 = vmatprep.subr.bf16.mxu0 %v6149
        %6906 = vmatpush1.bf16.msra.mxu0 %v6148
        %6907 = vmatprep.subr.bf16.mxu0 %v6157
        %6908 = vmatpush1.bf16.msra.mxu0 %v6156
        %6909 = vmatprep.subr.bf16.mxu0 %v6165
        %6910 = vmatpush1.bf16.msra.mxu0 %v6164
        %6911 = vmatprep.subr.bf16.mxu0 %v6173
        %6912 = vmatpush1.bf16.msra.mxu0 %v6172
        %6913 = vmatprep.mubr.bf16.mxu0 %v5461
        %6914 = vmatmul.mubr.bf16.gmra.mrb[0].mxu0 %v5460
        %v6915 = vpop.f32.mrb[0].mxu0
        %v6916 = vadd.f32 %v5649, %v6915
        %v6917 = vpop.f32.mrb[0].mxu0
        %v6918 = vadd.f32 %v5653, %v6917
        %v6919 = vpop.f32.mrb[0].mxu0
        %v6920 = vadd.f32 %v5649, %v6919
        %v6921 = vpop.f32.mrb[0].mxu0
        %v6922 = vadd.f32 %v5653, %v6921
        %6923 = vmatprep.mubr.bf16.mxu0 %v5463
        %6924 = vmatmul.mubr.bf16.gmra.mrb[0].mxu0 %v5462
        %v6925 = vpop.f32.mrb[0].mxu0
        %v6926 = vadd.f32 %v5649, %v6925
        %v6927 = vpop.f32.mrb[0].mxu0
        %v6928 = vadd.f32 %v5653, %v6927
        %v6929 = vpop.f32.mrb[0].mxu0
        %v6930 = vadd.f32 %v5649, %v6929
        %v6931 = vpop.f32.mrb[0].mxu0
        %v6932 = vadd.f32 %v5653, %v6931
        %6933 = vmatprep.mubr.bf16.mxu0 %v5465
        %6934 = vmatmul.mubr.bf16.gmra.mrb[0].mxu0 %v5464
        %v6935 = vpop.f32.mrb[0].mxu0
        %v6936 = vadd.f32 %v5649, %v6935
        %v6937 = vpop.f32.mrb[0].mxu0
        %v6938 = vadd.f32 %v5653, %v6937
        %v6939 = vpop.f32.mrb[0].mxu0
        %v6940 = vadd.f32 %v5649, %v6939
        %v6941 = vpop.f32.mrb[0].mxu0
        %v6942 = vadd.f32 %v5653, %v6941
        %6943 = vmatprep.mubr.bf16.mxu0 %v5467
        %6944 = vmatmul.mubr.bf16.gmra.mrb[0].mxu0 %v5466
        %v6945 = vpop.f32.mrb[0].mxu0
        %v6946 = vadd.f32 %v5649, %v6945
        %v6947 = vpop.f32.mrb[0].mxu0
        %v6948 = vadd.f32 %v5653, %v6947
        %v6949 = vpop.f32.mrb[0].mxu0
        %v6950 = vadd.f32 %v5649, %v6949
        %v6951 = vpop.f32.mrb[0].mxu0
        %v6952 = vadd.f32 %v5653, %v6951
        %6953 = vmatprep.mubr.bf16.mxu0 %v5469
        %6954 = vmatmul.mubr.bf16.gmra.mrb[0].mxu0 %v5468
        %v6955 = vpop.f32.mrb[0].mxu0
        %v6956 = vadd.f32 %v5649, %v6955
        %v6957 = vpop.f32.mrb[0].mxu0
        %v6958 = vadd.f32 %v5653, %v6957
        %v6959 = vpop.f32.mrb[0].mxu0
        %v6960 = vadd.f32 %v5649, %v6959
        %v6961 = vpop.f32.mrb[0].mxu0
        %v6962 = vadd.f32 %v5653, %v6961
        %6963 = vmatprep.mubr.bf16.mxu0 %v5471
        %6964 = vmatmul.mubr.bf16.gmra.mrb[0].mxu0 %v5470
        %v6965 = vpop.f32.mrb[0].mxu0
        %v6966 = vadd.f32 %v5649, %v6965
        %v6967 = vpop.f32.mrb[0].mxu0
        %v6968 = vadd.f32 %v5653, %v6967
        %v6969 = vpop.f32.mrb[0].mxu0
        %v6970 = vadd.f32 %v5649, %v6969
        %v6971 = vpop.f32.mrb[0].mxu0
        %v6972 = vadd.f32 %v5653, %v6971
        %6973 = vmatprep.mubr.bf16.mxu0 %v5473
        %6974 = vmatmul.mubr.bf16.gmra.mrb[0].mxu0 %v5472
        %v6975 = vpop.f32.mrb[0].mxu0
        %v6976 = vadd.f32 %v5649, %v6975
        %v6977 = vpop.f32.mrb[0].mxu0
        %v6978 = vadd.f32 %v5653, %v6977
        %v6979 = vpop.f32.mrb[0].mxu0
        %v6980 = vadd.f32 %v5649, %v6979
        %v6981 = vpop.f32.mrb[0].mxu0
        %v6982 = vadd.f32 %v5653, %v6981
        %6983 = vmatprep.mubr.bf16.mxu0 %v5475
        %6984 = vmatmul.mubr.bf16.gmra.mrb[0].mxu0 %v5474
        %v6985 = vpop.f32.mrb[0].mxu0
        %v6986 = vadd.f32 %v5649, %v6985
        %v6987 = vpop.f32.mrb[0].mxu0
        %v6988 = vadd.f32 %v5653, %v6987
        %v6989 = vpop.f32.mrb[0].mxu0
        %v6990 = vadd.f32 %v5649, %v6989
        %v6991 = vpop.f32.mrb[0].mxu0
        %v6992 = vadd.f32 %v5653, %v6991
        %6993 = vmatprep.mubr.bf16.mxu0 %v5477
        %6994 = vmatmul.mubr.bf16.gmra.mrb[0].mxu0 %v5476
        %v6995 = vpop.f32.mrb[0].mxu0
        %v6996 = vadd.f32 %v5649, %v6995
        %v6997 = vpop.f32.mrb[0].mxu0
        %v6998 = vadd.f32 %v5653, %v6997
        %v6999 = vpop.f32.mrb[0].mxu0
        %v7000 = vadd.f32 %v5649, %v6999
        %v7001 = vpop.f32.mrb[0].mxu0
        %v7002 = vadd.f32 %v5653, %v7001
        %7003 = vmatprep.mubr.bf16.mxu0 %v5479
        %7004 = vmatmul.mubr.bf16.gmra.mrb[0].mxu0 %v5478
        %v7005 = vpop.f32.mrb[0].mxu0
        %v7006 = vadd.f32 %v5649, %v7005
        %v7007 = vpop.f32.mrb[0].mxu0
        %v7008 = vadd.f32 %v5653, %v7007
        %v7009 = vpop.f32.mrb[0].mxu0
        %v7010 = vadd.f32 %v5649, %v7009
        %v7011 = vpop.f32.mrb[0].mxu0
        %v7012 = vadd.f32 %v5653, %v7011
        %7013 = vmatprep.mubr.bf16.mxu0 %v5481
        %7014 = vmatmul.mubr.bf16.gmra.mrb[0].mxu0 %v5480
        %v7015 = vpop.f32.mrb[0].mxu0
        %v7016 = vadd.f32 %v5649, %v7015
        %v7017 = vpop.f32.mrb[0].mxu0
        %v7018 = vadd.f32 %v5653, %v7017
        %v7019 = vpop.f32.mrb[0].mxu0
        %v7020 = vadd.f32 %v5649, %v7019
        %v7021 = vpop.f32.mrb[0].mxu0
        %v7022 = vadd.f32 %v5653, %v7021
        %7023 = vmatprep.mubr.bf16.mxu0 %v5483
        %7024 = vmatmul.mubr.bf16.gmra.mrb[0].mxu0 %v5482
        %v7025 = vpop.f32.mrb[0].mxu0
        %v7026 = vadd.f32 %v5649, %v7025
        %v7027 = vpop.f32.mrb[0].mxu0
        %v7028 = vadd.f32 %v5653, %v7027
        %v7029 = vpop.f32.mrb[0].mxu0
        %v7030 = vadd.f32 %v5649, %v7029
        %v7031 = vpop.f32.mrb[0].mxu0
        %v7032 = vadd.f32 %v5653, %v7031
        %7033 = vmatprep.mubr.bf16.mxu0 %v5485
        %7034 = vmatmul.mubr.bf16.gmra.mrb[0].mxu0 %v5484
        %v7035 = vpop.f32.mrb[0].mxu0
        %v7036 = vadd.f32 %v5649, %v7035
        %v7037 = vpop.f32.mrb[0].mxu0
        %v7038 = vadd.f32 %v5653, %v7037
        %v7039 = vpop.f32.mrb[0].mxu0
        %v7040 = vadd.f32 %v5649, %v7039
        %v7041 = vpop.f32.mrb[0].mxu0
        %v7042 = vadd.f32 %v5653, %v7041
        %7043 = vmatprep.mubr.bf16.mxu0 %v5487
        %7044 = vmatmul.mubr.bf16.gmra.mrb[0].mxu0 %v5486
        %v7045 = vpop.f32.mrb[0].mxu0
        %v7046 = vadd.f32 %v5649, %v7045
        %v7047 = vpop.f32.mrb[0].mxu0
        %v7048 = vadd.f32 %v5653, %v7047
        %v7049 = vpop.f32.mrb[0].mxu0
        %v7050 = vadd.f32 %v5649, %v7049
        %v7051 = vpop.f32.mrb[0].mxu0
        %v7052 = vadd.f32 %v5653, %v7051
        %7053 = vmatprep.mubr.bf16.mxu0 %v5489
        %7054 = vmatmul.mubr.bf16.gmra.mrb[0].mxu0 %v5488
        %v7055 = vpop.f32.mrb[0].mxu0
        %v7056 = vadd.f32 %v5649, %v7055
        %v7057 = vpop.f32.mrb[0].mxu0
        %v7058 = vadd.f32 %v5653, %v7057
        %v7059 = vpop.f32.mrb[0].mxu0
        %v7060 = vadd.f32 %v5649, %v7059
        %v7061 = vpop.f32.mrb[0].mxu0
        %v7062 = vadd.f32 %v5653, %v7061
        %7063 = vmatprep.mubr.bf16.mxu0 %v5491
        %7064 = vmatmul.mubr.bf16.gmra.mrb[0].mxu0 %v5490
        %v7065 = vpop.f32.mrb[0].mxu0
        %v7066 = vadd.f32 %v5649, %v7065
        %v7067 = vpop.f32.mrb[0].mxu0
        %v7068 = vadd.f32 %v5653, %v7067
        %v7069 = vpop.f32.mrb[0].mxu0
        %v7070 = vadd.f32 %v5649, %v7069
        %v7071 = vpop.f32.mrb[0].mxu0
        %v7072 = vadd.f32 %v5653, %v7071
        %7073 = vdwg.mxu0
        %v7074 = vmul.f32 %v6337, %v6337
        %v7075 = vmul.f32 %v6339, %v6339
        %v7076 = vmul.f32 %v6530, %v6530
        %v7077 = vmul.f32 %v6532, %v6532
        %v7078 = vmul.f32 %v6723, %v6723
        %v7079 = vmul.f32 %v6725, %v6725
        %v7080 = vmul.f32 %v6916, %v6916
        %v7081 = vmul.f32 %v6918, %v6918
        %v7082 = vmul.f32 %v6341, %v6341
        %v7083 = vmul.f32 %v6343, %v6343
        %v7084 = vmul.f32 %v6534, %v6534
        %v7085 = vmul.f32 %v6536, %v6536
        %v7086 = vmul.f32 %v6727, %v6727
        %v7087 = vmul.f32 %v6729, %v6729
        %v7088 = vmul.f32 %v6920, %v6920
        %v7089 = vmul.f32 %v6922, %v6922
        %v7090 = vmul.f32 %v6347, %v6347
        %v7091 = vmul.f32 %v6349, %v6349
        %v7092 = vmul.f32 %v6540, %v6540
        %v7093 = vmul.f32 %v6542, %v6542
        %v7094 = vmul.f32 %v6733, %v6733
        %v7095 = vmul.f32 %v6735, %v6735
        %v7096 = vmul.f32 %v6926, %v6926
        %v7097 = vmul.f32 %v6928, %v6928
        %v7098 = vmul.f32 %v6351, %v6351
        %v7099 = vmul.f32 %v6353, %v6353
        %v7100 = vmul.f32 %v6544, %v6544
        %v7101 = vmul.f32 %v6546, %v6546
        %v7102 = vmul.f32 %v6737, %v6737
        %v7103 = vmul.f32 %v6739, %v6739
        %v7104 = vmul.f32 %v6930, %v6930
        %v7105 = vmul.f32 %v6932, %v6932
        %v7106 = vmul.f32 %v6357, %v6357
        %v7107 = vmul.f32 %v6359, %v6359
        %v7108 = vmul.f32 %v6550, %v6550
        %v7109 = vmul.f32 %v6552, %v6552
        %v7110 = vmul.f32 %v6743, %v6743
        %v7111 = vmul.f32 %v6745, %v6745
        %v7112 = vmul.f32 %v6936, %v6936
        %v7113 = vmul.f32 %v6938, %v6938
        %v7114 = vmul.f32 %v6361, %v6361
        %v7115 = vmul.f32 %v6363, %v6363
        %v7116 = vmul.f32 %v6554, %v6554
        %v7117 = vmul.f32 %v6556, %v6556
        %v7118 = vmul.f32 %v6747, %v6747
        %v7119 = vmul.f32 %v6749, %v6749
        %v7120 = vmul.f32 %v6940, %v6940
        %v7121 = vmul.f32 %v6942, %v6942
        %v7122 = vmul.f32 %v6367, %v6367
        %v7123 = vmul.f32 %v6369, %v6369
        %v7124 = vmul.f32 %v6560, %v6560
        %v7125 = vmul.f32 %v6562, %v6562
        %v7126 = vmul.f32 %v6753, %v6753
        %v7127 = vmul.f32 %v6755, %v6755
        %v7128 = vmul.f32 %v6946, %v6946
        %v7129 = vmul.f32 %v6948, %v6948
        %v7130 = vmul.f32 %v6371, %v6371
        %v7131 = vmul.f32 %v6373, %v6373
        %v7132 = vmul.f32 %v6564, %v6564
        %v7133 = vmul.f32 %v6566, %v6566
        %v7134 = vmul.f32 %v6757, %v6757
        %v7135 = vmul.f32 %v6759, %v6759
        %v7136 = vmul.f32 %v6950, %v6950
        %v7137 = vmul.f32 %v6952, %v6952
        %v7138 = vmul.f32 %v6377, %v6377
        %v7139 = vmul.f32 %v6379, %v6379
        %v7140 = vmul.f32 %v6570, %v6570
        %v7141 = vmul.f32 %v6572, %v6572
        %v7142 = vmul.f32 %v6763, %v6763
        %v7143 = vmul.f32 %v6765, %v6765
        %v7144 = vmul.f32 %v6956, %v6956
        %v7145 = vmul.f32 %v6958, %v6958
        %v7146 = vmul.f32 %v6381, %v6381
        %v7147 = vmul.f32 %v6383, %v6383
        %v7148 = vmul.f32 %v6574, %v6574
        %v7149 = vmul.f32 %v6576, %v6576
        %v7150 = vmul.f32 %v6767, %v6767
        %v7151 = vmul.f32 %v6769, %v6769
        %v7152 = vmul.f32 %v6960, %v6960
        %v7153 = vmul.f32 %v6962, %v6962
        %v7154 = vmul.f32 %v6387, %v6387
        %v7155 = vmul.f32 %v6389, %v6389
        %v7156 = vmul.f32 %v6580, %v6580
        %v7157 = vmul.f32 %v6582, %v6582
        %v7158 = vmul.f32 %v6773, %v6773
        %v7159 = vmul.f32 %v6775, %v6775
        %v7160 = vmul.f32 %v6966, %v6966
        %v7161 = vmul.f32 %v6968, %v6968
        %v7162 = vmul.f32 %v6391, %v6391
        %v7163 = vmul.f32 %v6393, %v6393
        %v7164 = vmul.f32 %v6584, %v6584
        %v7165 = vmul.f32 %v6586, %v6586
        %v7166 = vmul.f32 %v6777, %v6777
        %v7167 = vmul.f32 %v6779, %v6779
        %v7168 = vmul.f32 %v6970, %v6970
        %v7169 = vmul.f32 %v6972, %v6972
        %v7170 = vmul.f32 %v6397, %v6397
        %v7171 = vmul.f32 %v6399, %v6399
        %v7172 = vmul.f32 %v6590, %v6590
        %v7173 = vmul.f32 %v6592, %v6592
        %v7174 = vmul.f32 %v6783, %v6783
        %v7175 = vmul.f32 %v6785, %v6785
        %v7176 = vmul.f32 %v6976, %v6976
        %v7177 = vmul.f32 %v6978, %v6978
        %v7178 = vmul.f32 %v6401, %v6401
        %v7179 = vmul.f32 %v6403, %v6403
        %v7180 = vmul.f32 %v6594, %v6594
        %v7181 = vmul.f32 %v6596, %v6596
        %v7182 = vmul.f32 %v6787, %v6787
        %v7183 = vmul.f32 %v6789, %v6789
        %v7184 = vmul.f32 %v6980, %v6980
        %v7185 = vmul.f32 %v6982, %v6982
        %v7186 = vmul.f32 %v6407, %v6407
        %v7187 = vmul.f32 %v6409, %v6409
        %v7188 = vmul.f32 %v6600, %v6600
        %v7189 = vmul.f32 %v6602, %v6602
        %v7190 = vmul.f32 %v6793, %v6793
        %v7191 = vmul.f32 %v6795, %v6795
        %v7192 = vmul.f32 %v6986, %v6986
        %v7193 = vmul.f32 %v6988, %v6988
        %v7194 = vmul.f32 %v6411, %v6411
        %v7195 = vmul.f32 %v6413, %v6413
        %v7196 = vmul.f32 %v6604, %v6604
        %v7197 = vmul.f32 %v6606, %v6606
        %v7198 = vmul.f32 %v6797, %v6797
        %v7199 = vmul.f32 %v6799, %v6799
        %v7200 = vmul.f32 %v6990, %v6990
        %v7201 = vmul.f32 %v6992, %v6992
        %v7202 = vmul.f32 %v6417, %v6417
        %v7203 = vmul.f32 %v6419, %v6419
        %v7204 = vmul.f32 %v6610, %v6610
        %v7205 = vmul.f32 %v6612, %v6612
        %v7206 = vmul.f32 %v6803, %v6803
        %v7207 = vmul.f32 %v6805, %v6805
        %v7208 = vmul.f32 %v6996, %v6996
        %v7209 = vmul.f32 %v6998, %v6998
        %v7210 = vmul.f32 %v6421, %v6421
        %v7211 = vmul.f32 %v6423, %v6423
        %v7212 = vmul.f32 %v6614, %v6614
        %v7213 = vmul.f32 %v6616, %v6616
        %v7214 = vmul.f32 %v6807, %v6807
        %v7215 = vmul.f32 %v6809, %v6809
        %v7216 = vmul.f32 %v7000, %v7000
        %v7217 = vmul.f32 %v7002, %v7002
        %v7218 = vmul.f32 %v6427, %v6427
        %v7219 = vmul.f32 %v6429, %v6429
        %v7220 = vmul.f32 %v6620, %v6620
        %v7221 = vmul.f32 %v6622, %v6622
        %v7222 = vmul.f32 %v6813, %v6813
        %v7223 = vmul.f32 %v6815, %v6815
        %v7224 = vmul.f32 %v7006, %v7006
        %v7225 = vmul.f32 %v7008, %v7008
        %v7226 = vmul.f32 %v6431, %v6431
        %v7227 = vmul.f32 %v6433, %v6433
        %v7228 = vmul.f32 %v6624, %v6624
        %v7229 = vmul.f32 %v6626, %v6626
        %v7230 = vmul.f32 %v6817, %v6817
        %v7231 = vmul.f32 %v6819, %v6819
        %v7232 = vmul.f32 %v7010, %v7010
        %v7233 = vmul.f32 %v7012, %v7012
        %v7234 = vmul.f32 %v6437, %v6437
        %v7235 = vmul.f32 %v6439, %v6439
        %v7236 = vmul.f32 %v6630, %v6630
        %v7237 = vmul.f32 %v6632, %v6632
        %v7238 = vmul.f32 %v6823, %v6823
        %v7239 = vmul.f32 %v6825, %v6825
        %v7240 = vmul.f32 %v7016, %v7016
        %v7241 = vmul.f32 %v7018, %v7018
        %v7242 = vmul.f32 %v6441, %v6441
        %v7243 = vmul.f32 %v6443, %v6443
        %v7244 = vmul.f32 %v6634, %v6634
        %v7245 = vmul.f32 %v6636, %v6636
        %v7246 = vmul.f32 %v6827, %v6827
        %v7247 = vmul.f32 %v6829, %v6829
        %v7248 = vmul.f32 %v7020, %v7020
        %v7249 = vmul.f32 %v7022, %v7022
        %v7250 = vmul.f32 %v6447, %v6447
        %v7251 = vmul.f32 %v6449, %v6449
        %v7252 = vmul.f32 %v6640, %v6640
        %v7253 = vmul.f32 %v6642, %v6642
        %v7254 = vmul.f32 %v6833, %v6833
        %v7255 = vmul.f32 %v6835, %v6835
        %v7256 = vmul.f32 %v7026, %v7026
        %v7257 = vmul.f32 %v7028, %v7028
        %v7258 = vmul.f32 %v6451, %v6451
        %v7259 = vmul.f32 %v6453, %v6453
        %v7260 = vmul.f32 %v6644, %v6644
        %v7261 = vmul.f32 %v6646, %v6646
        %v7262 = vmul.f32 %v6837, %v6837
        %v7263 = vmul.f32 %v6839, %v6839
        %v7264 = vmul.f32 %v7030, %v7030
        %v7265 = vmul.f32 %v7032, %v7032
        %v7266 = vmul.f32 %v6457, %v6457
        %v7267 = vmul.f32 %v6459, %v6459
        %v7268 = vmul.f32 %v6650, %v6650
        %v7269 = vmul.f32 %v6652, %v6652
        %v7270 = vmul.f32 %v6843, %v6843
        %v7271 = vmul.f32 %v6845, %v6845
        %v7272 = vmul.f32 %v7036, %v7036
        %v7273 = vmul.f32 %v7038, %v7038
        %v7274 = vmul.f32 %v6461, %v6461
        %v7275 = vmul.f32 %v6463, %v6463
        %v7276 = vmul.f32 %v6654, %v6654
        %v7277 = vmul.f32 %v6656, %v6656
        %v7278 = vmul.f32 %v6847, %v6847
        %v7279 = vmul.f32 %v6849, %v6849
        %v7280 = vmul.f32 %v7040, %v7040
        %v7281 = vmul.f32 %v7042, %v7042
        %v7282 = vmul.f32 %v6467, %v6467
        %v7283 = vmul.f32 %v6469, %v6469
        %v7284 = vmul.f32 %v6660, %v6660
        %v7285 = vmul.f32 %v6662, %v6662
        %v7286 = vmul.f32 %v6853, %v6853
        %v7287 = vmul.f32 %v6855, %v6855
        %v7288 = vmul.f32 %v7046, %v7046
        %v7289 = vmul.f32 %v7048, %v7048
        %v7290 = vmul.f32 %v6471, %v6471
        %v7291 = vmul.f32 %v6473, %v6473
        %v7292 = vmul.f32 %v6664, %v6664
        %v7293 = vmul.f32 %v6666, %v6666
        %v7294 = vmul.f32 %v6857, %v6857
        %v7295 = vmul.f32 %v6859, %v6859
        %v7296 = vmul.f32 %v7050, %v7050
        %v7297 = vmul.f32 %v7052, %v7052
        %v7298 = vmul.f32 %v6477, %v6477
        %v7299 = vmul.f32 %v6479, %v6479
        %v7300 = vmul.f32 %v6670, %v6670
        %v7301 = vmul.f32 %v6672, %v6672
        %v7302 = vmul.f32 %v6863, %v6863
        %v7303 = vmul.f32 %v6865, %v6865
        %v7304 = vmul.f32 %v7056, %v7056
        %v7305 = vmul.f32 %v7058, %v7058
        %v7306 = vmul.f32 %v6481, %v6481
        %v7307 = vmul.f32 %v6483, %v6483
        %v7308 = vmul.f32 %v6674, %v6674
        %v7309 = vmul.f32 %v6676, %v6676
        %v7310 = vmul.f32 %v6867, %v6867
        %v7311 = vmul.f32 %v6869, %v6869
        %v7312 = vmul.f32 %v7060, %v7060
        %v7313 = vmul.f32 %v7062, %v7062
        %v7314 = vmul.f32 %v6487, %v6487
        %v7315 = vmul.f32 %v6489, %v6489
        %v7316 = vmul.f32 %v6680, %v6680
        %v7317 = vmul.f32 %v6682, %v6682
        %v7318 = vmul.f32 %v6873, %v6873
        %v7319 = vmul.f32 %v6875, %v6875
        %v7320 = vmul.f32 %v7066, %v7066
        %v7321 = vmul.f32 %v7068, %v7068
        %v7322 = vmul.f32 %v6491, %v6491
        %v7323 = vmul.f32 %v6493, %v6493
        %v7324 = vmul.f32 %v6684, %v6684
        %v7325 = vmul.f32 %v6686, %v6686
        %v7326 = vmul.f32 %v6877, %v6877
        %v7327 = vmul.f32 %v6879, %v6879
        %v7328 = vmul.f32 %v7070, %v7070
        %v7329 = vmul.f32 %v7072, %v7072
        %v7330 = vmul.f32 %v6337, %v7074
        %v7331 = vmul.f32 %v6339, %v7075
        %v7332 = vmul.f32 %v6530, %v7076
        %v7333 = vmul.f32 %v6532, %v7077
        %v7334 = vmul.f32 %v6723, %v7078
        %v7335 = vmul.f32 %v6725, %v7079
        %v7336 = vmul.f32 %v6916, %v7080
        %v7337 = vmul.f32 %v6918, %v7081
        %v7338 = vmul.f32 %v6341, %v7082
        %v7339 = vmul.f32 %v6343, %v7083
        %v7340 = vmul.f32 %v6534, %v7084
        %v7341 = vmul.f32 %v6536, %v7085
        %v7342 = vmul.f32 %v6727, %v7086
        %v7343 = vmul.f32 %v6729, %v7087
        %v7344 = vmul.f32 %v6920, %v7088
        %v7345 = vmul.f32 %v6922, %v7089
        %v7346 = vmul.f32 %v6347, %v7090
        %v7347 = vmul.f32 %v6349, %v7091
        %v7348 = vmul.f32 %v6540, %v7092
        %v7349 = vmul.f32 %v6542, %v7093
        %v7350 = vmul.f32 %v6733, %v7094
        %v7351 = vmul.f32 %v6735, %v7095
        %v7352 = vmul.f32 %v6926, %v7096
        %v7353 = vmul.f32 %v6928, %v7097
        %v7354 = vmul.f32 %v6351, %v7098
        %v7355 = vmul.f32 %v6353, %v7099
        %v7356 = vmul.f32 %v6544, %v7100
        %v7357 = vmul.f32 %v6546, %v7101
        %v7358 = vmul.f32 %v6737, %v7102
        %v7359 = vmul.f32 %v6739, %v7103
        %v7360 = vmul.f32 %v6930, %v7104
        %v7361 = vmul.f32 %v6932, %v7105
        %v7362 = vmul.f32 %v6357, %v7106
        %v7363 = vmul.f32 %v6359, %v7107
        %v7364 = vmul.f32 %v6550, %v7108
        %v7365 = vmul.f32 %v6552, %v7109
        %v7366 = vmul.f32 %v6743, %v7110
        %v7367 = vmul.f32 %v6745, %v7111
        %v7368 = vmul.f32 %v6936, %v7112
        %v7369 = vmul.f32 %v6938, %v7113
        %v7370 = vmul.f32 %v6361, %v7114
        %v7371 = vmul.f32 %v6363, %v7115
        %v7372 = vmul.f32 %v6554, %v7116
        %v7373 = vmul.f32 %v6556, %v7117
        %v7374 = vmul.f32 %v6747, %v7118
        %v7375 = vmul.f32 %v6749, %v7119
        %v7376 = vmul.f32 %v6940, %v7120
        %v7377 = vmul.f32 %v6942, %v7121
        %v7378 = vmul.f32 %v6367, %v7122
        %v7379 = vmul.f32 %v6369, %v7123
        %v7380 = vmul.f32 %v6560, %v7124
        %v7381 = vmul.f32 %v6562, %v7125
        %v7382 = vmul.f32 %v6753, %v7126
        %v7383 = vmul.f32 %v6755, %v7127
        %v7384 = vmul.f32 %v6946, %v7128
        %v7385 = vmul.f32 %v6948, %v7129
        %v7386 = vmul.f32 %v6371, %v7130
        %v7387 = vmul.f32 %v6373, %v7131
        %v7388 = vmul.f32 %v6564, %v7132
        %v7389 = vmul.f32 %v6566, %v7133
        %v7390 = vmul.f32 %v6757, %v7134
        %v7391 = vmul.f32 %v6759, %v7135
        %v7392 = vmul.f32 %v6950, %v7136
        %v7393 = vmul.f32 %v6952, %v7137
        %v7394 = vmul.f32 %v6377, %v7138
        %v7395 = vmul.f32 %v6379, %v7139
        %v7396 = vmul.f32 %v6570, %v7140
        %v7397 = vmul.f32 %v6572, %v7141
        %v7398 = vmul.f32 %v6763, %v7142
        %v7399 = vmul.f32 %v6765, %v7143
        %v7400 = vmul.f32 %v6956, %v7144
        %v7401 = vmul.f32 %v6958, %v7145
        %v7402 = vmul.f32 %v6381, %v7146
        %v7403 = vmul.f32 %v6383, %v7147
        %v7404 = vmul.f32 %v6574, %v7148
        %v7405 = vmul.f32 %v6576, %v7149
        %v7406 = vmul.f32 %v6767, %v7150
        %v7407 = vmul.f32 %v6769, %v7151
        %v7408 = vmul.f32 %v6960, %v7152
        %v7409 = vmul.f32 %v6962, %v7153
        %v7410 = vmul.f32 %v6387, %v7154
        %v7411 = vmul.f32 %v6389, %v7155
        %v7412 = vmul.f32 %v6580, %v7156
        %v7413 = vmul.f32 %v6582, %v7157
        %v7414 = vmul.f32 %v6773, %v7158
        %v7415 = vmul.f32 %v6775, %v7159
        %v7416 = vmul.f32 %v6966, %v7160
        %v7417 = vmul.f32 %v6968, %v7161
        %v7418 = vmul.f32 %v6391, %v7162
        %v7419 = vmul.f32 %v6393, %v7163
        %v7420 = vmul.f32 %v6584, %v7164
        %v7421 = vmul.f32 %v6586, %v7165
        %v7422 = vmul.f32 %v6777, %v7166
        %v7423 = vmul.f32 %v6779, %v7167
        %v7424 = vmul.f32 %v6970, %v7168
        %v7425 = vmul.f32 %v6972, %v7169
        %v7426 = vmul.f32 %v6397, %v7170
        %v7427 = vmul.f32 %v6399, %v7171
        %v7428 = vmul.f32 %v6590, %v7172
        %v7429 = vmul.f32 %v6592, %v7173
        %v7430 = vmul.f32 %v6783, %v7174
        %v7431 = vmul.f32 %v6785, %v7175
        %v7432 = vmul.f32 %v6976, %v7176
        %v7433 = vmul.f32 %v6978, %v7177
        %v7434 = vmul.f32 %v6401, %v7178
        %v7435 = vmul.f32 %v6403, %v7179
        %v7436 = vmul.f32 %v6594, %v7180
        %v7437 = vmul.f32 %v6596, %v7181
        %v7438 = vmul.f32 %v6787, %v7182
        %v7439 = vmul.f32 %v6789, %v7183
        %v7440 = vmul.f32 %v6980, %v7184
        %v7441 = vmul.f32 %v6982, %v7185
        %v7442 = vmul.f32 %v6407, %v7186
        %v7443 = vmul.f32 %v6409, %v7187
        %v7444 = vmul.f32 %v6600, %v7188
        %v7445 = vmul.f32 %v6602, %v7189
        %v7446 = vmul.f32 %v6793, %v7190
        %v7447 = vmul.f32 %v6795, %v7191
        %v7448 = vmul.f32 %v6986, %v7192
        %v7449 = vmul.f32 %v6988, %v7193
        %v7450 = vmul.f32 %v6411, %v7194
        %v7451 = vmul.f32 %v6413, %v7195
        %v7452 = vmul.f32 %v6604, %v7196
        %v7453 = vmul.f32 %v6606, %v7197
        %v7454 = vmul.f32 %v6797, %v7198
        %v7455 = vmul.f32 %v6799, %v7199
        %v7456 = vmul.f32 %v6990, %v7200
        %v7457 = vmul.f32 %v6992, %v7201
        %v7458 = vmul.f32 %v6417, %v7202
        %v7459 = vmul.f32 %v6419, %v7203
        %v7460 = vmul.f32 %v6610, %v7204
        %v7461 = vmul.f32 %v6612, %v7205
        %v7462 = vmul.f32 %v6803, %v7206
        %v7463 = vmul.f32 %v6805, %v7207
        %v7464 = vmul.f32 %v6996, %v7208
        %v7465 = vmul.f32 %v6998, %v7209
        %v7466 = vmul.f32 %v6421, %v7210
        %v7467 = vmul.f32 %v6423, %v7211
        %v7468 = vmul.f32 %v6614, %v7212
        %v7469 = vmul.f32 %v6616, %v7213
        %v7470 = vmul.f32 %v6807, %v7214
        %v7471 = vmul.f32 %v6809, %v7215
        %v7472 = vmul.f32 %v7000, %v7216
        %v7473 = vmul.f32 %v7002, %v7217
        %v7474 = vmul.f32 %v6427, %v7218
        %v7475 = vmul.f32 %v6429, %v7219
        %v7476 = vmul.f32 %v6620, %v7220
        %v7477 = vmul.f32 %v6622, %v7221
        %v7478 = vmul.f32 %v6813, %v7222
        %v7479 = vmul.f32 %v6815, %v7223
        %v7480 = vmul.f32 %v7006, %v7224
        %v7481 = vmul.f32 %v7008, %v7225
        %v7482 = vmul.f32 %v6431, %v7226
        %v7483 = vmul.f32 %v6433, %v7227
        %v7484 = vmul.f32 %v6624, %v7228
        %v7485 = vmul.f32 %v6626, %v7229
        %v7486 = vmul.f32 %v6817, %v7230
        %v7487 = vmul.f32 %v6819, %v7231
        %v7488 = vmul.f32 %v7010, %v7232
        %v7489 = vmul.f32 %v7012, %v7233
        %v7490 = vmul.f32 %v6437, %v7234
        %v7491 = vmul.f32 %v6439, %v7235
        %v7492 = vmul.f32 %v6630, %v7236
        %v7493 = vmul.f32 %v6632, %v7237
        %v7494 = vmul.f32 %v6823, %v7238
        %v7495 = vmul.f32 %v6825, %v7239
        %v7496 = vmul.f32 %v7016, %v7240
        %v7497 = vmul.f32 %v7018, %v7241
        %v7498 = vmul.f32 %v6441, %v7242
        %v7499 = vmul.f32 %v6443, %v7243
        %v7500 = vmul.f32 %v6634, %v7244
        %v7501 = vmul.f32 %v6636, %v7245
        %v7502 = vmul.f32 %v6827, %v7246
        %v7503 = vmul.f32 %v6829, %v7247
        %v7504 = vmul.f32 %v7020, %v7248
        %v7505 = vmul.f32 %v7022, %v7249
        %v7506 = vmul.f32 %v6447, %v7250
        %v7507 = vmul.f32 %v6449, %v7251
        %v7508 = vmul.f32 %v6640, %v7252
        %v7509 = vmul.f32 %v6642, %v7253
        %v7510 = vmul.f32 %v6833, %v7254
        %v7511 = vmul.f32 %v6835, %v7255
        %v7512 = vmul.f32 %v7026, %v7256
        %v7513 = vmul.f32 %v7028, %v7257
        %v7514 = vmul.f32 %v6451, %v7258
        %v7515 = vmul.f32 %v6453, %v7259
        %v7516 = vmul.f32 %v6644, %v7260
        %v7517 = vmul.f32 %v6646, %v7261
        %v7518 = vmul.f32 %v6837, %v7262
        %v7519 = vmul.f32 %v6839, %v7263
        %v7520 = vmul.f32 %v7030, %v7264
        %v7521 = vmul.f32 %v7032, %v7265
        %v7522 = vmul.f32 %v6457, %v7266
        %v7523 = vmul.f32 %v6459, %v7267
        %v7524 = vmul.f32 %v6650, %v7268
        %v7525 = vmul.f32 %v6652, %v7269
        %v7526 = vmul.f32 %v6843, %v7270
        %v7527 = vmul.f32 %v6845, %v7271
        %v7528 = vmul.f32 %v7036, %v7272
        %v7529 = vmul.f32 %v7038, %v7273
        %v7530 = vmul.f32 %v6461, %v7274
        %v7531 = vmul.f32 %v6463, %v7275
        %v7532 = vmul.f32 %v6654, %v7276
        %v7533 = vmul.f32 %v6656, %v7277
        %v7534 = vmul.f32 %v6847, %v7278
        %v7535 = vmul.f32 %v6849, %v7279
        %v7536 = vmul.f32 %v7040, %v7280
        %v7537 = vmul.f32 %v7042, %v7281
        %v7538 = vmul.f32 %v6467, %v7282
        %v7539 = vmul.f32 %v6469, %v7283
        %v7540 = vmul.f32 %v6660, %v7284
        %v7541 = vmul.f32 %v6662, %v7285
        %v7542 = vmul.f32 %v6853, %v7286
        %v7543 = vmul.f32 %v6855, %v7287
        %v7544 = vmul.f32 %v7046, %v7288
        %v7545 = vmul.f32 %v7048, %v7289
        %v7546 = vmul.f32 %v6471, %v7290
        %v7547 = vmul.f32 %v6473, %v7291
        %v7548 = vmul.f32 %v6664, %v7292
        %v7549 = vmul.f32 %v6666, %v7293
        %v7550 = vmul.f32 %v6857, %v7294
        %v7551 = vmul.f32 %v6859, %v7295
        %v7552 = vmul.f32 %v7050, %v7296
        %v7553 = vmul.f32 %v7052, %v7297
        %v7554 = vmul.f32 %v6477, %v7298
        %v7555 = vmul.f32 %v6479, %v7299
        %v7556 = vmul.f32 %v6670, %v7300
        %v7557 = vmul.f32 %v6672, %v7301
        %v7558 = vmul.f32 %v6863, %v7302
        %v7559 = vmul.f32 %v6865, %v7303
        %v7560 = vmul.f32 %v7056, %v7304
        %v7561 = vmul.f32 %v7058, %v7305
        %v7562 = vmul.f32 %v6481, %v7306
        %v7563 = vmul.f32 %v6483, %v7307
        %v7564 = vmul.f32 %v6674, %v7308
        %v7565 = vmul.f32 %v6676, %v7309
        %v7566 = vmul.f32 %v6867, %v7310
        %v7567 = vmul.f32 %v6869, %v7311
        %v7568 = vmul.f32 %v7060, %v7312
        %v7569 = vmul.f32 %v7062, %v7313
        %v7570 = vmul.f32 %v6487, %v7314
        %v7571 = vmul.f32 %v6489, %v7315
        %v7572 = vmul.f32 %v6680, %v7316
        %v7573 = vmul.f32 %v6682, %v7317
        %v7574 = vmul.f32 %v6873, %v7318
        %v7575 = vmul.f32 %v6875, %v7319
        %v7576 = vmul.f32 %v7066, %v7320
        %v7577 = vmul.f32 %v7068, %v7321
        %v7578 = vmul.f32 %v6491, %v7322
        %v7579 = vmul.f32 %v6493, %v7323
        %v7580 = vmul.f32 %v6684, %v7324
        %v7581 = vmul.f32 %v6686, %v7325
        %v7582 = vmul.f32 %v6877, %v7326
        %v7583 = vmul.f32 %v6879, %v7327
        %v7584 = vmul.f32 %v7070, %v7328
        %v7585 = vmul.f32 %v7072, %v7329
        %v7586 = vmul.f32 %v7330, 0.044715
        %v7587 = vmul.f32 %v7331, 0.044715
        %v7588 = vmul.f32 %v7332, 0.044715
        %v7589 = vmul.f32 %v7333, 0.044715
        %v7590 = vmul.f32 %v7334, 0.044715
        %v7591 = vmul.f32 %v7335, 0.044715
        %v7592 = vmul.f32 %v7336, 0.044715
        %v7593 = vmul.f32 %v7337, 0.044715
        %v7594 = vmul.f32 %v7338, 0.044715
        %v7595 = vmul.f32 %v7339, 0.044715
        %v7596 = vmul.f32 %v7340, 0.044715
        %v7597 = vmul.f32 %v7341, 0.044715
        %v7598 = vmul.f32 %v7342, 0.044715
        %v7599 = vmul.f32 %v7343, 0.044715
        %v7600 = vmul.f32 %v7344, 0.044715
        %v7601 = vmul.f32 %v7345, 0.044715
        %v7602 = vmul.f32 %v7346, 0.044715
        %v7603 = vmul.f32 %v7347, 0.044715
        %v7604 = vmul.f32 %v7348, 0.044715
        %v7605 = vmul.f32 %v7349, 0.044715
        %v7606 = vmul.f32 %v7350, 0.044715
        %v7607 = vmul.f32 %v7351, 0.044715
        %v7608 = vmul.f32 %v7352, 0.044715
        %v7609 = vmul.f32 %v7353, 0.044715
        %v7610 = vmul.f32 %v7354, 0.044715
        %v7611 = vmul.f32 %v7355, 0.044715
        %v7612 = vmul.f32 %v7356, 0.044715
        %v7613 = vmul.f32 %v7357, 0.044715
        %v7614 = vmul.f32 %v7358, 0.044715
        %v7615 = vmul.f32 %v7359, 0.044715
        %v7616 = vmul.f32 %v7360, 0.044715
        %v7617 = vmul.f32 %v7361, 0.044715
        %v7618 = vmul.f32 %v7362, 0.044715
        %v7619 = vmul.f32 %v7363, 0.044715
        %v7620 = vmul.f32 %v7364, 0.044715
        %v7621 = vmul.f32 %v7365, 0.044715
        %v7622 = vmul.f32 %v7366, 0.044715
        %v7623 = vmul.f32 %v7367, 0.044715
        %v7624 = vmul.f32 %v7368, 0.044715
        %v7625 = vmul.f32 %v7369, 0.044715
        %v7626 = vmul.f32 %v7370, 0.044715
        %v7627 = vmul.f32 %v7371, 0.044715
        %v7628 = vmul.f32 %v7372, 0.044715
        %v7629 = vmul.f32 %v7373, 0.044715
        %v7630 = vmul.f32 %v7374, 0.044715
        %v7631 = vmul.f32 %v7375, 0.044715
        %v7632 = vmul.f32 %v7376, 0.044715
        %v7633 = vmul.f32 %v7377, 0.044715
        %v7634 = vmul.f32 %v7378, 0.044715
        %v7635 = vmul.f32 %v7379, 0.044715
        %v7636 = vmul.f32 %v7380, 0.044715
        %v7637 = vmul.f32 %v7381, 0.044715
        %v7638 = vmul.f32 %v7382, 0.044715
        %v7639 = vmul.f32 %v7383, 0.044715
        %v7640 = vmul.f32 %v7384, 0.044715
        %v7641 = vmul.f32 %v7385, 0.044715
        %v7642 = vmul.f32 %v7386, 0.044715
        %v7643 = vmul.f32 %v7387, 0.044715
        %v7644 = vmul.f32 %v7388, 0.044715
        %v7645 = vmul.f32 %v7389, 0.044715
        %v7646 = vmul.f32 %v7390, 0.044715
        %v7647 = vmul.f32 %v7391, 0.044715
        %v7648 = vmul.f32 %v7392, 0.044715
        %v7649 = vmul.f32 %v7393, 0.044715
        %v7650 = vmul.f32 %v7394, 0.044715
        %v7651 = vmul.f32 %v7395, 0.044715
        %v7652 = vmul.f32 %v7396, 0.044715
        %v7653 = vmul.f32 %v7397, 0.044715
        %v7654 = vmul.f32 %v7398, 0.044715
        %v7655 = vmul.f32 %v7399, 0.044715
        %v7656 = vmul.f32 %v7400, 0.044715
        %v7657 = vmul.f32 %v7401, 0.044715
        %v7658 = vmul.f32 %v7402, 0.044715
        %v7659 = vmul.f32 %v7403, 0.044715
        %v7660 = vmul.f32 %v7404, 0.044715
        %v7661 = vmul.f32 %v7405, 0.044715
        %v7662 = vmul.f32 %v7406, 0.044715
        %v7663 = vmul.f32 %v7407, 0.044715
        %v7664 = vmul.f32 %v7408, 0.044715
        %v7665 = vmul.f32 %v7409, 0.044715
        %v7666 = vmul.f32 %v7410, 0.044715
        %v7667 = vmul.f32 %v7411, 0.044715
        %v7668 = vmul.f32 %v7412, 0.044715
        %v7669 = vmul.f32 %v7413, 0.044715
        %v7670 = vmul.f32 %v7414, 0.044715
        %v7671 = vmul.f32 %v7415, 0.044715
        %v7672 = vmul.f32 %v7416, 0.044715
        %v7673 = vmul.f32 %v7417, 0.044715
        %v7674 = vmul.f32 %v7418, 0.044715
        %v7675 = vmul.f32 %v7419, 0.044715
        %v7676 = vmul.f32 %v7420, 0.044715
        %v7677 = vmul.f32 %v7421, 0.044715
        %v7678 = vmul.f32 %v7422, 0.044715
        %v7679 = vmul.f32 %v7423, 0.044715
        %v7680 = vmul.f32 %v7424, 0.044715
        %v7681 = vmul.f32 %v7425, 0.044715
        %v7682 = vmul.f32 %v7426, 0.044715
        %v7683 = vmul.f32 %v7427, 0.044715
        %v7684 = vmul.f32 %v7428, 0.044715
        %v7685 = vmul.f32 %v7429, 0.044715
        %v7686 = vmul.f32 %v7430, 0.044715
        %v7687 = vmul.f32 %v7431, 0.044715
        %v7688 = vmul.f32 %v7432, 0.044715
        %v7689 = vmul.f32 %v7433, 0.044715
        %v7690 = vmul.f32 %v7434, 0.044715
        %v7691 = vmul.f32 %v7435, 0.044715
        %v7692 = vmul.f32 %v7436, 0.044715
        %v7693 = vmul.f32 %v7437, 0.044715
        %v7694 = vmul.f32 %v7438, 0.044715
        %v7695 = vmul.f32 %v7439, 0.044715
        %v7696 = vmul.f32 %v7440, 0.044715
        %v7697 = vmul.f32 %v7441, 0.044715
        %v7698 = vmul.f32 %v7442, 0.044715
        %v7699 = vmul.f32 %v7443, 0.044715
        %v7700 = vmul.f32 %v7444, 0.044715
        %v7701 = vmul.f32 %v7445, 0.044715
        %v7702 = vmul.f32 %v7446, 0.044715
        %v7703 = vmul.f32 %v7447, 0.044715
        %v7704 = vmul.f32 %v7448, 0.044715
        %v7705 = vmul.f32 %v7449, 0.044715
        %v7706 = vmul.f32 %v7450, 0.044715
        %v7707 = vmul.f32 %v7451, 0.044715
        %v7708 = vmul.f32 %v7452, 0.044715
        %v7709 = vmul.f32 %v7453, 0.044715
        %v7710 = vmul.f32 %v7454, 0.044715
        %v7711 = vmul.f32 %v7455, 0.044715
        %v7712 = vmul.f32 %v7456, 0.044715
        %v7713 = vmul.f32 %v7457, 0.044715
        %v7714 = vmul.f32 %v7458, 0.044715
        %v7715 = vmul.f32 %v7459, 0.044715
        %v7716 = vmul.f32 %v7460, 0.044715
        %v7717 = vmul.f32 %v7461, 0.044715
        %v7718 = vmul.f32 %v7462, 0.044715
        %v7719 = vmul.f32 %v7463, 0.044715
        %v7720 = vmul.f32 %v7464, 0.044715
        %v7721 = vmul.f32 %v7465, 0.044715
        %v7722 = vmul.f32 %v7466, 0.044715
        %v7723 = vmul.f32 %v7467, 0.044715
        %v7724 = vmul.f32 %v7468, 0.044715
        %v7725 = vmul.f32 %v7469, 0.044715
        %v7726 = vmul.f32 %v7470, 0.044715
        %v7727 = vmul.f32 %v7471, 0.044715
        %v7728 = vmul.f32 %v7472, 0.044715
        %v7729 = vmul.f32 %v7473, 0.044715
        %v7730 = vmul.f32 %v7474, 0.044715
        %v7731 = vmul.f32 %v7475, 0.044715
        %v7732 = vmul.f32 %v7476, 0.044715
        %v7733 = vmul.f32 %v7477, 0.044715
        %v7734 = vmul.f32 %v7478, 0.044715
        %v7735 = vmul.f32 %v7479, 0.044715
        %v7736 = vmul.f32 %v7480, 0.044715
        %v7737 = vmul.f32 %v7481, 0.044715
        %v7738 = vmul.f32 %v7482, 0.044715
        %v7739 = vmul.f32 %v7483, 0.044715
        %v7740 = vmul.f32 %v7484, 0.044715
        %v7741 = vmul.f32 %v7485, 0.044715
        %v7742 = vmul.f32 %v7486, 0.044715
        %v7743 = vmul.f32 %v7487, 0.044715
        %v7744 = vmul.f32 %v7488, 0.044715
        %v7745 = vmul.f32 %v7489, 0.044715
        %v7746 = vmul.f32 %v7490, 0.044715
        %v7747 = vmul.f32 %v7491, 0.044715
        %v7748 = vmul.f32 %v7492, 0.044715
        %v7749 = vmul.f32 %v7493, 0.044715
        %v7750 = vmul.f32 %v7494, 0.044715
        %v7751 = vmul.f32 %v7495, 0.044715
        %v7752 = vmul.f32 %v7496, 0.044715
        %v7753 = vmul.f32 %v7497, 0.044715
        %v7754 = vmul.f32 %v7498, 0.044715
        %v7755 = vmul.f32 %v7499, 0.044715
        %v7756 = vmul.f32 %v7500, 0.044715
        %v7757 = vmul.f32 %v7501, 0.044715
        %v7758 = vmul.f32 %v7502, 0.044715
        %v7759 = vmul.f32 %v7503, 0.044715
        %v7760 = vmul.f32 %v7504, 0.044715
        %v7761 = vmul.f32 %v7505, 0.044715
        %v7762 = vmul.f32 %v7506, 0.044715
        %v7763 = vmul.f32 %v7507, 0.044715
        %v7764 = vmul.f32 %v7508, 0.044715
        %v7765 = vmul.f32 %v7509, 0.044715
        %v7766 = vmul.f32 %v7510, 0.044715
        %v7767 = vmul.f32 %v7511, 0.044715
        %v7768 = vmul.f32 %v7512, 0.044715
        %v7769 = vmul.f32 %v7513, 0.044715
        %v7770 = vmul.f32 %v7514, 0.044715
        %v7771 = vmul.f32 %v7515, 0.044715
        %v7772 = vmul.f32 %v7516, 0.044715
        %v7773 = vmul.f32 %v7517, 0.044715
        %v7774 = vmul.f32 %v7518, 0.044715
        %v7775 = vmul.f32 %v7519, 0.044715
        %v7776 = vmul.f32 %v7520, 0.044715
        %v7777 = vmul.f32 %v7521, 0.044715
        %v7778 = vmul.f32 %v7522, 0.044715
        %v7779 = vmul.f32 %v7523, 0.044715
        %v7780 = vmul.f32 %v7524, 0.044715
        %v7781 = vmul.f32 %v7525, 0.044715
        %v7782 = vmul.f32 %v7526, 0.044715
        %v7783 = vmul.f32 %v7527, 0.044715
        %v7784 = vmul.f32 %v7528, 0.044715
        %v7785 = vmul.f32 %v7529, 0.044715
        %v7786 = vmul.f32 %v7530, 0.044715
        %v7787 = vmul.f32 %v7531, 0.044715
        %v7788 = vmul.f32 %v7532, 0.044715
        %v7789 = vmul.f32 %v7533, 0.044715
        %v7790 = vmul.f32 %v7534, 0.044715
        %v7791 = vmul.f32 %v7535, 0.044715
        %v7792 = vmul.f32 %v7536, 0.044715
        %v7793 = vmul.f32 %v7537, 0.044715
        %v7794 = vmul.f32 %v7538, 0.044715
        %v7795 = vmul.f32 %v7539, 0.044715
        %v7796 = vmul.f32 %v7540, 0.044715
        %v7797 = vmul.f32 %v7541, 0.044715
        %v7798 = vmul.f32 %v7542, 0.044715
        %v7799 = vmul.f32 %v7543, 0.044715
        %v7800 = vmul.f32 %v7544, 0.044715
        %v7801 = vmul.f32 %v7545, 0.044715
        %v7802 = vmul.f32 %v7546, 0.044715
        %v7803 = vmul.f32 %v7547, 0.044715
        %v7804 = vmul.f32 %v7548, 0.044715
        %v7805 = vmul.f32 %v7549, 0.044715
        %v7806 = vmul.f32 %v7550, 0.044715
        %v7807 = vmul.f32 %v7551, 0.044715
        %v7808 = vmul.f32 %v7552, 0.044715
        %v7809 = vmul.f32 %v7553, 0.044715
        %v7810 = vmul.f32 %v7554, 0.044715
        %v7811 = vmul.f32 %v7555, 0.044715
        %v7812 = vmul.f32 %v7556, 0.044715
        %v7813 = vmul.f32 %v7557, 0.044715
        %v7814 = vmul.f32 %v7558, 0.044715
        %v7815 = vmul.f32 %v7559, 0.044715
        %v7816 = vmul.f32 %v7560, 0.044715
        %v7817 = vmul.f32 %v7561, 0.044715
        %v7818 = vmul.f32 %v7562, 0.044715
        %v7819 = vmul.f32 %v7563, 0.044715
        %v7820 = vmul.f32 %v7564, 0.044715
        %v7821 = vmul.f32 %v7565, 0.044715
        %v7822 = vmul.f32 %v7566, 0.044715
        %v7823 = vmul.f32 %v7567, 0.044715
        %v7824 = vmul.f32 %v7568, 0.044715
        %v7825 = vmul.f32 %v7569, 0.044715
        %v7826 = vmul.f32 %v7570, 0.044715
        %v7827 = vmul.f32 %v7571, 0.044715
        %v7828 = vmul.f32 %v7572, 0.044715
        %v7829 = vmul.f32 %v7573, 0.044715
        %v7830 = vmul.f32 %v7574, 0.044715
        %v7831 = vmul.f32 %v7575, 0.044715
        %v7832 = vmul.f32 %v7576, 0.044715
        %v7833 = vmul.f32 %v7577, 0.044715
        %v7834 = vmul.f32 %v7578, 0.044715
        %v7835 = vmul.f32 %v7579, 0.044715
        %v7836 = vmul.f32 %v7580, 0.044715
        %v7837 = vmul.f32 %v7581, 0.044715
        %v7838 = vmul.f32 %v7582, 0.044715
        %v7839 = vmul.f32 %v7583, 0.044715
        %v7840 = vmul.f32 %v7584, 0.044715
        %v7841 = vmul.f32 %v7585, 0.044715
        %v7842 = vadd.f32 %v6337, %v7586
        %v7843 = vadd.f32 %v6339, %v7587
        %v7844 = vadd.f32 %v6530, %v7588
        %v7845 = vadd.f32 %v6532, %v7589
        %v7846 = vadd.f32 %v6723, %v7590
        %v7847 = vadd.f32 %v6725, %v7591
        %v7848 = vadd.f32 %v6916, %v7592
        %v7849 = vadd.f32 %v6918, %v7593
        %v7850 = vadd.f32 %v6341, %v7594
        %v7851 = vadd.f32 %v6343, %v7595
        %v7852 = vadd.f32 %v6534, %v7596
        %v7853 = vadd.f32 %v6536, %v7597
        %v7854 = vadd.f32 %v6727, %v7598
        %v7855 = vadd.f32 %v6729, %v7599
        %v7856 = vadd.f32 %v6920, %v7600
        %v7857 = vadd.f32 %v6922, %v7601
        %v7858 = vadd.f32 %v6347, %v7602
        %v7859 = vadd.f32 %v6349, %v7603
        %v7860 = vadd.f32 %v6540, %v7604
        %v7861 = vadd.f32 %v6542, %v7605
        %v7862 = vadd.f32 %v6733, %v7606
        %v7863 = vadd.f32 %v6735, %v7607
        %v7864 = vadd.f32 %v6926, %v7608
        %v7865 = vadd.f32 %v6928, %v7609
        %v7866 = vadd.f32 %v6351, %v7610
        %v7867 = vadd.f32 %v6353, %v7611
        %v7868 = vadd.f32 %v6544, %v7612
        %v7869 = vadd.f32 %v6546, %v7613
        %v7870 = vadd.f32 %v6737, %v7614
        %v7871 = vadd.f32 %v6739, %v7615
        %v7872 = vadd.f32 %v6930, %v7616
        %v7873 = vadd.f32 %v6932, %v7617
        %v7874 = vadd.f32 %v6357, %v7618
        %v7875 = vadd.f32 %v6359, %v7619
        %v7876 = vadd.f32 %v6550, %v7620
        %v7877 = vadd.f32 %v6552, %v7621
        %v7878 = vadd.f32 %v6743, %v7622
        %v7879 = vadd.f32 %v6745, %v7623
        %v7880 = vadd.f32 %v6936, %v7624
        %v7881 = vadd.f32 %v6938, %v7625
        %v7882 = vadd.f32 %v6361, %v7626
        %v7883 = vadd.f32 %v6363, %v7627
        %v7884 = vadd.f32 %v6554, %v7628
        %v7885 = vadd.f32 %v6556, %v7629
        %v7886 = vadd.f32 %v6747, %v7630
        %v7887 = vadd.f32 %v6749, %v7631
        %v7888 = vadd.f32 %v6940, %v7632
        %v7889 = vadd.f32 %v6942, %v7633
        %v7890 = vadd.f32 %v6367, %v7634
        %v7891 = vadd.f32 %v6369, %v7635
        %v7892 = vadd.f32 %v6560, %v7636
        %v7893 = vadd.f32 %v6562, %v7637
        %v7894 = vadd.f32 %v6753, %v7638
        %v7895 = vadd.f32 %v6755, %v7639
        %v7896 = vadd.f32 %v6946, %v7640
        %v7897 = vadd.f32 %v6948, %v7641
        %v7898 = vadd.f32 %v6371, %v7642
        %v7899 = vadd.f32 %v6373, %v7643
        %v7900 = vadd.f32 %v6564, %v7644
        %v7901 = vadd.f32 %v6566, %v7645
        %v7902 = vadd.f32 %v6757, %v7646
        %v7903 = vadd.f32 %v6759, %v7647
        %v7904 = vadd.f32 %v6950, %v7648
        %v7905 = vadd.f32 %v6952, %v7649
        %v7906 = vadd.f32 %v6377, %v7650
        %v7907 = vadd.f32 %v6379, %v7651
        %v7908 = vadd.f32 %v6570, %v7652
        %v7909 = vadd.f32 %v6572, %v7653
        %v7910 = vadd.f32 %v6763, %v7654
        %v7911 = vadd.f32 %v6765, %v7655
        %v7912 = vadd.f32 %v6956, %v7656
        %v7913 = vadd.f32 %v6958, %v7657
        %v7914 = vadd.f32 %v6381, %v7658
        %v7915 = vadd.f32 %v6383, %v7659
        %v7916 = vadd.f32 %v6574, %v7660
        %v7917 = vadd.f32 %v6576, %v7661
        %v7918 = vadd.f32 %v6767, %v7662
        %v7919 = vadd.f32 %v6769, %v7663
        %v7920 = vadd.f32 %v6960, %v7664
        %v7921 = vadd.f32 %v6962, %v7665
        %v7922 = vadd.f32 %v6387, %v7666
        %v7923 = vadd.f32 %v6389, %v7667
        %v7924 = vadd.f32 %v6580, %v7668
        %v7925 = vadd.f32 %v6582, %v7669
        %v7926 = vadd.f32 %v6773, %v7670
        %v7927 = vadd.f32 %v6775, %v7671
        %v7928 = vadd.f32 %v6966, %v7672
        %v7929 = vadd.f32 %v6968, %v7673
        %v7930 = vadd.f32 %v6391, %v7674
        %v7931 = vadd.f32 %v6393, %v7675
        %v7932 = vadd.f32 %v6584, %v7676
        %v7933 = vadd.f32 %v6586, %v7677
        %v7934 = vadd.f32 %v6777, %v7678
        %v7935 = vadd.f32 %v6779, %v7679
        %v7936 = vadd.f32 %v6970, %v7680
        %v7937 = vadd.f32 %v6972, %v7681
        %v7938 = vadd.f32 %v6397, %v7682
        %v7939 = vadd.f32 %v6399, %v7683
        %v7940 = vadd.f32 %v6590, %v7684
        %v7941 = vadd.f32 %v6592, %v7685
        %v7942 = vadd.f32 %v6783, %v7686
        %v7943 = vadd.f32 %v6785, %v7687
        %v7944 = vadd.f32 %v6976, %v7688
        %v7945 = vadd.f32 %v6978, %v7689
        %v7946 = vadd.f32 %v6401, %v7690
        %v7947 = vadd.f32 %v6403, %v7691
        %v7948 = vadd.f32 %v6594, %v7692
        %v7949 = vadd.f32 %v6596, %v7693
        %v7950 = vadd.f32 %v6787, %v7694
        %v7951 = vadd.f32 %v6789, %v7695
        %v7952 = vadd.f32 %v6980, %v7696
        %v7953 = vadd.f32 %v6982, %v7697
        %v7954 = vadd.f32 %v6407, %v7698
        %v7955 = vadd.f32 %v6409, %v7699
        %v7956 = vadd.f32 %v6600, %v7700
        %v7957 = vadd.f32 %v6602, %v7701
        %v7958 = vadd.f32 %v6793, %v7702
        %v7959 = vadd.f32 %v6795, %v7703
        %v7960 = vadd.f32 %v6986, %v7704
        %v7961 = vadd.f32 %v6988, %v7705
        %v7962 = vadd.f32 %v6411, %v7706
        %v7963 = vadd.f32 %v6413, %v7707
        %v7964 = vadd.f32 %v6604, %v7708
        %v7965 = vadd.f32 %v6606, %v7709
        %v7966 = vadd.f32 %v6797, %v7710
        %v7967 = vadd.f32 %v6799, %v7711
        %v7968 = vadd.f32 %v6990, %v7712
        %v7969 = vadd.f32 %v6992, %v7713
        %v7970 = vadd.f32 %v6417, %v7714
        %v7971 = vadd.f32 %v6419, %v7715
        %v7972 = vadd.f32 %v6610, %v7716
        %v7973 = vadd.f32 %v6612, %v7717
        %v7974 = vadd.f32 %v6803, %v7718
        %v7975 = vadd.f32 %v6805, %v7719
        %v7976 = vadd.f32 %v6996, %v7720
        %v7977 = vadd.f32 %v6998, %v7721
        %v7978 = vadd.f32 %v6421, %v7722
        %v7979 = vadd.f32 %v6423, %v7723
        %v7980 = vadd.f32 %v6614, %v7724
        %v7981 = vadd.f32 %v6616, %v7725
        %v7982 = vadd.f32 %v6807, %v7726
        %v7983 = vadd.f32 %v6809, %v7727
        %v7984 = vadd.f32 %v7000, %v7728
        %v7985 = vadd.f32 %v7002, %v7729
        %v7986 = vadd.f32 %v6427, %v7730
        %v7987 = vadd.f32 %v6429, %v7731
        %v7988 = vadd.f32 %v6620, %v7732
        %v7989 = vadd.f32 %v6622, %v7733
        %v7990 = vadd.f32 %v6813, %v7734
        %v7991 = vadd.f32 %v6815, %v7735
        %v7992 = vadd.f32 %v7006, %v7736
        %v7993 = vadd.f32 %v7008, %v7737
        %v7994 = vadd.f32 %v6431, %v7738
        %v7995 = vadd.f32 %v6433, %v7739
        %v7996 = vadd.f32 %v6624, %v7740
        %v7997 = vadd.f32 %v6626, %v7741
        %v7998 = vadd.f32 %v6817, %v7742
        %v7999 = vadd.f32 %v6819, %v7743
        %v8000 = vadd.f32 %v7010, %v7744
        %v8001 = vadd.f32 %v7012, %v7745
        %v8002 = vadd.f32 %v6437, %v7746
        %v8003 = vadd.f32 %v6439, %v7747
        %v8004 = vadd.f32 %v6630, %v7748
        %v8005 = vadd.f32 %v6632, %v7749
        %v8006 = vadd.f32 %v6823, %v7750
        %v8007 = vadd.f32 %v6825, %v7751
        %v8008 = vadd.f32 %v7016, %v7752
        %v8009 = vadd.f32 %v7018, %v7753
        %v8010 = vadd.f32 %v6441, %v7754
        %v8011 = vadd.f32 %v6443, %v7755
        %v8012 = vadd.f32 %v6634, %v7756
        %v8013 = vadd.f32 %v6636, %v7757
        %v8014 = vadd.f32 %v6827, %v7758
        %v8015 = vadd.f32 %v6829, %v7759
        %v8016 = vadd.f32 %v7020, %v7760
        %v8017 = vadd.f32 %v7022, %v7761
        %v8018 = vadd.f32 %v6447, %v7762
        %v8019 = vadd.f32 %v6449, %v7763
        %v8020 = vadd.f32 %v6640, %v7764
        %v8021 = vadd.f32 %v6642, %v7765
        %v8022 = vadd.f32 %v6833, %v7766
        %v8023 = vadd.f32 %v6835, %v7767
        %v8024 = vadd.f32 %v7026, %v7768
        %v8025 = vadd.f32 %v7028, %v7769
        %v8026 = vadd.f32 %v6451, %v7770
        %v8027 = vadd.f32 %v6453, %v7771
        %v8028 = vadd.f32 %v6644, %v7772
        %v8029 = vadd.f32 %v6646, %v7773
        %v8030 = vadd.f32 %v6837, %v7774
        %v8031 = vadd.f32 %v6839, %v7775
        %v8032 = vadd.f32 %v7030, %v7776
        %v8033 = vadd.f32 %v7032, %v7777
        %v8034 = vadd.f32 %v6457, %v7778
        %v8035 = vadd.f32 %v6459, %v7779
        %v8036 = vadd.f32 %v6650, %v7780
        %v8037 = vadd.f32 %v6652, %v7781
        %v8038 = vadd.f32 %v6843, %v7782
        %v8039 = vadd.f32 %v6845, %v7783
        %v8040 = vadd.f32 %v7036, %v7784
        %v8041 = vadd.f32 %v7038, %v7785
        %v8042 = vadd.f32 %v6461, %v7786
        %v8043 = vadd.f32 %v6463, %v7787
        %v8044 = vadd.f32 %v6654, %v7788
        %v8045 = vadd.f32 %v6656, %v7789
        %v8046 = vadd.f32 %v6847, %v7790
        %v8047 = vadd.f32 %v6849, %v7791
        %v8048 = vadd.f32 %v7040, %v7792
        %v8049 = vadd.f32 %v7042, %v7793
        %v8050 = vadd.f32 %v6467, %v7794
        %v8051 = vadd.f32 %v6469, %v7795
        %v8052 = vadd.f32 %v6660, %v7796
        %v8053 = vadd.f32 %v6662, %v7797
        %v8054 = vadd.f32 %v6853, %v7798
        %v8055 = vadd.f32 %v6855, %v7799
        %v8056 = vadd.f32 %v7046, %v7800
        %v8057 = vadd.f32 %v7048, %v7801
        %v8058 = vadd.f32 %v6471, %v7802
        %v8059 = vadd.f32 %v6473, %v7803
        %v8060 = vadd.f32 %v6664, %v7804
        %v8061 = vadd.f32 %v6666, %v7805
        %v8062 = vadd.f32 %v6857, %v7806
        %v8063 = vadd.f32 %v6859, %v7807
        %v8064 = vadd.f32 %v7050, %v7808
        %v8065 = vadd.f32 %v7052, %v7809
        %v8066 = vadd.f32 %v6477, %v7810
        %v8067 = vadd.f32 %v6479, %v7811
        %v8068 = vadd.f32 %v6670, %v7812
        %v8069 = vadd.f32 %v6672, %v7813
        %v8070 = vadd.f32 %v6863, %v7814
        %v8071 = vadd.f32 %v6865, %v7815
        %v8072 = vadd.f32 %v7056, %v7816
        %v8073 = vadd.f32 %v7058, %v7817
        %v8074 = vadd.f32 %v6481, %v7818
        %v8075 = vadd.f32 %v6483, %v7819
        %v8076 = vadd.f32 %v6674, %v7820
        %v8077 = vadd.f32 %v6676, %v7821
        %v8078 = vadd.f32 %v6867, %v7822
        %v8079 = vadd.f32 %v6869, %v7823
        %v8080 = vadd.f32 %v7060, %v7824
        %v8081 = vadd.f32 %v7062, %v7825
        %v8082 = vadd.f32 %v6487, %v7826
        %v8083 = vadd.f32 %v6489, %v7827
        %v8084 = vadd.f32 %v6680, %v7828
        %v8085 = vadd.f32 %v6682, %v7829
        %v8086 = vadd.f32 %v6873, %v7830
        %v8087 = vadd.f32 %v6875, %v7831
        %v8088 = vadd.f32 %v7066, %v7832
        %v8089 = vadd.f32 %v7068, %v7833
        %v8090 = vadd.f32 %v6491, %v7834
        %v8091 = vadd.f32 %v6493, %v7835
        %v8092 = vadd.f32 %v6684, %v7836
        %v8093 = vadd.f32 %v6686, %v7837
        %v8094 = vadd.f32 %v6877, %v7838
        %v8095 = vadd.f32 %v6879, %v7839
        %v8096 = vadd.f32 %v7070, %v7840
        %v8097 = vadd.f32 %v7072, %v7841
        %v8098 = vmul.f32 %v7842, 0.7978846
        %v8099 = vmul.f32 %v7843, 0.7978846
        %v8100 = vmul.f32 %v7844, 0.7978846
        %v8101 = vmul.f32 %v7845, 0.7978846
        %v8102 = vmul.f32 %v7846, 0.7978846
        %v8103 = vmul.f32 %v7847, 0.7978846
        %v8104 = vmul.f32 %v7848, 0.7978846
        %v8105 = vmul.f32 %v7849, 0.7978846
        %v8106 = vmul.f32 %v7850, 0.7978846
        %v8107 = vmul.f32 %v7851, 0.7978846
        %v8108 = vmul.f32 %v7852, 0.7978846
        %v8109 = vmul.f32 %v7853, 0.7978846
        %v8110 = vmul.f32 %v7854, 0.7978846
        %v8111 = vmul.f32 %v7855, 0.7978846
        %v8112 = vmul.f32 %v7856, 0.7978846
        %v8113 = vmul.f32 %v7857, 0.7978846
        %v8114 = vmul.f32 %v7858, 0.7978846
        %v8115 = vmul.f32 %v7859, 0.7978846
        %v8116 = vmul.f32 %v7860, 0.7978846
        %v8117 = vmul.f32 %v7861, 0.7978846
        %v8118 = vmul.f32 %v7862, 0.7978846
        %v8119 = vmul.f32 %v7863, 0.7978846
        %v8120 = vmul.f32 %v7864, 0.7978846
        %v8121 = vmul.f32 %v7865, 0.7978846
        %v8122 = vmul.f32 %v7866, 0.7978846
        %v8123 = vmul.f32 %v7867, 0.7978846
        %v8124 = vmul.f32 %v7868, 0.7978846
        %v8125 = vmul.f32 %v7869, 0.7978846
        %v8126 = vmul.f32 %v7870, 0.7978846
        %v8127 = vmul.f32 %v7871, 0.7978846
        %v8128 = vmul.f32 %v7872, 0.7978846
        %v8129 = vmul.f32 %v7873, 0.7978846
        %v8130 = vmul.f32 %v7874, 0.7978846
        %v8131 = vmul.f32 %v7875, 0.7978846
        %v8132 = vmul.f32 %v7876, 0.7978846
        %v8133 = vmul.f32 %v7877, 0.7978846
        %v8134 = vmul.f32 %v7878, 0.7978846
        %v8135 = vmul.f32 %v7879, 0.7978846
        %v8136 = vmul.f32 %v7880, 0.7978846
        %v8137 = vmul.f32 %v7881, 0.7978846
        %v8138 = vmul.f32 %v7882, 0.7978846
        %v8139 = vmul.f32 %v7883, 0.7978846
        %v8140 = vmul.f32 %v7884, 0.7978846
        %v8141 = vmul.f32 %v7885, 0.7978846
        %v8142 = vmul.f32 %v7886, 0.7978846
        %v8143 = vmul.f32 %v7887, 0.7978846
        %v8144 = vmul.f32 %v7888, 0.7978846
        %v8145 = vmul.f32 %v7889, 0.7978846
        %v8146 = vmul.f32 %v7890, 0.7978846
        %v8147 = vmul.f32 %v7891, 0.7978846
        %v8148 = vmul.f32 %v7892, 0.7978846
        %v8149 = vmul.f32 %v7893, 0.7978846
        %v8150 = vmul.f32 %v7894, 0.7978846
        %v8151 = vmul.f32 %v7895, 0.7978846
        %v8152 = vmul.f32 %v7896, 0.7978846
        %v8153 = vmul.f32 %v7897, 0.7978846
        %v8154 = vmul.f32 %v7898, 0.7978846
        %v8155 = vmul.f32 %v7899, 0.7978846
        %v8156 = vmul.f32 %v7900, 0.7978846
        %v8157 = vmul.f32 %v7901, 0.7978846
        %v8158 = vmul.f32 %v7902, 0.7978846
        %v8159 = vmul.f32 %v7903, 0.7978846
        %v8160 = vmul.f32 %v7904, 0.7978846
        %v8161 = vmul.f32 %v7905, 0.7978846
        %v8162 = vmul.f32 %v7906, 0.7978846
        %v8163 = vmul.f32 %v7907, 0.7978846
        %v8164 = vmul.f32 %v7908, 0.7978846
        %v8165 = vmul.f32 %v7909, 0.7978846
        %v8166 = vmul.f32 %v7910, 0.7978846
        %v8167 = vmul.f32 %v7911, 0.7978846
        %v8168 = vmul.f32 %v7912, 0.7978846
        %v8169 = vmul.f32 %v7913, 0.7978846
        %v8170 = vmul.f32 %v7914, 0.7978846
        %v8171 = vmul.f32 %v7915, 0.7978846
        %v8172 = vmul.f32 %v7916, 0.7978846
        %v8173 = vmul.f32 %v7917, 0.7978846
        %v8174 = vmul.f32 %v7918, 0.7978846
        %v8175 = vmul.f32 %v7919, 0.7978846
        %v8176 = vmul.f32 %v7920, 0.7978846
        %v8177 = vmul.f32 %v7921, 0.7978846
        %v8178 = vmul.f32 %v7922, 0.7978846
        %v8179 = vmul.f32 %v7923, 0.7978846
        %v8180 = vmul.f32 %v7924, 0.7978846
        %v8181 = vmul.f32 %v7925, 0.7978846
        %v8182 = vmul.f32 %v7926, 0.7978846
        %v8183 = vmul.f32 %v7927, 0.7978846
        %v8184 = vmul.f32 %v7928, 0.7978846
        %v8185 = vmul.f32 %v7929, 0.7978846
        %v8186 = vmul.f32 %v7930, 0.7978846
        %v8187 = vmul.f32 %v7931, 0.7978846
        %v8188 = vmul.f32 %v7932, 0.7978846
        %v8189 = vmul.f32 %v7933, 0.7978846
        %v8190 = vmul.f32 %v7934, 0.7978846
        %v8191 = vmul.f32 %v7935, 0.7978846
        %v8192 = vmul.f32 %v7936, 0.7978846
        %v8193 = vmul.f32 %v7937, 0.7978846
        %v8194 = vmul.f32 %v7938, 0.7978846
        %v8195 = vmul.f32 %v7939, 0.7978846
        %v8196 = vmul.f32 %v7940, 0.7978846
        %v8197 = vmul.f32 %v7941, 0.7978846
        %v8198 = vmul.f32 %v7942, 0.7978846
        %v8199 = vmul.f32 %v7943, 0.7978846
        %v8200 = vmul.f32 %v7944, 0.7978846
        %v8201 = vmul.f32 %v7945, 0.7978846
        %v8202 = vmul.f32 %v7946, 0.7978846
        %v8203 = vmul.f32 %v7947, 0.7978846
        %v8204 = vmul.f32 %v7948, 0.7978846
        %v8205 = vmul.f32 %v7949, 0.7978846
        %v8206 = vmul.f32 %v7950, 0.7978846
        %v8207 = vmul.f32 %v7951, 0.7978846
        %v8208 = vmul.f32 %v7952, 0.7978846
        %v8209 = vmul.f32 %v7953, 0.7978846
        %v8210 = vmul.f32 %v7954, 0.7978846
        %v8211 = vmul.f32 %v7955, 0.7978846
        %v8212 = vmul.f32 %v7956, 0.7978846
        %v8213 = vmul.f32 %v7957, 0.7978846
        %v8214 = vmul.f32 %v7958, 0.7978846
        %v8215 = vmul.f32 %v7959, 0.7978846
        %v8216 = vmul.f32 %v7960, 0.7978846
        %v8217 = vmul.f32 %v7961, 0.7978846
        %v8218 = vmul.f32 %v7962, 0.7978846
        %v8219 = vmul.f32 %v7963, 0.7978846
        %v8220 = vmul.f32 %v7964, 0.7978846
        %v8221 = vmul.f32 %v7965, 0.7978846
        %v8222 = vmul.f32 %v7966, 0.7978846
        %v8223 = vmul.f32 %v7967, 0.7978846
        %v8224 = vmul.f32 %v7968, 0.7978846
        %v8225 = vmul.f32 %v7969, 0.7978846
        %v8226 = vmul.f32 %v7970, 0.7978846
        %v8227 = vmul.f32 %v7971, 0.7978846
        %v8228 = vmul.f32 %v7972, 0.7978846
        %v8229 = vmul.f32 %v7973, 0.7978846
        %v8230 = vmul.f32 %v7974, 0.7978846
        %v8231 = vmul.f32 %v7975, 0.7978846
        %v8232 = vmul.f32 %v7976, 0.7978846
        %v8233 = vmul.f32 %v7977, 0.7978846
        %v8234 = vmul.f32 %v7978, 0.7978846
        %v8235 = vmul.f32 %v7979, 0.7978846
        %v8236 = vmul.f32 %v7980, 0.7978846
        %v8237 = vmul.f32 %v7981, 0.7978846
        %v8238 = vmul.f32 %v7982, 0.7978846
        %v8239 = vmul.f32 %v7983, 0.7978846
        %v8240 = vmul.f32 %v7984, 0.7978846
        %v8241 = vmul.f32 %v7985, 0.7978846
        %v8242 = vmul.f32 %v7986, 0.7978846
        %v8243 = vmul.f32 %v7987, 0.7978846
        %v8244 = vmul.f32 %v7988, 0.7978846
        %v8245 = vmul.f32 %v7989, 0.7978846
        %v8246 = vmul.f32 %v7990, 0.7978846
        %v8247 = vmul.f32 %v7991, 0.7978846
        %v8248 = vmul.f32 %v7992, 0.7978846
        %v8249 = vmul.f32 %v7993, 0.7978846
        %v8250 = vmul.f32 %v7994, 0.7978846
        %v8251 = vmul.f32 %v7995, 0.7978846
        %v8252 = vmul.f32 %v7996, 0.7978846
        %v8253 = vmul.f32 %v7997, 0.7978846
        %v8254 = vmul.f32 %v7998, 0.7978846
        %v8255 = vmul.f32 %v7999, 0.7978846
        %v8256 = vmul.f32 %v8000, 0.7978846
        %v8257 = vmul.f32 %v8001, 0.7978846
        %v8258 = vmul.f32 %v8002, 0.7978846
        %v8259 = vmul.f32 %v8003, 0.7978846
        %v8260 = vmul.f32 %v8004, 0.7978846
        %v8261 = vmul.f32 %v8005, 0.7978846
        %v8262 = vmul.f32 %v8006, 0.7978846
        %v8263 = vmul.f32 %v8007, 0.7978846
        %v8264 = vmul.f32 %v8008, 0.7978846
        %v8265 = vmul.f32 %v8009, 0.7978846
        %v8266 = vmul.f32 %v8010, 0.7978846
        %v8267 = vmul.f32 %v8011, 0.7978846
        %v8268 = vmul.f32 %v8012, 0.7978846
        %v8269 = vmul.f32 %v8013, 0.7978846
        %v8270 = vmul.f32 %v8014, 0.7978846
        %v8271 = vmul.f32 %v8015, 0.7978846
        %v8272 = vmul.f32 %v8016, 0.7978846
        %v8273 = vmul.f32 %v8017, 0.7978846
        %v8274 = vmul.f32 %v8018, 0.7978846
        %v8275 = vmul.f32 %v8019, 0.7978846
        %v8276 = vmul.f32 %v8020, 0.7978846
        %v8277 = vmul.f32 %v8021, 0.7978846
        %v8278 = vmul.f32 %v8022, 0.7978846
        %v8279 = vmul.f32 %v8023, 0.7978846
        %v8280 = vmul.f32 %v8024, 0.7978846
        %v8281 = vmul.f32 %v8025, 0.7978846
        %v8282 = vmul.f32 %v8026, 0.7978846
        %v8283 = vmul.f32 %v8027, 0.7978846
        %v8284 = vmul.f32 %v8028, 0.7978846
        %v8285 = vmul.f32 %v8029, 0.7978846
        %v8286 = vmul.f32 %v8030, 0.7978846
        %v8287 = vmul.f32 %v8031, 0.7978846
        %v8288 = vmul.f32 %v8032, 0.7978846
        %v8289 = vmul.f32 %v8033, 0.7978846
        %v8290 = vmul.f32 %v8034, 0.7978846
        %v8291 = vmul.f32 %v8035, 0.7978846
        %v8292 = vmul.f32 %v8036, 0.7978846
        %v8293 = vmul.f32 %v8037, 0.7978846
        %v8294 = vmul.f32 %v8038, 0.7978846
        %v8295 = vmul.f32 %v8039, 0.7978846
        %v8296 = vmul.f32 %v8040, 0.7978846
        %v8297 = vmul.f32 %v8041, 0.7978846
        %v8298 = vmul.f32 %v8042, 0.7978846
        %v8299 = vmul.f32 %v8043, 0.7978846
        %v8300 = vmul.f32 %v8044, 0.7978846
        %v8301 = vmul.f32 %v8045, 0.7978846
        %v8302 = vmul.f32 %v8046, 0.7978846
        %v8303 = vmul.f32 %v8047, 0.7978846
        %v8304 = vmul.f32 %v8048, 0.7978846
        %v8305 = vmul.f32 %v8049, 0.7978846
        %v8306 = vmul.f32 %v8050, 0.7978846
        %v8307 = vmul.f32 %v8051, 0.7978846
        %v8308 = vmul.f32 %v8052, 0.7978846
        %v8309 = vmul.f32 %v8053, 0.7978846
        %v8310 = vmul.f32 %v8054, 0.7978846
        %v8311 = vmul.f32 %v8055, 0.7978846
        %v8312 = vmul.f32 %v8056, 0.7978846
        %v8313 = vmul.f32 %v8057, 0.7978846
        %v8314 = vmul.f32 %v8058, 0.7978846
        %v8315 = vmul.f32 %v8059, 0.7978846
        %v8316 = vmul.f32 %v8060, 0.7978846
        %v8317 = vmul.f32 %v8061, 0.7978846
        %v8318 = vmul.f32 %v8062, 0.7978846
        %v8319 = vmul.f32 %v8063, 0.7978846
        %v8320 = vmul.f32 %v8064, 0.7978846
        %v8321 = vmul.f32 %v8065, 0.7978846
        %v8322 = vmul.f32 %v8066, 0.7978846
        %v8323 = vmul.f32 %v8067, 0.7978846
        %v8324 = vmul.f32 %v8068, 0.7978846
        %v8325 = vmul.f32 %v8069, 0.7978846
        %v8326 = vmul.f32 %v8070, 0.7978846
        %v8327 = vmul.f32 %v8071, 0.7978846
        %v8328 = vmul.f32 %v8072, 0.7978846
        %v8329 = vmul.f32 %v8073, 0.7978846
        %v8330 = vmul.f32 %v8074, 0.7978846
        %v8331 = vmul.f32 %v8075, 0.7978846
        %v8332 = vmul.f32 %v8076, 0.7978846
        %v8333 = vmul.f32 %v8077, 0.7978846
        %v8334 = vmul.f32 %v8078, 0.7978846
        %v8335 = vmul.f32 %v8079, 0.7978846
        %v8336 = vmul.f32 %v8080, 0.7978846
        %v8337 = vmul.f32 %v8081, 0.7978846
        %v8338 = vmul.f32 %v8082, 0.7978846
        %v8339 = vmul.f32 %v8083, 0.7978846
        %v8340 = vmul.f32 %v8084, 0.7978846
        %v8341 = vmul.f32 %v8085, 0.7978846
        %v8342 = vmul.f32 %v8086, 0.7978846
        %v8343 = vmul.f32 %v8087, 0.7978846
        %v8344 = vmul.f32 %v8088, 0.7978846
        %v8345 = vmul.f32 %v8089, 0.7978846
        %v8346 = vmul.f32 %v8090, 0.7978846
        %v8347 = vmul.f32 %v8091, 0.7978846
        %v8348 = vmul.f32 %v8092, 0.7978846
        %v8349 = vmul.f32 %v8093, 0.7978846
        %v8350 = vmul.f32 %v8094, 0.7978846
        %v8351 = vmul.f32 %v8095, 0.7978846
        %v8352 = vmul.f32 %v8096, 0.7978846
        %v8353 = vmul.f32 %v8097, 0.7978846
        %v8354 = vtanh.pop %v8098
        %v8355 = vtanh.pop %v8099
        %v8356 = vtanh.pop %v8100
        %v8357 = vtanh.pop %v8101
        %v8358 = vtanh.pop %v8102
        %v8359 = vtanh.pop %v8103
        %v8360 = vtanh.pop %v8104
        %v8361 = vtanh.pop %v8105
        %v8362 = vtanh.pop %v8106
        %v8363 = vtanh.pop %v8107
        %v8364 = vtanh.pop %v8108
        %v8365 = vtanh.pop %v8109
        %v8366 = vtanh.pop %v8110
        %v8367 = vtanh.pop %v8111
        %v8368 = vtanh.pop %v8112
        %v8369 = vtanh.pop %v8113
        %v8370 = vtanh.pop %v8114
        %v8371 = vtanh.pop %v8115
        %v8372 = vtanh.pop %v8116
        %v8373 = vtanh.pop %v8117
        %v8374 = vtanh.pop %v8118
        %v8375 = vtanh.pop %v8119
        %v8376 = vtanh.pop %v8120
        %v8377 = vtanh.pop %v8121
        %v8378 = vtanh.pop %v8122
        %v8379 = vtanh.pop %v8123
        %v8380 = vtanh.pop %v8124
        %v8381 = vtanh.pop %v8125
        %v8382 = vtanh.pop %v8126
        %v8383 = vtanh.pop %v8127
        %v8384 = vtanh.pop %v8128
        %v8385 = vtanh.pop %v8129
        %v8386 = vtanh.pop %v8130
        %v8387 = vtanh.pop %v8131
        %v8388 = vtanh.pop %v8132
        %v8389 = vtanh.pop %v8133
        %v8390 = vtanh.pop %v8134
        %v8391 = vtanh.pop %v8135
        %v8392 = vtanh.pop %v8136
        %v8393 = vtanh.pop %v8137
        %v8394 = vtanh.pop %v8138
        %v8395 = vtanh.pop %v8139
        %v8396 = vtanh.pop %v8140
        %v8397 = vtanh.pop %v8141
        %v8398 = vtanh.pop %v8142
        %v8399 = vtanh.pop %v8143
        %v8400 = vtanh.pop %v8144
        %v8401 = vtanh.pop %v8145
        %v8402 = vtanh.pop %v8146
        %v8403 = vtanh.pop %v8147
        %v8404 = vtanh.pop %v8148
        %v8405 = vtanh.pop %v8149
        %v8406 = vtanh.pop %v8150
        %v8407 = vtanh.pop %v8151
        %v8408 = vtanh.pop %v8152
        %v8409 = vtanh.pop %v8153
        %v8410 = vtanh.pop %v8154
        %v8411 = vtanh.pop %v8155
        %v8412 = vtanh.pop %v8156
        %v8413 = vtanh.pop %v8157
        %v8414 = vtanh.pop %v8158
        %v8415 = vtanh.pop %v8159
        %v8416 = vtanh.pop %v8160
        %v8417 = vtanh.pop %v8161
        %v8418 = vtanh.pop %v8162
        %v8419 = vtanh.pop %v8163
        %v8420 = vtanh.pop %v8164
        %v8421 = vtanh.pop %v8165
        %v8422 = vtanh.pop %v8166
        %v8423 = vtanh.pop %v8167
        %v8424 = vtanh.pop %v8168
        %v8425 = vtanh.pop %v8169
        %v8426 = vtanh.pop %v8170
        %v8427 = vtanh.pop %v8171
        %v8428 = vtanh.pop %v8172
        %v8429 = vtanh.pop %v8173
        %v8430 = vtanh.pop %v8174
        %v8431 = vtanh.pop %v8175
        %v8432 = vtanh.pop %v8176
        %v8433 = vtanh.pop %v8177
        %v8434 = vtanh.pop %v8178
        %v8435 = vtanh.pop %v8179
        %v8436 = vtanh.pop %v8180
        %v8437 = vtanh.pop %v8181
        %v8438 = vtanh.pop %v8182
        %v8439 = vtanh.pop %v8183
        %v8440 = vtanh.pop %v8184
        %v8441 = vtanh.pop %v8185
        %v8442 = vtanh.pop %v8186
        %v8443 = vtanh.pop %v8187
        %v8444 = vtanh.pop %v8188
        %v8445 = vtanh.pop %v8189
        %v8446 = vtanh.pop %v8190
        %v8447 = vtanh.pop %v8191
        %v8448 = vtanh.pop %v8192
        %v8449 = vtanh.pop %v8193
        %v8450 = vtanh.pop %v8194
        %v8451 = vtanh.pop %v8195
        %v8452 = vtanh.pop %v8196
        %v8453 = vtanh.pop %v8197
        %v8454 = vtanh.pop %v8198
        %v8455 = vtanh.pop %v8199
        %v8456 = vtanh.pop %v8200
        %v8457 = vtanh.pop %v8201
        %v8458 = vtanh.pop %v8202
        %v8459 = vtanh.pop %v8203
        %v8460 = vtanh.pop %v8204
        %v8461 = vtanh.pop %v8205
        %v8462 = vtanh.pop %v8206
        %v8463 = vtanh.pop %v8207
        %v8464 = vtanh.pop %v8208
        %v8465 = vtanh.pop %v8209
        %v8466 = vtanh.pop %v8210
        %v8467 = vtanh.pop %v8211
        %v8468 = vtanh.pop %v8212
        %v8469 = vtanh.pop %v8213
        %v8470 = vtanh.pop %v8214
        %v8471 = vtanh.pop %v8215
        %v8472 = vtanh.pop %v8216
        %v8473 = vtanh.pop %v8217
        %v8474 = vtanh.pop %v8218
        %v8475 = vtanh.pop %v8219
        %v8476 = vtanh.pop %v8220
        %v8477 = vtanh.pop %v8221
        %v8478 = vtanh.pop %v8222
        %v8479 = vtanh.pop %v8223
        %v8480 = vtanh.pop %v8224
        %v8481 = vtanh.pop %v8225
        %v8482 = vtanh.pop %v8226
        %v8483 = vtanh.pop %v8227
        %v8484 = vtanh.pop %v8228
        %v8485 = vtanh.pop %v8229
        %v8486 = vtanh.pop %v8230
        %v8487 = vtanh.pop %v8231
        %v8488 = vtanh.pop %v8232
        %v8489 = vtanh.pop %v8233
        %v8490 = vtanh.pop %v8234
        %v8491 = vtanh.pop %v8235
        %v8492 = vtanh.pop %v8236
        %v8493 = vtanh.pop %v8237
        %v8494 = vtanh.pop %v8238
        %v8495 = vtanh.pop %v8239
        %v8496 = vtanh.pop %v8240
        %v8497 = vtanh.pop %v8241
        %v8498 = vtanh.pop %v8242
        %v8499 = vtanh.pop %v8243
        %v8500 = vtanh.pop %v8244
        %v8501 = vtanh.pop %v8245
        %v8502 = vtanh.pop %v8246
        %v8503 = vtanh.pop %v8247
        %v8504 = vtanh.pop %v8248
        %v8505 = vtanh.pop %v8249
        %v8506 = vtanh.pop %v8250
        %v8507 = vtanh.pop %v8251
        %v8508 = vtanh.pop %v8252
        %v8509 = vtanh.pop %v8253
        %v8510 = vtanh.pop %v8254
        %v8511 = vtanh.pop %v8255
        %v8512 = vtanh.pop %v8256
        %v8513 = vtanh.pop %v8257
        %v8514 = vtanh.pop %v8258
        %v8515 = vtanh.pop %v8259
        %v8516 = vtanh.pop %v8260
        %v8517 = vtanh.pop %v8261
        %v8518 = vtanh.pop %v8262
        %v8519 = vtanh.pop %v8263
        %v8520 = vtanh.pop %v8264
        %v8521 = vtanh.pop %v8265
        %v8522 = vtanh.pop %v8266
        %v8523 = vtanh.pop %v8267
        %v8524 = vtanh.pop %v8268
        %v8525 = vtanh.pop %v8269
        %v8526 = vtanh.pop %v8270
        %v8527 = vtanh.pop %v8271
        %v8528 = vtanh.pop %v8272
        %v8529 = vtanh.pop %v8273
        %v8530 = vtanh.pop %v8274
        %v8531 = vtanh.pop %v8275
        %v8532 = vtanh.pop %v8276
        %v8533 = vtanh.pop %v8277
        %v8534 = vtanh.pop %v8278
        %v8535 = vtanh.pop %v8279
        %v8536 = vtanh.pop %v8280
        %v8537 = vtanh.pop %v8281
        %v8538 = vtanh.pop %v8282
        %v8539 = vtanh.pop %v8283
        %v8540 = vtanh.pop %v8284
        %v8541 = vtanh.pop %v8285
        %v8542 = vtanh.pop %v8286
        %v8543 = vtanh.pop %v8287
        %v8544 = vtanh.pop %v8288
        %v8545 = vtanh.pop %v8289
        %v8546 = vtanh.pop %v8290
        %v8547 = vtanh.pop %v8291
        %v8548 = vtanh.pop %v8292
        %v8549 = vtanh.pop %v8293
        %v8550 = vtanh.pop %v8294
        %v8551 = vtanh.pop %v8295
        %v8552 = vtanh.pop %v8296
        %v8553 = vtanh.pop %v8297
        %v8554 = vtanh.pop %v8298
        %v8555 = vtanh.pop %v8299
        %v8556 = vtanh.pop %v8300
        %v8557 = vtanh.pop %v8301
        %v8558 = vtanh.pop %v8302
        %v8559 = vtanh.pop %v8303
        %v8560 = vtanh.pop %v8304
        %v8561 = vtanh.pop %v8305
        %v8562 = vtanh.pop %v8306
        %v8563 = vtanh.pop %v8307
        %v8564 = vtanh.pop %v8308
        %v8565 = vtanh.pop %v8309
        %v8566 = vtanh.pop %v8310
        %v8567 = vtanh.pop %v8311
        %v8568 = vtanh.pop %v8312
        %v8569 = vtanh.pop %v8313
        %v8570 = vtanh.pop %v8314
        %v8571 = vtanh.pop %v8315
        %v8572 = vtanh.pop %v8316
        %v8573 = vtanh.pop %v8317
        %v8574 = vtanh.pop %v8318
        %v8575 = vtanh.pop %v8319
        %v8576 = vtanh.pop %v8320
        %v8577 = vtanh.pop %v8321
        %v8578 = vtanh.pop %v8322
        %v8579 = vtanh.pop %v8323
        %v8580 = vtanh.pop %v8324
        %v8581 = vtanh.pop %v8325
        %v8582 = vtanh.pop %v8326
        %v8583 = vtanh.pop %v8327
        %v8584 = vtanh.pop %v8328
        %v8585 = vtanh.pop %v8329
        %v8586 = vtanh.pop %v8330
        %v8587 = vtanh.pop %v8331
        %v8588 = vtanh.pop %v8332
        %v8589 = vtanh.pop %v8333
        %v8590 = vtanh.pop %v8334
        %v8591 = vtanh.pop %v8335
        %v8592 = vtanh.pop %v8336
        %v8593 = vtanh.pop %v8337
        %v8594 = vtanh.pop %v8338
        %v8595 = vtanh.pop %v8339
        %v8596 = vtanh.pop %v8340
        %v8597 = vtanh.pop %v8341
        %v8598 = vtanh.pop %v8342
        %v8599 = vtanh.pop %v8343
        %v8600 = vtanh.pop %v8344
        %v8601 = vtanh.pop %v8345
        %v8602 = vtanh.pop %v8346
        %v8603 = vtanh.pop %v8347
        %v8604 = vtanh.pop %v8348
        %v8605 = vtanh.pop %v8349
        %v8606 = vtanh.pop %v8350
        %v8607 = vtanh.pop %v8351
        %v8608 = vtanh.pop %v8352
        %v8609 = vtanh.pop %v8353
        %v8610 = vadd.f32 %v8354, 1.0
        %v8611 = vadd.f32 %v8355, 1.0
        %v8612 = vadd.f32 %v8356, 1.0
        %v8613 = vadd.f32 %v8357, 1.0
        %v8614 = vadd.f32 %v8358, 1.0
        %v8615 = vadd.f32 %v8359, 1.0
        %v8616 = vadd.f32 %v8360, 1.0
        %v8617 = vadd.f32 %v8361, 1.0
        %v8618 = vadd.f32 %v8362, 1.0
        %v8619 = vadd.f32 %v8363, 1.0
        %v8620 = vadd.f32 %v8364, 1.0
        %v8621 = vadd.f32 %v8365, 1.0
        %v8622 = vadd.f32 %v8366, 1.0
        %v8623 = vadd.f32 %v8367, 1.0
        %v8624 = vadd.f32 %v8368, 1.0
        %v8625 = vadd.f32 %v8369, 1.0
        %v8626 = vadd.f32 %v8370, 1.0
        %v8627 = vadd.f32 %v8371, 1.0
        %v8628 = vadd.f32 %v8372, 1.0
        %v8629 = vadd.f32 %v8373, 1.0
        %v8630 = vadd.f32 %v8374, 1.0
        %v8631 = vadd.f32 %v8375, 1.0
        %v8632 = vadd.f32 %v8376, 1.0
        %v8633 = vadd.f32 %v8377, 1.0
        %v8634 = vadd.f32 %v8378, 1.0
        %v8635 = vadd.f32 %v8379, 1.0
        %v8636 = vadd.f32 %v8380, 1.0
        %v8637 = vadd.f32 %v8381, 1.0
        %v8638 = vadd.f32 %v8382, 1.0
        %v8639 = vadd.f32 %v8383, 1.0
        %v8640 = vadd.f32 %v8384, 1.0
        %v8641 = vadd.f32 %v8385, 1.0
        %v8642 = vadd.f32 %v8386, 1.0
        %v8643 = vadd.f32 %v8387, 1.0
        %v8644 = vadd.f32 %v8388, 1.0
        %v8645 = vadd.f32 %v8389, 1.0
        %v8646 = vadd.f32 %v8390, 1.0
        %v8647 = vadd.f32 %v8391, 1.0
        %v8648 = vadd.f32 %v8392, 1.0
        %v8649 = vadd.f32 %v8393, 1.0
        %v8650 = vadd.f32 %v8394, 1.0
        %v8651 = vadd.f32 %v8395, 1.0
        %v8652 = vadd.f32 %v8396, 1.0
        %v8653 = vadd.f32 %v8397, 1.0
        %v8654 = vadd.f32 %v8398, 1.0
        %v8655 = vadd.f32 %v8399, 1.0
        %v8656 = vadd.f32 %v8400, 1.0
        %v8657 = vadd.f32 %v8401, 1.0
        %v8658 = vadd.f32 %v8402, 1.0
        %v8659 = vadd.f32 %v8403, 1.0
        %v8660 = vadd.f32 %v8404, 1.0
        %v8661 = vadd.f32 %v8405, 1.0
        %v8662 = vadd.f32 %v8406, 1.0
        %v8663 = vadd.f32 %v8407, 1.0
        %v8664 = vadd.f32 %v8408, 1.0
        %v8665 = vadd.f32 %v8409, 1.0
        %v8666 = vadd.f32 %v8410, 1.0
        %v8667 = vadd.f32 %v8411, 1.0
        %v8668 = vadd.f32 %v8412, 1.0
        %v8669 = vadd.f32 %v8413, 1.0
        %v8670 = vadd.f32 %v8414, 1.0
        %v8671 = vadd.f32 %v8415, 1.0
        %v8672 = vadd.f32 %v8416, 1.0
        %v8673 = vadd.f32 %v8417, 1.0
        %v8674 = vadd.f32 %v8418, 1.0
        %v8675 = vadd.f32 %v8419, 1.0
        %v8676 = vadd.f32 %v8420, 1.0
        %v8677 = vadd.f32 %v8421, 1.0
        %v8678 = vadd.f32 %v8422, 1.0
        %v8679 = vadd.f32 %v8423, 1.0
        %v8680 = vadd.f32 %v8424, 1.0
        %v8681 = vadd.f32 %v8425, 1.0
        %v8682 = vadd.f32 %v8426, 1.0
        %v8683 = vadd.f32 %v8427, 1.0
        %v8684 = vadd.f32 %v8428, 1.0
        %v8685 = vadd.f32 %v8429, 1.0
        %v8686 = vadd.f32 %v8430, 1.0
        %v8687 = vadd.f32 %v8431, 1.0
        %v8688 = vadd.f32 %v8432, 1.0
        %v8689 = vadd.f32 %v8433, 1.0
        %v8690 = vadd.f32 %v8434, 1.0
        %v8691 = vadd.f32 %v8435, 1.0
        %v8692 = vadd.f32 %v8436, 1.0
        %v8693 = vadd.f32 %v8437, 1.0
        %v8694 = vadd.f32 %v8438, 1.0
        %v8695 = vadd.f32 %v8439, 1.0
        %v8696 = vadd.f32 %v8440, 1.0
        %v8697 = vadd.f32 %v8441, 1.0
        %v8698 = vadd.f32 %v8442, 1.0
        %v8699 = vadd.f32 %v8443, 1.0
        %v8700 = vadd.f32 %v8444, 1.0
        %v8701 = vadd.f32 %v8445, 1.0
        %v8702 = vadd.f32 %v8446, 1.0
        %v8703 = vadd.f32 %v8447, 1.0
        %v8704 = vadd.f32 %v8448, 1.0
        %v8705 = vadd.f32 %v8449, 1.0
        %v8706 = vadd.f32 %v8450, 1.0
        %v8707 = vadd.f32 %v8451, 1.0
        %v8708 = vadd.f32 %v8452, 1.0
        %v8709 = vadd.f32 %v8453, 1.0
        %v8710 = vadd.f32 %v8454, 1.0
        %v8711 = vadd.f32 %v8455, 1.0
        %v8712 = vadd.f32 %v8456, 1.0
        %v8713 = vadd.f32 %v8457, 1.0
        %v8714 = vadd.f32 %v8458, 1.0
        %v8715 = vadd.f32 %v8459, 1.0
        %v8716 = vadd.f32 %v8460, 1.0
        %v8717 = vadd.f32 %v8461, 1.0
        %v8718 = vadd.f32 %v8462, 1.0
        %v8719 = vadd.f32 %v8463, 1.0
        %v8720 = vadd.f32 %v8464, 1.0
        %v8721 = vadd.f32 %v8465, 1.0
        %v8722 = vadd.f32 %v8466, 1.0
        %v8723 = vadd.f32 %v8467, 1.0
        %v8724 = vadd.f32 %v8468, 1.0
        %v8725 = vadd.f32 %v8469, 1.0
        %v8726 = vadd.f32 %v8470, 1.0
        %v8727 = vadd.f32 %v8471, 1.0
        %v8728 = vadd.f32 %v8472, 1.0
        %v8729 = vadd.f32 %v8473, 1.0
        %v8730 = vadd.f32 %v8474, 1.0
        %v8731 = vadd.f32 %v8475, 1.0
        %v8732 = vadd.f32 %v8476, 1.0
        %v8733 = vadd.f32 %v8477, 1.0
        %v8734 = vadd.f32 %v8478, 1.0
        %v8735 = vadd.f32 %v8479, 1.0
        %v8736 = vadd.f32 %v8480, 1.0
        %v8737 = vadd.f32 %v8481, 1.0
        %v8738 = vadd.f32 %v8482, 1.0
        %v8739 = vadd.f32 %v8483, 1.0
        %v8740 = vadd.f32 %v8484, 1.0
        %v8741 = vadd.f32 %v8485, 1.0
        %v8742 = vadd.f32 %v8486, 1.0
        %v8743 = vadd.f32 %v8487, 1.0
        %v8744 = vadd.f32 %v8488, 1.0
        %v8745 = vadd.f32 %v8489, 1.0
        %v8746 = vadd.f32 %v8490, 1.0
        %v8747 = vadd.f32 %v8491, 1.0
        %v8748 = vadd.f32 %v8492, 1.0
        %v8749 = vadd.f32 %v8493, 1.0
        %v8750 = vadd.f32 %v8494, 1.0
        %v8751 = vadd.f32 %v8495, 1.0
        %v8752 = vadd.f32 %v8496, 1.0
        %v8753 = vadd.f32 %v8497, 1.0
        %v8754 = vadd.f32 %v8498, 1.0
        %v8755 = vadd.f32 %v8499, 1.0
        %v8756 = vadd.f32 %v8500, 1.0
        %v8757 = vadd.f32 %v8501, 1.0
        %v8758 = vadd.f32 %v8502, 1.0
        %v8759 = vadd.f32 %v8503, 1.0
        %v8760 = vadd.f32 %v8504, 1.0
        %v8761 = vadd.f32 %v8505, 1.0
        %v8762 = vadd.f32 %v8506, 1.0
        %v8763 = vadd.f32 %v8507, 1.0
        %v8764 = vadd.f32 %v8508, 1.0
        %v8765 = vadd.f32 %v8509, 1.0
        %v8766 = vadd.f32 %v8510, 1.0
        %v8767 = vadd.f32 %v8511, 1.0
        %v8768 = vadd.f32 %v8512, 1.0
        %v8769 = vadd.f32 %v8513, 1.0
        %v8770 = vadd.f32 %v8514, 1.0
        %v8771 = vadd.f32 %v8515, 1.0
        %v8772 = vadd.f32 %v8516, 1.0
        %v8773 = vadd.f32 %v8517, 1.0
        %v8774 = vadd.f32 %v8518, 1.0
        %v8775 = vadd.f32 %v8519, 1.0
        %v8776 = vadd.f32 %v8520, 1.0
        %v8777 = vadd.f32 %v8521, 1.0
        %v8778 = vadd.f32 %v8522, 1.0
        %v8779 = vadd.f32 %v8523, 1.0
        %v8780 = vadd.f32 %v8524, 1.0
        %v8781 = vadd.f32 %v8525, 1.0
        %v8782 = vadd.f32 %v8526, 1.0
        %v8783 = vadd.f32 %v8527, 1.0
        %v8784 = vadd.f32 %v8528, 1.0
        %v8785 = vadd.f32 %v8529, 1.0
        %v8786 = vadd.f32 %v8530, 1.0
        %v8787 = vadd.f32 %v8531, 1.0
        %v8788 = vadd.f32 %v8532, 1.0
        %v8789 = vadd.f32 %v8533, 1.0
        %v8790 = vadd.f32 %v8534, 1.0
        %v8791 = vadd.f32 %v8535, 1.0
        %v8792 = vadd.f32 %v8536, 1.0
        %v8793 = vadd.f32 %v8537, 1.0
        %v8794 = vadd.f32 %v8538, 1.0
        %v8795 = vadd.f32 %v8539, 1.0
        %v8796 = vadd.f32 %v8540, 1.0
        %v8797 = vadd.f32 %v8541, 1.0
        %v8798 = vadd.f32 %v8542, 1.0
        %v8799 = vadd.f32 %v8543, 1.0
        %v8800 = vadd.f32 %v8544, 1.0
        %v8801 = vadd.f32 %v8545, 1.0
        %v8802 = vadd.f32 %v8546, 1.0
        %v8803 = vadd.f32 %v8547, 1.0
        %v8804 = vadd.f32 %v8548, 1.0
        %v8805 = vadd.f32 %v8549, 1.0
        %v8806 = vadd.f32 %v8550, 1.0
        %v8807 = vadd.f32 %v8551, 1.0
        %v8808 = vadd.f32 %v8552, 1.0
        %v8809 = vadd.f32 %v8553, 1.0
        %v8810 = vadd.f32 %v8554, 1.0
        %v8811 = vadd.f32 %v8555, 1.0
        %v8812 = vadd.f32 %v8556, 1.0
        %v8813 = vadd.f32 %v8557, 1.0
        %v8814 = vadd.f32 %v8558, 1.0
        %v8815 = vadd.f32 %v8559, 1.0
        %v8816 = vadd.f32 %v8560, 1.0
        %v8817 = vadd.f32 %v8561, 1.0
        %v8818 = vadd.f32 %v8562, 1.0
        %v8819 = vadd.f32 %v8563, 1.0
        %v8820 = vadd.f32 %v8564, 1.0
        %v8821 = vadd.f32 %v8565, 1.0
        %v8822 = vadd.f32 %v8566, 1.0
        %v8823 = vadd.f32 %v8567, 1.0
        %v8824 = vadd.f32 %v8568, 1.0
        %v8825 = vadd.f32 %v8569, 1.0
        %v8826 = vadd.f32 %v8570, 1.0
        %v8827 = vadd.f32 %v8571, 1.0
        %v8828 = vadd.f32 %v8572, 1.0
        %v8829 = vadd.f32 %v8573, 1.0
        %v8830 = vadd.f32 %v8574, 1.0
        %v8831 = vadd.f32 %v8575, 1.0
        %v8832 = vadd.f32 %v8576, 1.0
        %v8833 = vadd.f32 %v8577, 1.0
        %v8834 = vadd.f32 %v8578, 1.0
        %v8835 = vadd.f32 %v8579, 1.0
        %v8836 = vadd.f32 %v8580, 1.0
        %v8837 = vadd.f32 %v8581, 1.0
        %v8838 = vadd.f32 %v8582, 1.0
        %v8839 = vadd.f32 %v8583, 1.0
        %v8840 = vadd.f32 %v8584, 1.0
        %v8841 = vadd.f32 %v8585, 1.0
        %v8842 = vadd.f32 %v8586, 1.0
        %v8843 = vadd.f32 %v8587, 1.0
        %v8844 = vadd.f32 %v8588, 1.0
        %v8845 = vadd.f32 %v8589, 1.0
        %v8846 = vadd.f32 %v8590, 1.0
        %v8847 = vadd.f32 %v8591, 1.0
        %v8848 = vadd.f32 %v8592, 1.0
        %v8849 = vadd.f32 %v8593, 1.0
        %v8850 = vadd.f32 %v8594, 1.0
        %v8851 = vadd.f32 %v8595, 1.0
        %v8852 = vadd.f32 %v8596, 1.0
        %v8853 = vadd.f32 %v8597, 1.0
        %v8854 = vadd.f32 %v8598, 1.0
        %v8855 = vadd.f32 %v8599, 1.0
        %v8856 = vadd.f32 %v8600, 1.0
        %v8857 = vadd.f32 %v8601, 1.0
        %v8858 = vadd.f32 %v8602, 1.0
        %v8859 = vadd.f32 %v8603, 1.0
        %v8860 = vadd.f32 %v8604, 1.0
        %v8861 = vadd.f32 %v8605, 1.0
        %v8862 = vadd.f32 %v8606, 1.0
        %v8863 = vadd.f32 %v8607, 1.0
        %v8864 = vadd.f32 %v8608, 1.0
        %v8865 = vadd.f32 %v8609, 1.0
        %v8866 = vmul.f32 %v8610, 0.5
        %v8867 = vmul.f32 %v8611, 0.5
        %v8868 = vmul.f32 %v8612, 0.5
        %v8869 = vmul.f32 %v8613, 0.5
        %v8870 = vmul.f32 %v8614, 0.5
        %v8871 = vmul.f32 %v8615, 0.5
        %v8872 = vmul.f32 %v8616, 0.5
        %v8873 = vmul.f32 %v8617, 0.5
        %v8874 = vmul.f32 %v8618, 0.5
        %v8875 = vmul.f32 %v8619, 0.5
        %v8876 = vmul.f32 %v8620, 0.5
        %v8877 = vmul.f32 %v8621, 0.5
        %v8878 = vmul.f32 %v8622, 0.5
        %v8879 = vmul.f32 %v8623, 0.5
        %v8880 = vmul.f32 %v8624, 0.5
        %v8881 = vmul.f32 %v8625, 0.5
        %v8882 = vmul.f32 %v8626, 0.5
        %v8883 = vmul.f32 %v8627, 0.5
        %v8884 = vmul.f32 %v8628, 0.5
        %v8885 = vmul.f32 %v8629, 0.5
        %v8886 = vmul.f32 %v8630, 0.5
        %v8887 = vmul.f32 %v8631, 0.5
        %v8888 = vmul.f32 %v8632, 0.5
        %v8889 = vmul.f32 %v8633, 0.5
        %v8890 = vmul.f32 %v8634, 0.5
        %v8891 = vmul.f32 %v8635, 0.5
        %v8892 = vmul.f32 %v8636, 0.5
        %v8893 = vmul.f32 %v8637, 0.5
        %v8894 = vmul.f32 %v8638, 0.5
        %v8895 = vmul.f32 %v8639, 0.5
        %v8896 = vmul.f32 %v8640, 0.5
        %v8897 = vmul.f32 %v8641, 0.5
        %v8898 = vmul.f32 %v8642, 0.5
        %v8899 = vmul.f32 %v8643, 0.5
        %v8900 = vmul.f32 %v8644, 0.5
        %v8901 = vmul.f32 %v8645, 0.5
        %v8902 = vmul.f32 %v8646, 0.5
        %v8903 = vmul.f32 %v8647, 0.5
        %v8904 = vmul.f32 %v8648, 0.5
        %v8905 = vmul.f32 %v8649, 0.5
        %v8906 = vmul.f32 %v8650, 0.5
        %v8907 = vmul.f32 %v8651, 0.5
        %v8908 = vmul.f32 %v8652, 0.5
        %v8909 = vmul.f32 %v8653, 0.5
        %v8910 = vmul.f32 %v8654, 0.5
        %v8911 = vmul.f32 %v8655, 0.5
        %v8912 = vmul.f32 %v8656, 0.5
        %v8913 = vmul.f32 %v8657, 0.5
        %v8914 = vmul.f32 %v8658, 0.5
        %v8915 = vmul.f32 %v8659, 0.5
        %v8916 = vmul.f32 %v8660, 0.5
        %v8917 = vmul.f32 %v8661, 0.5
        %v8918 = vmul.f32 %v8662, 0.5
        %v8919 = vmul.f32 %v8663, 0.5
        %v8920 = vmul.f32 %v8664, 0.5
        %v8921 = vmul.f32 %v8665, 0.5
        %v8922 = vmul.f32 %v8666, 0.5
        %v8923 = vmul.f32 %v8667, 0.5
        %v8924 = vmul.f32 %v8668, 0.5
        %v8925 = vmul.f32 %v8669, 0.5
        %v8926 = vmul.f32 %v8670, 0.5
        %v8927 = vmul.f32 %v8671, 0.5
        %v8928 = vmul.f32 %v8672, 0.5
        %v8929 = vmul.f32 %v8673, 0.5
        %v8930 = vmul.f32 %v8674, 0.5
        %v8931 = vmul.f32 %v8675, 0.5
        %v8932 = vmul.f32 %v8676, 0.5
        %v8933 = vmul.f32 %v8677, 0.5
        %v8934 = vmul.f32 %v8678, 0.5
        %v8935 = vmul.f32 %v8679, 0.5
        %v8936 = vmul.f32 %v8680, 0.5
        %v8937 = vmul.f32 %v8681, 0.5
        %v8938 = vmul.f32 %v8682, 0.5
        %v8939 = vmul.f32 %v8683, 0.5
        %v8940 = vmul.f32 %v8684, 0.5
        %v8941 = vmul.f32 %v8685, 0.5
        %v8942 = vmul.f32 %v8686, 0.5
        %v8943 = vmul.f32 %v8687, 0.5
        %v8944 = vmul.f32 %v8688, 0.5
        %v8945 = vmul.f32 %v8689, 0.5
        %v8946 = vmul.f32 %v8690, 0.5
        %v8947 = vmul.f32 %v8691, 0.5
        %v8948 = vmul.f32 %v8692, 0.5
        %v8949 = vmul.f32 %v8693, 0.5
        %v8950 = vmul.f32 %v8694, 0.5
        %v8951 = vmul.f32 %v8695, 0.5
        %v8952 = vmul.f32 %v8696, 0.5
        %v8953 = vmul.f32 %v8697, 0.5
        %v8954 = vmul.f32 %v8698, 0.5
        %v8955 = vmul.f32 %v8699, 0.5
        %v8956 = vmul.f32 %v8700, 0.5
        %v8957 = vmul.f32 %v8701, 0.5
        %v8958 = vmul.f32 %v8702, 0.5
        %v8959 = vmul.f32 %v8703, 0.5
        %v8960 = vmul.f32 %v8704, 0.5
        %v8961 = vmul.f32 %v8705, 0.5
        %v8962 = vmul.f32 %v8706, 0.5
        %v8963 = vmul.f32 %v8707, 0.5
        %v8964 = vmul.f32 %v8708, 0.5
        %v8965 = vmul.f32 %v8709, 0.5
        %v8966 = vmul.f32 %v8710, 0.5
        %v8967 = vmul.f32 %v8711, 0.5
        %v8968 = vmul.f32 %v8712, 0.5
        %v8969 = vmul.f32 %v8713, 0.5
        %v8970 = vmul.f32 %v8714, 0.5
        %v8971 = vmul.f32 %v8715, 0.5
        %v8972 = vmul.f32 %v8716, 0.5
        %v8973 = vmul.f32 %v8717, 0.5
        %v8974 = vmul.f32 %v8718, 0.5
        %v8975 = vmul.f32 %v8719, 0.5
        %v8976 = vmul.f32 %v8720, 0.5
        %v8977 = vmul.f32 %v8721, 0.5
        %v8978 = vmul.f32 %v8722, 0.5
        %v8979 = vmul.f32 %v8723, 0.5
        %v8980 = vmul.f32 %v8724, 0.5
        %v8981 = vmul.f32 %v8725, 0.5
        %v8982 = vmul.f32 %v8726, 0.5
        %v8983 = vmul.f32 %v8727, 0.5
        %v8984 = vmul.f32 %v8728, 0.5
        %v8985 = vmul.f32 %v8729, 0.5
        %v8986 = vmul.f32 %v8730, 0.5
        %v8987 = vmul.f32 %v8731, 0.5
        %v8988 = vmul.f32 %v8732, 0.5
        %v8989 = vmul.f32 %v8733, 0.5
        %v8990 = vmul.f32 %v8734, 0.5
        %v8991 = vmul.f32 %v8735, 0.5
        %v8992 = vmul.f32 %v8736, 0.5
        %v8993 = vmul.f32 %v8737, 0.5
        %v8994 = vmul.f32 %v8738, 0.5
        %v8995 = vmul.f32 %v8739, 0.5
        %v8996 = vmul.f32 %v8740, 0.5
        %v8997 = vmul.f32 %v8741, 0.5
        %v8998 = vmul.f32 %v8742, 0.5
        %v8999 = vmul.f32 %v8743, 0.5
        %v9000 = vmul.f32 %v8744, 0.5
        %v9001 = vmul.f32 %v8745, 0.5
        %v9002 = vmul.f32 %v8746, 0.5
        %v9003 = vmul.f32 %v8747, 0.5
        %v9004 = vmul.f32 %v8748, 0.5
        %v9005 = vmul.f32 %v8749, 0.5
        %v9006 = vmul.f32 %v8750, 0.5
        %v9007 = vmul.f32 %v8751, 0.5
        %v9008 = vmul.f32 %v8752, 0.5
        %v9009 = vmul.f32 %v8753, 0.5
        %v9010 = vmul.f32 %v8754, 0.5
        %v9011 = vmul.f32 %v8755, 0.5
        %v9012 = vmul.f32 %v8756, 0.5
        %v9013 = vmul.f32 %v8757, 0.5
        %v9014 = vmul.f32 %v8758, 0.5
        %v9015 = vmul.f32 %v8759, 0.5
        %v9016 = vmul.f32 %v8760, 0.5
        %v9017 = vmul.f32 %v8761, 0.5
        %v9018 = vmul.f32 %v8762, 0.5
        %v9019 = vmul.f32 %v8763, 0.5
        %v9020 = vmul.f32 %v8764, 0.5
        %v9021 = vmul.f32 %v8765, 0.5
        %v9022 = vmul.f32 %v8766, 0.5
        %v9023 = vmul.f32 %v8767, 0.5
        %v9024 = vmul.f32 %v8768, 0.5
        %v9025 = vmul.f32 %v8769, 0.5
        %v9026 = vmul.f32 %v8770, 0.5
        %v9027 = vmul.f32 %v8771, 0.5
        %v9028 = vmul.f32 %v8772, 0.5
        %v9029 = vmul.f32 %v8773, 0.5
        %v9030 = vmul.f32 %v8774, 0.5
        %v9031 = vmul.f32 %v8775, 0.5
        %v9032 = vmul.f32 %v8776, 0.5
        %v9033 = vmul.f32 %v8777, 0.5
        %v9034 = vmul.f32 %v8778, 0.5
        %v9035 = vmul.f32 %v8779, 0.5
        %v9036 = vmul.f32 %v8780, 0.5
        %v9037 = vmul.f32 %v8781, 0.5
        %v9038 = vmul.f32 %v8782, 0.5
        %v9039 = vmul.f32 %v8783, 0.5
        %v9040 = vmul.f32 %v8784, 0.5
        %v9041 = vmul.f32 %v8785, 0.5
        %v9042 = vmul.f32 %v8786, 0.5
        %v9043 = vmul.f32 %v8787, 0.5
        %v9044 = vmul.f32 %v8788, 0.5
        %v9045 = vmul.f32 %v8789, 0.5
        %v9046 = vmul.f32 %v8790, 0.5
        %v9047 = vmul.f32 %v8791, 0.5
        %v9048 = vmul.f32 %v8792, 0.5
        %v9049 = vmul.f32 %v8793, 0.5
        %v9050 = vmul.f32 %v8794, 0.5
        %v9051 = vmul.f32 %v8795, 0.5
        %v9052 = vmul.f32 %v8796, 0.5
        %v9053 = vmul.f32 %v8797, 0.5
        %v9054 = vmul.f32 %v8798, 0.5
        %v9055 = vmul.f32 %v8799, 0.5
        %v9056 = vmul.f32 %v8800, 0.5
        %v9057 = vmul.f32 %v8801, 0.5
        %v9058 = vmul.f32 %v8802, 0.5
        %v9059 = vmul.f32 %v8803, 0.5
        %v9060 = vmul.f32 %v8804, 0.5
        %v9061 = vmul.f32 %v8805, 0.5
        %v9062 = vmul.f32 %v8806, 0.5
        %v9063 = vmul.f32 %v8807, 0.5
        %v9064 = vmul.f32 %v8808, 0.5
        %v9065 = vmul.f32 %v8809, 0.5
        %v9066 = vmul.f32 %v8810, 0.5
        %v9067 = vmul.f32 %v8811, 0.5
        %v9068 = vmul.f32 %v8812, 0.5
        %v9069 = vmul.f32 %v8813, 0.5
        %v9070 = vmul.f32 %v8814, 0.5
        %v9071 = vmul.f32 %v8815, 0.5
        %v9072 = vmul.f32 %v8816, 0.5
        %v9073 = vmul.f32 %v8817, 0.5
        %v9074 = vmul.f32 %v8818, 0.5
        %v9075 = vmul.f32 %v8819, 0.5
        %v9076 = vmul.f32 %v8820, 0.5
        %v9077 = vmul.f32 %v8821, 0.5
        %v9078 = vmul.f32 %v8822, 0.5
        %v9079 = vmul.f32 %v8823, 0.5
        %v9080 = vmul.f32 %v8824, 0.5
        %v9081 = vmul.f32 %v8825, 0.5
        %v9082 = vmul.f32 %v8826, 0.5
        %v9083 = vmul.f32 %v8827, 0.5
        %v9084 = vmul.f32 %v8828, 0.5
        %v9085 = vmul.f32 %v8829, 0.5
        %v9086 = vmul.f32 %v8830, 0.5
        %v9087 = vmul.f32 %v8831, 0.5
        %v9088 = vmul.f32 %v8832, 0.5
        %v9089 = vmul.f32 %v8833, 0.5
        %v9090 = vmul.f32 %v8834, 0.5
        %v9091 = vmul.f32 %v8835, 0.5
        %v9092 = vmul.f32 %v8836, 0.5
        %v9093 = vmul.f32 %v8837, 0.5
        %v9094 = vmul.f32 %v8838, 0.5
        %v9095 = vmul.f32 %v8839, 0.5
        %v9096 = vmul.f32 %v8840, 0.5
        %v9097 = vmul.f32 %v8841, 0.5
        %v9098 = vmul.f32 %v8842, 0.5
        %v9099 = vmul.f32 %v8843, 0.5
        %v9100 = vmul.f32 %v8844, 0.5
        %v9101 = vmul.f32 %v8845, 0.5
        %v9102 = vmul.f32 %v8846, 0.5
        %v9103 = vmul.f32 %v8847, 0.5
        %v9104 = vmul.f32 %v8848, 0.5
        %v9105 = vmul.f32 %v8849, 0.5
        %v9106 = vmul.f32 %v8850, 0.5
        %v9107 = vmul.f32 %v8851, 0.5
        %v9108 = vmul.f32 %v8852, 0.5
        %v9109 = vmul.f32 %v8853, 0.5
        %v9110 = vmul.f32 %v8854, 0.5
        %v9111 = vmul.f32 %v8855, 0.5
        %v9112 = vmul.f32 %v8856, 0.5
        %v9113 = vmul.f32 %v8857, 0.5
        %v9114 = vmul.f32 %v8858, 0.5
        %v9115 = vmul.f32 %v8859, 0.5
        %v9116 = vmul.f32 %v8860, 0.5
        %v9117 = vmul.f32 %v8861, 0.5
        %v9118 = vmul.f32 %v8862, 0.5
        %v9119 = vmul.f32 %v8863, 0.5
        %v9120 = vmul.f32 %v8864, 0.5
        %v9121 = vmul.f32 %v8865, 0.5
        %v9122 = vmul.f32 %v6337, %v8866
        %v9123 = vmul.f32 %v6339, %v8867
        %v9124 = vmul.f32 %v6530, %v8868
        %v9125 = vmul.f32 %v6532, %v8869
        %v9126 = vmul.f32 %v6723, %v8870
        %v9127 = vmul.f32 %v6725, %v8871
        %v9128 = vmul.f32 %v6916, %v8872
        %v9129 = vmul.f32 %v6918, %v8873
        %v9130 = vmul.f32 %v6341, %v8874
        %v9131 = vmul.f32 %v6343, %v8875
        %v9132 = vmul.f32 %v6534, %v8876
        %v9133 = vmul.f32 %v6536, %v8877
        %v9134 = vmul.f32 %v6727, %v8878
        %v9135 = vmul.f32 %v6729, %v8879
        %v9136 = vmul.f32 %v6920, %v8880
        %v9137 = vmul.f32 %v6922, %v8881
        %v9138 = vmul.f32 %v6347, %v8882
        %v9139 = vmul.f32 %v6349, %v8883
        %v9140 = vmul.f32 %v6540, %v8884
        %v9141 = vmul.f32 %v6542, %v8885
        %v9142 = vmul.f32 %v6733, %v8886
        %v9143 = vmul.f32 %v6735, %v8887
        %v9144 = vmul.f32 %v6926, %v8888
        %v9145 = vmul.f32 %v6928, %v8889
        %v9146 = vmul.f32 %v6351, %v8890
        %v9147 = vmul.f32 %v6353, %v8891
        %v9148 = vmul.f32 %v6544, %v8892
        %v9149 = vmul.f32 %v6546, %v8893
        %v9150 = vmul.f32 %v6737, %v8894
        %v9151 = vmul.f32 %v6739, %v8895
        %v9152 = vmul.f32 %v6930, %v8896
        %v9153 = vmul.f32 %v6932, %v8897
        %v9154 = vmul.f32 %v6357, %v8898
        %v9155 = vmul.f32 %v6359, %v8899
        %v9156 = vmul.f32 %v6550, %v8900
        %v9157 = vmul.f32 %v6552, %v8901
        %v9158 = vmul.f32 %v6743, %v8902
        %v9159 = vmul.f32 %v6745, %v8903
        %v9160 = vmul.f32 %v6936, %v8904
        %v9161 = vmul.f32 %v6938, %v8905
        %v9162 = vmul.f32 %v6361, %v8906
        %v9163 = vmul.f32 %v6363, %v8907
        %v9164 = vmul.f32 %v6554, %v8908
        %v9165 = vmul.f32 %v6556, %v8909
        %v9166 = vmul.f32 %v6747, %v8910
        %v9167 = vmul.f32 %v6749, %v8911
        %v9168 = vmul.f32 %v6940, %v8912
        %v9169 = vmul.f32 %v6942, %v8913
        %v9170 = vmul.f32 %v6367, %v8914
        %v9171 = vmul.f32 %v6369, %v8915
        %v9172 = vmul.f32 %v6560, %v8916
        %v9173 = vmul.f32 %v6562, %v8917
        %v9174 = vmul.f32 %v6753, %v8918
        %v9175 = vmul.f32 %v6755, %v8919
        %v9176 = vmul.f32 %v6946, %v8920
        %v9177 = vmul.f32 %v6948, %v8921
        %v9178 = vmul.f32 %v6371, %v8922
        %v9179 = vmul.f32 %v6373, %v8923
        %v9180 = vmul.f32 %v6564, %v8924
        %v9181 = vmul.f32 %v6566, %v8925
        %v9182 = vmul.f32 %v6757, %v8926
        %v9183 = vmul.f32 %v6759, %v8927
        %v9184 = vmul.f32 %v6950, %v8928
        %v9185 = vmul.f32 %v6952, %v8929
        %v9186 = vmul.f32 %v6377, %v8930
        %v9187 = vmul.f32 %v6379, %v8931
        %v9188 = vmul.f32 %v6570, %v8932
        %v9189 = vmul.f32 %v6572, %v8933
        %v9190 = vmul.f32 %v6763, %v8934
        %v9191 = vmul.f32 %v6765, %v8935
        %v9192 = vmul.f32 %v6956, %v8936
        %v9193 = vmul.f32 %v6958, %v8937
        %v9194 = vmul.f32 %v6381, %v8938
        %v9195 = vmul.f32 %v6383, %v8939
        %v9196 = vmul.f32 %v6574, %v8940
        %v9197 = vmul.f32 %v6576, %v8941
        %v9198 = vmul.f32 %v6767, %v8942
        %v9199 = vmul.f32 %v6769, %v8943
        %v9200 = vmul.f32 %v6960, %v8944
        %v9201 = vmul.f32 %v6962, %v8945
        %v9202 = vmul.f32 %v6387, %v8946
        %v9203 = vmul.f32 %v6389, %v8947
        %v9204 = vmul.f32 %v6580, %v8948
        %v9205 = vmul.f32 %v6582, %v8949
        %v9206 = vmul.f32 %v6773, %v8950
        %v9207 = vmul.f32 %v6775, %v8951
        %v9208 = vmul.f32 %v6966, %v8952
        %v9209 = vmul.f32 %v6968, %v8953
        %v9210 = vmul.f32 %v6391, %v8954
        %v9211 = vmul.f32 %v6393, %v8955
        %v9212 = vmul.f32 %v6584, %v8956
        %v9213 = vmul.f32 %v6586, %v8957
        %v9214 = vmul.f32 %v6777, %v8958
        %v9215 = vmul.f32 %v6779, %v8959
        %v9216 = vmul.f32 %v6970, %v8960
        %v9217 = vmul.f32 %v6972, %v8961
        %v9218 = vmul.f32 %v6397, %v8962
        %v9219 = vmul.f32 %v6399, %v8963
        %v9220 = vmul.f32 %v6590, %v8964
        %v9221 = vmul.f32 %v6592, %v8965
        %v9222 = vmul.f32 %v6783, %v8966
        %v9223 = vmul.f32 %v6785, %v8967
        %v9224 = vmul.f32 %v6976, %v8968
        %v9225 = vmul.f32 %v6978, %v8969
        %v9226 = vmul.f32 %v6401, %v8970
        %v9227 = vmul.f32 %v6403, %v8971
        %v9228 = vmul.f32 %v6594, %v8972
        %v9229 = vmul.f32 %v6596, %v8973
        %v9230 = vmul.f32 %v6787, %v8974
        %v9231 = vmul.f32 %v6789, %v8975
        %v9232 = vmul.f32 %v6980, %v8976
        %v9233 = vmul.f32 %v6982, %v8977
        %v9234 = vmul.f32 %v6407, %v8978
        %v9235 = vmul.f32 %v6409, %v8979
        %v9236 = vmul.f32 %v6600, %v8980
        %v9237 = vmul.f32 %v6602, %v8981
        %v9238 = vmul.f32 %v6793, %v8982
        %v9239 = vmul.f32 %v6795, %v8983
        %v9240 = vmul.f32 %v6986, %v8984
        %v9241 = vmul.f32 %v6988, %v8985
        %v9242 = vmul.f32 %v6411, %v8986
        %v9243 = vmul.f32 %v6413, %v8987
        %v9244 = vmul.f32 %v6604, %v8988
        %v9245 = vmul.f32 %v6606, %v8989
        %v9246 = vmul.f32 %v6797, %v8990
        %v9247 = vmul.f32 %v6799, %v8991
        %v9248 = vmul.f32 %v6990, %v8992
        %v9249 = vmul.f32 %v6992, %v8993
        %v9250 = vmul.f32 %v6417, %v8994
        %v9251 = vmul.f32 %v6419, %v8995
        %v9252 = vmul.f32 %v6610, %v8996
        %v9253 = vmul.f32 %v6612, %v8997
        %v9254 = vmul.f32 %v6803, %v8998
        %v9255 = vmul.f32 %v6805, %v8999
        %v9256 = vmul.f32 %v6996, %v9000
        %v9257 = vmul.f32 %v6998, %v9001
        %v9258 = vmul.f32 %v6421, %v9002
        %v9259 = vmul.f32 %v6423, %v9003
        %v9260 = vmul.f32 %v6614, %v9004
        %v9261 = vmul.f32 %v6616, %v9005
        %v9262 = vmul.f32 %v6807, %v9006
        %v9263 = vmul.f32 %v6809, %v9007
        %v9264 = vmul.f32 %v7000, %v9008
        %v9265 = vmul.f32 %v7002, %v9009
        %v9266 = vmul.f32 %v6427, %v9010
        %v9267 = vmul.f32 %v6429, %v9011
        %v9268 = vmul.f32 %v6620, %v9012
        %v9269 = vmul.f32 %v6622, %v9013
        %v9270 = vmul.f32 %v6813, %v9014
        %v9271 = vmul.f32 %v6815, %v9015
        %v9272 = vmul.f32 %v7006, %v9016
        %v9273 = vmul.f32 %v7008, %v9017
        %v9274 = vmul.f32 %v6431, %v9018
        %v9275 = vmul.f32 %v6433, %v9019
        %v9276 = vmul.f32 %v6624, %v9020
        %v9277 = vmul.f32 %v6626, %v9021
        %v9278 = vmul.f32 %v6817, %v9022
        %v9279 = vmul.f32 %v6819, %v9023
        %v9280 = vmul.f32 %v7010, %v9024
        %v9281 = vmul.f32 %v7012, %v9025
        %v9282 = vmul.f32 %v6437, %v9026
        %v9283 = vmul.f32 %v6439, %v9027
        %v9284 = vmul.f32 %v6630, %v9028
        %v9285 = vmul.f32 %v6632, %v9029
        %v9286 = vmul.f32 %v6823, %v9030
        %v9287 = vmul.f32 %v6825, %v9031
        %v9288 = vmul.f32 %v7016, %v9032
        %v9289 = vmul.f32 %v7018, %v9033
        %v9290 = vmul.f32 %v6441, %v9034
        %v9291 = vmul.f32 %v6443, %v9035
        %v9292 = vmul.f32 %v6634, %v9036
        %v9293 = vmul.f32 %v6636, %v9037
        %v9294 = vmul.f32 %v6827, %v9038
        %v9295 = vmul.f32 %v6829, %v9039
        %v9296 = vmul.f32 %v7020, %v9040
        %v9297 = vmul.f32 %v7022, %v9041
        %v9298 = vmul.f32 %v6447, %v9042
        %v9299 = vmul.f32 %v6449, %v9043
        %v9300 = vmul.f32 %v6640, %v9044
        %v9301 = vmul.f32 %v6642, %v9045
        %v9302 = vmul.f32 %v6833, %v9046
        %v9303 = vmul.f32 %v6835, %v9047
        %v9304 = vmul.f32 %v7026, %v9048
        %v9305 = vmul.f32 %v7028, %v9049
        %v9306 = vmul.f32 %v6451, %v9050
        %v9307 = vmul.f32 %v6453, %v9051
        %v9308 = vmul.f32 %v6644, %v9052
        %v9309 = vmul.f32 %v6646, %v9053
        %v9310 = vmul.f32 %v6837, %v9054
        %v9311 = vmul.f32 %v6839, %v9055
        %v9312 = vmul.f32 %v7030, %v9056
        %v9313 = vmul.f32 %v7032, %v9057
        %v9314 = vmul.f32 %v6457, %v9058
        %v9315 = vmul.f32 %v6459, %v9059
        %v9316 = vmul.f32 %v6650, %v9060
        %v9317 = vmul.f32 %v6652, %v9061
        %v9318 = vmul.f32 %v6843, %v9062
        %v9319 = vmul.f32 %v6845, %v9063
        %v9320 = vmul.f32 %v7036, %v9064
        %v9321 = vmul.f32 %v7038, %v9065
        %v9322 = vmul.f32 %v6461, %v9066
        %v9323 = vmul.f32 %v6463, %v9067
        %v9324 = vmul.f32 %v6654, %v9068
        %v9325 = vmul.f32 %v6656, %v9069
        %v9326 = vmul.f32 %v6847, %v9070
        %v9327 = vmul.f32 %v6849, %v9071
        %v9328 = vmul.f32 %v7040, %v9072
        %v9329 = vmul.f32 %v7042, %v9073
        %v9330 = vmul.f32 %v6467, %v9074
        %v9331 = vmul.f32 %v6469, %v9075
        %v9332 = vmul.f32 %v6660, %v9076
        %v9333 = vmul.f32 %v6662, %v9077
        %v9334 = vmul.f32 %v6853, %v9078
        %v9335 = vmul.f32 %v6855, %v9079
        %v9336 = vmul.f32 %v7046, %v9080
        %v9337 = vmul.f32 %v7048, %v9081
        %v9338 = vmul.f32 %v6471, %v9082
        %v9339 = vmul.f32 %v6473, %v9083
        %v9340 = vmul.f32 %v6664, %v9084
        %v9341 = vmul.f32 %v6666, %v9085
        %v9342 = vmul.f32 %v6857, %v9086
        %v9343 = vmul.f32 %v6859, %v9087
        %v9344 = vmul.f32 %v7050, %v9088
        %v9345 = vmul.f32 %v7052, %v9089
        %v9346 = vmul.f32 %v6477, %v9090
        %v9347 = vmul.f32 %v6479, %v9091
        %v9348 = vmul.f32 %v6670, %v9092
        %v9349 = vmul.f32 %v6672, %v9093
        %v9350 = vmul.f32 %v6863, %v9094
        %v9351 = vmul.f32 %v6865, %v9095
        %v9352 = vmul.f32 %v7056, %v9096
        %v9353 = vmul.f32 %v7058, %v9097
        %v9354 = vmul.f32 %v6481, %v9098
        %v9355 = vmul.f32 %v6483, %v9099
        %v9356 = vmul.f32 %v6674, %v9100
        %v9357 = vmul.f32 %v6676, %v9101
        %v9358 = vmul.f32 %v6867, %v9102
        %v9359 = vmul.f32 %v6869, %v9103
        %v9360 = vmul.f32 %v7060, %v9104
        %v9361 = vmul.f32 %v7062, %v9105
        %v9362 = vmul.f32 %v6487, %v9106
        %v9363 = vmul.f32 %v6489, %v9107
        %v9364 = vmul.f32 %v6680, %v9108
        %v9365 = vmul.f32 %v6682, %v9109
        %v9366 = vmul.f32 %v6873, %v9110
        %v9367 = vmul.f32 %v6875, %v9111
        %v9368 = vmul.f32 %v7066, %v9112
        %v9369 = vmul.f32 %v7068, %v9113
        %v9370 = vmul.f32 %v6491, %v9114
        %v9371 = vmul.f32 %v6493, %v9115
        %v9372 = vmul.f32 %v6684, %v9116
        %v9373 = vmul.f32 %v6686, %v9117
        %v9374 = vmul.f32 %v6877, %v9118
        %v9375 = vmul.f32 %v6879, %v9119
        %v9376 = vmul.f32 %v7070, %v9120
        %v9377 = vmul.f32 %v7072, %v9121
        %v9378 = vpack.c.bf16 %v9130, %v9122
        %v9379 = vpack.c.bf16 %v9131, %v9123
        %v9380 = vpack.c.bf16 %v9132, %v9124
        %v9381 = vpack.c.bf16 %v9133, %v9125
        %v9382 = vpack.c.bf16 %v9134, %v9126
        %v9383 = vpack.c.bf16 %v9135, %v9127
        %v9384 = vpack.c.bf16 %v9136, %v9128
        %v9385 = vpack.c.bf16 %v9137, %v9129
        %v9386 = vpack.c.bf16 %v9146, %v9138
        %v9387 = vpack.c.bf16 %v9147, %v9139
        %v9388 = vpack.c.bf16 %v9148, %v9140
        %v9389 = vpack.c.bf16 %v9149, %v9141
        %v9390 = vpack.c.bf16 %v9150, %v9142
        %v9391 = vpack.c.bf16 %v9151, %v9143
        %v9392 = vpack.c.bf16 %v9152, %v9144
        %v9393 = vpack.c.bf16 %v9153, %v9145
        %v9394 = vpack.c.bf16 %v9162, %v9154
        %v9395 = vpack.c.bf16 %v9163, %v9155
        %v9396 = vpack.c.bf16 %v9164, %v9156
        %v9397 = vpack.c.bf16 %v9165, %v9157
        %v9398 = vpack.c.bf16 %v9166, %v9158
        %v9399 = vpack.c.bf16 %v9167, %v9159
        %v9400 = vpack.c.bf16 %v9168, %v9160
        %v9401 = vpack.c.bf16 %v9169, %v9161
        %v9402 = vpack.c.bf16 %v9178, %v9170
        %v9403 = vpack.c.bf16 %v9179, %v9171
        %v9404 = vpack.c.bf16 %v9180, %v9172
        %v9405 = vpack.c.bf16 %v9181, %v9173
        %v9406 = vpack.c.bf16 %v9182, %v9174
        %v9407 = vpack.c.bf16 %v9183, %v9175
        %v9408 = vpack.c.bf16 %v9184, %v9176
        %v9409 = vpack.c.bf16 %v9185, %v9177
        %v9410 = vpack.c.bf16 %v9194, %v9186
        %v9411 = vpack.c.bf16 %v9195, %v9187
        %v9412 = vpack.c.bf16 %v9196, %v9188
        %v9413 = vpack.c.bf16 %v9197, %v9189
        %v9414 = vpack.c.bf16 %v9198, %v9190
        %v9415 = vpack.c.bf16 %v9199, %v9191
        %v9416 = vpack.c.bf16 %v9200, %v9192
        %v9417 = vpack.c.bf16 %v9201, %v9193
        %v9418 = vpack.c.bf16 %v9210, %v9202
        %v9419 = vpack.c.bf16 %v9211, %v9203
        %v9420 = vpack.c.bf16 %v9212, %v9204
        %v9421 = vpack.c.bf16 %v9213, %v9205
        %v9422 = vpack.c.bf16 %v9214, %v9206
        %v9423 = vpack.c.bf16 %v9215, %v9207
        %v9424 = vpack.c.bf16 %v9216, %v9208
        %v9425 = vpack.c.bf16 %v9217, %v9209
        %v9426 = vpack.c.bf16 %v9226, %v9218
        %v9427 = vpack.c.bf16 %v9227, %v9219
        %v9428 = vpack.c.bf16 %v9228, %v9220
        %v9429 = vpack.c.bf16 %v9229, %v9221
        %v9430 = vpack.c.bf16 %v9230, %v9222
        %v9431 = vpack.c.bf16 %v9231, %v9223
        %v9432 = vpack.c.bf16 %v9232, %v9224
        %v9433 = vpack.c.bf16 %v9233, %v9225
        %v9434 = vpack.c.bf16 %v9242, %v9234
        %v9435 = vpack.c.bf16 %v9243, %v9235
        %v9436 = vpack.c.bf16 %v9244, %v9236
        %v9437 = vpack.c.bf16 %v9245, %v9237
        %v9438 = vpack.c.bf16 %v9246, %v9238
        %v9439 = vpack.c.bf16 %v9247, %v9239
        %v9440 = vpack.c.bf16 %v9248, %v9240
        %v9441 = vpack.c.bf16 %v9249, %v9241
        %v9442 = vpack.c.bf16 %v9258, %v9250
        %v9443 = vpack.c.bf16 %v9259, %v9251
        %v9444 = vpack.c.bf16 %v9260, %v9252
        %v9445 = vpack.c.bf16 %v9261, %v9253
        %v9446 = vpack.c.bf16 %v9262, %v9254
        %v9447 = vpack.c.bf16 %v9263, %v9255
        %v9448 = vpack.c.bf16 %v9264, %v9256
        %v9449 = vpack.c.bf16 %v9265, %v9257
        %v9450 = vpack.c.bf16 %v9274, %v9266
        %v9451 = vpack.c.bf16 %v9275, %v9267
        %v9452 = vpack.c.bf16 %v9276, %v9268
        %v9453 = vpack.c.bf16 %v9277, %v9269
        %v9454 = vpack.c.bf16 %v9278, %v9270
        %v9455 = vpack.c.bf16 %v9279, %v9271
        %v9456 = vpack.c.bf16 %v9280, %v9272
        %v9457 = vpack.c.bf16 %v9281, %v9273
        %v9458 = vpack.c.bf16 %v9290, %v9282
        %v9459 = vpack.c.bf16 %v9291, %v9283
        %v9460 = vpack.c.bf16 %v9292, %v9284
        %v9461 = vpack.c.bf16 %v9293, %v9285
        %v9462 = vpack.c.bf16 %v9294, %v9286
        %v9463 = vpack.c.bf16 %v9295, %v9287
        %v9464 = vpack.c.bf16 %v9296, %v9288
        %v9465 = vpack.c.bf16 %v9297, %v9289
        %v9466 = vpack.c.bf16 %v9306, %v9298
        %v9467 = vpack.c.bf16 %v9307, %v9299
        %v9468 = vpack.c.bf16 %v9308, %v9300
        %v9469 = vpack.c.bf16 %v9309, %v9301
        %v9470 = vpack.c.bf16 %v9310, %v9302
        %v9471 = vpack.c.bf16 %v9311, %v9303
        %v9472 = vpack.c.bf16 %v9312, %v9304
        %v9473 = vpack.c.bf16 %v9313, %v9305
        %v9474 = vpack.c.bf16 %v9322, %v9314
        %v9475 = vpack.c.bf16 %v9323, %v9315
        %v9476 = vpack.c.bf16 %v9324, %v9316
        %v9477 = vpack.c.bf16 %v9325, %v9317
        %v9478 = vpack.c.bf16 %v9326, %v9318
        %v9479 = vpack.c.bf16 %v9327, %v9319
        %v9480 = vpack.c.bf16 %v9328, %v9320
        %v9481 = vpack.c.bf16 %v9329, %v9321
        %v9482 = vpack.c.bf16 %v9338, %v9330
        %v9483 = vpack.c.bf16 %v9339, %v9331
        %v9484 = vpack.c.bf16 %v9340, %v9332
        %v9485 = vpack.c.bf16 %v9341, %v9333
        %v9486 = vpack.c.bf16 %v9342, %v9334
        %v9487 = vpack.c.bf16 %v9343, %v9335
        %v9488 = vpack.c.bf16 %v9344, %v9336
        %v9489 = vpack.c.bf16 %v9345, %v9337
        %v9490 = vpack.c.bf16 %v9354, %v9346
        %v9491 = vpack.c.bf16 %v9355, %v9347
        %v9492 = vpack.c.bf16 %v9356, %v9348
        %v9493 = vpack.c.bf16 %v9357, %v9349
        %v9494 = vpack.c.bf16 %v9358, %v9350
        %v9495 = vpack.c.bf16 %v9359, %v9351
        %v9496 = vpack.c.bf16 %v9360, %v9352
        %v9497 = vpack.c.bf16 %v9361, %v9353
        %v9498 = vpack.c.bf16 %v9370, %v9362
        %v9499 = vpack.c.bf16 %v9371, %v9363
        %v9500 = vpack.c.bf16 %v9372, %v9364
        %v9501 = vpack.c.bf16 %v9373, %v9365
        %v9502 = vpack.c.bf16 %v9374, %v9366
        %v9503 = vpack.c.bf16 %v9375, %v9367
        %v9504 = vpack.c.bf16 %v9376, %v9368
        %v9505 = vpack.c.bf16 %v9377, %v9369
        %v9506 = vld [vmem:[%s517] sm:$0xff]
        %v9507 = vld [vmem:[%s517 + $0x8] sm:$0xff]
        %v9508 = vld [vmem:[%s517 + $0x10] sm:$0xff]
        %v9509 = vld [vmem:[%s517 + $0x18] sm:$0xff]
        %v9510 = vld [vmem:[%s517 + $0x20] sm:$0xff]
        %v9511 = vld [vmem:[%s517 + $0x28] sm:$0xff]
        %v9512 = vld [vmem:[%s517 + $0x30] sm:$0xff]
        %v9513 = vld [vmem:[%s517 + $0x38] sm:$0xff]
        %v9514 = vld [vmem:[%s517 + $0x40] sm:$0xff]
        %v9515 = vld [vmem:[%s517 + $0x48] sm:$0xff]
        %v9516 = vld [vmem:[%s517 + $0x50] sm:$0xff]
        %v9517 = vld [vmem:[%s517 + $0x58] sm:$0xff]
        %v9518 = vld [vmem:[%s517 + $0x60] sm:$0xff]
        %v9519 = vld [vmem:[%s517 + $0x68] sm:$0xff]
        %v9520 = vld [vmem:[%s517 + $0x70] sm:$0xff]
        %v9521 = vld [vmem:[%s517 + $0x78] sm:$0xff]
        %v9522 = vld [vmem:[%s517 + $0x80] sm:$0xff]
        %v9523 = vld [vmem:[%s517 + $0x88] sm:$0xff]
        %v9524 = vld [vmem:[%s517 + $0x90] sm:$0xff]
        %v9525 = vld [vmem:[%s517 + $0x98] sm:$0xff]
        %v9526 = vld [vmem:[%s517 + $0xa0] sm:$0xff]
        %v9527 = vld [vmem:[%s517 + $0xa8] sm:$0xff]
        %v9528 = vld [vmem:[%s517 + $0xb0] sm:$0xff]
        %v9529 = vld [vmem:[%s517 + $0xb8] sm:$0xff]
        %v9530 = vld [vmem:[%s517 + $0xc0] sm:$0xff]
        %v9531 = vld [vmem:[%s517 + $0xc8] sm:$0xff]
        %v9532 = vld [vmem:[%s517 + $0xd0] sm:$0xff]
        %v9533 = vld [vmem:[%s517 + $0xd8] sm:$0xff]
        %v9534 = vld [vmem:[%s517 + $0xe0] sm:$0xff]
        %v9535 = vld [vmem:[%s517 + $0xe8] sm:$0xff]
        %v9536 = vld [vmem:[%s517 + $0xf0] sm:$0xff]
        %v9537 = vld [vmem:[%s517 + $0xf8] sm:$0xff]
        %v9538 = vld [vmem:[%s517 + $0x100] sm:$0xff]
        %v9539 = vld [vmem:[%s517 + $0x108] sm:$0xff]
        %v9540 = vld [vmem:[%s517 + $0x110] sm:$0xff]
        %v9541 = vld [vmem:[%s517 + $0x118] sm:$0xff]
        %v9542 = vld [vmem:[%s517 + $0x120] sm:$0xff]
        %v9543 = vld [vmem:[%s517 + $0x128] sm:$0xff]
        %v9544 = vld [vmem:[%s517 + $0x130] sm:$0xff]
        %v9545 = vld [vmem:[%s517 + $0x138] sm:$0xff]
        %v9546 = vld [vmem:[%s517 + $0x140] sm:$0xff]
        %v9547 = vld [vmem:[%s517 + $0x148] sm:$0xff]
        %v9548 = vld [vmem:[%s517 + $0x150] sm:$0xff]
        %v9549 = vld [vmem:[%s517 + $0x158] sm:$0xff]
        %v9550 = vld [vmem:[%s517 + $0x160] sm:$0xff]
        %v9551 = vld [vmem:[%s517 + $0x168] sm:$0xff]
        %v9552 = vld [vmem:[%s517 + $0x170] sm:$0xff]
        %v9553 = vld [vmem:[%s517 + $0x178] sm:$0xff]
        %v9554 = vld [vmem:[%s517 + $0x180] sm:$0xff]
        %v9555 = vld [vmem:[%s517 + $0x188] sm:$0xff]
        %v9556 = vld [vmem:[%s517 + $0x190] sm:$0xff]
        %v9557 = vld [vmem:[%s517 + $0x198] sm:$0xff]
        %v9558 = vld [vmem:[%s517 + $0x1a0] sm:$0xff]
        %v9559 = vld [vmem:[%s517 + $0x1a8] sm:$0xff]
        %v9560 = vld [vmem:[%s517 + $0x1b0] sm:$0xff]
        %v9561 = vld [vmem:[%s517 + $0x1b8] sm:$0xff]
        %v9562 = vld [vmem:[%s517 + $0x1c0] sm:$0xff]
        %v9563 = vld [vmem:[%s517 + $0x1c8] sm:$0xff]
        %v9564 = vld [vmem:[%s517 + $0x1d0] sm:$0xff]
        %v9565 = vld [vmem:[%s517 + $0x1d8] sm:$0xff]
        %v9566 = vld [vmem:[%s517 + $0x1e0] sm:$0xff]
        %v9567 = vld [vmem:[%s517 + $0x1e8] sm:$0xff]
        %v9568 = vld [vmem:[%s517 + $0x1f0] sm:$0xff]
        %v9569 = vld [vmem:[%s517 + $0x1f8] sm:$0xff]
        %v9570 = vld [vmem:[%s517 + $0x200] sm:$0xff]
        %v9571 = vld [vmem:[%s517 + $0x208] sm:$0xff]
        %v9572 = vld [vmem:[%s517 + $0x210] sm:$0xff]
        %v9573 = vld [vmem:[%s517 + $0x218] sm:$0xff]
        %v9574 = vld [vmem:[%s517 + $0x220] sm:$0xff]
        %v9575 = vld [vmem:[%s517 + $0x228] sm:$0xff]
        %v9576 = vld [vmem:[%s517 + $0x230] sm:$0xff]
        %v9577 = vld [vmem:[%s517 + $0x238] sm:$0xff]
        %v9578 = vld [vmem:[%s517 + $0x240] sm:$0xff]
        %v9579 = vld [vmem:[%s517 + $0x248] sm:$0xff]
        %v9580 = vld [vmem:[%s517 + $0x250] sm:$0xff]
        %v9581 = vld [vmem:[%s517 + $0x258] sm:$0xff]
        %v9582 = vld [vmem:[%s517 + $0x260] sm:$0xff]
        %v9583 = vld [vmem:[%s517 + $0x268] sm:$0xff]
        %v9584 = vld [vmem:[%s517 + $0x270] sm:$0xff]
        %v9585 = vld [vmem:[%s517 + $0x278] sm:$0xff]
        %v9586 = vld [vmem:[%s517 + $0x280] sm:$0xff]
        %v9587 = vld [vmem:[%s517 + $0x288] sm:$0xff]
        %v9588 = vld [vmem:[%s517 + $0x290] sm:$0xff]
        %v9589 = vld [vmem:[%s517 + $0x298] sm:$0xff]
        %v9590 = vld [vmem:[%s517 + $0x2a0] sm:$0xff]
        %v9591 = vld [vmem:[%s517 + $0x2a8] sm:$0xff]
        %v9592 = vld [vmem:[%s517 + $0x2b0] sm:$0xff]
        %v9593 = vld [vmem:[%s517 + $0x2b8] sm:$0xff]
        %v9594 = vld [vmem:[%s517 + $0x2c0] sm:$0xff]
        %v9595 = vld [vmem:[%s517 + $0x2c8] sm:$0xff]
        %v9596 = vld [vmem:[%s517 + $0x2d0] sm:$0xff]
        %v9597 = vld [vmem:[%s517 + $0x2d8] sm:$0xff]
        %v9598 = vld [vmem:[%s517 + $0x2e0] sm:$0xff]
        %v9599 = vld [vmem:[%s517 + $0x2e8] sm:$0xff]
        %v9600 = vld [vmem:[%s517 + $0x2f0] sm:$0xff]
        %v9601 = vld [vmem:[%s517 + $0x2f8] sm:$0xff]
        %v9602 = vld [vmem:[%s517 + $0x300] sm:$0xff]
        %v9603 = vld [vmem:[%s517 + $0x308] sm:$0xff]
        %v9604 = vld [vmem:[%s517 + $0x310] sm:$0xff]
        %v9605 = vld [vmem:[%s517 + $0x318] sm:$0xff]
        %v9606 = vld [vmem:[%s517 + $0x320] sm:$0xff]
        %v9607 = vld [vmem:[%s517 + $0x328] sm:$0xff]
        %v9608 = vld [vmem:[%s517 + $0x330] sm:$0xff]
        %v9609 = vld [vmem:[%s517 + $0x338] sm:$0xff]
        %v9610 = vld [vmem:[%s517 + $0x340] sm:$0xff]
        %v9611 = vld [vmem:[%s517 + $0x348] sm:$0xff]
        %v9612 = vld [vmem:[%s517 + $0x350] sm:$0xff]
        %v9613 = vld [vmem:[%s517 + $0x358] sm:$0xff]
        %v9614 = vld [vmem:[%s517 + $0x360] sm:$0xff]
        %v9615 = vld [vmem:[%s517 + $0x368] sm:$0xff]
        %v9616 = vld [vmem:[%s517 + $0x370] sm:$0xff]
        %v9617 = vld [vmem:[%s517 + $0x378] sm:$0xff]
        %v9618 = vld [vmem:[%s517 + $0x380] sm:$0xff]
        %v9619 = vld [vmem:[%s517 + $0x388] sm:$0xff]
        %v9620 = vld [vmem:[%s517 + $0x390] sm:$0xff]
        %v9621 = vld [vmem:[%s517 + $0x398] sm:$0xff]
        %v9622 = vld [vmem:[%s517 + $0x3a0] sm:$0xff]
        %v9623 = vld [vmem:[%s517 + $0x3a8] sm:$0xff]
        %v9624 = vld [vmem:[%s517 + $0x3b0] sm:$0xff]
        %v9625 = vld [vmem:[%s517 + $0x3b8] sm:$0xff]
        %v9626 = vld [vmem:[%s517 + $0x3c0] sm:$0xff]
        %v9627 = vld [vmem:[%s517 + $0x3c8] sm:$0xff]
        %v9628 = vld [vmem:[%s517 + $0x3d0] sm:$0xff]
        %v9629 = vld [vmem:[%s517 + $0x3d8] sm:$0xff]
        %v9630 = vld [vmem:[%s517 + $0x3e0] sm:$0xff]
        %v9631 = vld [vmem:[%s517 + $0x3e8] sm:$0xff]
        %v9632 = vld [vmem:[%s517 + $0x3f0] sm:$0xff]
        %v9633 = vld [vmem:[%s517 + $0x3f8] sm:$0xff]
        %v9634 = vld [vmem:[%s526] sm:$0x3]
        %v9636 = vlaneseq
        %v9637 = vshrl.u32 %v9636, 7
        %v9638 = vsub.s32 0, %v9637
        %v9639 = vrot.slane %v9634, %v9638
        %v9640 = vlaneseq
        %v9641 = vshrl.u32 %v9640, 7
        %v9642 = vsub.s32 1, %v9641
        %v9643 = vrot.slane %v9634, %v9642
        %v9774 = vunpack.c.l.b16 %v9506
        %v9775 = vunpack.c.h.b16 %v9506
        %v9776 = vunpack.c.l.b16 %v9507
        %v9777 = vunpack.c.h.b16 %v9507
        %v9778 = vunpack.c.l.b16 %v9508
        %v9779 = vunpack.c.h.b16 %v9508
        %v9780 = vunpack.c.l.b16 %v9509
        %v9781 = vunpack.c.h.b16 %v9509
        %v9782 = vunpack.c.l.b16 %v9510
        %v9783 = vunpack.c.h.b16 %v9510
        %v9784 = vunpack.c.l.b16 %v9511
        %v9785 = vunpack.c.h.b16 %v9511
        %v9786 = vunpack.c.l.b16 %v9512
        %v9787 = vunpack.c.h.b16 %v9512
        %v9788 = vunpack.c.l.b16 %v9513
        %v9789 = vunpack.c.h.b16 %v9513
        %v9790 = vunpack.c.l.b16 %v9514
        %v9791 = vunpack.c.h.b16 %v9514
        %v9792 = vunpack.c.l.b16 %v9515
        %v9793 = vunpack.c.h.b16 %v9515
        %v9794 = vunpack.c.l.b16 %v9516
        %v9795 = vunpack.c.h.b16 %v9516
        %v9796 = vunpack.c.l.b16 %v9517
        %v9797 = vunpack.c.h.b16 %v9517
        %v9798 = vunpack.c.l.b16 %v9518
        %v9799 = vunpack.c.h.b16 %v9518
        %v9800 = vunpack.c.l.b16 %v9519
        %v9801 = vunpack.c.h.b16 %v9519
        %v9802 = vunpack.c.l.b16 %v9520
        %v9803 = vunpack.c.h.b16 %v9520
        %v9804 = vunpack.c.l.b16 %v9521
        %v9805 = vunpack.c.h.b16 %v9521
        %v9806 = vunpack.c.l.b16 %v9522
        %v9807 = vunpack.c.h.b16 %v9522
        %v9808 = vunpack.c.l.b16 %v9523
        %v9809 = vunpack.c.h.b16 %v9523
        %v9810 = vunpack.c.l.b16 %v9524
        %v9811 = vunpack.c.h.b16 %v9524
        %v9812 = vunpack.c.l.b16 %v9525
        %v9813 = vunpack.c.h.b16 %v9525
        %v9814 = vunpack.c.l.b16 %v9526
        %v9815 = vunpack.c.h.b16 %v9526
        %v9816 = vunpack.c.l.b16 %v9527
        %v9817 = vunpack.c.h.b16 %v9527
        %v9818 = vunpack.c.l.b16 %v9528
        %v9819 = vunpack.c.h.b16 %v9528
        %v9820 = vunpack.c.l.b16 %v9529
        %v9821 = vunpack.c.h.b16 %v9529
        %v9822 = vunpack.c.l.b16 %v9530
        %v9823 = vunpack.c.h.b16 %v9530
        %v9824 = vunpack.c.l.b16 %v9531
        %v9825 = vunpack.c.h.b16 %v9531
        %v9826 = vunpack.c.l.b16 %v9532
        %v9827 = vunpack.c.h.b16 %v9532
        %v9828 = vunpack.c.l.b16 %v9533
        %v9829 = vunpack.c.h.b16 %v9533
        %v9830 = vunpack.c.l.b16 %v9534
        %v9831 = vunpack.c.h.b16 %v9534
        %v9832 = vunpack.c.l.b16 %v9535
        %v9833 = vunpack.c.h.b16 %v9535
        %v9834 = vunpack.c.l.b16 %v9536
        %v9835 = vunpack.c.h.b16 %v9536
        %v9836 = vunpack.c.l.b16 %v9537
        %v9837 = vunpack.c.h.b16 %v9537
        %v9838 = vunpack.c.l.b16 %v9538
        %v9839 = vunpack.c.h.b16 %v9538
        %v9840 = vunpack.c.l.b16 %v9539
        %v9841 = vunpack.c.h.b16 %v9539
        %v9842 = vunpack.c.l.b16 %v9540
        %v9843 = vunpack.c.h.b16 %v9540
        %v9844 = vunpack.c.l.b16 %v9541
        %v9845 = vunpack.c.h.b16 %v9541
        %v9846 = vunpack.c.l.b16 %v9542
        %v9847 = vunpack.c.h.b16 %v9542
        %v9848 = vunpack.c.l.b16 %v9543
        %v9849 = vunpack.c.h.b16 %v9543
        %v9850 = vunpack.c.l.b16 %v9544
        %v9851 = vunpack.c.h.b16 %v9544
        %v9852 = vunpack.c.l.b16 %v9545
        %v9853 = vunpack.c.h.b16 %v9545
        %v9854 = vunpack.c.l.b16 %v9546
        %v9855 = vunpack.c.h.b16 %v9546
        %v9856 = vunpack.c.l.b16 %v9547
        %v9857 = vunpack.c.h.b16 %v9547
        %v9858 = vunpack.c.l.b16 %v9548
        %v9859 = vunpack.c.h.b16 %v9548
        %v9860 = vunpack.c.l.b16 %v9549
        %v9861 = vunpack.c.h.b16 %v9549
        %v9862 = vunpack.c.l.b16 %v9550
        %v9863 = vunpack.c.h.b16 %v9550
        %v9864 = vunpack.c.l.b16 %v9551
        %v9865 = vunpack.c.h.b16 %v9551
        %v9866 = vunpack.c.l.b16 %v9552
        %v9867 = vunpack.c.h.b16 %v9552
        %v9868 = vunpack.c.l.b16 %v9553
        %v9869 = vunpack.c.h.b16 %v9553
        %v9870 = vunpack.c.l.b16 %v9554
        %v9871 = vunpack.c.h.b16 %v9554
        %v9872 = vunpack.c.l.b16 %v9555
        %v9873 = vunpack.c.h.b16 %v9555
        %v9874 = vunpack.c.l.b16 %v9556
        %v9875 = vunpack.c.h.b16 %v9556
        %v9876 = vunpack.c.l.b16 %v9557
        %v9877 = vunpack.c.h.b16 %v9557
        %v9878 = vunpack.c.l.b16 %v9558
        %v9879 = vunpack.c.h.b16 %v9558
        %v9880 = vunpack.c.l.b16 %v9559
        %v9881 = vunpack.c.h.b16 %v9559
        %v9882 = vunpack.c.l.b16 %v9560
        %v9883 = vunpack.c.h.b16 %v9560
        %v9884 = vunpack.c.l.b16 %v9561
        %v9885 = vunpack.c.h.b16 %v9561
        %v9886 = vunpack.c.l.b16 %v9562
        %v9887 = vunpack.c.h.b16 %v9562
        %v9888 = vunpack.c.l.b16 %v9563
        %v9889 = vunpack.c.h.b16 %v9563
        %v9890 = vunpack.c.l.b16 %v9564
        %v9891 = vunpack.c.h.b16 %v9564
        %v9892 = vunpack.c.l.b16 %v9565
        %v9893 = vunpack.c.h.b16 %v9565
        %v9894 = vunpack.c.l.b16 %v9566
        %v9895 = vunpack.c.h.b16 %v9566
        %v9896 = vunpack.c.l.b16 %v9567
        %v9897 = vunpack.c.h.b16 %v9567
        %v9898 = vunpack.c.l.b16 %v9568
        %v9899 = vunpack.c.h.b16 %v9568
        %v9900 = vunpack.c.l.b16 %v9569
        %v9901 = vunpack.c.h.b16 %v9569
        %v9902 = vunpack.c.l.b16 %v9570
        %v9903 = vunpack.c.h.b16 %v9570
        %v9904 = vunpack.c.l.b16 %v9571
        %v9905 = vunpack.c.h.b16 %v9571
        %v9906 = vunpack.c.l.b16 %v9572
        %v9907 = vunpack.c.h.b16 %v9572
        %v9908 = vunpack.c.l.b16 %v9573
        %v9909 = vunpack.c.h.b16 %v9573
        %v9910 = vunpack.c.l.b16 %v9574
        %v9911 = vunpack.c.h.b16 %v9574
        %v9912 = vunpack.c.l.b16 %v9575
        %v9913 = vunpack.c.h.b16 %v9575
        %v9914 = vunpack.c.l.b16 %v9576
        %v9915 = vunpack.c.h.b16 %v9576
        %v9916 = vunpack.c.l.b16 %v9577
        %v9917 = vunpack.c.h.b16 %v9577
        %v9918 = vunpack.c.l.b16 %v9578
        %v9919 = vunpack.c.h.b16 %v9578
        %v9920 = vunpack.c.l.b16 %v9579
        %v9921 = vunpack.c.h.b16 %v9579
        %v9922 = vunpack.c.l.b16 %v9580
        %v9923 = vunpack.c.h.b16 %v9580
        %v9924 = vunpack.c.l.b16 %v9581
        %v9925 = vunpack.c.h.b16 %v9581
        %v9926 = vunpack.c.l.b16 %v9582
        %v9927 = vunpack.c.h.b16 %v9582
        %v9928 = vunpack.c.l.b16 %v9583
        %v9929 = vunpack.c.h.b16 %v9583
        %v9930 = vunpack.c.l.b16 %v9584
        %v9931 = vunpack.c.h.b16 %v9584
        %v9932 = vunpack.c.l.b16 %v9585
        %v9933 = vunpack.c.h.b16 %v9585
        %v9934 = vunpack.c.l.b16 %v9586
        %v9935 = vunpack.c.h.b16 %v9586
        %v9936 = vunpack.c.l.b16 %v9587
        %v9937 = vunpack.c.h.b16 %v9587
        %v9938 = vunpack.c.l.b16 %v9588
        %v9939 = vunpack.c.h.b16 %v9588
        %v9940 = vunpack.c.l.b16 %v9589
        %v9941 = vunpack.c.h.b16 %v9589
        %v9942 = vunpack.c.l.b16 %v9590
        %v9943 = vunpack.c.h.b16 %v9590
        %v9944 = vunpack.c.l.b16 %v9591
        %v9945 = vunpack.c.h.b16 %v9591
        %v9946 = vunpack.c.l.b16 %v9592
        %v9947 = vunpack.c.h.b16 %v9592
        %v9948 = vunpack.c.l.b16 %v9593
        %v9949 = vunpack.c.h.b16 %v9593
        %v9950 = vunpack.c.l.b16 %v9594
        %v9951 = vunpack.c.h.b16 %v9594
        %v9952 = vunpack.c.l.b16 %v9595
        %v9953 = vunpack.c.h.b16 %v9595
        %v9954 = vunpack.c.l.b16 %v9596
        %v9955 = vunpack.c.h.b16 %v9596
        %v9956 = vunpack.c.l.b16 %v9597
        %v9957 = vunpack.c.h.b16 %v9597
        %v9958 = vunpack.c.l.b16 %v9598
        %v9959 = vunpack.c.h.b16 %v9598
        %v9960 = vunpack.c.l.b16 %v9599
        %v9961 = vunpack.c.h.b16 %v9599
        %v9962 = vunpack.c.l.b16 %v9600
        %v9963 = vunpack.c.h.b16 %v9600
        %v9964 = vunpack.c.l.b16 %v9601
        %v9965 = vunpack.c.h.b16 %v9601
        %v9966 = vunpack.c.l.b16 %v9602
        %v9967 = vunpack.c.h.b16 %v9602
        %v9968 = vunpack.c.l.b16 %v9603
        %v9969 = vunpack.c.h.b16 %v9603
        %v9970 = vunpack.c.l.b16 %v9604
        %v9971 = vunpack.c.h.b16 %v9604
        %v9972 = vunpack.c.l.b16 %v9605
        %v9973 = vunpack.c.h.b16 %v9605
        %v9974 = vunpack.c.l.b16 %v9606
        %v9975 = vunpack.c.h.b16 %v9606
        %v9976 = vunpack.c.l.b16 %v9607
        %v9977 = vunpack.c.h.b16 %v9607
        %v9978 = vunpack.c.l.b16 %v9608
        %v9979 = vunpack.c.h.b16 %v9608
        %v9980 = vunpack.c.l.b16 %v9609
        %v9981 = vunpack.c.h.b16 %v9609
        %v9982 = vunpack.c.l.b16 %v9610
        %v9983 = vunpack.c.h.b16 %v9610
        %v9984 = vunpack.c.l.b16 %v9611
        %v9985 = vunpack.c.h.b16 %v9611
        %v9986 = vunpack.c.l.b16 %v9612
        %v9987 = vunpack.c.h.b16 %v9612
        %v9988 = vunpack.c.l.b16 %v9613
        %v9989 = vunpack.c.h.b16 %v9613
        %v9990 = vunpack.c.l.b16 %v9614
        %v9991 = vunpack.c.h.b16 %v9614
        %v9992 = vunpack.c.l.b16 %v9615
        %v9993 = vunpack.c.h.b16 %v9615
        %v9994 = vunpack.c.l.b16 %v9616
        %v9995 = vunpack.c.h.b16 %v9616
        %v9996 = vunpack.c.l.b16 %v9617
        %v9997 = vunpack.c.h.b16 %v9617
        %v9998 = vunpack.c.l.b16 %v9618
        %v9999 = vunpack.c.h.b16 %v9618
        %v10000 = vunpack.c.l.b16 %v9619
        %v10001 = vunpack.c.h.b16 %v9619
        %v10002 = vunpack.c.l.b16 %v9620
        %v10003 = vunpack.c.h.b16 %v9620
        %v10004 = vunpack.c.l.b16 %v9621
        %v10005 = vunpack.c.h.b16 %v9621
        %v10006 = vunpack.c.l.b16 %v9622
        %v10007 = vunpack.c.h.b16 %v9622
        %v10008 = vunpack.c.l.b16 %v9623
        %v10009 = vunpack.c.h.b16 %v9623
        %v10010 = vunpack.c.l.b16 %v9624
        %v10011 = vunpack.c.h.b16 %v9624
        %v10012 = vunpack.c.l.b16 %v9625
        %v10013 = vunpack.c.h.b16 %v9625
        %v10014 = vunpack.c.l.b16 %v9626
        %v10015 = vunpack.c.h.b16 %v9626
        %v10016 = vunpack.c.l.b16 %v9627
        %v10017 = vunpack.c.h.b16 %v9627
        %v10018 = vunpack.c.l.b16 %v9628
        %v10019 = vunpack.c.h.b16 %v9628
        %v10020 = vunpack.c.l.b16 %v9629
        %v10021 = vunpack.c.h.b16 %v9629
        %v10022 = vunpack.c.l.b16 %v9630
        %v10023 = vunpack.c.h.b16 %v9630
        %v10024 = vunpack.c.l.b16 %v9631
        %v10025 = vunpack.c.h.b16 %v9631
        %v10026 = vunpack.c.l.b16 %v9632
        %v10027 = vunpack.c.h.b16 %v9632
        %v10028 = vunpack.c.l.b16 %v9633
        %v10029 = vunpack.c.h.b16 %v9633
        %v10030 = vpack.c.b16 %v9776, %v9774
        %v10031 = vpack.c.b16 %v9777, %v9775
        %v10032 = vpack.c.b16 %v9780, %v9778
        %v10033 = vpack.c.b16 %v9781, %v9779
        %v10034 = vpack.c.b16 %v9784, %v9782
        %v10035 = vpack.c.b16 %v9785, %v9783
        %v10036 = vpack.c.b16 %v9788, %v9786
        %v10037 = vpack.c.b16 %v9789, %v9787
        %v10038 = vpack.c.b16 %v9792, %v9790
        %v10039 = vpack.c.b16 %v9793, %v9791
        %v10040 = vpack.c.b16 %v9796, %v9794
        %v10041 = vpack.c.b16 %v9797, %v9795
        %v10042 = vpack.c.b16 %v9800, %v9798
        %v10043 = vpack.c.b16 %v9801, %v9799
        %v10044 = vpack.c.b16 %v9804, %v9802
        %v10045 = vpack.c.b16 %v9805, %v9803
        %v10046 = vpack.c.b16 %v9808, %v9806
        %v10047 = vpack.c.b16 %v9809, %v9807
        %v10048 = vpack.c.b16 %v9812, %v9810
        %v10049 = vpack.c.b16 %v9813, %v9811
        %v10050 = vpack.c.b16 %v9816, %v9814
        %v10051 = vpack.c.b16 %v9817, %v9815
        %v10052 = vpack.c.b16 %v9820, %v9818
        %v10053 = vpack.c.b16 %v9821, %v9819
        %v10054 = vpack.c.b16 %v9824, %v9822
        %v10055 = vpack.c.b16 %v9825, %v9823
        %v10056 = vpack.c.b16 %v9828, %v9826
        %v10057 = vpack.c.b16 %v9829, %v9827
        %v10058 = vpack.c.b16 %v9832, %v9830
        %v10059 = vpack.c.b16 %v9833, %v9831
        %v10060 = vpack.c.b16 %v9836, %v9834
        %v10061 = vpack.c.b16 %v9837, %v9835
        %v10062 = vpack.c.b16 %v9840, %v9838
        %v10063 = vpack.c.b16 %v9841, %v9839
        %v10064 = vpack.c.b16 %v9844, %v9842
        %v10065 = vpack.c.b16 %v9845, %v9843
        %v10066 = vpack.c.b16 %v9848, %v9846
        %v10067 = vpack.c.b16 %v9849, %v9847
        %v10068 = vpack.c.b16 %v9852, %v9850
        %v10069 = vpack.c.b16 %v9853, %v9851
        %v10070 = vpack.c.b16 %v9856, %v9854
        %v10071 = vpack.c.b16 %v9857, %v9855
        %v10072 = vpack.c.b16 %v9860, %v9858
        %v10073 = vpack.c.b16 %v9861, %v9859
        %v10074 = vpack.c.b16 %v9864, %v9862
        %v10075 = vpack.c.b16 %v9865, %v9863
        %v10076 = vpack.c.b16 %v9868, %v9866
        %v10077 = vpack.c.b16 %v9869, %v9867
        %v10078 = vpack.c.b16 %v9872, %v9870
        %v10079 = vpack.c.b16 %v9873, %v9871
        %v10080 = vpack.c.b16 %v9876, %v9874
        %v10081 = vpack.c.b16 %v9877, %v9875
        %v10082 = vpack.c.b16 %v9880, %v9878
        %v10083 = vpack.c.b16 %v9881, %v9879
        %v10084 = vpack.c.b16 %v9884, %v9882
        %v10085 = vpack.c.b16 %v9885, %v9883
        %v10086 = vpack.c.b16 %v9888, %v9886
        %v10087 = vpack.c.b16 %v9889, %v9887
        %v10088 = vpack.c.b16 %v9892, %v9890
        %v10089 = vpack.c.b16 %v9893, %v9891
        %v10090 = vpack.c.b16 %v9896, %v9894
        %v10091 = vpack.c.b16 %v9897, %v9895
        %v10092 = vpack.c.b16 %v9900, %v9898
        %v10093 = vpack.c.b16 %v9901, %v9899
        %v10094 = vpack.c.b16 %v9904, %v9902
        %v10095 = vpack.c.b16 %v9905, %v9903
        %v10096 = vpack.c.b16 %v9908, %v9906
        %v10097 = vpack.c.b16 %v9909, %v9907
        %v10098 = vpack.c.b16 %v9912, %v9910
        %v10099 = vpack.c.b16 %v9913, %v9911
        %v10100 = vpack.c.b16 %v9916, %v9914
        %v10101 = vpack.c.b16 %v9917, %v9915
        %v10102 = vpack.c.b16 %v9920, %v9918
        %v10103 = vpack.c.b16 %v9921, %v9919
        %v10104 = vpack.c.b16 %v9924, %v9922
        %v10105 = vpack.c.b16 %v9925, %v9923
        %v10106 = vpack.c.b16 %v9928, %v9926
        %v10107 = vpack.c.b16 %v9929, %v9927
        %v10108 = vpack.c.b16 %v9932, %v9930
        %v10109 = vpack.c.b16 %v9933, %v9931
        %v10110 = vpack.c.b16 %v9936, %v9934
        %v10111 = vpack.c.b16 %v9937, %v9935
        %v10112 = vpack.c.b16 %v9940, %v9938
        %v10113 = vpack.c.b16 %v9941, %v9939
        %v10114 = vpack.c.b16 %v9944, %v9942
        %v10115 = vpack.c.b16 %v9945, %v9943
        %v10116 = vpack.c.b16 %v9948, %v9946
        %v10117 = vpack.c.b16 %v9949, %v9947
        %v10118 = vpack.c.b16 %v9952, %v9950
        %v10119 = vpack.c.b16 %v9953, %v9951
        %v10120 = vpack.c.b16 %v9956, %v9954
        %v10121 = vpack.c.b16 %v9957, %v9955
        %v10122 = vpack.c.b16 %v9960, %v9958
        %v10123 = vpack.c.b16 %v9961, %v9959
        %v10124 = vpack.c.b16 %v9964, %v9962
        %v10125 = vpack.c.b16 %v9965, %v9963
        %v10126 = vpack.c.b16 %v9968, %v9966
        %v10127 = vpack.c.b16 %v9969, %v9967
        %v10128 = vpack.c.b16 %v9972, %v9970
        %v10129 = vpack.c.b16 %v9973, %v9971
        %v10130 = vpack.c.b16 %v9976, %v9974
        %v10131 = vpack.c.b16 %v9977, %v9975
        %v10132 = vpack.c.b16 %v9980, %v9978
        %v10133 = vpack.c.b16 %v9981, %v9979
        %v10134 = vpack.c.b16 %v9984, %v9982
        %v10135 = vpack.c.b16 %v9985, %v9983
        %v10136 = vpack.c.b16 %v9988, %v9986
        %v10137 = vpack.c.b16 %v9989, %v9987
        %v10138 = vpack.c.b16 %v9992, %v9990
        %v10139 = vpack.c.b16 %v9993, %v9991
        %v10140 = vpack.c.b16 %v9996, %v9994
        %v10141 = vpack.c.b16 %v9997, %v9995
        %v10142 = vpack.c.b16 %v10000, %v9998
        %v10143 = vpack.c.b16 %v10001, %v9999
        %v10144 = vpack.c.b16 %v10004, %v10002
        %v10145 = vpack.c.b16 %v10005, %v10003
        %v10146 = vpack.c.b16 %v10008, %v10006
        %v10147 = vpack.c.b16 %v10009, %v10007
        %v10148 = vpack.c.b16 %v10012, %v10010
        %v10149 = vpack.c.b16 %v10013, %v10011
        %v10150 = vpack.c.b16 %v10016, %v10014
        %v10151 = vpack.c.b16 %v10017, %v10015
        %v10152 = vpack.c.b16 %v10020, %v10018
        %v10153 = vpack.c.b16 %v10021, %v10019
        %v10154 = vpack.c.b16 %v10024, %v10022
        %v10155 = vpack.c.b16 %v10025, %v10023
        %v10156 = vpack.c.b16 %v10028, %v10026
        %v10157 = vpack.c.b16 %v10029, %v10027
        %10286 = vmatprep.subr.bf16.mxu0 %v10031
        %10287 = vmatpush1.bf16.msra.mxu0 %v10030
        %10288 = vmatprep.subr.bf16.mxu0 %v10033
        %10289 = vmatpush1.bf16.msra.mxu0 %v10032
        %10290 = vmatprep.subr.bf16.mxu0 %v10035
        %10291 = vmatpush1.bf16.msra.mxu0 %v10034
        %10292 = vmatprep.subr.bf16.mxu0 %v10037
        %10293 = vmatpush1.bf16.msra.mxu0 %v10036
        %10294 = vmatprep.subr.bf16.mxu0 %v10039
        %10295 = vmatpush1.bf16.msra.mxu0 %v10038
        %10296 = vmatprep.subr.bf16.mxu0 %v10041
        %10297 = vmatpush1.bf16.msra.mxu0 %v10040
        %10298 = vmatprep.subr.bf16.mxu0 %v10043
        %10299 = vmatpush1.bf16.msra.mxu0 %v10042
        %10300 = vmatprep.subr.bf16.mxu0 %v10045
        %10301 = vmatpush1.bf16.msra.mxu0 %v10044
        %10302 = vmatprep.subr.bf16.mxu0 %v10047
        %10303 = vmatpush1.bf16.msra.mxu0 %v10046
        %10304 = vmatprep.subr.bf16.mxu0 %v10049
        %10305 = vmatpush1.bf16.msra.mxu0 %v10048
        %10306 = vmatprep.subr.bf16.mxu0 %v10051
        %10307 = vmatpush1.bf16.msra.mxu0 %v10050
        %10308 = vmatprep.subr.bf16.mxu0 %v10053
        %10309 = vmatpush1.bf16.msra.mxu0 %v10052
        %10310 = vmatprep.subr.bf16.mxu0 %v10055
        %10311 = vmatpush1.bf16.msra.mxu0 %v10054
        %10312 = vmatprep.subr.bf16.mxu0 %v10057
        %10313 = vmatpush1.bf16.msra.mxu0 %v10056
        %10314 = vmatprep.subr.bf16.mxu0 %v10059
        %10315 = vmatpush1.bf16.msra.mxu0 %v10058
        %10316 = vmatprep.subr.bf16.mxu0 %v10061
        %10317 = vmatpush1.bf16.msra.mxu0 %v10060
        %10318 = vmatprep.mubr.bf16.mxu0 %v9379
        %10319 = vmatmul.mubr.bf16.gmra.mrb[0].mxu0 %v9378
        %v10320 = vpop.f32.mrb[0].mxu0
        %v10321 = vadd.f32 %v9639, %v10320
        %v10322 = vpop.f32.mrb[0].mxu0
        %v10323 = vadd.f32 %v9643, %v10322
        %v10324 = vpop.f32.mrb[0].mxu0
        %v10325 = vadd.f32 %v9639, %v10324
        %v10326 = vpop.f32.mrb[0].mxu0
        %v10327 = vadd.f32 %v9643, %v10326
        %10328 = vmatprep.mubr.bf16.mxu0 %v9387
        %10329 = vmatmul.mubr.bf16.gmra.mrb[0].mxu0 %v9386
        %v10330 = vpop.f32.mrb[0].mxu0
        %v10331 = vadd.f32 %v9639, %v10330
        %v10332 = vpop.f32.mrb[0].mxu0
        %v10333 = vadd.f32 %v9643, %v10332
        %v10334 = vpop.f32.mrb[0].mxu0
        %v10335 = vadd.f32 %v9639, %v10334
        %v10336 = vpop.f32.mrb[0].mxu0
        %v10337 = vadd.f32 %v9643, %v10336
        %10338 = vmatprep.mubr.bf16.mxu0 %v9395
        %10339 = vmatmul.mubr.bf16.gmra.mrb[0].mxu0 %v9394
        %v10340 = vpop.f32.mrb[0].mxu0
        %v10341 = vadd.f32 %v9639, %v10340
        %v10342 = vpop.f32.mrb[0].mxu0
        %v10343 = vadd.f32 %v9643, %v10342
        %v10344 = vpop.f32.mrb[0].mxu0
        %v10345 = vadd.f32 %v9639, %v10344
        %v10346 = vpop.f32.mrb[0].mxu0
        %v10347 = vadd.f32 %v9643, %v10346
        %10348 = vmatprep.mubr.bf16.mxu0 %v9403
        %10349 = vmatmul.mubr.bf16.gmra.mrb[0].mxu0 %v9402
        %v10350 = vpop.f32.mrb[0].mxu0
        %v10351 = vadd.f32 %v9639, %v10350
        %v10352 = vpop.f32.mrb[0].mxu0
        %v10353 = vadd.f32 %v9643, %v10352
        %v10354 = vpop.f32.mrb[0].mxu0
        %v10355 = vadd.f32 %v9639, %v10354
        %v10356 = vpop.f32.mrb[0].mxu0
        %v10357 = vadd.f32 %v9643, %v10356
        %10358 = vmatprep.mubr.bf16.mxu0 %v9411
        %10359 = vmatmul.mubr.bf16.gmra.mrb[0].mxu0 %v9410
        %v10360 = vpop.f32.mrb[0].mxu0
        %v10361 = vadd.f32 %v9639, %v10360
        %v10362 = vpop.f32.mrb[0].mxu0
        %v10363 = vadd.f32 %v9643, %v10362
        %v10364 = vpop.f32.mrb[0].mxu0
        %v10365 = vadd.f32 %v9639, %v10364
        %v10366 = vpop.f32.mrb[0].mxu0
        %v10367 = vadd.f32 %v9643, %v10366
        %10368 = vmatprep.mubr.bf16.mxu0 %v9419
        %10369 = vmatmul.mubr.bf16.gmra.mrb[0].mxu0 %v9418
        %v10370 = vpop.f32.mrb[0].mxu0
        %v10371 = vadd.f32 %v9639, %v10370
        %v10372 = vpop.f32.mrb[0].mxu0
        %v10373 = vadd.f32 %v9643, %v10372
        %v10374 = vpop.f32.mrb[0].mxu0
        %v10375 = vadd.f32 %v9639, %v10374
        %v10376 = vpop.f32.mrb[0].mxu0
        %v10377 = vadd.f32 %v9643, %v10376
        %10378 = vmatprep.mubr.bf16.mxu0 %v9427
        %10379 = vmatmul.mubr.bf16.gmra.mrb[0].mxu0 %v9426
        %v10380 = vpop.f32.mrb[0].mxu0
        %v10381 = vadd.f32 %v9639, %v10380
        %v10382 = vpop.f32.mrb[0].mxu0
        %v10383 = vadd.f32 %v9643, %v10382
        %v10384 = vpop.f32.mrb[0].mxu0
        %v10385 = vadd.f32 %v9639, %v10384
        %v10386 = vpop.f32.mrb[0].mxu0
        %v10387 = vadd.f32 %v9643, %v10386
        %10388 = vmatprep.mubr.bf16.mxu0 %v9435
        %10389 = vmatmul.mubr.bf16.gmra.mrb[0].mxu0 %v9434
        %v10390 = vpop.f32.mrb[0].mxu0
        %v10391 = vadd.f32 %v9639, %v10390
        %v10392 = vpop.f32.mrb[0].mxu0
        %v10393 = vadd.f32 %v9643, %v10392
        %v10394 = vpop.f32.mrb[0].mxu0
        %v10395 = vadd.f32 %v9639, %v10394
        %v10396 = vpop.f32.mrb[0].mxu0
        %v10397 = vadd.f32 %v9643, %v10396
        %10398 = vmatprep.mubr.bf16.mxu0 %v9443
        %10399 = vmatmul.mubr.bf16.gmra.mrb[0].mxu0 %v9442
        %v10400 = vpop.f32.mrb[0].mxu0
        %v10401 = vadd.f32 %v9639, %v10400
        %v10402 = vpop.f32.mrb[0].mxu0
        %v10403 = vadd.f32 %v9643, %v10402
        %v10404 = vpop.f32.mrb[0].mxu0
        %v10405 = vadd.f32 %v9639, %v10404
        %v10406 = vpop.f32.mrb[0].mxu0
        %v10407 = vadd.f32 %v9643, %v10406
        %10408 = vmatprep.mubr.bf16.mxu0 %v9451
        %10409 = vmatmul.mubr.bf16.gmra.mrb[0].mxu0 %v9450
        %v10410 = vpop.f32.mrb[0].mxu0
        %v10411 = vadd.f32 %v9639, %v10410
        %v10412 = vpop.f32.mrb[0].mxu0
        %v10413 = vadd.f32 %v9643, %v10412
        %v10414 = vpop.f32.mrb[0].mxu0
        %v10415 = vadd.f32 %v9639, %v10414
        %v10416 = vpop.f32.mrb[0].mxu0
        %v10417 = vadd.f32 %v9643, %v10416
        %10418 = vmatprep.mubr.bf16.mxu0 %v9459
        %10419 = vmatmul.mubr.bf16.gmra.mrb[0].mxu0 %v9458
        %v10420 = vpop.f32.mrb[0].mxu0
        %v10421 = vadd.f32 %v9639, %v10420
        %v10422 = vpop.f32.mrb[0].mxu0
        %v10423 = vadd.f32 %v9643, %v10422
        %v10424 = vpop.f32.mrb[0].mxu0
        %v10425 = vadd.f32 %v9639, %v10424
        %v10426 = vpop.f32.mrb[0].mxu0
        %v10427 = vadd.f32 %v9643, %v10426
        %10428 = vmatprep.mubr.bf16.mxu0 %v9467
        %10429 = vmatmul.mubr.bf16.gmra.mrb[0].mxu0 %v9466
        %v10430 = vpop.f32.mrb[0].mxu0
        %v10431 = vadd.f32 %v9639, %v10430
        %v10432 = vpop.f32.mrb[0].mxu0
        %v10433 = vadd.f32 %v9643, %v10432
        %v10434 = vpop.f32.mrb[0].mxu0
        %v10435 = vadd.f32 %v9639, %v10434
        %v10436 = vpop.f32.mrb[0].mxu0
        %v10437 = vadd.f32 %v9643, %v10436
        %10438 = vmatprep.mubr.bf16.mxu0 %v9475
        %10439 = vmatmul.mubr.bf16.gmra.mrb[0].mxu0 %v9474
        %v10440 = vpop.f32.mrb[0].mxu0
        %v10441 = vadd.f32 %v9639, %v10440
        %v10442 = vpop.f32.mrb[0].mxu0
        %v10443 = vadd.f32 %v9643, %v10442
        %v10444 = vpop.f32.mrb[0].mxu0
        %v10445 = vadd.f32 %v9639, %v10444
        %v10446 = vpop.f32.mrb[0].mxu0
        %v10447 = vadd.f32 %v9643, %v10446
        %10448 = vmatprep.mubr.bf16.mxu0 %v9483
        %10449 = vmatmul.mubr.bf16.gmra.mrb[0].mxu0 %v9482
        %v10450 = vpop.f32.mrb[0].mxu0
        %v10451 = vadd.f32 %v9639, %v10450
        %v10452 = vpop.f32.mrb[0].mxu0
        %v10453 = vadd.f32 %v9643, %v10452
        %v10454 = vpop.f32.mrb[0].mxu0
        %v10455 = vadd.f32 %v9639, %v10454
        %v10456 = vpop.f32.mrb[0].mxu0
        %v10457 = vadd.f32 %v9643, %v10456
        %10458 = vmatprep.mubr.bf16.mxu0 %v9491
        %10459 = vmatmul.mubr.bf16.gmra.mrb[0].mxu0 %v9490
        %v10460 = vpop.f32.mrb[0].mxu0
        %v10461 = vadd.f32 %v9639, %v10460
        %v10462 = vpop.f32.mrb[0].mxu0
        %v10463 = vadd.f32 %v9643, %v10462
        %v10464 = vpop.f32.mrb[0].mxu0
        %v10465 = vadd.f32 %v9639, %v10464
        %v10466 = vpop.f32.mrb[0].mxu0
        %v10467 = vadd.f32 %v9643, %v10466
        %10468 = vmatprep.mubr.bf16.mxu0 %v9499
        %10469 = vmatmul.mubr.bf16.gmra.mrb[0].mxu0 %v9498
        %v10470 = vpop.f32.mrb[0].mxu0
        %v10471 = vadd.f32 %v9639, %v10470
        %v10472 = vpop.f32.mrb[0].mxu0
        %v10473 = vadd.f32 %v9643, %v10472
        %v10474 = vpop.f32.mrb[0].mxu0
        %v10475 = vadd.f32 %v9639, %v10474
        %v10476 = vpop.f32.mrb[0].mxu0
        %v10477 = vadd.f32 %v9643, %v10476
        %10478 = vdwg.mxu0
        %10479 = vmatprep.subr.bf16.mxu0 %v10063
        %10480 = vmatpush1.bf16.msra.mxu0 %v10062
        %10481 = vmatprep.subr.bf16.mxu0 %v10065
        %10482 = vmatpush1.bf16.msra.mxu0 %v10064
        %10483 = vmatprep.subr.bf16.mxu0 %v10067
        %10484 = vmatpush1.bf16.msra.mxu0 %v10066
        %10485 = vmatprep.subr.bf16.mxu0 %v10069
        %10486 = vmatpush1.bf16.msra.mxu0 %v10068
        %10487 = vmatprep.subr.bf16.mxu0 %v10071
        %10488 = vmatpush1.bf16.msra.mxu0 %v10070
        %10489 = vmatprep.subr.bf16.mxu0 %v10073
        %10490 = vmatpush1.bf16.msra.mxu0 %v10072
        %10491 = vmatprep.subr.bf16.mxu0 %v10075
        %10492 = vmatpush1.bf16.msra.mxu0 %v10074
        %10493 = vmatprep.subr.bf16.mxu0 %v10077
        %10494 = vmatpush1.bf16.msra.mxu0 %v10076
        %10495 = vmatprep.subr.bf16.mxu0 %v10079
        %10496 = vmatpush1.bf16.msra.mxu0 %v10078
        %10497 = vmatprep.subr.bf16.mxu0 %v10081
        %10498 = vmatpush1.bf16.msra.mxu0 %v10080
        %10499 = vmatprep.subr.bf16.mxu0 %v10083
        %10500 = vmatpush1.bf16.msra.mxu0 %v10082
        %10501 = vmatprep.subr.bf16.mxu0 %v10085
        %10502 = vmatpush1.bf16.msra.mxu0 %v10084
        %10503 = vmatprep.subr.bf16.mxu0 %v10087
        %10504 = vmatpush1.bf16.msra.mxu0 %v10086
        %10505 = vmatprep.subr.bf16.mxu0 %v10089
        %10506 = vmatpush1.bf16.msra.mxu0 %v10088
        %10507 = vmatprep.subr.bf16.mxu0 %v10091
        %10508 = vmatpush1.bf16.msra.mxu0 %v10090
        %10509 = vmatprep.subr.bf16.mxu0 %v10093
        %10510 = vmatpush1.bf16.msra.mxu0 %v10092
        %10511 = vmatprep.mubr.bf16.mxu0 %v9381
        %10512 = vmatmul.mubr.bf16.gmra.mrb[0].mxu0 %v9380
        %v10513 = vpop.f32.mrb[0].mxu0
        %v10514 = vadd.f32 %v10321, %v10513
        %v10515 = vpop.f32.mrb[0].mxu0
        %v10516 = vadd.f32 %v10323, %v10515
        %v10517 = vpop.f32.mrb[0].mxu0
        %v10518 = vadd.f32 %v10325, %v10517
        %v10519 = vpop.f32.mrb[0].mxu0
        %v10520 = vadd.f32 %v10327, %v10519
        %10521 = vmatprep.mubr.bf16.mxu0 %v9389
        %10522 = vmatmul.mubr.bf16.gmra.mrb[0].mxu0 %v9388
        %v10523 = vpop.f32.mrb[0].mxu0
        %v10524 = vadd.f32 %v10331, %v10523
        %v10525 = vpop.f32.mrb[0].mxu0
        %v10526 = vadd.f32 %v10333, %v10525
        %v10527 = vpop.f32.mrb[0].mxu0
        %v10528 = vadd.f32 %v10335, %v10527
        %v10529 = vpop.f32.mrb[0].mxu0
        %v10530 = vadd.f32 %v10337, %v10529
        %10531 = vmatprep.mubr.bf16.mxu0 %v9397
        %10532 = vmatmul.mubr.bf16.gmra.mrb[0].mxu0 %v9396
        %v10533 = vpop.f32.mrb[0].mxu0
        %v10534 = vadd.f32 %v10341, %v10533
        %v10535 = vpop.f32.mrb[0].mxu0
        %v10536 = vadd.f32 %v10343, %v10535
        %v10537 = vpop.f32.mrb[0].mxu0
        %v10538 = vadd.f32 %v10345, %v10537
        %v10539 = vpop.f32.mrb[0].mxu0
        %v10540 = vadd.f32 %v10347, %v10539
        %10541 = vmatprep.mubr.bf16.mxu0 %v9405
        %10542 = vmatmul.mubr.bf16.gmra.mrb[0].mxu0 %v9404
        %v10543 = vpop.f32.mrb[0].mxu0
        %v10544 = vadd.f32 %v10351, %v10543
        %v10545 = vpop.f32.mrb[0].mxu0
        %v10546 = vadd.f32 %v10353, %v10545
        %v10547 = vpop.f32.mrb[0].mxu0
        %v10548 = vadd.f32 %v10355, %v10547
        %v10549 = vpop.f32.mrb[0].mxu0
        %v10550 = vadd.f32 %v10357, %v10549
        %10551 = vmatprep.mubr.bf16.mxu0 %v9413
        %10552 = vmatmul.mubr.bf16.gmra.mrb[0].mxu0 %v9412
        %v10553 = vpop.f32.mrb[0].mxu0
        %v10554 = vadd.f32 %v10361, %v10553
        %v10555 = vpop.f32.mrb[0].mxu0
        %v10556 = vadd.f32 %v10363, %v10555
        %v10557 = vpop.f32.mrb[0].mxu0
        %v10558 = vadd.f32 %v10365, %v10557
        %v10559 = vpop.f32.mrb[0].mxu0
        %v10560 = vadd.f32 %v10367, %v10559
        %10561 = vmatprep.mubr.bf16.mxu0 %v9421
        %10562 = vmatmul.mubr.bf16.gmra.mrb[0].mxu0 %v9420
        %v10563 = vpop.f32.mrb[0].mxu0
        %v10564 = vadd.f32 %v10371, %v10563
        %v10565 = vpop.f32.mrb[0].mxu0
        %v10566 = vadd.f32 %v10373, %v10565
        %v10567 = vpop.f32.mrb[0].mxu0
        %v10568 = vadd.f32 %v10375, %v10567
        %v10569 = vpop.f32.mrb[0].mxu0
        %v10570 = vadd.f32 %v10377, %v10569
        %10571 = vmatprep.mubr.bf16.mxu0 %v9429
        %10572 = vmatmul.mubr.bf16.gmra.mrb[0].mxu0 %v9428
        %v10573 = vpop.f32.mrb[0].mxu0
        %v10574 = vadd.f32 %v10381, %v10573
        %v10575 = vpop.f32.mrb[0].mxu0
        %v10576 = vadd.f32 %v10383, %v10575
        %v10577 = vpop.f32.mrb[0].mxu0
        %v10578 = vadd.f32 %v10385, %v10577
        %v10579 = vpop.f32.mrb[0].mxu0
        %v10580 = vadd.f32 %v10387, %v10579
        %10581 = vmatprep.mubr.bf16.mxu0 %v9437
        %10582 = vmatmul.mubr.bf16.gmra.mrb[0].mxu0 %v9436
        %v10583 = vpop.f32.mrb[0].mxu0
        %v10584 = vadd.f32 %v10391, %v10583
        %v10585 = vpop.f32.mrb[0].mxu0
        %v10586 = vadd.f32 %v10393, %v10585
        %v10587 = vpop.f32.mrb[0].mxu0
        %v10588 = vadd.f32 %v10395, %v10587
        %v10589 = vpop.f32.mrb[0].mxu0
        %v10590 = vadd.f32 %v10397, %v10589
        %10591 = vmatprep.mubr.bf16.mxu0 %v9445
        %10592 = vmatmul.mubr.bf16.gmra.mrb[0].mxu0 %v9444
        %v10593 = vpop.f32.mrb[0].mxu0
        %v10594 = vadd.f32 %v10401, %v10593
        %v10595 = vpop.f32.mrb[0].mxu0
        %v10596 = vadd.f32 %v10403, %v10595
        %v10597 = vpop.f32.mrb[0].mxu0
        %v10598 = vadd.f32 %v10405, %v10597
        %v10599 = vpop.f32.mrb[0].mxu0
        %v10600 = vadd.f32 %v10407, %v10599
        %10601 = vmatprep.mubr.bf16.mxu0 %v9453
        %10602 = vmatmul.mubr.bf16.gmra.mrb[0].mxu0 %v9452
        %v10603 = vpop.f32.mrb[0].mxu0
        %v10604 = vadd.f32 %v10411, %v10603
        %v10605 = vpop.f32.mrb[0].mxu0
        %v10606 = vadd.f32 %v10413, %v10605
        %v10607 = vpop.f32.mrb[0].mxu0
        %v10608 = vadd.f32 %v10415, %v10607
        %v10609 = vpop.f32.mrb[0].mxu0
        %v10610 = vadd.f32 %v10417, %v10609
        %10611 = vmatprep.mubr.bf16.mxu0 %v9461
        %10612 = vmatmul.mubr.bf16.gmra.mrb[0].mxu0 %v9460
        %v10613 = vpop.f32.mrb[0].mxu0
        %v10614 = vadd.f32 %v10421, %v10613
        %v10615 = vpop.f32.mrb[0].mxu0
        %v10616 = vadd.f32 %v10423, %v10615
        %v10617 = vpop.f32.mrb[0].mxu0
        %v10618 = vadd.f32 %v10425, %v10617
        %v10619 = vpop.f32.mrb[0].mxu0
        %v10620 = vadd.f32 %v10427, %v10619
        %10621 = vmatprep.mubr.bf16.mxu0 %v9469
        %10622 = vmatmul.mubr.bf16.gmra.mrb[0].mxu0 %v9468
        %v10623 = vpop.f32.mrb[0].mxu0
        %v10624 = vadd.f32 %v10431, %v10623
        %v10625 = vpop.f32.mrb[0].mxu0
        %v10626 = vadd.f32 %v10433, %v10625
        %v10627 = vpop.f32.mrb[0].mxu0
        %v10628 = vadd.f32 %v10435, %v10627
        %v10629 = vpop.f32.mrb[0].mxu0
        %v10630 = vadd.f32 %v10437, %v10629
        %10631 = vmatprep.mubr.bf16.mxu0 %v9477
        %10632 = vmatmul.mubr.bf16.gmra.mrb[0].mxu0 %v9476
        %v10633 = vpop.f32.mrb[0].mxu0
        %v10634 = vadd.f32 %v10441, %v10633
        %v10635 = vpop.f32.mrb[0].mxu0
        %v10636 = vadd.f32 %v10443, %v10635
        %v10637 = vpop.f32.mrb[0].mxu0
        %v10638 = vadd.f32 %v10445, %v10637
        %v10639 = vpop.f32.mrb[0].mxu0
        %v10640 = vadd.f32 %v10447, %v10639
        %10641 = vmatprep.mubr.bf16.mxu0 %v9485
        %10642 = vmatmul.mubr.bf16.gmra.mrb[0].mxu0 %v9484
        %v10643 = vpop.f32.mrb[0].mxu0
        %v10644 = vadd.f32 %v10451, %v10643
        %v10645 = vpop.f32.mrb[0].mxu0
        %v10646 = vadd.f32 %v10453, %v10645
        %v10647 = vpop.f32.mrb[0].mxu0
        %v10648 = vadd.f32 %v10455, %v10647
        %v10649 = vpop.f32.mrb[0].mxu0
        %v10650 = vadd.f32 %v10457, %v10649
        %10651 = vmatprep.mubr.bf16.mxu0 %v9493
        %10652 = vmatmul.mubr.bf16.gmra.mrb[0].mxu0 %v9492
        %v10653 = vpop.f32.mrb[0].mxu0
        %v10654 = vadd.f32 %v10461, %v10653
        %v10655 = vpop.f32.mrb[0].mxu0
        %v10656 = vadd.f32 %v10463, %v10655
        %v10657 = vpop.f32.mrb[0].mxu0
        %v10658 = vadd.f32 %v10465, %v10657
        %v10659 = vpop.f32.mrb[0].mxu0
        %v10660 = vadd.f32 %v10467, %v10659
        %10661 = vmatprep.mubr.bf16.mxu0 %v9501
        %10662 = vmatmul.mubr.bf16.gmra.mrb[0].mxu0 %v9500
        %v10663 = vpop.f32.mrb[0].mxu0
        %v10664 = vadd.f32 %v10471, %v10663
        %v10665 = vpop.f32.mrb[0].mxu0
        %v10666 = vadd.f32 %v10473, %v10665
        %v10667 = vpop.f32.mrb[0].mxu0
        %v10668 = vadd.f32 %v10475, %v10667
        %v10669 = vpop.f32.mrb[0].mxu0
        %v10670 = vadd.f32 %v10477, %v10669
        %10671 = vdwg.mxu0
        %10672 = vmatprep.subr.bf16.mxu0 %v10095
        %10673 = vmatpush1.bf16.msra.mxu0 %v10094
        %10674 = vmatprep.subr.bf16.mxu0 %v10097
        %10675 = vmatpush1.bf16.msra.mxu0 %v10096
        %10676 = vmatprep.subr.bf16.mxu0 %v10099
        %10677 = vmatpush1.bf16.msra.mxu0 %v10098
        %10678 = vmatprep.subr.bf16.mxu0 %v10101
        %10679 = vmatpush1.bf16.msra.mxu0 %v10100
        %10680 = vmatprep.subr.bf16.mxu0 %v10103
        %10681 = vmatpush1.bf16.msra.mxu0 %v10102
        %10682 = vmatprep.subr.bf16.mxu0 %v10105
        %10683 = vmatpush1.bf16.msra.mxu0 %v10104
        %10684 = vmatprep.subr.bf16.mxu0 %v10107
        %10685 = vmatpush1.bf16.msra.mxu0 %v10106
        %10686 = vmatprep.subr.bf16.mxu0 %v10109
        %10687 = vmatpush1.bf16.msra.mxu0 %v10108
        %10688 = vmatprep.subr.bf16.mxu0 %v10111
        %10689 = vmatpush1.bf16.msra.mxu0 %v10110
        %10690 = vmatprep.subr.bf16.mxu0 %v10113
        %10691 = vmatpush1.bf16.msra.mxu0 %v10112
        %10692 = vmatprep.subr.bf16.mxu0 %v10115
        %10693 = vmatpush1.bf16.msra.mxu0 %v10114
        %10694 = vmatprep.subr.bf16.mxu0 %v10117
        %10695 = vmatpush1.bf16.msra.mxu0 %v10116
        %10696 = vmatprep.subr.bf16.mxu0 %v10119
        %10697 = vmatpush1.bf16.msra.mxu0 %v10118
        %10698 = vmatprep.subr.bf16.mxu0 %v10121
        %10699 = vmatpush1.bf16.msra.mxu0 %v10120
        %10700 = vmatprep.subr.bf16.mxu0 %v10123
        %10701 = vmatpush1.bf16.msra.mxu0 %v10122
        %10702 = vmatprep.subr.bf16.mxu0 %v10125
        %10703 = vmatpush1.bf16.msra.mxu0 %v10124
        %10704 = vmatprep.mubr.bf16.mxu0 %v9383
        %10705 = vmatmul.mubr.bf16.gmra.mrb[0].mxu0 %v9382
        %v10706 = vpop.f32.mrb[0].mxu0
        %v10707 = vadd.f32 %v10514, %v10706
        %v10708 = vpop.f32.mrb[0].mxu0
        %v10709 = vadd.f32 %v10516, %v10708
        %v10710 = vpop.f32.mrb[0].mxu0
        %v10711 = vadd.f32 %v10518, %v10710
        %v10712 = vpop.f32.mrb[0].mxu0
        %v10713 = vadd.f32 %v10520, %v10712
        %10714 = vmatprep.mubr.bf16.mxu0 %v9391
        %10715 = vmatmul.mubr.bf16.gmra.mrb[0].mxu0 %v9390
        %v10716 = vpop.f32.mrb[0].mxu0
        %v10717 = vadd.f32 %v10524, %v10716
        %v10718 = vpop.f32.mrb[0].mxu0
        %v10719 = vadd.f32 %v10526, %v10718
        %v10720 = vpop.f32.mrb[0].mxu0
        %v10721 = vadd.f32 %v10528, %v10720
        %v10722 = vpop.f32.mrb[0].mxu0
        %v10723 = vadd.f32 %v10530, %v10722
        %10724 = vmatprep.mubr.bf16.mxu0 %v9399
        %10725 = vmatmul.mubr.bf16.gmra.mrb[0].mxu0 %v9398
        %v10726 = vpop.f32.mrb[0].mxu0
        %v10727 = vadd.f32 %v10534, %v10726
        %v10728 = vpop.f32.mrb[0].mxu0
        %v10729 = vadd.f32 %v10536, %v10728
        %v10730 = vpop.f32.mrb[0].mxu0
        %v10731 = vadd.f32 %v10538, %v10730
        %v10732 = vpop.f32.mrb[0].mxu0
        %v10733 = vadd.f32 %v10540, %v10732
        %10734 = vmatprep.mubr.bf16.mxu0 %v9407
        %10735 = vmatmul.mubr.bf16.gmra.mrb[0].mxu0 %v9406
        %v10736 = vpop.f32.mrb[0].mxu0
        %v10737 = vadd.f32 %v10544, %v10736
        %v10738 = vpop.f32.mrb[0].mxu0
        %v10739 = vadd.f32 %v10546, %v10738
        %v10740 = vpop.f32.mrb[0].mxu0
        %v10741 = vadd.f32 %v10548, %v10740
        %v10742 = vpop.f32.mrb[0].mxu0
        %v10743 = vadd.f32 %v10550, %v10742
        %10744 = vmatprep.mubr.bf16.mxu0 %v9415
        %10745 = vmatmul.mubr.bf16.gmra.mrb[0].mxu0 %v9414
        %v10746 = vpop.f32.mrb[0].mxu0
        %v10747 = vadd.f32 %v10554, %v10746
        %v10748 = vpop.f32.mrb[0].mxu0
        %v10749 = vadd.f32 %v10556, %v10748
        %v10750 = vpop.f32.mrb[0].mxu0
        %v10751 = vadd.f32 %v10558, %v10750
        %v10752 = vpop.f32.mrb[0].mxu0
        %v10753 = vadd.f32 %v10560, %v10752
        %10754 = vmatprep.mubr.bf16.mxu0 %v9423
        %10755 = vmatmul.mubr.bf16.gmra.mrb[0].mxu0 %v9422
        %v10756 = vpop.f32.mrb[0].mxu0
        %v10757 = vadd.f32 %v10564, %v10756
        %v10758 = vpop.f32.mrb[0].mxu0
        %v10759 = vadd.f32 %v10566, %v10758
        %v10760 = vpop.f32.mrb[0].mxu0
        %v10761 = vadd.f32 %v10568, %v10760
        %v10762 = vpop.f32.mrb[0].mxu0
        %v10763 = vadd.f32 %v10570, %v10762
        %10764 = vmatprep.mubr.bf16.mxu0 %v9431
        %10765 = vmatmul.mubr.bf16.gmra.mrb[0].mxu0 %v9430
        %v10766 = vpop.f32.mrb[0].mxu0
        %v10767 = vadd.f32 %v10574, %v10766
        %v10768 = vpop.f32.mrb[0].mxu0
        %v10769 = vadd.f32 %v10576, %v10768
        %v10770 = vpop.f32.mrb[0].mxu0
        %v10771 = vadd.f32 %v10578, %v10770
        %v10772 = vpop.f32.mrb[0].mxu0
        %v10773 = vadd.f32 %v10580, %v10772
        %10774 = vmatprep.mubr.bf16.mxu0 %v9439
        %10775 = vmatmul.mubr.bf16.gmra.mrb[0].mxu0 %v9438
        %v10776 = vpop.f32.mrb[0].mxu0
        %v10777 = vadd.f32 %v10584, %v10776
        %v10778 = vpop.f32.mrb[0].mxu0
        %v10779 = vadd.f32 %v10586, %v10778
        %v10780 = vpop.f32.mrb[0].mxu0
        %v10781 = vadd.f32 %v10588, %v10780
        %v10782 = vpop.f32.mrb[0].mxu0
        %v10783 = vadd.f32 %v10590, %v10782
        %10784 = vmatprep.mubr.bf16.mxu0 %v9447
        %10785 = vmatmul.mubr.bf16.gmra.mrb[0].mxu0 %v9446
        %v10786 = vpop.f32.mrb[0].mxu0
        %v10787 = vadd.f32 %v10594, %v10786
        %v10788 = vpop.f32.mrb[0].mxu0
        %v10789 = vadd.f32 %v10596, %v10788
        %v10790 = vpop.f32.mrb[0].mxu0
        %v10791 = vadd.f32 %v10598, %v10790
        %v10792 = vpop.f32.mrb[0].mxu0
        %v10793 = vadd.f32 %v10600, %v10792
        %10794 = vmatprep.mubr.bf16.mxu0 %v9455
        %10795 = vmatmul.mubr.bf16.gmra.mrb[0].mxu0 %v9454
        %v10796 = vpop.f32.mrb[0].mxu0
        %v10797 = vadd.f32 %v10604, %v10796
        %v10798 = vpop.f32.mrb[0].mxu0
        %v10799 = vadd.f32 %v10606, %v10798
        %v10800 = vpop.f32.mrb[0].mxu0
        %v10801 = vadd.f32 %v10608, %v10800
        %v10802 = vpop.f32.mrb[0].mxu0
        %v10803 = vadd.f32 %v10610, %v10802
        %10804 = vmatprep.mubr.bf16.mxu0 %v9463
        %10805 = vmatmul.mubr.bf16.gmra.mrb[0].mxu0 %v9462
        %v10806 = vpop.f32.mrb[0].mxu0
        %v10807 = vadd.f32 %v10614, %v10806
        %v10808 = vpop.f32.mrb[0].mxu0
        %v10809 = vadd.f32 %v10616, %v10808
        %v10810 = vpop.f32.mrb[0].mxu0
        %v10811 = vadd.f32 %v10618, %v10810
        %v10812 = vpop.f32.mrb[0].mxu0
        %v10813 = vadd.f32 %v10620, %v10812
        %10814 = vmatprep.mubr.bf16.mxu0 %v9471
        %10815 = vmatmul.mubr.bf16.gmra.mrb[0].mxu0 %v9470
        %v10816 = vpop.f32.mrb[0].mxu0
        %v10817 = vadd.f32 %v10624, %v10816
        %v10818 = vpop.f32.mrb[0].mxu0
        %v10819 = vadd.f32 %v10626, %v10818
        %v10820 = vpop.f32.mrb[0].mxu0
        %v10821 = vadd.f32 %v10628, %v10820
        %v10822 = vpop.f32.mrb[0].mxu0
        %v10823 = vadd.f32 %v10630, %v10822
        %10824 = vmatprep.mubr.bf16.mxu0 %v9479
        %10825 = vmatmul.mubr.bf16.gmra.mrb[0].mxu0 %v9478
        %v10826 = vpop.f32.mrb[0].mxu0
        %v10827 = vadd.f32 %v10634, %v10826
        %v10828 = vpop.f32.mrb[0].mxu0
        %v10829 = vadd.f32 %v10636, %v10828
        %v10830 = vpop.f32.mrb[0].mxu0
        %v10831 = vadd.f32 %v10638, %v10830
        %v10832 = vpop.f32.mrb[0].mxu0
        %v10833 = vadd.f32 %v10640, %v10832
        %10834 = vmatprep.mubr.bf16.mxu0 %v9487
        %10835 = vmatmul.mubr.bf16.gmra.mrb[0].mxu0 %v9486
        %v10836 = vpop.f32.mrb[0].mxu0
        %v10837 = vadd.f32 %v10644, %v10836
        %v10838 = vpop.f32.mrb[0].mxu0
        %v10839 = vadd.f32 %v10646, %v10838
        %v10840 = vpop.f32.mrb[0].mxu0
        %v10841 = vadd.f32 %v10648, %v10840
        %v10842 = vpop.f32.mrb[0].mxu0
        %v10843 = vadd.f32 %v10650, %v10842
        %10844 = vmatprep.mubr.bf16.mxu0 %v9495
        %10845 = vmatmul.mubr.bf16.gmra.mrb[0].mxu0 %v9494
        %v10846 = vpop.f32.mrb[0].mxu0
        %v10847 = vadd.f32 %v10654, %v10846
        %v10848 = vpop.f32.mrb[0].mxu0
        %v10849 = vadd.f32 %v10656, %v10848
        %v10850 = vpop.f32.mrb[0].mxu0
        %v10851 = vadd.f32 %v10658, %v10850
        %v10852 = vpop.f32.mrb[0].mxu0
        %v10853 = vadd.f32 %v10660, %v10852
        %10854 = vmatprep.mubr.bf16.mxu0 %v9503
        %10855 = vmatmul.mubr.bf16.gmra.mrb[0].mxu0 %v9502
        %v10856 = vpop.f32.mrb[0].mxu0
        %v10857 = vadd.f32 %v10664, %v10856
        %v10858 = vpop.f32.mrb[0].mxu0
        %v10859 = vadd.f32 %v10666, %v10858
        %v10860 = vpop.f32.mrb[0].mxu0
        %v10861 = vadd.f32 %v10668, %v10860
        %v10862 = vpop.f32.mrb[0].mxu0
        %v10863 = vadd.f32 %v10670, %v10862
        %10864 = vdwg.mxu0
        %10865 = vmatprep.subr.bf16.mxu0 %v10127
        %10866 = vmatpush1.bf16.msra.mxu0 %v10126
        %10867 = vmatprep.subr.bf16.mxu0 %v10129
        %10868 = vmatpush1.bf16.msra.mxu0 %v10128
        %10869 = vmatprep.subr.bf16.mxu0 %v10131
        %10870 = vmatpush1.bf16.msra.mxu0 %v10130
        %10871 = vmatprep.subr.bf16.mxu0 %v10133
        %10872 = vmatpush1.bf16.msra.mxu0 %v10132
        %10873 = vmatprep.subr.bf16.mxu0 %v10135
        %10874 = vmatpush1.bf16.msra.mxu0 %v10134
        %10875 = vmatprep.subr.bf16.mxu0 %v10137
        %10876 = vmatpush1.bf16.msra.mxu0 %v10136
        %10877 = vmatprep.subr.bf16.mxu0 %v10139
        %10878 = vmatpush1.bf16.msra.mxu0 %v10138
        %10879 = vmatprep.subr.bf16.mxu0 %v10141
        %10880 = vmatpush1.bf16.msra.mxu0 %v10140
        %10881 = vmatprep.subr.bf16.mxu0 %v10143
        %10882 = vmatpush1.bf16.msra.mxu0 %v10142
        %10883 = vmatprep.subr.bf16.mxu0 %v10145
        %10884 = vmatpush1.bf16.msra.mxu0 %v10144
        %10885 = vmatprep.subr.bf16.mxu0 %v10147
        %10886 = vmatpush1.bf16.msra.mxu0 %v10146
        %10887 = vmatprep.subr.bf16.mxu0 %v10149
        %10888 = vmatpush1.bf16.msra.mxu0 %v10148
        %10889 = vmatprep.subr.bf16.mxu0 %v10151
        %10890 = vmatpush1.bf16.msra.mxu0 %v10150
        %10891 = vmatprep.subr.bf16.mxu0 %v10153
        %10892 = vmatpush1.bf16.msra.mxu0 %v10152
        %10893 = vmatprep.subr.bf16.mxu0 %v10155
        %10894 = vmatpush1.bf16.msra.mxu0 %v10154
        %10895 = vmatprep.subr.bf16.mxu0 %v10157
        %10896 = vmatpush1.bf16.msra.mxu0 %v10156
        %10897 = vmatprep.mubr.bf16.mxu0 %v9385
        %10898 = vmatmul.mubr.bf16.gmra.mrb[0].mxu0 %v9384
        %v10899 = vpop.f32.mrb[0].mxu0
        %v10900 = vadd.f32 %v10707, %v10899
        %v10901 = vpop.f32.mrb[0].mxu0
        %v10902 = vadd.f32 %v10709, %v10901
        %v10903 = vpop.f32.mrb[0].mxu0
        %v10904 = vadd.f32 %v10711, %v10903
        %v10905 = vpop.f32.mrb[0].mxu0
        %v10906 = vadd.f32 %v10713, %v10905
        %10907 = vmatprep.mubr.bf16.mxu0 %v9393
        %10908 = vmatmul.mubr.bf16.gmra.mrb[0].mxu0 %v9392
        %v10909 = vpop.f32.mrb[0].mxu0
        %v10910 = vadd.f32 %v10717, %v10909
        %v10911 = vpop.f32.mrb[0].mxu0
        %v10912 = vadd.f32 %v10719, %v10911
        %v10913 = vpop.f32.mrb[0].mxu0
        %v10914 = vadd.f32 %v10721, %v10913
        %v10915 = vpop.f32.mrb[0].mxu0
        %v10916 = vadd.f32 %v10723, %v10915
        %10917 = vmatprep.mubr.bf16.mxu0 %v9401
        %10918 = vmatmul.mubr.bf16.gmra.mrb[0].mxu0 %v9400
        %v10919 = vpop.f32.mrb[0].mxu0
        %v10920 = vadd.f32 %v10727, %v10919
        %v10921 = vpop.f32.mrb[0].mxu0
        %v10922 = vadd.f32 %v10729, %v10921
        %v10923 = vpop.f32.mrb[0].mxu0
        %v10924 = vadd.f32 %v10731, %v10923
        %v10925 = vpop.f32.mrb[0].mxu0
        %v10926 = vadd.f32 %v10733, %v10925
        %10927 = vmatprep.mubr.bf16.mxu0 %v9409
        %10928 = vmatmul.mubr.bf16.gmra.mrb[0].mxu0 %v9408
        %v10929 = vpop.f32.mrb[0].mxu0
        %v10930 = vadd.f32 %v10737, %v10929
        %v10931 = vpop.f32.mrb[0].mxu0
        %v10932 = vadd.f32 %v10739, %v10931
        %v10933 = vpop.f32.mrb[0].mxu0
        %v10934 = vadd.f32 %v10741, %v10933
        %v10935 = vpop.f32.mrb[0].mxu0
        %v10936 = vadd.f32 %v10743, %v10935
        %10937 = vmatprep.mubr.bf16.mxu0 %v9417
        %10938 = vmatmul.mubr.bf16.gmra.mrb[0].mxu0 %v9416
        %v10939 = vpop.f32.mrb[0].mxu0
        %v10940 = vadd.f32 %v10747, %v10939
        %v10941 = vpop.f32.mrb[0].mxu0
        %v10942 = vadd.f32 %v10749, %v10941
        %v10943 = vpop.f32.mrb[0].mxu0
        %v10944 = vadd.f32 %v10751, %v10943
        %v10945 = vpop.f32.mrb[0].mxu0
        %v10946 = vadd.f32 %v10753, %v10945
        %10947 = vmatprep.mubr.bf16.mxu0 %v9425
        %10948 = vmatmul.mubr.bf16.gmra.mrb[0].mxu0 %v9424
        %v10949 = vpop.f32.mrb[0].mxu0
        %v10950 = vadd.f32 %v10757, %v10949
        %v10951 = vpop.f32.mrb[0].mxu0
        %v10952 = vadd.f32 %v10759, %v10951
        %v10953 = vpop.f32.mrb[0].mxu0
        %v10954 = vadd.f32 %v10761, %v10953
        %v10955 = vpop.f32.mrb[0].mxu0
        %v10956 = vadd.f32 %v10763, %v10955
        %10957 = vmatprep.mubr.bf16.mxu0 %v9433
        %10958 = vmatmul.mubr.bf16.gmra.mrb[0].mxu0 %v9432
        %v10959 = vpop.f32.mrb[0].mxu0
        %v10960 = vadd.f32 %v10767, %v10959
        %v10961 = vpop.f32.mrb[0].mxu0
        %v10962 = vadd.f32 %v10769, %v10961
        %v10963 = vpop.f32.mrb[0].mxu0
        %v10964 = vadd.f32 %v10771, %v10963
        %v10965 = vpop.f32.mrb[0].mxu0
        %v10966 = vadd.f32 %v10773, %v10965
        %10967 = vmatprep.mubr.bf16.mxu0 %v9441
        %10968 = vmatmul.mubr.bf16.gmra.mrb[0].mxu0 %v9440
        %v10969 = vpop.f32.mrb[0].mxu0
        %v10970 = vadd.f32 %v10777, %v10969
        %v10971 = vpop.f32.mrb[0].mxu0
        %v10972 = vadd.f32 %v10779, %v10971
        %v10973 = vpop.f32.mrb[0].mxu0
        %v10974 = vadd.f32 %v10781, %v10973
        %v10975 = vpop.f32.mrb[0].mxu0
        %v10976 = vadd.f32 %v10783, %v10975
        %10977 = vmatprep.mubr.bf16.mxu0 %v9449
        %10978 = vmatmul.mubr.bf16.gmra.mrb[0].mxu0 %v9448
        %v10979 = vpop.f32.mrb[0].mxu0
        %v10980 = vadd.f32 %v10787, %v10979
        %v10981 = vpop.f32.mrb[0].mxu0
        %v10982 = vadd.f32 %v10789, %v10981
        %v10983 = vpop.f32.mrb[0].mxu0
        %v10984 = vadd.f32 %v10791, %v10983
        %v10985 = vpop.f32.mrb[0].mxu0
        %v10986 = vadd.f32 %v10793, %v10985
        %10987 = vmatprep.mubr.bf16.mxu0 %v9457
        %10988 = vmatmul.mubr.bf16.gmra.mrb[0].mxu0 %v9456
        %v10989 = vpop.f32.mrb[0].mxu0
        %v10990 = vadd.f32 %v10797, %v10989
        %v10991 = vpop.f32.mrb[0].mxu0
        %v10992 = vadd.f32 %v10799, %v10991
        %v10993 = vpop.f32.mrb[0].mxu0
        %v10994 = vadd.f32 %v10801, %v10993
        %v10995 = vpop.f32.mrb[0].mxu0
        %v10996 = vadd.f32 %v10803, %v10995
        %10997 = vmatprep.mubr.bf16.mxu0 %v9465
        %10998 = vmatmul.mubr.bf16.gmra.mrb[0].mxu0 %v9464
        %v10999 = vpop.f32.mrb[0].mxu0
        %v11000 = vadd.f32 %v10807, %v10999
        %v11001 = vpop.f32.mrb[0].mxu0
        %v11002 = vadd.f32 %v10809, %v11001
        %v11003 = vpop.f32.mrb[0].mxu0
        %v11004 = vadd.f32 %v10811, %v11003
        %v11005 = vpop.f32.mrb[0].mxu0
        %v11006 = vadd.f32 %v10813, %v11005
        %11007 = vmatprep.mubr.bf16.mxu0 %v9473
        %11008 = vmatmul.mubr.bf16.gmra.mrb[0].mxu0 %v9472
        %v11009 = vpop.f32.mrb[0].mxu0
        %v11010 = vadd.f32 %v10817, %v11009
        %v11011 = vpop.f32.mrb[0].mxu0
        %v11012 = vadd.f32 %v10819, %v11011
        %v11013 = vpop.f32.mrb[0].mxu0
        %v11014 = vadd.f32 %v10821, %v11013
        %v11015 = vpop.f32.mrb[0].mxu0
        %v11016 = vadd.f32 %v10823, %v11015
        %11017 = vmatprep.mubr.bf16.mxu0 %v9481
        %11018 = vmatmul.mubr.bf16.gmra.mrb[0].mxu0 %v9480
        %v11019 = vpop.f32.mrb[0].mxu0
        %v11020 = vadd.f32 %v10827, %v11019
        %v11021 = vpop.f32.mrb[0].mxu0
        %v11022 = vadd.f32 %v10829, %v11021
        %v11023 = vpop.f32.mrb[0].mxu0
        %v11024 = vadd.f32 %v10831, %v11023
        %v11025 = vpop.f32.mrb[0].mxu0
        %v11026 = vadd.f32 %v10833, %v11025
        %11027 = vmatprep.mubr.bf16.mxu0 %v9489
        %11028 = vmatmul.mubr.bf16.gmra.mrb[0].mxu0 %v9488
        %v11029 = vpop.f32.mrb[0].mxu0
        %v11030 = vadd.f32 %v10837, %v11029
        %v11031 = vpop.f32.mrb[0].mxu0
        %v11032 = vadd.f32 %v10839, %v11031
        %v11033 = vpop.f32.mrb[0].mxu0
        %v11034 = vadd.f32 %v10841, %v11033
        %v11035 = vpop.f32.mrb[0].mxu0
        %v11036 = vadd.f32 %v10843, %v11035
        %11037 = vmatprep.mubr.bf16.mxu0 %v9497
        %11038 = vmatmul.mubr.bf16.gmra.mrb[0].mxu0 %v9496
        %v11039 = vpop.f32.mrb[0].mxu0
        %v11040 = vadd.f32 %v10847, %v11039
        %v11041 = vpop.f32.mrb[0].mxu0
        %v11042 = vadd.f32 %v10849, %v11041
        %v11043 = vpop.f32.mrb[0].mxu0
        %v11044 = vadd.f32 %v10851, %v11043
        %v11045 = vpop.f32.mrb[0].mxu0
        %v11046 = vadd.f32 %v10853, %v11045
        %11047 = vmatprep.mubr.bf16.mxu0 %v9505
        %11048 = vmatmul.mubr.bf16.gmra.mrb[0].mxu0 %v9504
        %v11049 = vpop.f32.mrb[0].mxu0
        %v11050 = vadd.f32 %v10857, %v11049
        %v11051 = vpop.f32.mrb[0].mxu0
        %v11052 = vadd.f32 %v10859, %v11051
        %v11053 = vpop.f32.mrb[0].mxu0
        %v11054 = vadd.f32 %v10861, %v11053
        %v11055 = vpop.f32.mrb[0].mxu0
        %v11056 = vadd.f32 %v10863, %v11055
        %11057 = vdwg.mxu0
        %v11058 = vadd.f32 %v4732, %v10900
        %v11059 = vadd.f32 %v4733, %v10902
        %v11060 = vadd.f32 %v4734, %v10904
        %v11061 = vadd.f32 %v4735, %v10906
        %v11062 = vadd.f32 %v4736, %v10910
        %v11063 = vadd.f32 %v4737, %v10912
        %v11064 = vadd.f32 %v4738, %v10914
        %v11065 = vadd.f32 %v4739, %v10916
        %v11066 = vadd.f32 %v4740, %v10920
        %v11067 = vadd.f32 %v4741, %v10922
        %v11068 = vadd.f32 %v4742, %v10924
        %v11069 = vadd.f32 %v4743, %v10926
        %v11070 = vadd.f32 %v4744, %v10930
        %v11071 = vadd.f32 %v4745, %v10932
        %v11072 = vadd.f32 %v4746, %v10934
        %v11073 = vadd.f32 %v4747, %v10936
        %v11074 = vadd.f32 %v4748, %v10940
        %v11075 = vadd.f32 %v4749, %v10942
        %v11076 = vadd.f32 %v4750, %v10944
        %v11077 = vadd.f32 %v4751, %v10946
        %v11078 = vadd.f32 %v4752, %v10950
        %v11079 = vadd.f32 %v4753, %v10952
        %v11080 = vadd.f32 %v4754, %v10954
        %v11081 = vadd.f32 %v4755, %v10956
        %v11082 = vadd.f32 %v4756, %v10960
        %v11083 = vadd.f32 %v4757, %v10962
        %v11084 = vadd.f32 %v4758, %v10964
        %v11085 = vadd.f32 %v4759, %v10966
        %v11086 = vadd.f32 %v4760, %v10970
        %v11087 = vadd.f32 %v4761, %v10972
        %v11088 = vadd.f32 %v4762, %v10974
        %v11089 = vadd.f32 %v4763, %v10976
        %v11090 = vadd.f32 %v4764, %v10980
        %v11091 = vadd.f32 %v4765, %v10982
        %v11092 = vadd.f32 %v4766, %v10984
        %v11093 = vadd.f32 %v4767, %v10986
        %v11094 = vadd.f32 %v4768, %v10990
        %v11095 = vadd.f32 %v4769, %v10992
        %v11096 = vadd.f32 %v4770, %v10994
        %v11097 = vadd.f32 %v4771, %v10996
        %v11098 = vadd.f32 %v4772, %v11000
        %v11099 = vadd.f32 %v4773, %v11002
        %v11100 = vadd.f32 %v4774, %v11004
        %v11101 = vadd.f32 %v4775, %v11006
        %v11102 = vadd.f32 %v4776, %v11010
        %v11103 = vadd.f32 %v4777, %v11012
        %v11104 = vadd.f32 %v4778, %v11014
        %v11105 = vadd.f32 %v4779, %v11016
        %v11106 = vadd.f32 %v4780, %v11020
        %v11107 = vadd.f32 %v4781, %v11022
        %v11108 = vadd.f32 %v4782, %v11024
        %v11109 = vadd.f32 %v4783, %v11026
        %v11110 = vadd.f32 %v4784, %v11030
        %v11111 = vadd.f32 %v4785, %v11032
        %v11112 = vadd.f32 %v4786, %v11034
        %v11113 = vadd.f32 %v4787, %v11036
        %v11114 = vadd.f32 %v4788, %v11040
        %v11115 = vadd.f32 %v4789, %v11042
        %v11116 = vadd.f32 %v4790, %v11044
        %v11117 = vadd.f32 %v4791, %v11046
        %v11118 = vadd.f32 %v4792, %v11050
        %v11119 = vadd.f32 %v4793, %v11052
        %v11120 = vadd.f32 %v4794, %v11054
        %v11121 = vadd.f32 %v4795, %v11056
        %v11122 = vpack.c.bf16 %v11060, %v11058
        %v11123 = vpack.c.bf16 %v11061, %v11059
        %v11124 = vpack.c.bf16 %v11064, %v11062
        %v11125 = vpack.c.bf16 %v11065, %v11063
        %v11126 = vpack.c.bf16 %v11068, %v11066
        %v11127 = vpack.c.bf16 %v11069, %v11067
        %v11128 = vpack.c.bf16 %v11072, %v11070
        %v11129 = vpack.c.bf16 %v11073, %v11071
        %v11130 = vpack.c.bf16 %v11076, %v11074
        %v11131 = vpack.c.bf16 %v11077, %v11075
        %v11132 = vpack.c.bf16 %v11080, %v11078
        %v11133 = vpack.c.bf16 %v11081, %v11079
        %v11134 = vpack.c.bf16 %v11084, %v11082
        %v11135 = vpack.c.bf16 %v11085, %v11083
        %v11136 = vpack.c.bf16 %v11088, %v11086
        %v11137 = vpack.c.bf16 %v11089, %v11087
        %v11138 = vpack.c.bf16 %v11092, %v11090
        %v11139 = vpack.c.bf16 %v11093, %v11091
        %v11140 = vpack.c.bf16 %v11096, %v11094
        %v11141 = vpack.c.bf16 %v11097, %v11095
        %v11142 = vpack.c.bf16 %v11100, %v11098
        %v11143 = vpack.c.bf16 %v11101, %v11099
        %v11144 = vpack.c.bf16 %v11104, %v11102
        %v11145 = vpack.c.bf16 %v11105, %v11103
        %v11146 = vpack.c.bf16 %v11108, %v11106
        %v11147 = vpack.c.bf16 %v11109, %v11107
        %v11148 = vpack.c.bf16 %v11112, %v11110
        %v11149 = vpack.c.bf16 %v11113, %v11111
        %v11150 = vpack.c.bf16 %v11116, %v11114
        %v11151 = vpack.c.bf16 %v11117, %v11115
        %v11152 = vpack.c.bf16 %v11120, %v11118
        %v11153 = vpack.c.bf16 %v11121, %v11119
        %v11186 = vunpack.c.l.b16 %v11122
        %v11187 = vunpack.c.l.b16 %v11123
        %v11188 = vunpack.c.h.b16 %v11122
        %v11189 = vunpack.c.h.b16 %v11123
        %v11190 = vunpack.c.l.b16 %v11124
        %v11191 = vunpack.c.l.b16 %v11125
        %v11192 = vunpack.c.h.b16 %v11124
        %v11193 = vunpack.c.h.b16 %v11125
        %v11194 = vunpack.c.l.b16 %v11126
        %v11195 = vunpack.c.l.b16 %v11127
        %v11196 = vunpack.c.h.b16 %v11126
        %v11197 = vunpack.c.h.b16 %v11127
        %v11198 = vunpack.c.l.b16 %v11128
        %v11199 = vunpack.c.l.b16 %v11129
        %v11200 = vunpack.c.h.b16 %v11128
        %v11201 = vunpack.c.h.b16 %v11129
        %v11202 = vunpack.c.l.b16 %v11130
        %v11203 = vunpack.c.l.b16 %v11131
        %v11204 = vunpack.c.h.b16 %v11130
        %v11205 = vunpack.c.h.b16 %v11131
        %v11206 = vunpack.c.l.b16 %v11132
        %v11207 = vunpack.c.l.b16 %v11133
        %v11208 = vunpack.c.h.b16 %v11132
        %v11209 = vunpack.c.h.b16 %v11133
        %v11210 = vunpack.c.l.b16 %v11134
        %v11211 = vunpack.c.l.b16 %v11135
        %v11212 = vunpack.c.h.b16 %v11134
        %v11213 = vunpack.c.h.b16 %v11135
        %v11214 = vunpack.c.l.b16 %v11136
        %v11215 = vunpack.c.l.b16 %v11137
        %v11216 = vunpack.c.h.b16 %v11136
        %v11217 = vunpack.c.h.b16 %v11137
        %v11218 = vunpack.c.l.b16 %v11138
        %v11219 = vunpack.c.l.b16 %v11139
        %v11220 = vunpack.c.h.b16 %v11138
        %v11221 = vunpack.c.h.b16 %v11139
        %v11222 = vunpack.c.l.b16 %v11140
        %v11223 = vunpack.c.l.b16 %v11141
        %v11224 = vunpack.c.h.b16 %v11140
        %v11225 = vunpack.c.h.b16 %v11141
        %v11226 = vunpack.c.l.b16 %v11142
        %v11227 = vunpack.c.l.b16 %v11143
        %v11228 = vunpack.c.h.b16 %v11142
        %v11229 = vunpack.c.h.b16 %v11143
        %v11230 = vunpack.c.l.b16 %v11144
        %v11231 = vunpack.c.l.b16 %v11145
        %v11232 = vunpack.c.h.b16 %v11144
        %v11233 = vunpack.c.h.b16 %v11145
        %v11234 = vunpack.c.l.b16 %v11146
        %v11235 = vunpack.c.l.b16 %v11147
        %v11236 = vunpack.c.h.b16 %v11146
        %v11237 = vunpack.c.h.b16 %v11147
        %v11238 = vunpack.c.l.b16 %v11148
        %v11239 = vunpack.c.l.b16 %v11149
        %v11240 = vunpack.c.h.b16 %v11148
        %v11241 = vunpack.c.h.b16 %v11149
        %v11242 = vunpack.c.l.b16 %v11150
        %v11243 = vunpack.c.l.b16 %v11151
        %v11244 = vunpack.c.h.b16 %v11150
        %v11245 = vunpack.c.h.b16 %v11151
        %v11246 = vunpack.c.l.b16 %v11152
        %v11247 = vunpack.c.l.b16 %v11153
        %v11248 = vunpack.c.h.b16 %v11152
        %v11249 = vunpack.c.h.b16 %v11153
        %v11250 = vpack.c.b16 %v11187, %v11186
        %v11251 = vpack.c.b16 %v11189, %v11188
        %v11252 = vpack.c.b16 %v11191, %v11190
        %v11253 = vpack.c.b16 %v11193, %v11192
        %v11254 = vpack.c.b16 %v11195, %v11194
        %v11255 = vpack.c.b16 %v11197, %v11196
        %v11256 = vpack.c.b16 %v11199, %v11198
        %v11257 = vpack.c.b16 %v11201, %v11200
        %v11258 = vpack.c.b16 %v11203, %v11202
        %v11259 = vpack.c.b16 %v11205, %v11204
        %v11260 = vpack.c.b16 %v11207, %v11206
        %v11261 = vpack.c.b16 %v11209, %v11208
        %v11262 = vpack.c.b16 %v11211, %v11210
        %v11263 = vpack.c.b16 %v11213, %v11212
        %v11264 = vpack.c.b16 %v11215, %v11214
        %v11265 = vpack.c.b16 %v11217, %v11216
        %v11266 = vpack.c.b16 %v11219, %v11218
        %v11267 = vpack.c.b16 %v11221, %v11220
        %v11268 = vpack.c.b16 %v11223, %v11222
        %v11269 = vpack.c.b16 %v11225, %v11224
        %v11270 = vpack.c.b16 %v11227, %v11226
        %v11271 = vpack.c.b16 %v11229, %v11228
        %v11272 = vpack.c.b16 %v11231, %v11230
        %v11273 = vpack.c.b16 %v11233, %v11232
        %v11274 = vpack.c.b16 %v11235, %v11234
        %v11275 = vpack.c.b16 %v11237, %v11236
        %v11276 = vpack.c.b16 %v11239, %v11238
        %v11277 = vpack.c.b16 %v11241, %v11240
        %v11278 = vpack.c.b16 %v11243, %v11242
        %v11279 = vpack.c.b16 %v11245, %v11244
        %v11280 = vpack.c.b16 %v11247, %v11246
        %v11281 = vpack.c.b16 %v11249, %v11248
        %11314 = vst [vmem:[#allocation11] sm:$0xff] %v11250
        %11315 = vst [vmem:[#allocation11 + $0x8] sm:$0xff] %v11251
        %11316 = vst [vmem:[#allocation11 + $0x10] sm:$0xff] %v11252
        %11317 = vst [vmem:[#allocation11 + $0x18] sm:$0xff] %v11253
        %11318 = vst [vmem:[#allocation11 + $0x20] sm:$0xff] %v11254
        %11319 = vst [vmem:[#allocation11 + $0x28] sm:$0xff] %v11255
        %11320 = vst [vmem:[#allocation11 + $0x30] sm:$0xff] %v11256
        %11321 = vst [vmem:[#allocation11 + $0x38] sm:$0xff] %v11257
        %11322 = vst [vmem:[#allocation11 + $0x40] sm:$0xff] %v11258
        %11323 = vst [vmem:[#allocation11 + $0x48] sm:$0xff] %v11259
        %11324 = vst [vmem:[#allocation11 + $0x50] sm:$0xff] %v11260
        %11325 = vst [vmem:[#allocation11 + $0x58] sm:$0xff] %v11261
        %11326 = vst [vmem:[#allocation11 + $0x60] sm:$0xff] %v11262
        %11327 = vst [vmem:[#allocation11 + $0x68] sm:$0xff] %v11263
        %11328 = vst [vmem:[#allocation11 + $0x70] sm:$0xff] %v11264
        %11329 = vst [vmem:[#allocation11 + $0x78] sm:$0xff] %v11265
        %11330 = vst [vmem:[#allocation11 + $0x80] sm:$0xff] %v11266
        %11331 = vst [vmem:[#allocation11 + $0x88] sm:$0xff] %v11267
        %11332 = vst [vmem:[#allocation11 + $0x90] sm:$0xff] %v11268
        %11333 = vst [vmem:[#allocation11 + $0x98] sm:$0xff] %v11269
        %11334 = vst [vmem:[#allocation11 + $0xa0] sm:$0xff] %v11270
        %11335 = vst [vmem:[#allocation11 + $0xa8] sm:$0xff] %v11271
        %11336 = vst [vmem:[#allocation11 + $0xb0] sm:$0xff] %v11272
        %11337 = vst [vmem:[#allocation11 + $0xb8] sm:$0xff] %v11273
        %11338 = vst [vmem:[#allocation11 + $0xc0] sm:$0xff] %v11274
        %11339 = vst [vmem:[#allocation11 + $0xc8] sm:$0xff] %v11275
        %11340 = vst [vmem:[#allocation11 + $0xd0] sm:$0xff] %v11276
        %11341 = vst [vmem:[#allocation11 + $0xd8] sm:$0xff] %v11277
        %11342 = vst [vmem:[#allocation11 + $0xe0] sm:$0xff] %v11278
        %11343 = vst [vmem:[#allocation11 + $0xe8] sm:$0xff] %v11279
        %11344 = vst [vmem:[#allocation11 + $0xf0] sm:$0xff] %v11280
        %11345 = vst [vmem:[#allocation11 + $0xf8] sm:$0xff] %v11281
        // Predicated region
        $region89: #{hf_model_list_forward.1} parent=63 // pred_check
          %p11346 = pneg %p324
        $region90: #{hf_model_list_forward.1} parent=63 // pred_check_branch
          %11348 = sbr.rel (%p11346) target = $region92
        $region91: #{hf_model_list_forward.1} parent=63 // pred_region
          %s11350 = ssub.s32 4096, 4096
          %11351 = vsyncadd [#allocation4], %s11350
          %s11352 = sshll.u32 [#allocation11], 4
          %s11353 = int_to_ptr.vmem [resolvable:$true] %s11352
          %11358 = dma.vmem_to_hbm [thread:$0]  %s11353, 4096, %s11, [#allocation4], 128, 128, 8
        $region92: #{hf_model_list_forward.1} parent=63 // pred_fallthru
          _
        // Predicated region
        $region93: #{hf_model_list_forward.1} parent=63 // pred_check
          %p11359 = pneg %p324
        $region94: #{hf_model_list_forward.1} parent=63 // pred_check_branch
          %11361 = sbr.rel (%p11359) target = $region96
        $region95: #{hf_model_list_forward.1} parent=63 // pred_region
          %11362 = dma.done [#allocation4], 4096
        $region96: #{hf_model_list_forward.1} parent=63 // pred_fallthru
          _
      $region64: #{hf_model_list_forward.1} parent=5 // pred_fallthru
        _
      %p11363 = scmp.le.s32.totalorder 2, %s25
      // Predicated region
      $region97: #{hf_model_list_forward.1} parent=5 // pred_check
        %p11364 = pneg %p11363
      $region98: #{hf_model_list_forward.1} parent=5 // pred_check_branch
        %11366 = sbr.rel (%p11364) target = $region100
      $region99: #{hf_model_list_forward.1} parent=5 // pred_region
        %s11367 = ssub.s32 %s25, 2
      $region100: #{hf_model_list_forward.1} parent=5 // pred_fallthru
        _
    $region6: #{hf_model_list_forward.1} parent=1 // loop_footer
      %s29 = sadd.s32 1, %s25
    $region7: #{hf_model_list_forward.1} parent=1 // loop_footer_branch
      %24 = sbr.rel target = $region3
    $region8: #{hf_model_list_forward.1} parent=1 // loop_exit
      _
    %11368 = vsyncpa [#allocation3], 1
    %s11369 = scalar_lea.sflag [#allocation3], 1
    %11370 = vsyncpa %s11369, 1
    %11371 = vsyncpa [#allocation6], 1
    %s11372 = scalar_lea.sflag [#allocation6], 1
    %11373 = vsyncpa %s11372, 1
    %11374 = vsyncpa [#allocation9], 1
    %s11375 = scalar_lea.sflag [#allocation9], 1
    %11376 = vsyncpa %s11375, 1
    %11377 = vsyncpa [#allocation4], 1
    %s11378 = scalar_lea.sflag [#allocation4], 1
    %11379 = vsyncpa %s11378, 1

</llo_original>
